<compile_context>
chip_gen: v7x
topology: tpu7x:2x2x1
jax: 0.10.0
libtpu: 0.0.40
codegen_flags: <defaults>
</compile_context>

<pallas_src>
import jax
import jax.numpy as jnp
from jax.experimental import pallas as pl
from jax.experimental.pallas import tpu as pltpu

BN_EPS = 1e-5


def _depthwise3x3(x, w3):
    """3x3 depthwise conv, padding=1. x: (N,H,W,C) f32, w3: (3,3,C)."""
    N, H, W, C = x.shape
    zrow = jnp.zeros((N, 1, W, C), jnp.float32)
    xh = jnp.concatenate([zrow, x, zrow], axis=1)                  # (N,H+2,W,C)
    zcol = jnp.zeros((N, H + 2, 1, C), jnp.float32)
    # Hoisted kw (sublane) shifts: built once, reused by all three kh taps.
    xs = (jnp.concatenate([zcol, xh[:, :, :W - 1, :]], axis=2),    # reads col w-1
          xh,                                                      # reads col w
          jnp.concatenate([xh[:, :, 1:, :], zcol], axis=2))        # reads col w+1
    acc = jnp.zeros((N, H, W, C), jnp.float32)
    for kh in range(3):
        for kw in range(3):
            acc = acc + xs[kw][:, kh:kh + H, :, :] * w3[kh, kw, :]
    return acc


def _bn_relu(z, gamma, beta):
    """Training-mode BatchNorm (biased variance, one-pass stats) + ReLU.

    z: (M, C) f32, gamma/beta: (1, C).
    """
    inv_n = 1.0 / z.shape[0]
    mean = jnp.sum(z, axis=0, keepdims=True) * inv_n
    ex2 = jnp.sum(z * z, axis=0, keepdims=True) * inv_n
    var = jnp.maximum(ex2 - mean * mean, 0.0)
    scale = jax.lax.rsqrt(var + BN_EPS) * gamma                    # (1, C)
    shift = beta - mean * scale
    return jnp.maximum(z * scale + shift, 0.0)


def _single_block(x2d, nhw_dims, w3, g1, be1, w1_bf16, g2, be2):
    """One SingleUnitXblock on a (N*H*W, cin) f32 value; returns (N*H*W, cout)."""
    N, H, W = nhw_dims
    nhw, cin = x2d.shape
    cout = w3.shape[-1]
    m = cout // cin

    # --- channel expansion for groups=cin (output channel c reads input c//m),
    #     done in VMEM via a 0/1 matrix built with iota (no extra HBM traffic).
    if m > 1:
        row = jax.lax.broadcasted_iota(jnp.int32, (cin, cout), 0)
        col = jax.lax.broadcasted_iota(jnp.int32, (cin, cout), 1)
        lo = row * m
        expand = jnp.logical_and(col >= lo, col < lo + m).astype(jnp.float32)
        x2d = jnp.dot(x2d, expand, preferred_element_type=jnp.float32)

    x4 = x2d.reshape(N, H, W, cout)

    # --- grouped 3x3 conv (depthwise on the expanded channels), padding=1.
    #     Conv bias omitted: training-mode BN cancels per-channel constants.
    z1 = _depthwise3x3(x4, w3).reshape(nhw, cout)
    h = _bn_relu(z1, g1, be1)

    # --- 1x1 conv == channel matmul on the MXU (bf16 operands, f32 accum) ---
    z2 = jnp.dot(h.astype(jnp.bfloat16), w1_bf16,
                 preferred_element_type=jnp.float32)
    return _bn_relu(z2, g2, be2)


def group_xblock_kernel(*refs):
    """All three SingleUnitXblocks fused; whole batch resident in VMEM.

    refs = (x_ref(N*H*W,cin),
            [w3(3,3,C), g1(1,C), be1(1,C), w1_bf16(C,C), g2(1,C), be2(1,C)] * 3,
            out_ref(N,H,W,Cout))
    """
    x_ref, out_ref = refs[0], refs[-1]
    prm = refs[1:-1]
    N, H, W, _ = out_ref.shape

    x2d = x_ref[...].astype(jnp.float32)
    for b in range(len(prm) // 6):
        w3, g1, be1, w1, g2, be2 = prm[6 * b: 6 * b + 6]
        x2d = _single_block(x2d, (N, H, W), w3[...], g1[...], be1[...],
                            w1[...], g2[...], be2[...])

    out_ref[...] = x2d.reshape(N, H, W, -1).astype(out_ref.dtype)


def _full_spec(shape):
    # whole array as a single block (grid=(1,))
    return pl.BlockSpec(shape, lambda i, _n=len(shape): (0,) * _n)


@jax.jit
def group_single_unit_xblock(x_nchw, params):
    """GroupSingleUnitXblock forward. Input/output are NCHW like PyTorch."""
    x = jnp.transpose(x_nchw, (0, 2, 3, 1))                    # NCHW -> NHWC
    N, H, W, cin = x.shape
    cout = params[-1]["w1"].shape[-1]

    args = [x.reshape(N * H * W, cin)]                         # lane axis = channels
    for p in params:
        C = p["w3e"].shape[-1]
        args += [p["w3e"],
                 p["g1"].reshape(1, C), p["be1"].reshape(1, C),
                 p["w1"].astype(jnp.bfloat16),                 # bf16 MXU operand
                 p["g2"].reshape(1, C), p["be2"].reshape(1, C)]

    out = pl.pallas_call(
        group_xblock_kernel,
        out_shape=jax.ShapeDtypeStruct((N, H, W, cout), jnp.float32),
        grid=(1,),
        in_specs=[_full_spec(a.shape) for a in args],
        out_specs=_full_spec((N, H, W, cout)),
        compiler_params=pltpu.CompilerParams(
            dimension_semantics=("arbitrary",)),
    )(*args)
    return jnp.transpose(out, (0, 3, 1, 2))                    # NHWC -> NCHW


def init_block_params(key, cin, cout):
    assert cout % cin == 0, "grouped conv (groups=cin) needs cout % cin == 0"
    ks = jax.random.split(key, 6)
    # PyTorch weight layout for Conv2d(cin, cout, 3, groups=cin): (cout, 1, 3, 3)
    w3_torch = jax.random.normal(ks[0], (cout, 1, 3, 3), jnp.float32) / 3.0
    w3e = jnp.transpose(w3_torch[:, 0], (1, 2, 0))             # (3, 3, cout)
    g1 = 1.0 + 0.1 * jax.random.normal(ks[1], (cout,), jnp.float32)
    be1 = 0.1 * jax.random.normal(ks[2], (cout,), jnp.float32)
    # 1x1 conv weight as (in_ch, out_ch) matrix
    w1 = jax.random.normal(ks[3], (cout, cout), jnp.float32) / jnp.sqrt(cout)
    g2 = 1.0 + 0.1 * jax.random.normal(ks[4], (cout,), jnp.float32)
    be2 = 0.1 * jax.random.normal(ks[5], (cout,), jnp.float32)
    # NOTE: conv biases (b3, bc1) are intentionally not created: under
    # training-mode BatchNorm the batch-mean subtraction cancels any
    # per-channel constant, so they never affect the forward output.
    return dict(w3e=w3e, g1=g1, be1=be1, w1=w1, g2=g2, be2=be2)


def init_group_params(key, in_ch, out_ch, num_channels=64):
    k1, k2, k3 = jax.random.split(key, 3)
    return [
        init_block_params(k1, in_ch, num_channels),
        init_block_params(k2, num_channels, num_channels * 2),
        init_block_params(k3, num_channels * 2, out_ch),
    ]


def _reference_forward(x_nchw, params):
    """Pure-JAX reference (f32), same semantics as the PyTorch forward."""
    x = jnp.transpose(x_nchw, (0, 2, 3, 1)).astype(jnp.float32)
    for p in params:
        N, H, W, cin = x.shape
        cout = p["w3e"].shape[-1]
        m = cout // cin
        xe = jnp.repeat(x, m, axis=-1)
        xp = jnp.pad(xe, ((0, 0), (1, 1), (1, 1), (0, 0)))
        acc = jnp.zeros((N, H, W, cout), jnp.float32)
        for kh in range(3):
            for kw in range(3):
                acc = acc + xp[:, kh:kh + H, kw:kw + W, :] * p["w3e"][kh, kw, :]
        z1 = acc.reshape(N * H * W, cout)
        mean1 = jnp.mean(z1, axis=0)
        var1 = jnp.mean((z1 - mean1) ** 2, axis=0)
        h = jnp.maximum((z1 - mean1) / jnp.sqrt(var1 + BN_EPS) * p["g1"]
                        + p["be1"], 0.0)
        z2 = jnp.dot(h, p["w1"], preferred_element_type=jnp.float32)
        mean2 = jnp.mean(z2, axis=0)
        var2 = jnp.mean((z2 - mean2) ** 2, axis=0)
        y = jnp.maximum((z2 - mean2) / jnp.sqrt(var2 + BN_EPS) * p["g2"]
                        + p["be2"], 0.0)
        x = y.reshape(N, H, W, cout)
    return jnp.transpose(x, (0, 3, 1, 2))


if __name__ == "__main__":
    # block_3's grouped conv has groups=128, so the group's out_ch must be a
    # multiple of 128; block_1 needs 64 % in_ch == 0.
    N, in_ch, H, W = 2, 4, 16, 16
    out_ch = 128

    x = jax.random.normal(jax.random.PRNGKey(0), (N, in_ch, H, W), jnp.float32)
    params = init_group_params(jax.random.PRNGKey(1), in_ch, out_ch)

    y = jax.block_until_ready(group_single_unit_xblock(x, params))
    assert y.shape == (N, out_ch, H, W), y.shape
    assert bool(jnp.all(jnp.isfinite(y)))

    # Loose sanity check vs. the pure-JAX reference (the kernel uses bf16 MXU
    # operands for the 1x1 convs, so results are close but not bit-identical).
    y_ref = _reference_forward(x, params)
    max_err = float(jnp.max(jnp.abs(y - y_ref)))
    assert max_err < 0.25, f"max abs err vs reference too large: {max_err}"

    # TODO(synk): the PyTorch module's print() logging statements are omitted.
    print("KERNEL_OK")
</pallas_src>

<mosaic_0001>
module attributes {stable_mosaic.version = 11 : i64} {
  func.func @group_xblock_kernel(%arg0: i32, %arg1: memref<512x4xf32, #tpu.memory_space<vmem>>, %arg2: memref<3x3x64xf32, #tpu.memory_space<vmem>>, %arg3: memref<1x64xf32, #tpu.memory_space<vmem>>, %arg4: memref<1x64xf32, #tpu.memory_space<vmem>>, %arg5: memref<64x64xbf16, #tpu.memory_space<vmem>>, %arg6: memref<1x64xf32, #tpu.memory_space<vmem>>, %arg7: memref<1x64xf32, #tpu.memory_space<vmem>>, %arg8: memref<3x3x128xf32, #tpu.memory_space<vmem>>, %arg9: memref<1x128xf32, #tpu.memory_space<vmem>>, %arg10: memref<1x128xf32, #tpu.memory_space<vmem>>, %arg11: memref<128x128xbf16, #tpu.memory_space<vmem>>, %arg12: memref<1x128xf32, #tpu.memory_space<vmem>>, %arg13: memref<1x128xf32, #tpu.memory_space<vmem>>, %arg14: memref<3x3x128xf32, #tpu.memory_space<vmem>>, %arg15: memref<1x128xf32, #tpu.memory_space<vmem>>, %arg16: memref<1x128xf32, #tpu.memory_space<vmem>>, %arg17: memref<128x128xbf16, #tpu.memory_space<vmem>>, %arg18: memref<1x128xf32, #tpu.memory_space<vmem>>, %arg19: memref<1x128xf32, #tpu.memory_space<vmem>>, %arg20: memref<2x16x16x128xf32, #tpu.memory_space<vmem>>) attributes {dimension_semantics = [#tpu.dimension_semantics<arbitrary>], iteration_bounds = array<i64: 1>, scalar_prefetch = 0 : i64, scratch_operands = 0 : i64, tpu.core_type = #tpu.core_type<tc>, window_params = [{pipeline_mode = #tpu.pipeline_mode<synchronous>, transform_indices = @transform_0, window_bounds = array<i64: 512, 4>}, {pipeline_mode = #tpu.pipeline_mode<synchronous>, transform_indices = @transform_1, window_bounds = array<i64: 3, 3, 64>}, {pipeline_mode = #tpu.pipeline_mode<synchronous>, transform_indices = @transform_2, window_bounds = array<i64: 1, 64>}, {pipeline_mode = #tpu.pipeline_mode<synchronous>, transform_indices = @transform_3, window_bounds = array<i64: 1, 64>}, {pipeline_mode = #tpu.pipeline_mode<synchronous>, transform_indices = @transform_4, window_bounds = array<i64: 64, 64>}, {pipeline_mode = #tpu.pipeline_mode<synchronous>, transform_indices = @transform_5, window_bounds = array<i64: 1, 64>}, {pipeline_mode = #tpu.pipeline_mode<synchronous>, transform_indices = @transform_6, window_bounds = array<i64: 1, 64>}, {pipeline_mode = #tpu.pipeline_mode<synchronous>, transform_indices = @transform_7, window_bounds = array<i64: 3, 3, 128>}, {pipeline_mode = #tpu.pipeline_mode<synchronous>, transform_indices = @transform_8, window_bounds = array<i64: 1, 128>}, {pipeline_mode = #tpu.pipeline_mode<synchronous>, transform_indices = @transform_9, window_bounds = array<i64: 1, 128>}, {pipeline_mode = #tpu.pipeline_mode<synchronous>, transform_indices = @transform_10, window_bounds = array<i64: 128, 128>}, {pipeline_mode = #tpu.pipeline_mode<synchronous>, transform_indices = @transform_11, window_bounds = array<i64: 1, 128>}, {pipeline_mode = #tpu.pipeline_mode<synchronous>, transform_indices = @transform_12, window_bounds = array<i64: 1, 128>}, {pipeline_mode = #tpu.pipeline_mode<synchronous>, transform_indices = @transform_13, window_bounds = array<i64: 3, 3, 128>}, {pipeline_mode = #tpu.pipeline_mode<synchronous>, transform_indices = @transform_14, window_bounds = array<i64: 1, 128>}, {pipeline_mode = #tpu.pipeline_mode<synchronous>, transform_indices = @transform_15, window_bounds = array<i64: 1, 128>}, {pipeline_mode = #tpu.pipeline_mode<synchronous>, transform_indices = @transform_16, window_bounds = array<i64: 128, 128>}, {pipeline_mode = #tpu.pipeline_mode<synchronous>, transform_indices = @transform_17, window_bounds = array<i64: 1, 128>}, {pipeline_mode = #tpu.pipeline_mode<synchronous>, transform_indices = @transform_18, window_bounds = array<i64: 1, 128>}, {pipeline_mode = #tpu.pipeline_mode<synchronous>, transform_indices = @transform_19, window_bounds = array<i64: 2, 16, 16, 128>}]} {
    %c0 = arith.constant 0 : index
    %c0_0 = arith.constant 0 : index
    %0 = vector.load %arg1[%c0, %c0_0] : memref<512x4xf32, #tpu.memory_space<vmem>>, vector<512x4xf32>
    %c0_1 = arith.constant 0 : index
    %c0_2 = arith.constant 0 : index
    %c0_3 = arith.constant 0 : index
    %1 = vector.load %arg2[%c0_1, %c0_2, %c0_3] : memref<3x3x64xf32, #tpu.memory_space<vmem>>, vector<3x3x64xf32>
    %c0_4 = arith.constant 0 : index
    %c0_5 = arith.constant 0 : index
    %2 = vector.load %arg3[%c0_4, %c0_5] : memref<1x64xf32, #tpu.memory_space<vmem>>, vector<1x64xf32>
    %c0_6 = arith.constant 0 : index
    %c0_7 = arith.constant 0 : index
    %3 = vector.load %arg4[%c0_6, %c0_7] : memref<1x64xf32, #tpu.memory_space<vmem>>, vector<1x64xf32>
    %c0_8 = arith.constant 0 : index
    %c0_9 = arith.constant 0 : index
    %4 = vector.load %arg5[%c0_8, %c0_9] : memref<64x64xbf16, #tpu.memory_space<vmem>>, vector<64x64xbf16>
    %c0_10 = arith.constant 0 : index
    %c0_11 = arith.constant 0 : index
    %5 = vector.load %arg6[%c0_10, %c0_11] : memref<1x64xf32, #tpu.memory_space<vmem>>, vector<1x64xf32>
    %c0_12 = arith.constant 0 : index
    %c0_13 = arith.constant 0 : index
    %6 = vector.load %arg7[%c0_12, %c0_13] : memref<1x64xf32, #tpu.memory_space<vmem>>, vector<1x64xf32>
    %7 = tpu.iota {dimensions = array<i32: 0>} : vector<4x64xi32>
    %8 = tpu.iota {dimensions = array<i32: 1>} : vector<4x64xi32>
    %c16_i32 = arith.constant 16 : i32
    %9 = vector.broadcast %c16_i32 : i32 to vector<4x64xi32>
    %10 = arith.muli %7, %9 : vector<4x64xi32>
    %11 = arith.cmpi sge, %8, %10 : vector<4x64xi32>
    %c16_i32_14 = arith.constant 16 : i32
    %12 = vector.broadcast %c16_i32_14 : i32 to vector<4x64xi32>
    %13 = arith.addi %10, %12 : vector<4x64xi32>
    %14 = arith.cmpi slt, %8, %13 : vector<4x64xi32>
    %15 = arith.andi %11, %14 : vector<4x64xi1>
    %16 = arith.extui %15 : vector<4x64xi1> to vector<4x64xi32>
    %17 = arith.sitofp %16 : vector<4x64xi32> to vector<4x64xf32>
    %cst = arith.constant dense<0.000000e+00> : vector<512x64xf32>
    %18 = tpu.matmul %0, %17, %cst {dimension_numbers = #tpu.dot_dimension_numbers<[1], [0], [0], [1], [0, 0, 1, 1], [], []>} : vector<512x4xf32>, vector<4x64xf32>, vector<512x64xf32> -> vector<512x64xf32>
    %19 = vector.shape_cast %18 : vector<512x64xf32> to vector<2x16x16x64xf32>
    %cst_15 = arith.constant 0.000000e+00 : f32
    %20 = vector.broadcast %cst_15 : f32 to vector<2x1x16x64xf32>
    %21 = tpu.concatenate %20, %19, %20 in 1 : vector<2x1x16x64xf32>, vector<2x16x16x64xf32>, vector<2x1x16x64xf32> -> vector<2x18x16x64xf32>
    %cst_16 = arith.constant 0.000000e+00 : f32
    %22 = vector.broadcast %cst_16 : f32 to vector<2x18x1x64xf32>
    %23 = vector.extract_strided_slice %21 {offsets = [0, 0, 0, 0], sizes = [2, 18, 15, 64], strides = [1, 1, 1, 1]} : vector<2x18x16x64xf32> to vector<2x18x15x64xf32>
    %24 = tpu.concatenate %22, %23 in 2 : vector<2x18x1x64xf32>, vector<2x18x15x64xf32> -> vector<2x18x16x64xf32>
    %25 = vector.extract_strided_slice %21 {offsets = [0, 0, 1, 0], sizes = [2, 18, 15, 64], strides = [1, 1, 1, 1]} : vector<2x18x16x64xf32> to vector<2x18x15x64xf32>
    %26 = tpu.concatenate %25, %22 in 2 : vector<2x18x15x64xf32>, vector<2x18x1x64xf32> -> vector<2x18x16x64xf32>
    %cst_17 = arith.constant 0.000000e+00 : f32
    %27 = vector.broadcast %cst_17 : f32 to vector<2x16x16x64xf32>
    %28 = vector.extract_strided_slice %24 {offsets = [0, 0, 0, 0], sizes = [2, 16, 16, 64], strides = [1, 1, 1, 1]} : vector<2x18x16x64xf32> to vector<2x16x16x64xf32>
    %29 = vector.extract_strided_slice %1 {offsets = [0, 0, 0], sizes = [1, 1, 64], strides = [1, 1, 1]} : vector<3x3x64xf32> to vector<1x1x64xf32>
    %30 = vector.shape_cast %29 : vector<1x1x64xf32> to vector<64xf32>
    %31 = vector.shape_cast %30 : vector<64xf32> to vector<1x1x1x64xf32>
    %32 = vector.broadcast %31 : vector<1x1x1x64xf32> to vector<2x16x16x64xf32>
    %33 = arith.mulf %28, %32 : vector<2x16x16x64xf32>
    %34 = arith.addf %27, %33 : vector<2x16x16x64xf32>
    %35 = vector.extract_strided_slice %21 {offsets = [0, 0, 0, 0], sizes = [2, 16, 16, 64], strides = [1, 1, 1, 1]} : vector<2x18x16x64xf32> to vector<2x16x16x64xf32>
    %36 = vector.extract_strided_slice %1 {offsets = [0, 1, 0], sizes = [1, 1, 64], strides = [1, 1, 1]} : vector<3x3x64xf32> to vector<1x1x64xf32>
    %37 = vector.shape_cast %36 : vector<1x1x64xf32> to vector<64xf32>
    %38 = vector.shape_cast %37 : vector<64xf32> to vector<1x1x1x64xf32>
    %39 = vector.broadcast %38 : vector<1x1x1x64xf32> to vector<2x16x16x64xf32>
    %40 = arith.mulf %35, %39 : vector<2x16x16x64xf32>
    %41 = arith.addf %34, %40 : vector<2x16x16x64xf32>
    %42 = vector.extract_strided_slice %26 {offsets = [0, 0, 0, 0], sizes = [2, 16, 16, 64], strides = [1, 1, 1, 1]} : vector<2x18x16x64xf32> to vector<2x16x16x64xf32>
    %43 = vector.extract_strided_slice %1 {offsets = [0, 2, 0], sizes = [1, 1, 64], strides = [1, 1, 1]} : vector<3x3x64xf32> to vector<1x1x64xf32>
    %44 = vector.shape_cast %43 : vector<1x1x64xf32> to vector<64xf32>
    %45 = vector.shape_cast %44 : vector<64xf32> to vector<1x1x1x64xf32>
    %46 = vector.broadcast %45 : vector<1x1x1x64xf32> to vector<2x16x16x64xf32>
    %47 = arith.mulf %42, %46 : vector<2x16x16x64xf32>
    %48 = arith.addf %41, %47 : vector<2x16x16x64xf32>
    %49 = vector.extract_strided_slice %24 {offsets = [0, 1, 0, 0], sizes = [2, 16, 16, 64], strides = [1, 1, 1, 1]} : vector<2x18x16x64xf32> to vector<2x16x16x64xf32>
    %50 = vector.extract_strided_slice %1 {offsets = [1, 0, 0], sizes = [1, 1, 64], strides = [1, 1, 1]} : vector<3x3x64xf32> to vector<1x1x64xf32>
    %51 = vector.shape_cast %50 : vector<1x1x64xf32> to vector<64xf32>
    %52 = vector.shape_cast %51 : vector<64xf32> to vector<1x1x1x64xf32>
    %53 = vector.broadcast %52 : vector<1x1x1x64xf32> to vector<2x16x16x64xf32>
    %54 = arith.mulf %49, %53 : vector<2x16x16x64xf32>
    %55 = arith.addf %48, %54 : vector<2x16x16x64xf32>
    %56 = vector.extract_strided_slice %21 {offsets = [0, 1, 0, 0], sizes = [2, 16, 16, 64], strides = [1, 1, 1, 1]} : vector<2x18x16x64xf32> to vector<2x16x16x64xf32>
    %57 = vector.extract_strided_slice %1 {offsets = [1, 1, 0], sizes = [1, 1, 64], strides = [1, 1, 1]} : vector<3x3x64xf32> to vector<1x1x64xf32>
    %58 = vector.shape_cast %57 : vector<1x1x64xf32> to vector<64xf32>
    %59 = vector.shape_cast %58 : vector<64xf32> to vector<1x1x1x64xf32>
    %60 = vector.broadcast %59 : vector<1x1x1x64xf32> to vector<2x16x16x64xf32>
    %61 = arith.mulf %56, %60 : vector<2x16x16x64xf32>
    %62 = arith.addf %55, %61 : vector<2x16x16x64xf32>
    %63 = vector.extract_strided_slice %26 {offsets = [0, 1, 0, 0], sizes = [2, 16, 16, 64], strides = [1, 1, 1, 1]} : vector<2x18x16x64xf32> to vector<2x16x16x64xf32>
    %64 = vector.extract_strided_slice %1 {offsets = [1, 2, 0], sizes = [1, 1, 64], strides = [1, 1, 1]} : vector<3x3x64xf32> to vector<1x1x64xf32>
    %65 = vector.shape_cast %64 : vector<1x1x64xf32> to vector<64xf32>
    %66 = vector.shape_cast %65 : vector<64xf32> to vector<1x1x1x64xf32>
    %67 = vector.broadcast %66 : vector<1x1x1x64xf32> to vector<2x16x16x64xf32>
    %68 = arith.mulf %63, %67 : vector<2x16x16x64xf32>
    %69 = arith.addf %62, %68 : vector<2x16x16x64xf32>
    %70 = vector.extract_strided_slice %24 {offsets = [0, 2, 0, 0], sizes = [2, 16, 16, 64], strides = [1, 1, 1, 1]} : vector<2x18x16x64xf32> to vector<2x16x16x64xf32>
    %71 = vector.extract_strided_slice %1 {offsets = [2, 0, 0], sizes = [1, 1, 64], strides = [1, 1, 1]} : vector<3x3x64xf32> to vector<1x1x64xf32>
    %72 = vector.shape_cast %71 : vector<1x1x64xf32> to vector<64xf32>
    %73 = vector.shape_cast %72 : vector<64xf32> to vector<1x1x1x64xf32>
    %74 = vector.broadcast %73 : vector<1x1x1x64xf32> to vector<2x16x16x64xf32>
    %75 = arith.mulf %70, %74 : vector<2x16x16x64xf32>
    %76 = arith.addf %69, %75 : vector<2x16x16x64xf32>
    %77 = vector.extract_strided_slice %21 {offsets = [0, 2, 0, 0], sizes = [2, 16, 16, 64], strides = [1, 1, 1, 1]} : vector<2x18x16x64xf32> to vector<2x16x16x64xf32>
    %78 = vector.extract_strided_slice %1 {offsets = [2, 1, 0], sizes = [1, 1, 64], strides = [1, 1, 1]} : vector<3x3x64xf32> to vector<1x1x64xf32>
    %79 = vector.shape_cast %78 : vector<1x1x64xf32> to vector<64xf32>
    %80 = vector.shape_cast %79 : vector<64xf32> to vector<1x1x1x64xf32>
    %81 = vector.broadcast %80 : vector<1x1x1x64xf32> to vector<2x16x16x64xf32>
    %82 = arith.mulf %77, %81 : vector<2x16x16x64xf32>
    %83 = arith.addf %76, %82 : vector<2x16x16x64xf32>
    %84 = vector.extract_strided_slice %26 {offsets = [0, 2, 0, 0], sizes = [2, 16, 16, 64], strides = [1, 1, 1, 1]} : vector<2x18x16x64xf32> to vector<2x16x16x64xf32>
    %85 = vector.extract_strided_slice %1 {offsets = [2, 2, 0], sizes = [1, 1, 64], strides = [1, 1, 1]} : vector<3x3x64xf32> to vector<1x1x64xf32>
    %86 = vector.shape_cast %85 : vector<1x1x64xf32> to vector<64xf32>
    %87 = vector.shape_cast %86 : vector<64xf32> to vector<1x1x1x64xf32>
    %88 = vector.broadcast %87 : vector<1x1x1x64xf32> to vector<2x16x16x64xf32>
    %89 = arith.mulf %84, %88 : vector<2x16x16x64xf32>
    %90 = arith.addf %83, %89 : vector<2x16x16x64xf32>
    %91 = vector.shape_cast %90 : vector<2x16x16x64xf32> to vector<512x64xf32>
    %cst_18 = arith.constant dense<0.000000e+00> : vector<64xf32>
    %92 = vector.multi_reduction <add>, %91, %cst_18 [0] : vector<512x64xf32> to vector<64xf32>
    %93 = vector.shape_cast %92 : vector<64xf32> to vector<1x64xf32>
    %cst_19 = arith.constant 0.001953125 : f32
    %94 = vector.broadcast %cst_19 : f32 to vector<1x64xf32>
    %95 = arith.mulf %93, %94 : vector<1x64xf32>
    %96 = arith.mulf %91, %91 : vector<512x64xf32>
    %cst_20 = arith.constant dense<0.000000e+00> : vector<64xf32>
    %97 = vector.multi_reduction <add>, %96, %cst_20 [0] : vector<512x64xf32> to vector<64xf32>
    %98 = vector.shape_cast %97 : vector<64xf32> to vector<1x64xf32>
    %cst_21 = arith.constant 0.001953125 : f32
    %99 = vector.broadcast %cst_21 : f32 to vector<1x64xf32>
    %100 = arith.mulf %98, %99 : vector<1x64xf32>
    %101 = arith.mulf %95, %95 : vector<1x64xf32>
    %102 = arith.subf %100, %101 : vector<1x64xf32>
    %cst_22 = arith.constant 0.000000e+00 : f32
    %103 = vector.broadcast %cst_22 : f32 to vector<1x64xf32>
    %104 = arith.maximumf %102, %103 : vector<1x64xf32>
    %cst_23 = arith.constant 9.99999974E-6 : f32
    %105 = vector.broadcast %cst_23 : f32 to vector<1x64xf32>
    %106 = arith.addf %104, %105 : vector<1x64xf32>
    %107 = math.rsqrt %106 : vector<1x64xf32>
    %108 = arith.mulf %107, %2 : vector<1x64xf32>
    %109 = arith.mulf %95, %108 : vector<1x64xf32>
    %110 = arith.subf %3, %109 : vector<1x64xf32>
    %111 = vector.broadcast %108 : vector<1x64xf32> to vector<512x64xf32>
    %112 = arith.mulf %91, %111 : vector<512x64xf32>
    %113 = vector.broadcast %110 : vector<1x64xf32> to vector<512x64xf32>
    %114 = arith.addf %112, %113 : vector<512x64xf32>
    %cst_24 = arith.constant 0.000000e+00 : f32
    %115 = vector.broadcast %cst_24 : f32 to vector<512x64xf32>
    %116 = arith.maximumf %114, %115 : vector<512x64xf32>
    %117 = arith.truncf %116 : vector<512x64xf32> to vector<512x64xbf16>
    %cst_25 = arith.constant dense<0.000000e+00> : vector<512x64xf32>
    %118 = tpu.matmul %117, %4, %cst_25 {dimension_numbers = #tpu.dot_dimension_numbers<[1], [0], [0], [1], [0, 0, 1, 1], [], []>} : vector<512x64xbf16>, vector<64x64xbf16>, vector<512x64xf32> -> vector<512x64xf32>
    %cst_26 = arith.constant dense<0.000000e+00> : vector<64xf32>
    %119 = vector.multi_reduction <add>, %118, %cst_26 [0] : vector<512x64xf32> to vector<64xf32>
    %120 = vector.shape_cast %119 : vector<64xf32> to vector<1x64xf32>
    %cst_27 = arith.constant 0.001953125 : f32
    %121 = vector.broadcast %cst_27 : f32 to vector<1x64xf32>
    %122 = arith.mulf %120, %121 : vector<1x64xf32>
    %123 = arith.mulf %118, %118 : vector<512x64xf32>
    %cst_28 = arith.constant dense<0.000000e+00> : vector<64xf32>
    %124 = vector.multi_reduction <add>, %123, %cst_28 [0] : vector<512x64xf32> to vector<64xf32>
    %125 = vector.shape_cast %124 : vector<64xf32> to vector<1x64xf32>
    %cst_29 = arith.constant 0.001953125 : f32
    %126 = vector.broadcast %cst_29 : f32 to vector<1x64xf32>
    %127 = arith.mulf %125, %126 : vector<1x64xf32>
    %128 = arith.mulf %122, %122 : vector<1x64xf32>
    %129 = arith.subf %127, %128 : vector<1x64xf32>
    %cst_30 = arith.constant 0.000000e+00 : f32
    %130 = vector.broadcast %cst_30 : f32 to vector<1x64xf32>
    %131 = arith.maximumf %129, %130 : vector<1x64xf32>
    %cst_31 = arith.constant 9.99999974E-6 : f32
    %132 = vector.broadcast %cst_31 : f32 to vector<1x64xf32>
    %133 = arith.addf %131, %132 : vector<1x64xf32>
    %134 = math.rsqrt %133 : vector<1x64xf32>
    %135 = arith.mulf %134, %5 : vector<1x64xf32>
    %136 = arith.mulf %122, %135 : vector<1x64xf32>
    %137 = arith.subf %6, %136 : vector<1x64xf32>
    %138 = vector.broadcast %135 : vector<1x64xf32> to vector<512x64xf32>
    %139 = arith.mulf %118, %138 : vector<512x64xf32>
    %140 = vector.broadcast %137 : vector<1x64xf32> to vector<512x64xf32>
    %141 = arith.addf %139, %140 : vector<512x64xf32>
    %cst_32 = arith.constant 0.000000e+00 : f32
    %142 = vector.broadcast %cst_32 : f32 to vector<512x64xf32>
    %143 = arith.maximumf %141, %142 : vector<512x64xf32>
    %c0_33 = arith.constant 0 : index
    %c0_34 = arith.constant 0 : index
    %c0_35 = arith.constant 0 : index
    %144 = vector.load %arg8[%c0_33, %c0_34, %c0_35] : memref<3x3x128xf32, #tpu.memory_space<vmem>>, vector<3x3x128xf32>
    %c0_36 = arith.constant 0 : index
    %c0_37 = arith.constant 0 : index
    %145 = vector.load %arg9[%c0_36, %c0_37] : memref<1x128xf32, #tpu.memory_space<vmem>>, vector<1x128xf32>
    %c0_38 = arith.constant 0 : index
    %c0_39 = arith.constant 0 : index
    %146 = vector.load %arg10[%c0_38, %c0_39] : memref<1x128xf32, #tpu.memory_space<vmem>>, vector<1x128xf32>
    %c0_40 = arith.constant 0 : index
    %c0_41 = arith.constant 0 : index
    %147 = vector.load %arg11[%c0_40, %c0_41] : memref<128x128xbf16, #tpu.memory_space<vmem>>, vector<128x128xbf16>
    %c0_42 = arith.constant 0 : index
    %c0_43 = arith.constant 0 : index
    %148 = vector.load %arg12[%c0_42, %c0_43] : memref<1x128xf32, #tpu.memory_space<vmem>>, vector<1x128xf32>
    %c0_44 = arith.constant 0 : index
    %c0_45 = arith.constant 0 : index
    %149 = vector.load %arg13[%c0_44, %c0_45] : memref<1x128xf32, #tpu.memory_space<vmem>>, vector<1x128xf32>
    %150 = tpu.iota {dimensions = array<i32: 0>} : vector<64x128xi32>
    %151 = tpu.iota {dimensions = array<i32: 1>} : vector<64x128xi32>
    %c2_i32 = arith.constant 2 : i32
    %152 = vector.broadcast %c2_i32 : i32 to vector<64x128xi32>
    %153 = arith.muli %150, %152 : vector<64x128xi32>
    %154 = arith.cmpi sge, %151, %153 : vector<64x128xi32>
    %c2_i32_46 = arith.constant 2 : i32
    %155 = vector.broadcast %c2_i32_46 : i32 to vector<64x128xi32>
    %156 = arith.addi %153, %155 : vector<64x128xi32>
    %157 = arith.cmpi slt, %151, %156 : vector<64x128xi32>
    %158 = arith.andi %154, %157 : vector<64x128xi1>
    %159 = arith.extui %158 : vector<64x128xi1> to vector<64x128xi32>
    %160 = arith.sitofp %159 : vector<64x128xi32> to vector<64x128xf32>
    %cst_47 = arith.constant dense<0.000000e+00> : vector<512x128xf32>
    %161 = tpu.matmul %143, %160, %cst_47 {dimension_numbers = #tpu.dot_dimension_numbers<[1], [0], [0], [1], [0, 0, 1, 1], [], []>} : vector<512x64xf32>, vector<64x128xf32>, vector<512x128xf32> -> vector<512x128xf32>
    %162 = vector.shape_cast %161 : vector<512x128xf32> to vector<2x16x16x128xf32>
    %cst_48 = arith.constant 0.000000e+00 : f32
    %163 = vector.broadcast %cst_48 : f32 to vector<2x1x16x128xf32>
    %164 = tpu.concatenate %163, %162, %163 in 1 : vector<2x1x16x128xf32>, vector<2x16x16x128xf32>, vector<2x1x16x128xf32> -> vector<2x18x16x128xf32>
    %cst_49 = arith.constant 0.000000e+00 : f32
    %165 = vector.broadcast %cst_49 : f32 to vector<2x18x1x128xf32>
    %166 = vector.extract_strided_slice %164 {offsets = [0, 0, 0, 0], sizes = [2, 18, 15, 128], strides = [1, 1, 1, 1]} : vector<2x18x16x128xf32> to vector<2x18x15x128xf32>
    %167 = tpu.concatenate %165, %166 in 2 : vector<2x18x1x128xf32>, vector<2x18x15x128xf32> -> vector<2x18x16x128xf32>
    %168 = vector.extract_strided_slice %164 {offsets = [0, 0, 1, 0], sizes = [2, 18, 15, 128], strides = [1, 1, 1, 1]} : vector<2x18x16x128xf32> to vector<2x18x15x128xf32>
    %169 = tpu.concatenate %168, %165 in 2 : vector<2x18x15x128xf32>, vector<2x18x1x128xf32> -> vector<2x18x16x128xf32>
    %cst_50 = arith.constant 0.000000e+00 : f32
    %170 = vector.broadcast %cst_50 : f32 to vector<2x16x16x128xf32>
    %171 = vector.extract_strided_slice %167 {offsets = [0, 0, 0, 0], sizes = [2, 16, 16, 128], strides = [1, 1, 1, 1]} : vector<2x18x16x128xf32> to vector<2x16x16x128xf32>
    %172 = vector.extract_strided_slice %144 {offsets = [0, 0, 0], sizes = [1, 1, 128], strides = [1, 1, 1]} : vector<3x3x128xf32> to vector<1x1x128xf32>
    %173 = vector.shape_cast %172 : vector<1x1x128xf32> to vector<128xf32>
    %174 = vector.shape_cast %173 : vector<128xf32> to vector<1x1x1x128xf32>
    %175 = vector.broadcast %174 : vector<1x1x1x128xf32> to vector<2x16x16x128xf32>
    %176 = arith.mulf %171, %175 : vector<2x16x16x128xf32>
    %177 = arith.addf %170, %176 : vector<2x16x16x128xf32>
    %178 = vector.extract_strided_slice %164 {offsets = [0, 0, 0, 0], sizes = [2, 16, 16, 128], strides = [1, 1, 1, 1]} : vector<2x18x16x128xf32> to vector<2x16x16x128xf32>
    %179 = vector.extract_strided_slice %144 {offsets = [0, 1, 0], sizes = [1, 1, 128], strides = [1, 1, 1]} : vector<3x3x128xf32> to vector<1x1x128xf32>
    %180 = vector.shape_cast %179 : vector<1x1x128xf32> to vector<128xf32>
    %181 = vector.shape_cast %180 : vector<128xf32> to vector<1x1x1x128xf32>
    %182 = vector.broadcast %181 : vector<1x1x1x128xf32> to vector<2x16x16x128xf32>
    %183 = arith.mulf %178, %182 : vector<2x16x16x128xf32>
    %184 = arith.addf %177, %183 : vector<2x16x16x128xf32>
    %185 = vector.extract_strided_slice %169 {offsets = [0, 0, 0, 0], sizes = [2, 16, 16, 128], strides = [1, 1, 1, 1]} : vector<2x18x16x128xf32> to vector<2x16x16x128xf32>
    %186 = vector.extract_strided_slice %144 {offsets = [0, 2, 0], sizes = [1, 1, 128], strides = [1, 1, 1]} : vector<3x3x128xf32> to vector<1x1x128xf32>
    %187 = vector.shape_cast %186 : vector<1x1x128xf32> to vector<128xf32>
    %188 = vector.shape_cast %187 : vector<128xf32> to vector<1x1x1x128xf32>
    %189 = vector.broadcast %188 : vector<1x1x1x128xf32> to vector<2x16x16x128xf32>
    %190 = arith.mulf %185, %189 : vector<2x16x16x128xf32>
    %191 = arith.addf %184, %190 : vector<2x16x16x128xf32>
    %192 = vector.extract_strided_slice %167 {offsets = [0, 1, 0, 0], sizes = [2, 16, 16, 128], strides = [1, 1, 1, 1]} : vector<2x18x16x128xf32> to vector<2x16x16x128xf32>
    %193 = vector.extract_strided_slice %144 {offsets = [1, 0, 0], sizes = [1, 1, 128], strides = [1, 1, 1]} : vector<3x3x128xf32> to vector<1x1x128xf32>
    %194 = vector.shape_cast %193 : vector<1x1x128xf32> to vector<128xf32>
    %195 = vector.shape_cast %194 : vector<128xf32> to vector<1x1x1x128xf32>
    %196 = vector.broadcast %195 : vector<1x1x1x128xf32> to vector<2x16x16x128xf32>
    %197 = arith.mulf %192, %196 : vector<2x16x16x128xf32>
    %198 = arith.addf %191, %197 : vector<2x16x16x128xf32>
    %199 = vector.extract_strided_slice %164 {offsets = [0, 1, 0, 0], sizes = [2, 16, 16, 128], strides = [1, 1, 1, 1]} : vector<2x18x16x128xf32> to vector<2x16x16x128xf32>
    %200 = vector.extract_strided_slice %144 {offsets = [1, 1, 0], sizes = [1, 1, 128], strides = [1, 1, 1]} : vector<3x3x128xf32> to vector<1x1x128xf32>
    %201 = vector.shape_cast %200 : vector<1x1x128xf32> to vector<128xf32>
    %202 = vector.shape_cast %201 : vector<128xf32> to vector<1x1x1x128xf32>
    %203 = vector.broadcast %202 : vector<1x1x1x128xf32> to vector<2x16x16x128xf32>
    %204 = arith.mulf %199, %203 : vector<2x16x16x128xf32>
    %205 = arith.addf %198, %204 : vector<2x16x16x128xf32>
    %206 = vector.extract_strided_slice %169 {offsets = [0, 1, 0, 0], sizes = [2, 16, 16, 128], strides = [1, 1, 1, 1]} : vector<2x18x16x128xf32> to vector<2x16x16x128xf32>
    %207 = vector.extract_strided_slice %144 {offsets = [1, 2, 0], sizes = [1, 1, 128], strides = [1, 1, 1]} : vector<3x3x128xf32> to vector<1x1x128xf32>
    %208 = vector.shape_cast %207 : vector<1x1x128xf32> to vector<128xf32>
    %209 = vector.shape_cast %208 : vector<128xf32> to vector<1x1x1x128xf32>
    %210 = vector.broadcast %209 : vector<1x1x1x128xf32> to vector<2x16x16x128xf32>
    %211 = arith.mulf %206, %210 : vector<2x16x16x128xf32>
    %212 = arith.addf %205, %211 : vector<2x16x16x128xf32>
    %213 = vector.extract_strided_slice %167 {offsets = [0, 2, 0, 0], sizes = [2, 16, 16, 128], strides = [1, 1, 1, 1]} : vector<2x18x16x128xf32> to vector<2x16x16x128xf32>
    %214 = vector.extract_strided_slice %144 {offsets = [2, 0, 0], sizes = [1, 1, 128], strides = [1, 1, 1]} : vector<3x3x128xf32> to vector<1x1x128xf32>
    %215 = vector.shape_cast %214 : vector<1x1x128xf32> to vector<128xf32>
    %216 = vector.shape_cast %215 : vector<128xf32> to vector<1x1x1x128xf32>
    %217 = vector.broadcast %216 : vector<1x1x1x128xf32> to vector<2x16x16x128xf32>
    %218 = arith.mulf %213, %217 : vector<2x16x16x128xf32>
    %219 = arith.addf %212, %218 : vector<2x16x16x128xf32>
    %220 = vector.extract_strided_slice %164 {offsets = [0, 2, 0, 0], sizes = [2, 16, 16, 128], strides = [1, 1, 1, 1]} : vector<2x18x16x128xf32> to vector<2x16x16x128xf32>
    %221 = vector.extract_strided_slice %144 {offsets = [2, 1, 0], sizes = [1, 1, 128], strides = [1, 1, 1]} : vector<3x3x128xf32> to vector<1x1x128xf32>
    %222 = vector.shape_cast %221 : vector<1x1x128xf32> to vector<128xf32>
    %223 = vector.shape_cast %222 : vector<128xf32> to vector<1x1x1x128xf32>
    %224 = vector.broadcast %223 : vector<1x1x1x128xf32> to vector<2x16x16x128xf32>
    %225 = arith.mulf %220, %224 : vector<2x16x16x128xf32>
    %226 = arith.addf %219, %225 : vector<2x16x16x128xf32>
    %227 = vector.extract_strided_slice %169 {offsets = [0, 2, 0, 0], sizes = [2, 16, 16, 128], strides = [1, 1, 1, 1]} : vector<2x18x16x128xf32> to vector<2x16x16x128xf32>
    %228 = vector.extract_strided_slice %144 {offsets = [2, 2, 0], sizes = [1, 1, 128], strides = [1, 1, 1]} : vector<3x3x128xf32> to vector<1x1x128xf32>
    %229 = vector.shape_cast %228 : vector<1x1x128xf32> to vector<128xf32>
    %230 = vector.shape_cast %229 : vector<128xf32> to vector<1x1x1x128xf32>
    %231 = vector.broadcast %230 : vector<1x1x1x128xf32> to vector<2x16x16x128xf32>
    %232 = arith.mulf %227, %231 : vector<2x16x16x128xf32>
    %233 = arith.addf %226, %232 : vector<2x16x16x128xf32>
    %234 = vector.shape_cast %233 : vector<2x16x16x128xf32> to vector<512x128xf32>
    %cst_51 = arith.constant dense<0.000000e+00> : vector<128xf32>
    %235 = vector.multi_reduction <add>, %234, %cst_51 [0] : vector<512x128xf32> to vector<128xf32>
    %236 = vector.shape_cast %235 : vector<128xf32> to vector<1x128xf32>
    %cst_52 = arith.constant 0.001953125 : f32
    %237 = vector.broadcast %cst_52 : f32 to vector<1x128xf32>
    %238 = arith.mulf %236, %237 : vector<1x128xf32>
    %239 = arith.mulf %234, %234 : vector<512x128xf32>
    %cst_53 = arith.constant dense<0.000000e+00> : vector<128xf32>
    %240 = vector.multi_reduction <add>, %239, %cst_53 [0] : vector<512x128xf32> to vector<128xf32>
    %241 = vector.shape_cast %240 : vector<128xf32> to vector<1x128xf32>
    %cst_54 = arith.constant 0.001953125 : f32
    %242 = vector.broadcast %cst_54 : f32 to vector<1x128xf32>
    %243 = arith.mulf %241, %242 : vector<1x128xf32>
    %244 = arith.mulf %238, %238 : vector<1x128xf32>
    %245 = arith.subf %243, %244 : vector<1x128xf32>
    %cst_55 = arith.constant 0.000000e+00 : f32
    %246 = vector.broadcast %cst_55 : f32 to vector<1x128xf32>
    %247 = arith.maximumf %245, %246 : vector<1x128xf32>
    %cst_56 = arith.constant 9.99999974E-6 : f32
    %248 = vector.broadcast %cst_56 : f32 to vector<1x128xf32>
    %249 = arith.addf %247, %248 : vector<1x128xf32>
    %250 = math.rsqrt %249 : vector<1x128xf32>
    %251 = arith.mulf %250, %145 : vector<1x128xf32>
    %252 = arith.mulf %238, %251 : vector<1x128xf32>
    %253 = arith.subf %146, %252 : vector<1x128xf32>
    %254 = vector.broadcast %251 : vector<1x128xf32> to vector<512x128xf32>
    %255 = arith.mulf %234, %254 : vector<512x128xf32>
    %256 = vector.broadcast %253 : vector<1x128xf32> to vector<512x128xf32>
    %257 = arith.addf %255, %256 : vector<512x128xf32>
    %cst_57 = arith.constant 0.000000e+00 : f32
    %258 = vector.broadcast %cst_57 : f32 to vector<512x128xf32>
    %259 = arith.maximumf %257, %258 : vector<512x128xf32>
    %260 = arith.truncf %259 : vector<512x128xf32> to vector<512x128xbf16>
    %cst_58 = arith.constant dense<0.000000e+00> : vector<512x128xf32>
    %261 = tpu.matmul %260, %147, %cst_58 {dimension_numbers = #tpu.dot_dimension_numbers<[1], [0], [0], [1], [0, 0, 1, 1], [], []>} : vector<512x128xbf16>, vector<128x128xbf16>, vector<512x128xf32> -> vector<512x128xf32>
    %cst_59 = arith.constant dense<0.000000e+00> : vector<128xf32>
    %262 = vector.multi_reduction <add>, %261, %cst_59 [0] : vector<512x128xf32> to vector<128xf32>
    %263 = vector.shape_cast %262 : vector<128xf32> to vector<1x128xf32>
    %cst_60 = arith.constant 0.001953125 : f32
    %264 = vector.broadcast %cst_60 : f32 to vector<1x128xf32>
    %265 = arith.mulf %263, %264 : vector<1x128xf32>
    %266 = arith.mulf %261, %261 : vector<512x128xf32>
    %cst_61 = arith.constant dense<0.000000e+00> : vector<128xf32>
    %267 = vector.multi_reduction <add>, %266, %cst_61 [0] : vector<512x128xf32> to vector<128xf32>
    %268 = vector.shape_cast %267 : vector<128xf32> to vector<1x128xf32>
    %cst_62 = arith.constant 0.001953125 : f32
    %269 = vector.broadcast %cst_62 : f32 to vector<1x128xf32>
    %270 = arith.mulf %268, %269 : vector<1x128xf32>
    %271 = arith.mulf %265, %265 : vector<1x128xf32>
    %272 = arith.subf %270, %271 : vector<1x128xf32>
    %cst_63 = arith.constant 0.000000e+00 : f32
    %273 = vector.broadcast %cst_63 : f32 to vector<1x128xf32>
    %274 = arith.maximumf %272, %273 : vector<1x128xf32>
    %cst_64 = arith.constant 9.99999974E-6 : f32
    %275 = vector.broadcast %cst_64 : f32 to vector<1x128xf32>
    %276 = arith.addf %274, %275 : vector<1x128xf32>
    %277 = math.rsqrt %276 : vector<1x128xf32>
    %278 = arith.mulf %277, %148 : vector<1x128xf32>
    %279 = arith.mulf %265, %278 : vector<1x128xf32>
    %280 = arith.subf %149, %279 : vector<1x128xf32>
    %281 = vector.broadcast %278 : vector<1x128xf32> to vector<512x128xf32>
    %282 = arith.mulf %261, %281 : vector<512x128xf32>
    %283 = vector.broadcast %280 : vector<1x128xf32> to vector<512x128xf32>
    %284 = arith.addf %282, %283 : vector<512x128xf32>
    %cst_65 = arith.constant 0.000000e+00 : f32
    %285 = vector.broadcast %cst_65 : f32 to vector<512x128xf32>
    %286 = arith.maximumf %284, %285 : vector<512x128xf32>
    %c0_66 = arith.constant 0 : index
    %c0_67 = arith.constant 0 : index
    %c0_68 = arith.constant 0 : index
    %287 = vector.load %arg14[%c0_66, %c0_67, %c0_68] : memref<3x3x128xf32, #tpu.memory_space<vmem>>, vector<3x3x128xf32>
    %c0_69 = arith.constant 0 : index
    %c0_70 = arith.constant 0 : index
    %288 = vector.load %arg15[%c0_69, %c0_70] : memref<1x128xf32, #tpu.memory_space<vmem>>, vector<1x128xf32>
    %c0_71 = arith.constant 0 : index
    %c0_72 = arith.constant 0 : index
    %289 = vector.load %arg16[%c0_71, %c0_72] : memref<1x128xf32, #tpu.memory_space<vmem>>, vector<1x128xf32>
    %c0_73 = arith.constant 0 : index
    %c0_74 = arith.constant 0 : index
    %290 = vector.load %arg17[%c0_73, %c0_74] : memref<128x128xbf16, #tpu.memory_space<vmem>>, vector<128x128xbf16>
    %c0_75 = arith.constant 0 : index
    %c0_76 = arith.constant 0 : index
    %291 = vector.load %arg18[%c0_75, %c0_76] : memref<1x128xf32, #tpu.memory_space<vmem>>, vector<1x128xf32>
    %c0_77 = arith.constant 0 : index
    %c0_78 = arith.constant 0 : index
    %292 = vector.load %arg19[%c0_77, %c0_78] : memref<1x128xf32, #tpu.memory_space<vmem>>, vector<1x128xf32>
    %293 = vector.shape_cast %286 : vector<512x128xf32> to vector<2x16x16x128xf32>
    %cst_79 = arith.constant 0.000000e+00 : f32
    %294 = vector.broadcast %cst_79 : f32 to vector<2x1x16x128xf32>
    %295 = tpu.concatenate %294, %293, %294 in 1 : vector<2x1x16x128xf32>, vector<2x16x16x128xf32>, vector<2x1x16x128xf32> -> vector<2x18x16x128xf32>
    %cst_80 = arith.constant 0.000000e+00 : f32
    %296 = vector.broadcast %cst_80 : f32 to vector<2x18x1x128xf32>
    %297 = vector.extract_strided_slice %295 {offsets = [0, 0, 0, 0], sizes = [2, 18, 15, 128], strides = [1, 1, 1, 1]} : vector<2x18x16x128xf32> to vector<2x18x15x128xf32>
    %298 = tpu.concatenate %296, %297 in 2 : vector<2x18x1x128xf32>, vector<2x18x15x128xf32> -> vector<2x18x16x128xf32>
    %299 = vector.extract_strided_slice %295 {offsets = [0, 0, 1, 0], sizes = [2, 18, 15, 128], strides = [1, 1, 1, 1]} : vector<2x18x16x128xf32> to vector<2x18x15x128xf32>
    %300 = tpu.concatenate %299, %296 in 2 : vector<2x18x15x128xf32>, vector<2x18x1x128xf32> -> vector<2x18x16x128xf32>
    %cst_81 = arith.constant 0.000000e+00 : f32
    %301 = vector.broadcast %cst_81 : f32 to vector<2x16x16x128xf32>
    %302 = vector.extract_strided_slice %298 {offsets = [0, 0, 0, 0], sizes = [2, 16, 16, 128], strides = [1, 1, 1, 1]} : vector<2x18x16x128xf32> to vector<2x16x16x128xf32>
    %303 = vector.extract_strided_slice %287 {offsets = [0, 0, 0], sizes = [1, 1, 128], strides = [1, 1, 1]} : vector<3x3x128xf32> to vector<1x1x128xf32>
    %304 = vector.shape_cast %303 : vector<1x1x128xf32> to vector<128xf32>
    %305 = vector.shape_cast %304 : vector<128xf32> to vector<1x1x1x128xf32>
    %306 = vector.broadcast %305 : vector<1x1x1x128xf32> to vector<2x16x16x128xf32>
    %307 = arith.mulf %302, %306 : vector<2x16x16x128xf32>
    %308 = arith.addf %301, %307 : vector<2x16x16x128xf32>
    %309 = vector.extract_strided_slice %295 {offsets = [0, 0, 0, 0], sizes = [2, 16, 16, 128], strides = [1, 1, 1, 1]} : vector<2x18x16x128xf32> to vector<2x16x16x128xf32>
    %310 = vector.extract_strided_slice %287 {offsets = [0, 1, 0], sizes = [1, 1, 128], strides = [1, 1, 1]} : vector<3x3x128xf32> to vector<1x1x128xf32>
    %311 = vector.shape_cast %310 : vector<1x1x128xf32> to vector<128xf32>
    %312 = vector.shape_cast %311 : vector<128xf32> to vector<1x1x1x128xf32>
    %313 = vector.broadcast %312 : vector<1x1x1x128xf32> to vector<2x16x16x128xf32>
    %314 = arith.mulf %309, %313 : vector<2x16x16x128xf32>
    %315 = arith.addf %308, %314 : vector<2x16x16x128xf32>
    %316 = vector.extract_strided_slice %300 {offsets = [0, 0, 0, 0], sizes = [2, 16, 16, 128], strides = [1, 1, 1, 1]} : vector<2x18x16x128xf32> to vector<2x16x16x128xf32>
    %317 = vector.extract_strided_slice %287 {offsets = [0, 2, 0], sizes = [1, 1, 128], strides = [1, 1, 1]} : vector<3x3x128xf32> to vector<1x1x128xf32>
    %318 = vector.shape_cast %317 : vector<1x1x128xf32> to vector<128xf32>
    %319 = vector.shape_cast %318 : vector<128xf32> to vector<1x1x1x128xf32>
    %320 = vector.broadcast %319 : vector<1x1x1x128xf32> to vector<2x16x16x128xf32>
    %321 = arith.mulf %316, %320 : vector<2x16x16x128xf32>
    %322 = arith.addf %315, %321 : vector<2x16x16x128xf32>
    %323 = vector.extract_strided_slice %298 {offsets = [0, 1, 0, 0], sizes = [2, 16, 16, 128], strides = [1, 1, 1, 1]} : vector<2x18x16x128xf32> to vector<2x16x16x128xf32>
    %324 = vector.extract_strided_slice %287 {offsets = [1, 0, 0], sizes = [1, 1, 128], strides = [1, 1, 1]} : vector<3x3x128xf32> to vector<1x1x128xf32>
    %325 = vector.shape_cast %324 : vector<1x1x128xf32> to vector<128xf32>
    %326 = vector.shape_cast %325 : vector<128xf32> to vector<1x1x1x128xf32>
    %327 = vector.broadcast %326 : vector<1x1x1x128xf32> to vector<2x16x16x128xf32>
    %328 = arith.mulf %323, %327 : vector<2x16x16x128xf32>
    %329 = arith.addf %322, %328 : vector<2x16x16x128xf32>
    %330 = vector.extract_strided_slice %295 {offsets = [0, 1, 0, 0], sizes = [2, 16, 16, 128], strides = [1, 1, 1, 1]} : vector<2x18x16x128xf32> to vector<2x16x16x128xf32>
    %331 = vector.extract_strided_slice %287 {offsets = [1, 1, 0], sizes = [1, 1, 128], strides = [1, 1, 1]} : vector<3x3x128xf32> to vector<1x1x128xf32>
    %332 = vector.shape_cast %331 : vector<1x1x128xf32> to vector<128xf32>
    %333 = vector.shape_cast %332 : vector<128xf32> to vector<1x1x1x128xf32>
    %334 = vector.broadcast %333 : vector<1x1x1x128xf32> to vector<2x16x16x128xf32>
    %335 = arith.mulf %330, %334 : vector<2x16x16x128xf32>
    %336 = arith.addf %329, %335 : vector<2x16x16x128xf32>
    %337 = vector.extract_strided_slice %300 {offsets = [0, 1, 0, 0], sizes = [2, 16, 16, 128], strides = [1, 1, 1, 1]} : vector<2x18x16x128xf32> to vector<2x16x16x128xf32>
    %338 = vector.extract_strided_slice %287 {offsets = [1, 2, 0], sizes = [1, 1, 128], strides = [1, 1, 1]} : vector<3x3x128xf32> to vector<1x1x128xf32>
    %339 = vector.shape_cast %338 : vector<1x1x128xf32> to vector<128xf32>
    %340 = vector.shape_cast %339 : vector<128xf32> to vector<1x1x1x128xf32>
    %341 = vector.broadcast %340 : vector<1x1x1x128xf32> to vector<2x16x16x128xf32>
    %342 = arith.mulf %337, %341 : vector<2x16x16x128xf32>
    %343 = arith.addf %336, %342 : vector<2x16x16x128xf32>
    %344 = vector.extract_strided_slice %298 {offsets = [0, 2, 0, 0], sizes = [2, 16, 16, 128], strides = [1, 1, 1, 1]} : vector<2x18x16x128xf32> to vector<2x16x16x128xf32>
    %345 = vector.extract_strided_slice %287 {offsets = [2, 0, 0], sizes = [1, 1, 128], strides = [1, 1, 1]} : vector<3x3x128xf32> to vector<1x1x128xf32>
    %346 = vector.shape_cast %345 : vector<1x1x128xf32> to vector<128xf32>
    %347 = vector.shape_cast %346 : vector<128xf32> to vector<1x1x1x128xf32>
    %348 = vector.broadcast %347 : vector<1x1x1x128xf32> to vector<2x16x16x128xf32>
    %349 = arith.mulf %344, %348 : vector<2x16x16x128xf32>
    %350 = arith.addf %343, %349 : vector<2x16x16x128xf32>
    %351 = vector.extract_strided_slice %295 {offsets = [0, 2, 0, 0], sizes = [2, 16, 16, 128], strides = [1, 1, 1, 1]} : vector<2x18x16x128xf32> to vector<2x16x16x128xf32>
    %352 = vector.extract_strided_slice %287 {offsets = [2, 1, 0], sizes = [1, 1, 128], strides = [1, 1, 1]} : vector<3x3x128xf32> to vector<1x1x128xf32>
    %353 = vector.shape_cast %352 : vector<1x1x128xf32> to vector<128xf32>
    %354 = vector.shape_cast %353 : vector<128xf32> to vector<1x1x1x128xf32>
    %355 = vector.broadcast %354 : vector<1x1x1x128xf32> to vector<2x16x16x128xf32>
    %356 = arith.mulf %351, %355 : vector<2x16x16x128xf32>
    %357 = arith.addf %350, %356 : vector<2x16x16x128xf32>
    %358 = vector.extract_strided_slice %300 {offsets = [0, 2, 0, 0], sizes = [2, 16, 16, 128], strides = [1, 1, 1, 1]} : vector<2x18x16x128xf32> to vector<2x16x16x128xf32>
    %359 = vector.extract_strided_slice %287 {offsets = [2, 2, 0], sizes = [1, 1, 128], strides = [1, 1, 1]} : vector<3x3x128xf32> to vector<1x1x128xf32>
    %360 = vector.shape_cast %359 : vector<1x1x128xf32> to vector<128xf32>
    %361 = vector.shape_cast %360 : vector<128xf32> to vector<1x1x1x128xf32>
    %362 = vector.broadcast %361 : vector<1x1x1x128xf32> to vector<2x16x16x128xf32>
    %363 = arith.mulf %358, %362 : vector<2x16x16x128xf32>
    %364 = arith.addf %357, %363 : vector<2x16x16x128xf32>
    %365 = vector.shape_cast %364 : vector<2x16x16x128xf32> to vector<512x128xf32>
    %cst_82 = arith.constant dense<0.000000e+00> : vector<128xf32>
    %366 = vector.multi_reduction <add>, %365, %cst_82 [0] : vector<512x128xf32> to vector<128xf32>
    %367 = vector.shape_cast %366 : vector<128xf32> to vector<1x128xf32>
    %cst_83 = arith.constant 0.001953125 : f32
    %368 = vector.broadcast %cst_83 : f32 to vector<1x128xf32>
    %369 = arith.mulf %367, %368 : vector<1x128xf32>
    %370 = arith.mulf %365, %365 : vector<512x128xf32>
    %cst_84 = arith.constant dense<0.000000e+00> : vector<128xf32>
    %371 = vector.multi_reduction <add>, %370, %cst_84 [0] : vector<512x128xf32> to vector<128xf32>
    %372 = vector.shape_cast %371 : vector<128xf32> to vector<1x128xf32>
    %cst_85 = arith.constant 0.001953125 : f32
    %373 = vector.broadcast %cst_85 : f32 to vector<1x128xf32>
    %374 = arith.mulf %372, %373 : vector<1x128xf32>
    %375 = arith.mulf %369, %369 : vector<1x128xf32>
    %376 = arith.subf %374, %375 : vector<1x128xf32>
    %cst_86 = arith.constant 0.000000e+00 : f32
    %377 = vector.broadcast %cst_86 : f32 to vector<1x128xf32>
    %378 = arith.maximumf %376, %377 : vector<1x128xf32>
    %cst_87 = arith.constant 9.99999974E-6 : f32
    %379 = vector.broadcast %cst_87 : f32 to vector<1x128xf32>
    %380 = arith.addf %378, %379 : vector<1x128xf32>
    %381 = math.rsqrt %380 : vector<1x128xf32>
    %382 = arith.mulf %381, %288 : vector<1x128xf32>
    %383 = arith.mulf %369, %382 : vector<1x128xf32>
    %384 = arith.subf %289, %383 : vector<1x128xf32>
    %385 = vector.broadcast %382 : vector<1x128xf32> to vector<512x128xf32>
    %386 = arith.mulf %365, %385 : vector<512x128xf32>
    %387 = vector.broadcast %384 : vector<1x128xf32> to vector<512x128xf32>
    %388 = arith.addf %386, %387 : vector<512x128xf32>
    %cst_88 = arith.constant 0.000000e+00 : f32
    %389 = vector.broadcast %cst_88 : f32 to vector<512x128xf32>
    %390 = arith.maximumf %388, %389 : vector<512x128xf32>
    %391 = arith.truncf %390 : vector<512x128xf32> to vector<512x128xbf16>
    %cst_89 = arith.constant dense<0.000000e+00> : vector<512x128xf32>
    %392 = tpu.matmul %391, %290, %cst_89 {dimension_numbers = #tpu.dot_dimension_numbers<[1], [0], [0], [1], [0, 0, 1, 1], [], []>} : vector<512x128xbf16>, vector<128x128xbf16>, vector<512x128xf32> -> vector<512x128xf32>
    %cst_90 = arith.constant dense<0.000000e+00> : vector<128xf32>
    %393 = vector.multi_reduction <add>, %392, %cst_90 [0] : vector<512x128xf32> to vector<128xf32>
    %394 = vector.shape_cast %393 : vector<128xf32> to vector<1x128xf32>
    %cst_91 = arith.constant 0.001953125 : f32
    %395 = vector.broadcast %cst_91 : f32 to vector<1x128xf32>
    %396 = arith.mulf %394, %395 : vector<1x128xf32>
    %397 = arith.mulf %392, %392 : vector<512x128xf32>
    %cst_92 = arith.constant dense<0.000000e+00> : vector<128xf32>
    %398 = vector.multi_reduction <add>, %397, %cst_92 [0] : vector<512x128xf32> to vector<128xf32>
    %399 = vector.shape_cast %398 : vector<128xf32> to vector<1x128xf32>
    %cst_93 = arith.constant 0.001953125 : f32
    %400 = vector.broadcast %cst_93 : f32 to vector<1x128xf32>
    %401 = arith.mulf %399, %400 : vector<1x128xf32>
    %402 = arith.mulf %396, %396 : vector<1x128xf32>
    %403 = arith.subf %401, %402 : vector<1x128xf32>
    %cst_94 = arith.constant 0.000000e+00 : f32
    %404 = vector.broadcast %cst_94 : f32 to vector<1x128xf32>
    %405 = arith.maximumf %403, %404 : vector<1x128xf32>
    %cst_95 = arith.constant 9.99999974E-6 : f32
    %406 = vector.broadcast %cst_95 : f32 to vector<1x128xf32>
    %407 = arith.addf %405, %406 : vector<1x128xf32>
    %408 = math.rsqrt %407 : vector<1x128xf32>
    %409 = arith.mulf %408, %291 : vector<1x128xf32>
    %410 = arith.mulf %396, %409 : vector<1x128xf32>
    %411 = arith.subf %292, %410 : vector<1x128xf32>
    %412 = vector.broadcast %409 : vector<1x128xf32> to vector<512x128xf32>
    %413 = arith.mulf %392, %412 : vector<512x128xf32>
    %414 = vector.broadcast %411 : vector<1x128xf32> to vector<512x128xf32>
    %415 = arith.addf %413, %414 : vector<512x128xf32>
    %cst_96 = arith.constant 0.000000e+00 : f32
    %416 = vector.broadcast %cst_96 : f32 to vector<512x128xf32>
    %417 = arith.maximumf %415, %416 : vector<512x128xf32>
    %418 = vector.shape_cast %417 : vector<512x128xf32> to vector<2x16x16x128xf32>
    %c0_97 = arith.constant 0 : index
    %c0_98 = arith.constant 0 : index
    %c0_99 = arith.constant 0 : index
    %c0_100 = arith.constant 0 : index
    %419 = vector.load %arg20[%c0_97, %c0_98, %c0_99, %c0_100] : memref<2x16x16x128xf32, #tpu.memory_space<vmem>>, vector<2x16x16x128xf32>
    tpu.vector_store %arg20[%c0_97, %c0_98, %c0_99, %c0_100], %418 {strides = array<i32>} : memref<2x16x16x128xf32, #tpu.memory_space<vmem>>, vector<2x16x16x128xf32>,
    return
  }
  func.func @transform_0(%arg0: i32) -> (i32, i32) {
    %c0_i32 = arith.constant 0 : i32
    %c0_i32_0 = arith.constant 0 : i32
    %c0_i32_1 = arith.constant 0 : i32
    return %c0_i32, %c0_i32_0 : i32, i32
  }
  func.func @transform_1(%arg0: i32) -> (i32, i32, i32) {
    %c0_i32 = arith.constant 0 : i32
    %c0_i32_0 = arith.constant 0 : i32
    %c0_i32_1 = arith.constant 0 : i32
    %c0_i32_2 = arith.constant 0 : i32
    return %c0_i32, %c0_i32_0, %c0_i32_1 : i32, i32, i32
  }
  func.func @transform_2(%arg0: i32) -> (i32, i32) {
    %c0_i32 = arith.constant 0 : i32
    %c0_i32_0 = arith.constant 0 : i32
    %c0_i32_1 = arith.constant 0 : i32
    return %c0_i32, %c0_i32_0 : i32, i32
  }
  func.func @transform_3(%arg0: i32) -> (i32, i32) {
    %c0_i32 = arith.constant 0 : i32
    %c0_i32_0 = arith.constant 0 : i32
    %c0_i32_1 = arith.constant 0 : i32
    return %c0_i32, %c0_i32_0 : i32, i32
  }
  func.func @transform_4(%arg0: i32) -> (i32, i32) {
    %c0_i32 = arith.constant 0 : i32
    %c0_i32_0 = arith.constant 0 : i32
    %c0_i32_1 = arith.constant 0 : i32
    return %c0_i32, %c0_i32_0 : i32, i32
  }
  func.func @transform_5(%arg0: i32) -> (i32, i32) {
    %c0_i32 = arith.constant 0 : i32
    %c0_i32_0 = arith.constant 0 : i32
    %c0_i32_1 = arith.constant 0 : i32
    return %c0_i32, %c0_i32_0 : i32, i32
  }
  func.func @transform_6(%arg0: i32) -> (i32, i32) {
    %c0_i32 = arith.constant 0 : i32
    %c0_i32_0 = arith.constant 0 : i32
    %c0_i32_1 = arith.constant 0 : i32
    return %c0_i32, %c0_i32_0 : i32, i32
  }
  func.func @transform_7(%arg0: i32) -> (i32, i32, i32) {
    %c0_i32 = arith.constant 0 : i32
    %c0_i32_0 = arith.constant 0 : i32
    %c0_i32_1 = arith.constant 0 : i32
    %c0_i32_2 = arith.constant 0 : i32
    return %c0_i32, %c0_i32_0, %c0_i32_1 : i32, i32, i32
  }
  func.func @transform_8(%arg0: i32) -> (i32, i32) {
    %c0_i32 = arith.constant 0 : i32
    %c0_i32_0 = arith.constant 0 : i32
    %c0_i32_1 = arith.constant 0 : i32
    return %c0_i32, %c0_i32_0 : i32, i32
  }
  func.func @transform_9(%arg0: i32) -> (i32, i32) {
    %c0_i32 = arith.constant 0 : i32
    %c0_i32_0 = arith.constant 0 : i32
    %c0_i32_1 = arith.constant 0 : i32
    return %c0_i32, %c0_i32_0 : i32, i32
  }
  func.func @transform_10(%arg0: i32) -> (i32, i32) {
    %c0_i32 = arith.constant 0 : i32
    %c0_i32_0 = arith.constant 0 : i32
    %c0_i32_1 = arith.constant 0 : i32
    return %c0_i32, %c0_i32_0 : i32, i32
  }
  func.func @transform_11(%arg0: i32) -> (i32, i32) {
    %c0_i32 = arith.constant 0 : i32
    %c0_i32_0 = arith.constant 0 : i32
    %c0_i32_1 = arith.constant 0 : i32
    return %c0_i32, %c0_i32_0 : i32, i32
  }
  func.func @transform_12(%arg0: i32) -> (i32, i32) {
    %c0_i32 = arith.constant 0 : i32
    %c0_i32_0 = arith.constant 0 : i32
    %c0_i32_1 = arith.constant 0 : i32
    return %c0_i32, %c0_i32_0 : i32, i32
  }
  func.func @transform_13(%arg0: i32) -> (i32, i32, i32) {
    %c0_i32 = arith.constant 0 : i32
    %c0_i32_0 = arith.constant 0 : i32
    %c0_i32_1 = arith.constant 0 : i32
    %c0_i32_2 = arith.constant 0 : i32
    return %c0_i32, %c0_i32_0, %c0_i32_1 : i32, i32, i32
  }
  func.func @transform_14(%arg0: i32) -> (i32, i32) {
    %c0_i32 = arith.constant 0 : i32
    %c0_i32_0 = arith.constant 0 : i32
    %c0_i32_1 = arith.constant 0 : i32
    return %c0_i32, %c0_i32_0 : i32, i32
  }
  func.func @transform_15(%arg0: i32) -> (i32, i32) {
    %c0_i32 = arith.constant 0 : i32
    %c0_i32_0 = arith.constant 0 : i32
    %c0_i32_1 = arith.constant 0 : i32
    return %c0_i32, %c0_i32_0 : i32, i32
  }
  func.func @transform_16(%arg0: i32) -> (i32, i32) {
    %c0_i32 = arith.constant 0 : i32
    %c0_i32_0 = arith.constant 0 : i32
    %c0_i32_1 = arith.constant 0 : i32
    return %c0_i32, %c0_i32_0 : i32, i32
  }
  func.func @transform_17(%arg0: i32) -> (i32, i32) {
    %c0_i32 = arith.constant 0 : i32
    %c0_i32_0 = arith.constant 0 : i32
    %c0_i32_1 = arith.constant 0 : i32
    return %c0_i32, %c0_i32_0 : i32, i32
  }
  func.func @transform_18(%arg0: i32) -> (i32, i32) {
    %c0_i32 = arith.constant 0 : i32
    %c0_i32_0 = arith.constant 0 : i32
    %c0_i32_1 = arith.constant 0 : i32
    return %c0_i32, %c0_i32_0 : i32, i32
  }
  func.func @transform_19(%arg0: i32) -> (i32, i32, i32, i32) {
    %c0_i32 = arith.constant 0 : i32
    %c0_i32_0 = arith.constant 0 : i32
    %c0_i32_1 = arith.constant 0 : i32
    %c0_i32_2 = arith.constant 0 : i32
    %c0_i32_3 = arith.constant 0 : i32
    return %c0_i32, %c0_i32_0, %c0_i32_1, %c0_i32_2 : i32, i32, i32, i32
  }
}

</mosaic_0001>

<llo_original>
// kernel: group_single_unit_xblock.1
$region0: #{group_single_unit_xblock.1}
  #allocation0 [shape = 'u32[]', space=smem, size = 0x4, offset = 0x4, fixed_abs, tag = 'smem constant byte address 0x4 - core index']
  #allocation1 [shape = 'u32[144,128]{1,0:T(1,128)}', space=vmem, size = 0x12000, scoped, tag = 'internal scratch']
  %s0 = inlined_call_operand.vmem [shape: f32[512,4], index: 0, kind: input, shape index: {}]
  %s1 = inlined_call_operand.vmem [shape: f32[3,3,64], index: 1, kind: input, shape index: {}]
  %s2 = inlined_call_operand.vmem [shape: f32[1,64], index: 2, kind: input, shape index: {}]
  %s3 = inlined_call_operand.vmem [shape: f32[1,64], index: 3, kind: input, shape index: {}]
  %s4 = inlined_call_operand.vmem [shape: bf16[64,64], index: 4, kind: input, shape index: {}]
  %s5 = inlined_call_operand.vmem [shape: f32[1,64], index: 5, kind: input, shape index: {}]
  %s6 = inlined_call_operand.vmem [shape: f32[1,64], index: 6, kind: input, shape index: {}]
  %s7 = inlined_call_operand.vmem [shape: f32[3,3,128], index: 7, kind: input, shape index: {}]
  %s8 = inlined_call_operand.vmem [shape: f32[1,128], index: 8, kind: input, shape index: {}]
  %s9 = inlined_call_operand.vmem [shape: f32[1,128], index: 9, kind: input, shape index: {}]
  %s10 = inlined_call_operand.vmem [shape: bf16[128,128], index: 10, kind: input, shape index: {}]
  %s11 = inlined_call_operand.vmem [shape: f32[1,128], index: 11, kind: input, shape index: {}]
  %s12 = inlined_call_operand.vmem [shape: f32[1,128], index: 12, kind: input, shape index: {}]
  %s13 = inlined_call_operand.vmem [shape: f32[3,3,128], index: 13, kind: input, shape index: {}]
  %s14 = inlined_call_operand.vmem [shape: f32[1,128], index: 14, kind: input, shape index: {}]
  %s15 = inlined_call_operand.vmem [shape: f32[1,128], index: 15, kind: input, shape index: {}]
  %s16 = inlined_call_operand.vmem [shape: bf16[128,128], index: 16, kind: input, shape index: {}]
  %s17 = inlined_call_operand.vmem [shape: f32[1,128], index: 17, kind: input, shape index: {}]
  %s18 = inlined_call_operand.vmem [shape: f32[1,128], index: 18, kind: input, shape index: {}]
  %s19 = inlined_call_operand.hbm [shape: f32[2,16,16,128], index: 19, kind: output, shape index: {}]
  %s20 = sld [smem:[#allocation0]]
  $region86: #{group_single_unit_xblock.1} parent=0
    _
  %s22 = ssub.s32 1, %s20
  %s23 = scalar_select 0, %s22, %s20
  $region1: #{group_single_unit_xblock.1} parent=0
    #allocation2 [shape = 'u8[262144]{0}', space=vmem, size = 0x40000, scoped, tag = 'output window, operand 0, single buffered']
    #allocation3 [shape = 's32[1]{0}', space=sflag, size = 0x4, scoped, tag = 'scoped memory for group_single_unit_xblock.1']
    %24 = vsyncpa [#allocation3], 0
    // Predicated region
    $region2: #{group_single_unit_xblock.1} parent=1 // pred_check
      _
    $region3: #{group_single_unit_xblock.1} parent=1 // pred_check_branch
      %26 = sbr.rel (0) target = $region5
    $region4: #{group_single_unit_xblock.1} parent=1 // pred_region
      _
    $region5: #{group_single_unit_xblock.1} parent=1 // pred_fallthru
      _
    // Predicated region
    $region6: #{group_single_unit_xblock.1} parent=1 // pred_check
      _
    $region7: #{group_single_unit_xblock.1} parent=1 // pred_check_branch
      %28 = sbr.rel (0) target = $region9
    $region8: #{group_single_unit_xblock.1} parent=1 // pred_region
      _
    $region9: #{group_single_unit_xblock.1} parent=1 // pred_fallthru
      _
    // Predicated region
    $region10: #{group_single_unit_xblock.1} parent=1 // pred_check
      _
    $region11: #{group_single_unit_xblock.1} parent=1 // pred_check_branch
      %30 = sbr.rel (0) target = $region13
    $region12: #{group_single_unit_xblock.1} parent=1 // pred_region
      _
    $region13: #{group_single_unit_xblock.1} parent=1 // pred_fallthru
      _
    // Predicated region
    $region14: #{group_single_unit_xblock.1} parent=1 // pred_check
      _
    $region15: #{group_single_unit_xblock.1} parent=1 // pred_check_branch
      %32 = sbr.rel (0) target = $region17
    $region16: #{group_single_unit_xblock.1} parent=1 // pred_region
      _
    $region17: #{group_single_unit_xblock.1} parent=1 // pred_fallthru
      _
    // Predicated region
    $region18: #{group_single_unit_xblock.1} parent=1 // pred_check
      _
    $region19: #{group_single_unit_xblock.1} parent=1 // pred_check_branch
      %34 = sbr.rel (0) target = $region21
    $region20: #{group_single_unit_xblock.1} parent=1 // pred_region
      _
    $region21: #{group_single_unit_xblock.1} parent=1 // pred_fallthru
      _
    // Predicated region
    $region22: #{group_single_unit_xblock.1} parent=1 // pred_check
      _
    $region23: #{group_single_unit_xblock.1} parent=1 // pred_check_branch
      %36 = sbr.rel (0) target = $region25
    $region24: #{group_single_unit_xblock.1} parent=1 // pred_region
      _
    $region25: #{group_single_unit_xblock.1} parent=1 // pred_fallthru
      _
    // Predicated region
    $region26: #{group_single_unit_xblock.1} parent=1 // pred_check
      _
    $region27: #{group_single_unit_xblock.1} parent=1 // pred_check_branch
      %38 = sbr.rel (0) target = $region29
    $region28: #{group_single_unit_xblock.1} parent=1 // pred_region
      _
    $region29: #{group_single_unit_xblock.1} parent=1 // pred_fallthru
      _
    // Predicated region
    $region30: #{group_single_unit_xblock.1} parent=1 // pred_check
      _
    $region31: #{group_single_unit_xblock.1} parent=1 // pred_check_branch
      %40 = sbr.rel (0) target = $region33
    $region32: #{group_single_unit_xblock.1} parent=1 // pred_region
      _
    $region33: #{group_single_unit_xblock.1} parent=1 // pred_fallthru
      _
    // Predicated region
    $region34: #{group_single_unit_xblock.1} parent=1 // pred_check
      _
    $region35: #{group_single_unit_xblock.1} parent=1 // pred_check_branch
      %42 = sbr.rel (0) target = $region37
    $region36: #{group_single_unit_xblock.1} parent=1 // pred_region
      _
    $region37: #{group_single_unit_xblock.1} parent=1 // pred_fallthru
      _
    // Predicated region
    $region38: #{group_single_unit_xblock.1} parent=1 // pred_check
      _
    $region39: #{group_single_unit_xblock.1} parent=1 // pred_check_branch
      %44 = sbr.rel (0) target = $region41
    $region40: #{group_single_unit_xblock.1} parent=1 // pred_region
      _
    $region41: #{group_single_unit_xblock.1} parent=1 // pred_fallthru
      _
    // Predicated region
    $region42: #{group_single_unit_xblock.1} parent=1 // pred_check
      _
    $region43: #{group_single_unit_xblock.1} parent=1 // pred_check_branch
      %46 = sbr.rel (0) target = $region45
    $region44: #{group_single_unit_xblock.1} parent=1 // pred_region
      _
    $region45: #{group_single_unit_xblock.1} parent=1 // pred_fallthru
      _
    // Predicated region
    $region46: #{group_single_unit_xblock.1} parent=1 // pred_check
      _
    $region47: #{group_single_unit_xblock.1} parent=1 // pred_check_branch
      %48 = sbr.rel (0) target = $region49
    $region48: #{group_single_unit_xblock.1} parent=1 // pred_region
      _
    $region49: #{group_single_unit_xblock.1} parent=1 // pred_fallthru
      _
    // Predicated region
    $region50: #{group_single_unit_xblock.1} parent=1 // pred_check
      _
    $region51: #{group_single_unit_xblock.1} parent=1 // pred_check_branch
      %50 = sbr.rel (0) target = $region53
    $region52: #{group_single_unit_xblock.1} parent=1 // pred_region
      _
    $region53: #{group_single_unit_xblock.1} parent=1 // pred_fallthru
      _
    // Predicated region
    $region54: #{group_single_unit_xblock.1} parent=1 // pred_check
      _
    $region55: #{group_single_unit_xblock.1} parent=1 // pred_check_branch
      %52 = sbr.rel (0) target = $region57
    $region56: #{group_single_unit_xblock.1} parent=1 // pred_region
      _
    $region57: #{group_single_unit_xblock.1} parent=1 // pred_fallthru
      _
    // Predicated region
    $region58: #{group_single_unit_xblock.1} parent=1 // pred_check
      _
    $region59: #{group_single_unit_xblock.1} parent=1 // pred_check_branch
      %54 = sbr.rel (0) target = $region61
    $region60: #{group_single_unit_xblock.1} parent=1 // pred_region
      _
    $region61: #{group_single_unit_xblock.1} parent=1 // pred_fallthru
      _
    // Predicated region
    $region62: #{group_single_unit_xblock.1} parent=1 // pred_check
      _
    $region63: #{group_single_unit_xblock.1} parent=1 // pred_check_branch
      %56 = sbr.rel (0) target = $region65
    $region64: #{group_single_unit_xblock.1} parent=1 // pred_region
      _
    $region65: #{group_single_unit_xblock.1} parent=1 // pred_fallthru
      _
    // Predicated region
    $region66: #{group_single_unit_xblock.1} parent=1 // pred_check
      _
    $region67: #{group_single_unit_xblock.1} parent=1 // pred_check_branch
      %58 = sbr.rel (0) target = $region69
    $region68: #{group_single_unit_xblock.1} parent=1 // pred_region
      _
    $region69: #{group_single_unit_xblock.1} parent=1 // pred_fallthru
      _
    // Predicated region
    $region70: #{group_single_unit_xblock.1} parent=1 // pred_check
      _
    $region71: #{group_single_unit_xblock.1} parent=1 // pred_check_branch
      %60 = sbr.rel (0) target = $region73
    $region72: #{group_single_unit_xblock.1} parent=1 // pred_region
      _
    $region73: #{group_single_unit_xblock.1} parent=1 // pred_fallthru
      _
    // Predicated region
    $region74: #{group_single_unit_xblock.1} parent=1 // pred_check
      _
    $region75: #{group_single_unit_xblock.1} parent=1 // pred_check_branch
      %62 = sbr.rel (0) target = $region77
    $region76: #{group_single_unit_xblock.1} parent=1 // pred_region
      _
    $region77: #{group_single_unit_xblock.1} parent=1 // pred_fallthru
      _
    %v64 = vld [vmem:[%s0] sm:$0xff]
    %v65 = vld [vmem:[%s0 + $0x8] sm:$0xff]
    %v66 = vld [vmem:[%s0 + $0x10] sm:$0xff]
    %v67 = vld [vmem:[%s0 + $0x18] sm:$0xff]
    %v68 = vld [vmem:[%s0 + $0x20] sm:$0xff]
    %v69 = vld [vmem:[%s0 + $0x28] sm:$0xff]
    %v70 = vld [vmem:[%s0 + $0x30] sm:$0xff]
    %v71 = vld [vmem:[%s0 + $0x38] sm:$0xff]
    %v72 = vld [vmem:[%s0 + $0x40] sm:$0xff]
    %v73 = vld [vmem:[%s0 + $0x48] sm:$0xff]
    %v74 = vld [vmem:[%s0 + $0x50] sm:$0xff]
    %v75 = vld [vmem:[%s0 + $0x58] sm:$0xff]
    %v76 = vld [vmem:[%s0 + $0x60] sm:$0xff]
    %v77 = vld [vmem:[%s0 + $0x68] sm:$0xff]
    %v78 = vld [vmem:[%s0 + $0x70] sm:$0xff]
    %v79 = vld [vmem:[%s0 + $0x78] sm:$0xff]
    %v80 = vld [vmem:[%s0 + $0x80] sm:$0xff]
    %v81 = vld [vmem:[%s0 + $0x88] sm:$0xff]
    %v82 = vld [vmem:[%s0 + $0x90] sm:$0xff]
    %v83 = vld [vmem:[%s0 + $0x98] sm:$0xff]
    %v84 = vld [vmem:[%s0 + $0xa0] sm:$0xff]
    %v85 = vld [vmem:[%s0 + $0xa8] sm:$0xff]
    %v86 = vld [vmem:[%s0 + $0xb0] sm:$0xff]
    %v87 = vld [vmem:[%s0 + $0xb8] sm:$0xff]
    %v88 = vld [vmem:[%s0 + $0xc0] sm:$0xff]
    %v89 = vld [vmem:[%s0 + $0xc8] sm:$0xff]
    %v90 = vld [vmem:[%s0 + $0xd0] sm:$0xff]
    %v91 = vld [vmem:[%s0 + $0xd8] sm:$0xff]
    %v92 = vld [vmem:[%s0 + $0xe0] sm:$0xff]
    %v93 = vld [vmem:[%s0 + $0xe8] sm:$0xff]
    %v94 = vld [vmem:[%s0 + $0xf0] sm:$0xff]
    %v95 = vld [vmem:[%s0 + $0xf8] sm:$0xff]
    %v96 = vld [vmem:[%s0 + $0x100] sm:$0xff]
    %v97 = vld [vmem:[%s0 + $0x108] sm:$0xff]
    %v98 = vld [vmem:[%s0 + $0x110] sm:$0xff]
    %v99 = vld [vmem:[%s0 + $0x118] sm:$0xff]
    %v100 = vld [vmem:[%s0 + $0x120] sm:$0xff]
    %v101 = vld [vmem:[%s0 + $0x128] sm:$0xff]
    %v102 = vld [vmem:[%s0 + $0x130] sm:$0xff]
    %v103 = vld [vmem:[%s0 + $0x138] sm:$0xff]
    %v104 = vld [vmem:[%s0 + $0x140] sm:$0xff]
    %v105 = vld [vmem:[%s0 + $0x148] sm:$0xff]
    %v106 = vld [vmem:[%s0 + $0x150] sm:$0xff]
    %v107 = vld [vmem:[%s0 + $0x158] sm:$0xff]
    %v108 = vld [vmem:[%s0 + $0x160] sm:$0xff]
    %v109 = vld [vmem:[%s0 + $0x168] sm:$0xff]
    %v110 = vld [vmem:[%s0 + $0x170] sm:$0xff]
    %v111 = vld [vmem:[%s0 + $0x178] sm:$0xff]
    %v112 = vld [vmem:[%s0 + $0x180] sm:$0xff]
    %v113 = vld [vmem:[%s0 + $0x188] sm:$0xff]
    %v114 = vld [vmem:[%s0 + $0x190] sm:$0xff]
    %v115 = vld [vmem:[%s0 + $0x198] sm:$0xff]
    %v116 = vld [vmem:[%s0 + $0x1a0] sm:$0xff]
    %v117 = vld [vmem:[%s0 + $0x1a8] sm:$0xff]
    %v118 = vld [vmem:[%s0 + $0x1b0] sm:$0xff]
    %v119 = vld [vmem:[%s0 + $0x1b8] sm:$0xff]
    %v120 = vld [vmem:[%s0 + $0x1c0] sm:$0xff]
    %v121 = vld [vmem:[%s0 + $0x1c8] sm:$0xff]
    %v122 = vld [vmem:[%s0 + $0x1d0] sm:$0xff]
    %v123 = vld [vmem:[%s0 + $0x1d8] sm:$0xff]
    %v124 = vld [vmem:[%s0 + $0x1e0] sm:$0xff]
    %v125 = vld [vmem:[%s0 + $0x1e8] sm:$0xff]
    %v126 = vld [vmem:[%s0 + $0x1f0] sm:$0xff]
    %v127 = vld [vmem:[%s0 + $0x1f8] sm:$0xff]
    %v128 = vld [vmem:[%s1] sm:$0x7]
    %v129 = vld [vmem:[%s1 + $0x4] sm:$0x7]
    %v130 = vld [vmem:[%s1 + $0x8] sm:$0x7]
    %v131 = vld [vmem:[%s2] sm:$0x1]
    %v132 = vld [vmem:[%s3] sm:$0x1]
    %v133 = vld [vmem:[%s4] sm:$0xf]
    %v134 = vld [vmem:[%s4 + $0x4] sm:$0xf]
    %v135 = vld [vmem:[%s4 + $0x8] sm:$0xf]
    %v136 = vld [vmem:[%s4 + $0xc] sm:$0xf]
    %v137 = vld [vmem:[%s4 + $0x10] sm:$0xf]
    %v138 = vld [vmem:[%s4 + $0x14] sm:$0xf]
    %v139 = vld [vmem:[%s4 + $0x18] sm:$0xf]
    %v140 = vld [vmem:[%s4 + $0x1c] sm:$0xf]
    %v141 = vld [vmem:[%s5] sm:$0x1]
    %v142 = vld [vmem:[%s6] sm:$0x1]
    %v143 = vlaneseq
    %v144 = vshrl.u32 %v143, 7
    %v145 = vlaneseq
    %v146 = vand.u32 %v145, 127
    %v147 = vmul.u32 %v144, 16
    %vm148 = vcmp.ge.s32.totalorder %v146, %v147
    %v149 = vadd.s32 %v147, 16
    %vm150 = vcmp.lt.s32.totalorder %v146, %v149
    %vm151 = vmand %vm148, %vm150
    %v152 = vsel %vm151, 1, 0
    %v153 = vcvt.s32.f32 %v152
    %vm154 = vcmask 31744
    %v156 = vsel %vm154, %v64, 0
    %v159 = vsel %vm154, %v65, 0
    %v162 = vsel %vm154, %v66, 0
    %v165 = vsel %vm154, %v67, 0
    %v168 = vsel %vm154, %v68, 0
    %v171 = vsel %vm154, %v69, 0
    %v174 = vsel %vm154, %v70, 0
    %v177 = vsel %vm154, %v71, 0
    %v180 = vsel %vm154, %v72, 0
    %v183 = vsel %vm154, %v73, 0
    %v186 = vsel %vm154, %v74, 0
    %v189 = vsel %vm154, %v75, 0
    %v192 = vsel %vm154, %v76, 0
    %v195 = vsel %vm154, %v77, 0
    %v198 = vsel %vm154, %v78, 0
    %v201 = vsel %vm154, %v79, 0
    %v204 = vsel %vm154, %v80, 0
    %v207 = vsel %vm154, %v81, 0
    %v210 = vsel %vm154, %v82, 0
    %v213 = vsel %vm154, %v83, 0
    %v216 = vsel %vm154, %v84, 0
    %v219 = vsel %vm154, %v85, 0
    %v222 = vsel %vm154, %v86, 0
    %v225 = vsel %vm154, %v87, 0
    %v228 = vsel %vm154, %v88, 0
    %v231 = vsel %vm154, %v89, 0
    %v234 = vsel %vm154, %v90, 0
    %v237 = vsel %vm154, %v91, 0
    %v240 = vsel %vm154, %v92, 0
    %v243 = vsel %vm154, %v93, 0
    %v246 = vsel %vm154, %v94, 0
    %v249 = vsel %vm154, %v95, 0
    %v252 = vsel %vm154, %v96, 0
    %v255 = vsel %vm154, %v97, 0
    %v258 = vsel %vm154, %v98, 0
    %v261 = vsel %vm154, %v99, 0
    %v264 = vsel %vm154, %v100, 0
    %v267 = vsel %vm154, %v101, 0
    %v270 = vsel %vm154, %v102, 0
    %v273 = vsel %vm154, %v103, 0
    %v276 = vsel %vm154, %v104, 0
    %v279 = vsel %vm154, %v105, 0
    %v282 = vsel %vm154, %v106, 0
    %v285 = vsel %vm154, %v107, 0
    %v288 = vsel %vm154, %v108, 0
    %v291 = vsel %vm154, %v109, 0
    %v294 = vsel %vm154, %v110, 0
    %v297 = vsel %vm154, %v111, 0
    %v300 = vsel %vm154, %v112, 0
    %v303 = vsel %vm154, %v113, 0
    %v306 = vsel %vm154, %v114, 0
    %v309 = vsel %vm154, %v115, 0
    %v312 = vsel %vm154, %v116, 0
    %v315 = vsel %vm154, %v117, 0
    %v318 = vsel %vm154, %v118, 0
    %v321 = vsel %vm154, %v119, 0
    %v324 = vsel %vm154, %v120, 0
    %v327 = vsel %vm154, %v121, 0
    %v330 = vsel %vm154, %v122, 0
    %v333 = vsel %vm154, %v123, 0
    %v336 = vsel %vm154, %v124, 0
    %v339 = vsel %vm154, %v125, 0
    %v342 = vsel %vm154, %v126, 0
    %v345 = vsel %vm154, %v127, 0
    %vm347 = vcmask 1043456
    %v349 = vsel %vm347, %v153, 0
    %351 = vmatprep.subr.mxu0 0.0
    %352 = vmatpush1.msra.mxu0 %v349
    %353 = vmatprep.subr.mxu0 0.0
    %354 = vmatpush1.msra.mxu0 0.0
    %355 = vmatprep.subr.mxu0 0.0
    %356 = vmatpush1.msra.mxu0 0.0
    %357 = vmatprep.subr.mxu0 0.0
    %358 = vmatpush1.msra.mxu0 0.0
    %359 = vmatprep.subr.mxu0 0.0
    %360 = vmatpush1.msra.mxu0 0.0
    %361 = vmatprep.subr.mxu0 0.0
    %362 = vmatpush1.msra.mxu0 0.0
    %363 = vmatprep.subr.mxu0 0.0
    %364 = vmatpush1.msra.mxu0 0.0
    %365 = vmatprep.subr.mxu0 0.0
    %366 = vmatpush1.msra.mxu0 0.0
    %367 = vmatprep.subr.mxu0 0.0
    %368 = vmatpush1.msra.mxu0 0.0
    %369 = vmatprep.subr.mxu0 0.0
    %370 = vmatpush1.msra.mxu0 0.0
    %371 = vmatprep.subr.mxu0 0.0
    %372 = vmatpush1.msra.mxu0 0.0
    %373 = vmatprep.subr.mxu0 0.0
    %374 = vmatpush1.msra.mxu0 0.0
    %375 = vmatprep.subr.mxu0 0.0
    %376 = vmatpush1.msra.mxu0 0.0
    %377 = vmatprep.subr.mxu0 0.0
    %378 = vmatpush1.msra.mxu0 0.0
    %379 = vmatprep.subr.mxu0 0.0
    %380 = vmatpush1.msra.mxu0 0.0
    %381 = vmatprep.subr.mxu0 0.0
    %382 = vmatpush1.msra.mxu0 0.0
    %383 = vmatprep.subr.mxu0 0.0
    %384 = vmatpush1.msra.mxu0 0.0
    %385 = vmatprep.subr.mxu0 0.0
    %386 = vmatpush1.msra.mxu0 0.0
    %387 = vmatprep.subr.mxu0 0.0
    %388 = vmatpush1.msra.mxu0 0.0
    %389 = vmatprep.subr.mxu0 0.0
    %390 = vmatpush1.msra.mxu0 0.0
    %391 = vmatprep.subr.mxu0 0.0
    %392 = vmatpush1.msra.mxu0 0.0
    %393 = vmatprep.subr.mxu0 0.0
    %394 = vmatpush1.msra.mxu0 0.0
    %395 = vmatprep.subr.mxu0 0.0
    %396 = vmatpush1.msra.mxu0 0.0
    %397 = vmatprep.subr.mxu0 0.0
    %398 = vmatpush1.msra.mxu0 0.0
    %399 = vmatprep.subr.mxu0 0.0
    %400 = vmatpush1.msra.mxu0 0.0
    %401 = vmatprep.subr.mxu0 0.0
    %402 = vmatpush1.msra.mxu0 0.0
    %403 = vmatprep.subr.mxu0 0.0
    %404 = vmatpush1.msra.mxu0 0.0
    %405 = vmatprep.subr.mxu0 0.0
    %406 = vmatpush1.msra.mxu0 0.0
    %407 = vmatprep.subr.mxu0 0.0
    %408 = vmatpush1.msra.mxu0 0.0
    %409 = vmatprep.subr.mxu0 0.0
    %410 = vmatpush1.msra.mxu0 0.0
    %411 = vmatprep.subr.mxu0 0.0
    %412 = vmatpush1.msra.mxu0 0.0
    %413 = vmatprep.subr.mxu0 0.0
    %414 = vmatpush1.msra.mxu0 0.0
    %415 = vmatprep.mubr.f32.mxu0 0.0
    %416 = vmatmul.mubr.f32.gmra.mrb[0].mxu0 %v156
    %v417 = vpop.f32.mrb[0].mxu0
    %v418 = vadd.f32 0.0, %v417
    %v419 = vpop.f32.mrb[0].mxu0
    %420 = vmatprep.mubr.f32.mxu0 0.0
    %421 = vmatmul.mubr.f32.gmra.mrb[0].mxu0 %v159
    %v422 = vpop.f32.mrb[0].mxu0
    %v423 = vadd.f32 0.0, %v422
    %v424 = vpop.f32.mrb[0].mxu0
    %425 = vmatprep.mubr.f32.mxu0 0.0
    %426 = vmatmul.mubr.f32.gmra.mrb[0].mxu0 %v162
    %v427 = vpop.f32.mrb[0].mxu0
    %v428 = vadd.f32 0.0, %v427
    %v429 = vpop.f32.mrb[0].mxu0
    %430 = vmatprep.mubr.f32.mxu0 0.0
    %431 = vmatmul.mubr.f32.gmra.mrb[0].mxu0 %v165
    %v432 = vpop.f32.mrb[0].mxu0
    %v433 = vadd.f32 0.0, %v432
    %v434 = vpop.f32.mrb[0].mxu0
    %435 = vmatprep.mubr.f32.mxu0 0.0
    %436 = vmatmul.mubr.f32.gmra.mrb[0].mxu0 %v168
    %v437 = vpop.f32.mrb[0].mxu0
    %v438 = vadd.f32 0.0, %v437
    %v439 = vpop.f32.mrb[0].mxu0
    %440 = vmatprep.mubr.f32.mxu0 0.0
    %441 = vmatmul.mubr.f32.gmra.mrb[0].mxu0 %v171
    %v442 = vpop.f32.mrb[0].mxu0
    %v443 = vadd.f32 0.0, %v442
    %v444 = vpop.f32.mrb[0].mxu0
    %445 = vmatprep.mubr.f32.mxu0 0.0
    %446 = vmatmul.mubr.f32.gmra.mrb[0].mxu0 %v174
    %v447 = vpop.f32.mrb[0].mxu0
    %v448 = vadd.f32 0.0, %v447
    %v449 = vpop.f32.mrb[0].mxu0
    %450 = vmatprep.mubr.f32.mxu0 0.0
    %451 = vmatmul.mubr.f32.gmra.mrb[0].mxu0 %v177
    %v452 = vpop.f32.mrb[0].mxu0
    %v453 = vadd.f32 0.0, %v452
    %v454 = vpop.f32.mrb[0].mxu0
    %455 = vmatprep.mubr.f32.mxu0 0.0
    %456 = vmatmul.mubr.f32.gmra.mrb[0].mxu0 %v180
    %v457 = vpop.f32.mrb[0].mxu0
    %v458 = vadd.f32 0.0, %v457
    %v459 = vpop.f32.mrb[0].mxu0
    %460 = vmatprep.mubr.f32.mxu0 0.0
    %461 = vmatmul.mubr.f32.gmra.mrb[0].mxu0 %v183
    %v462 = vpop.f32.mrb[0].mxu0
    %v463 = vadd.f32 0.0, %v462
    %v464 = vpop.f32.mrb[0].mxu0
    %465 = vmatprep.mubr.f32.mxu0 0.0
    %466 = vmatmul.mubr.f32.gmra.mrb[0].mxu0 %v186
    %v467 = vpop.f32.mrb[0].mxu0
    %v468 = vadd.f32 0.0, %v467
    %v469 = vpop.f32.mrb[0].mxu0
    %470 = vmatprep.mubr.f32.mxu0 0.0
    %471 = vmatmul.mubr.f32.gmra.mrb[0].mxu0 %v189
    %v472 = vpop.f32.mrb[0].mxu0
    %v473 = vadd.f32 0.0, %v472
    %v474 = vpop.f32.mrb[0].mxu0
    %475 = vmatprep.mubr.f32.mxu0 0.0
    %476 = vmatmul.mubr.f32.gmra.mrb[0].mxu0 %v192
    %v477 = vpop.f32.mrb[0].mxu0
    %v478 = vadd.f32 0.0, %v477
    %v479 = vpop.f32.mrb[0].mxu0
    %480 = vmatprep.mubr.f32.mxu0 0.0
    %481 = vmatmul.mubr.f32.gmra.mrb[0].mxu0 %v195
    %v482 = vpop.f32.mrb[0].mxu0
    %v483 = vadd.f32 0.0, %v482
    %v484 = vpop.f32.mrb[0].mxu0
    %485 = vmatprep.mubr.f32.mxu0 0.0
    %486 = vmatmul.mubr.f32.gmra.mrb[0].mxu0 %v198
    %v487 = vpop.f32.mrb[0].mxu0
    %v488 = vadd.f32 0.0, %v487
    %v489 = vpop.f32.mrb[0].mxu0
    %490 = vmatprep.mubr.f32.mxu0 0.0
    %491 = vmatmul.mubr.f32.gmra.mrb[0].mxu0 %v201
    %v492 = vpop.f32.mrb[0].mxu0
    %v493 = vadd.f32 0.0, %v492
    %v494 = vpop.f32.mrb[0].mxu0
    %495 = vmatprep.mubr.f32.mxu0 0.0
    %496 = vmatmul.mubr.f32.gmra.mrb[0].mxu0 %v204
    %v497 = vpop.f32.mrb[0].mxu0
    %v498 = vadd.f32 0.0, %v497
    %v499 = vpop.f32.mrb[0].mxu0
    %500 = vmatprep.mubr.f32.mxu0 0.0
    %501 = vmatmul.mubr.f32.gmra.mrb[0].mxu0 %v207
    %v502 = vpop.f32.mrb[0].mxu0
    %v503 = vadd.f32 0.0, %v502
    %v504 = vpop.f32.mrb[0].mxu0
    %505 = vmatprep.mubr.f32.mxu0 0.0
    %506 = vmatmul.mubr.f32.gmra.mrb[0].mxu0 %v210
    %v507 = vpop.f32.mrb[0].mxu0
    %v508 = vadd.f32 0.0, %v507
    %v509 = vpop.f32.mrb[0].mxu0
    %510 = vmatprep.mubr.f32.mxu0 0.0
    %511 = vmatmul.mubr.f32.gmra.mrb[0].mxu0 %v213
    %v512 = vpop.f32.mrb[0].mxu0
    %v513 = vadd.f32 0.0, %v512
    %v514 = vpop.f32.mrb[0].mxu0
    %515 = vmatprep.mubr.f32.mxu0 0.0
    %516 = vmatmul.mubr.f32.gmra.mrb[0].mxu0 %v216
    %v517 = vpop.f32.mrb[0].mxu0
    %v518 = vadd.f32 0.0, %v517
    %v519 = vpop.f32.mrb[0].mxu0
    %520 = vmatprep.mubr.f32.mxu0 0.0
    %521 = vmatmul.mubr.f32.gmra.mrb[0].mxu0 %v219
    %v522 = vpop.f32.mrb[0].mxu0
    %v523 = vadd.f32 0.0, %v522
    %v524 = vpop.f32.mrb[0].mxu0
    %525 = vmatprep.mubr.f32.mxu0 0.0
    %526 = vmatmul.mubr.f32.gmra.mrb[0].mxu0 %v222
    %v527 = vpop.f32.mrb[0].mxu0
    %v528 = vadd.f32 0.0, %v527
    %v529 = vpop.f32.mrb[0].mxu0
    %530 = vmatprep.mubr.f32.mxu0 0.0
    %531 = vmatmul.mubr.f32.gmra.mrb[0].mxu0 %v225
    %v532 = vpop.f32.mrb[0].mxu0
    %v533 = vadd.f32 0.0, %v532
    %v534 = vpop.f32.mrb[0].mxu0
    %535 = vmatprep.mubr.f32.mxu0 0.0
    %536 = vmatmul.mubr.f32.gmra.mrb[0].mxu0 %v228
    %v537 = vpop.f32.mrb[0].mxu0
    %v538 = vadd.f32 0.0, %v537
    %v539 = vpop.f32.mrb[0].mxu0
    %540 = vmatprep.mubr.f32.mxu0 0.0
    %541 = vmatmul.mubr.f32.gmra.mrb[0].mxu0 %v231
    %v542 = vpop.f32.mrb[0].mxu0
    %v543 = vadd.f32 0.0, %v542
    %v544 = vpop.f32.mrb[0].mxu0
    %545 = vmatprep.mubr.f32.mxu0 0.0
    %546 = vmatmul.mubr.f32.gmra.mrb[0].mxu0 %v234
    %v547 = vpop.f32.mrb[0].mxu0
    %v548 = vadd.f32 0.0, %v547
    %v549 = vpop.f32.mrb[0].mxu0
    %550 = vmatprep.mubr.f32.mxu0 0.0
    %551 = vmatmul.mubr.f32.gmra.mrb[0].mxu0 %v237
    %v552 = vpop.f32.mrb[0].mxu0
    %v553 = vadd.f32 0.0, %v552
    %v554 = vpop.f32.mrb[0].mxu0
    %555 = vmatprep.mubr.f32.mxu0 0.0
    %556 = vmatmul.mubr.f32.gmra.mrb[0].mxu0 %v240
    %v557 = vpop.f32.mrb[0].mxu0
    %v558 = vadd.f32 0.0, %v557
    %v559 = vpop.f32.mrb[0].mxu0
    %560 = vmatprep.mubr.f32.mxu0 0.0
    %561 = vmatmul.mubr.f32.gmra.mrb[0].mxu0 %v243
    %v562 = vpop.f32.mrb[0].mxu0
    %v563 = vadd.f32 0.0, %v562
    %v564 = vpop.f32.mrb[0].mxu0
    %565 = vmatprep.mubr.f32.mxu0 0.0
    %566 = vmatmul.mubr.f32.gmra.mrb[0].mxu0 %v246
    %v567 = vpop.f32.mrb[0].mxu0
    %v568 = vadd.f32 0.0, %v567
    %v569 = vpop.f32.mrb[0].mxu0
    %570 = vmatprep.mubr.f32.mxu0 0.0
    %571 = vmatmul.mubr.f32.gmra.mrb[0].mxu0 %v249
    %v572 = vpop.f32.mrb[0].mxu0
    %v573 = vadd.f32 0.0, %v572
    %v574 = vpop.f32.mrb[0].mxu0
    %575 = vmatprep.mubr.f32.mxu0 0.0
    %576 = vmatmul.mubr.f32.gmra.mrb[0].mxu0 %v252
    %v577 = vpop.f32.mrb[0].mxu0
    %v578 = vadd.f32 0.0, %v577
    %v579 = vpop.f32.mrb[0].mxu0
    %580 = vmatprep.mubr.f32.mxu0 0.0
    %581 = vmatmul.mubr.f32.gmra.mrb[0].mxu0 %v255
    %v582 = vpop.f32.mrb[0].mxu0
    %v583 = vadd.f32 0.0, %v582
    %v584 = vpop.f32.mrb[0].mxu0
    %585 = vmatprep.mubr.f32.mxu0 0.0
    %586 = vmatmul.mubr.f32.gmra.mrb[0].mxu0 %v258
    %v587 = vpop.f32.mrb[0].mxu0
    %v588 = vadd.f32 0.0, %v587
    %v589 = vpop.f32.mrb[0].mxu0
    %590 = vmatprep.mubr.f32.mxu0 0.0
    %591 = vmatmul.mubr.f32.gmra.mrb[0].mxu0 %v261
    %v592 = vpop.f32.mrb[0].mxu0
    %v593 = vadd.f32 0.0, %v592
    %v594 = vpop.f32.mrb[0].mxu0
    %595 = vmatprep.mubr.f32.mxu0 0.0
    %596 = vmatmul.mubr.f32.gmra.mrb[0].mxu0 %v264
    %v597 = vpop.f32.mrb[0].mxu0
    %v598 = vadd.f32 0.0, %v597
    %v599 = vpop.f32.mrb[0].mxu0
    %600 = vmatprep.mubr.f32.mxu0 0.0
    %601 = vmatmul.mubr.f32.gmra.mrb[0].mxu0 %v267
    %v602 = vpop.f32.mrb[0].mxu0
    %v603 = vadd.f32 0.0, %v602
    %v604 = vpop.f32.mrb[0].mxu0
    %605 = vmatprep.mubr.f32.mxu0 0.0
    %606 = vmatmul.mubr.f32.gmra.mrb[0].mxu0 %v270
    %v607 = vpop.f32.mrb[0].mxu0
    %v608 = vadd.f32 0.0, %v607
    %v609 = vpop.f32.mrb[0].mxu0
    %610 = vmatprep.mubr.f32.mxu0 0.0
    %611 = vmatmul.mubr.f32.gmra.mrb[0].mxu0 %v273
    %v612 = vpop.f32.mrb[0].mxu0
    %v613 = vadd.f32 0.0, %v612
    %v614 = vpop.f32.mrb[0].mxu0
    %615 = vmatprep.mubr.f32.mxu0 0.0
    %616 = vmatmul.mubr.f32.gmra.mrb[0].mxu0 %v276
    %v617 = vpop.f32.mrb[0].mxu0
    %v618 = vadd.f32 0.0, %v617
    %v619 = vpop.f32.mrb[0].mxu0
    %620 = vmatprep.mubr.f32.mxu0 0.0
    %621 = vmatmul.mubr.f32.gmra.mrb[0].mxu0 %v279
    %v622 = vpop.f32.mrb[0].mxu0
    %v623 = vadd.f32 0.0, %v622
    %v624 = vpop.f32.mrb[0].mxu0
    %625 = vmatprep.mubr.f32.mxu0 0.0
    %626 = vmatmul.mubr.f32.gmra.mrb[0].mxu0 %v282
    %v627 = vpop.f32.mrb[0].mxu0
    %v628 = vadd.f32 0.0, %v627
    %v629 = vpop.f32.mrb[0].mxu0
    %630 = vmatprep.mubr.f32.mxu0 0.0
    %631 = vmatmul.mubr.f32.gmra.mrb[0].mxu0 %v285
    %v632 = vpop.f32.mrb[0].mxu0
    %v633 = vadd.f32 0.0, %v632
    %v634 = vpop.f32.mrb[0].mxu0
    %635 = vmatprep.mubr.f32.mxu0 0.0
    %636 = vmatmul.mubr.f32.gmra.mrb[0].mxu0 %v288
    %v637 = vpop.f32.mrb[0].mxu0
    %v638 = vadd.f32 0.0, %v637
    %v639 = vpop.f32.mrb[0].mxu0
    %640 = vmatprep.mubr.f32.mxu0 0.0
    %641 = vmatmul.mubr.f32.gmra.mrb[0].mxu0 %v291
    %v642 = vpop.f32.mrb[0].mxu0
    %v643 = vadd.f32 0.0, %v642
    %v644 = vpop.f32.mrb[0].mxu0
    %645 = vmatprep.mubr.f32.mxu0 0.0
    %646 = vmatmul.mubr.f32.gmra.mrb[0].mxu0 %v294
    %v647 = vpop.f32.mrb[0].mxu0
    %v648 = vadd.f32 0.0, %v647
    %v649 = vpop.f32.mrb[0].mxu0
    %650 = vmatprep.mubr.f32.mxu0 0.0
    %651 = vmatmul.mubr.f32.gmra.mrb[0].mxu0 %v297
    %v652 = vpop.f32.mrb[0].mxu0
    %v653 = vadd.f32 0.0, %v652
    %v654 = vpop.f32.mrb[0].mxu0
    %655 = vmatprep.mubr.f32.mxu0 0.0
    %656 = vmatmul.mubr.f32.gmra.mrb[0].mxu0 %v300
    %v657 = vpop.f32.mrb[0].mxu0
    %v658 = vadd.f32 0.0, %v657
    %v659 = vpop.f32.mrb[0].mxu0
    %660 = vmatprep.mubr.f32.mxu0 0.0
    %661 = vmatmul.mubr.f32.gmra.mrb[0].mxu0 %v303
    %v662 = vpop.f32.mrb[0].mxu0
    %v663 = vadd.f32 0.0, %v662
    %v664 = vpop.f32.mrb[0].mxu0
    %665 = vmatprep.mubr.f32.mxu0 0.0
    %666 = vmatmul.mubr.f32.gmra.mrb[0].mxu0 %v306
    %v667 = vpop.f32.mrb[0].mxu0
    %v668 = vadd.f32 0.0, %v667
    %v669 = vpop.f32.mrb[0].mxu0
    %670 = vmatprep.mubr.f32.mxu0 0.0
    %671 = vmatmul.mubr.f32.gmra.mrb[0].mxu0 %v309
    %v672 = vpop.f32.mrb[0].mxu0
    %v673 = vadd.f32 0.0, %v672
    %v674 = vpop.f32.mrb[0].mxu0
    %675 = vmatprep.mubr.f32.mxu0 0.0
    %676 = vmatmul.mubr.f32.gmra.mrb[0].mxu0 %v312
    %v677 = vpop.f32.mrb[0].mxu0
    %v678 = vadd.f32 0.0, %v677
    %v679 = vpop.f32.mrb[0].mxu0
    %680 = vmatprep.mubr.f32.mxu0 0.0
    %681 = vmatmul.mubr.f32.gmra.mrb[0].mxu0 %v315
    %v682 = vpop.f32.mrb[0].mxu0
    %v683 = vadd.f32 0.0, %v682
    %v684 = vpop.f32.mrb[0].mxu0
    %685 = vmatprep.mubr.f32.mxu0 0.0
    %686 = vmatmul.mubr.f32.gmra.mrb[0].mxu0 %v318
    %v687 = vpop.f32.mrb[0].mxu0
    %v688 = vadd.f32 0.0, %v687
    %v689 = vpop.f32.mrb[0].mxu0
    %690 = vmatprep.mubr.f32.mxu0 0.0
    %691 = vmatmul.mubr.f32.gmra.mrb[0].mxu0 %v321
    %v692 = vpop.f32.mrb[0].mxu0
    %v693 = vadd.f32 0.0, %v692
    %v694 = vpop.f32.mrb[0].mxu0
    %695 = vmatprep.mubr.f32.mxu0 0.0
    %696 = vmatmul.mubr.f32.gmra.mrb[0].mxu0 %v324
    %v697 = vpop.f32.mrb[0].mxu0
    %v698 = vadd.f32 0.0, %v697
    %v699 = vpop.f32.mrb[0].mxu0
    %700 = vmatprep.mubr.f32.mxu0 0.0
    %701 = vmatmul.mubr.f32.gmra.mrb[0].mxu0 %v327
    %v702 = vpop.f32.mrb[0].mxu0
    %v703 = vadd.f32 0.0, %v702
    %v704 = vpop.f32.mrb[0].mxu0
    %705 = vmatprep.mubr.f32.mxu0 0.0
    %706 = vmatmul.mubr.f32.gmra.mrb[0].mxu0 %v330
    %v707 = vpop.f32.mrb[0].mxu0
    %v708 = vadd.f32 0.0, %v707
    %v709 = vpop.f32.mrb[0].mxu0
    %710 = vmatprep.mubr.f32.mxu0 0.0
    %711 = vmatmul.mubr.f32.gmra.mrb[0].mxu0 %v333
    %v712 = vpop.f32.mrb[0].mxu0
    %v713 = vadd.f32 0.0, %v712
    %v714 = vpop.f32.mrb[0].mxu0
    %715 = vmatprep.mubr.f32.mxu0 0.0
    %716 = vmatmul.mubr.f32.gmra.mrb[0].mxu0 %v336
    %v717 = vpop.f32.mrb[0].mxu0
    %v718 = vadd.f32 0.0, %v717
    %v719 = vpop.f32.mrb[0].mxu0
    %720 = vmatprep.mubr.f32.mxu0 0.0
    %721 = vmatmul.mubr.f32.gmra.mrb[0].mxu0 %v339
    %v722 = vpop.f32.mrb[0].mxu0
    %v723 = vadd.f32 0.0, %v722
    %v724 = vpop.f32.mrb[0].mxu0
    %725 = vmatprep.mubr.f32.mxu0 0.0
    %726 = vmatmul.mubr.f32.gmra.mrb[0].mxu0 %v342
    %v727 = vpop.f32.mrb[0].mxu0
    %v728 = vadd.f32 0.0, %v727
    %v729 = vpop.f32.mrb[0].mxu0
    %730 = vmatprep.mubr.f32.mxu0 0.0
    %731 = vmatmul.mubr.f32.gmra.mrb[0].mxu0 %v345
    %v732 = vpop.f32.mrb[0].mxu0
    %v733 = vadd.f32 0.0, %v732
    %v734 = vpop.f32.mrb[0].mxu0
    %735 = vdwg.mxu0
    %vm801 = vcmask 1040384
    %v802 = vrot.slane 0.0, 7
    %v803 = vsel %vm801, %v802, %v802
    %v804 = vrot.slane %v418, 7
    %v805 = vrot.slane %v423, 7
    %v806 = vsel %vm801, %v804, %v805
    %v807 = vrot.slane %v428, 7
    %v808 = vrot.slane %v433, 7
    %v809 = vsel %vm801, %v807, %v808
    %v810 = vrot.slane %v438, 7
    %v811 = vrot.slane %v443, 7
    %v812 = vsel %vm801, %v810, %v811
    %v813 = vrot.slane %v448, 7
    %v814 = vrot.slane %v453, 7
    %v815 = vsel %vm801, %v813, %v814
    %v816 = vrot.slane %v458, 7
    %v817 = vrot.slane %v463, 7
    %v818 = vsel %vm801, %v816, %v817
    %v819 = vrot.slane %v468, 7
    %v820 = vrot.slane %v473, 7
    %v821 = vsel %vm801, %v819, %v820
    %v822 = vrot.slane %v478, 7
    %v823 = vrot.slane %v483, 7
    %v824 = vsel %vm801, %v822, %v823
    %v825 = vrot.slane %v488, 7
    %v826 = vrot.slane %v493, 7
    %v827 = vsel %vm801, %v825, %v826
    %v828 = vrot.slane %v498, 7
    %v829 = vrot.slane %v503, 7
    %v830 = vsel %vm801, %v828, %v829
    %v831 = vrot.slane %v508, 7
    %v832 = vrot.slane %v513, 7
    %v833 = vsel %vm801, %v831, %v832
    %v834 = vrot.slane %v518, 7
    %v835 = vrot.slane %v523, 7
    %v836 = vsel %vm801, %v834, %v835
    %v837 = vrot.slane %v528, 7
    %v838 = vrot.slane %v533, 7
    %v839 = vsel %vm801, %v837, %v838
    %v840 = vrot.slane %v538, 7
    %v841 = vrot.slane %v543, 7
    %v842 = vsel %vm801, %v840, %v841
    %v843 = vrot.slane %v548, 7
    %v844 = vrot.slane %v553, 7
    %v845 = vsel %vm801, %v843, %v844
    %v846 = vrot.slane %v558, 7
    %v847 = vrot.slane %v563, 7
    %v848 = vsel %vm801, %v846, %v847
    %v849 = vrot.slane %v568, 7
    %v850 = vrot.slane %v573, 7
    %v851 = vsel %vm801, %v849, %v850
    %v852 = vrot.slane %v578, 7
    %v853 = vrot.slane %v583, 7
    %v854 = vsel %vm801, %v852, %v853
    %v855 = vrot.slane %v588, 7
    %v856 = vrot.slane %v593, 7
    %v857 = vsel %vm801, %v855, %v856
    %v858 = vrot.slane %v598, 7
    %v859 = vrot.slane %v603, 7
    %v860 = vsel %vm801, %v858, %v859
    %v861 = vrot.slane %v608, 7
    %v862 = vrot.slane %v613, 7
    %v863 = vsel %vm801, %v861, %v862
    %v864 = vrot.slane %v618, 7
    %v865 = vrot.slane %v623, 7
    %v866 = vsel %vm801, %v864, %v865
    %v867 = vrot.slane %v628, 7
    %v868 = vrot.slane %v633, 7
    %v869 = vsel %vm801, %v867, %v868
    %v870 = vrot.slane %v638, 7
    %v871 = vrot.slane %v643, 7
    %v872 = vsel %vm801, %v870, %v871
    %v873 = vrot.slane %v648, 7
    %v874 = vrot.slane %v653, 7
    %v875 = vsel %vm801, %v873, %v874
    %v876 = vrot.slane %v658, 7
    %v877 = vrot.slane %v663, 7
    %v878 = vsel %vm801, %v876, %v877
    %v879 = vrot.slane %v668, 7
    %v880 = vrot.slane %v673, 7
    %v881 = vsel %vm801, %v879, %v880
    %v882 = vrot.slane %v678, 7
    %v883 = vrot.slane %v683, 7
    %v884 = vsel %vm801, %v882, %v883
    %v885 = vrot.slane %v688, 7
    %v886 = vrot.slane %v693, 7
    %v887 = vsel %vm801, %v885, %v886
    %v888 = vrot.slane %v698, 7
    %v889 = vrot.slane %v703, 7
    %v890 = vsel %vm801, %v888, %v889
    %v891 = vrot.slane %v708, 7
    %v892 = vrot.slane %v713, 7
    %v893 = vsel %vm801, %v891, %v892
    %v894 = vrot.slane %v718, 7
    %v895 = vrot.slane %v723, 7
    %v896 = vsel %vm801, %v894, %v895
    %v897 = vrot.slane %v728, 7
    %v898 = vrot.slane %v733, 7
    %v899 = vsel %vm801, %v897, %v898
    %v966 = vsel %vm801, 0.0, %v802
    %v967 = vsel %vm801, 0.0, %v804
    %v968 = vsel %vm801, 0.0, %v807
    %v969 = vsel %vm801, 0.0, %v810
    %v970 = vsel %vm801, 0.0, %v813
    %v971 = vsel %vm801, 0.0, %v816
    %v972 = vsel %vm801, 0.0, %v819
    %v973 = vsel %vm801, 0.0, %v822
    %v974 = vsel %vm801, 0.0, %v825
    %v975 = vsel %vm801, 0.0, %v828
    %v976 = vsel %vm801, 0.0, %v831
    %v977 = vsel %vm801, 0.0, %v834
    %v978 = vsel %vm801, 0.0, %v837
    %v979 = vsel %vm801, 0.0, %v840
    %v980 = vsel %vm801, 0.0, %v843
    %v981 = vsel %vm801, 0.0, %v846
    %v982 = vsel %vm801, 0.0, %v849
    %v983 = vsel %vm801, 0.0, %v852
    %v984 = vsel %vm801, 0.0, %v855
    %v985 = vsel %vm801, 0.0, %v858
    %v986 = vsel %vm801, 0.0, %v861
    %v987 = vsel %vm801, 0.0, %v864
    %v988 = vsel %vm801, 0.0, %v867
    %v989 = vsel %vm801, 0.0, %v870
    %v990 = vsel %vm801, 0.0, %v873
    %v991 = vsel %vm801, 0.0, %v876
    %v992 = vsel %vm801, 0.0, %v879
    %v993 = vsel %vm801, 0.0, %v882
    %v994 = vsel %vm801, 0.0, %v885
    %v995 = vsel %vm801, 0.0, %v888
    %v996 = vsel %vm801, 0.0, %v891
    %v997 = vsel %vm801, 0.0, %v894
    %v998 = vsel %vm801, 0.0, %v897
    %vm999 = vcmask 1046528
    %v1000 = vrot.slane 0.0, 1
    %v1001 = vsel %vm999, %v1000, %v1000
    %v1002 = vrot.slane %v418, 1
    %v1003 = vrot.slane %v423, 1
    %v1004 = vsel %vm999, %v1002, %v1003
    %v1005 = vrot.slane %v428, 1
    %v1006 = vrot.slane %v433, 1
    %v1007 = vsel %vm999, %v1005, %v1006
    %v1008 = vrot.slane %v438, 1
    %v1009 = vrot.slane %v443, 1
    %v1010 = vsel %vm999, %v1008, %v1009
    %v1011 = vrot.slane %v448, 1
    %v1012 = vrot.slane %v453, 1
    %v1013 = vsel %vm999, %v1011, %v1012
    %v1014 = vrot.slane %v458, 1
    %v1015 = vrot.slane %v463, 1
    %v1016 = vsel %vm999, %v1014, %v1015
    %v1017 = vrot.slane %v468, 1
    %v1018 = vrot.slane %v473, 1
    %v1019 = vsel %vm999, %v1017, %v1018
    %v1020 = vrot.slane %v478, 1
    %v1021 = vrot.slane %v483, 1
    %v1022 = vsel %vm999, %v1020, %v1021
    %v1023 = vrot.slane %v488, 1
    %v1024 = vrot.slane %v493, 1
    %v1025 = vsel %vm999, %v1023, %v1024
    %v1026 = vrot.slane %v498, 1
    %v1027 = vrot.slane %v503, 1
    %v1028 = vsel %vm999, %v1026, %v1027
    %v1029 = vrot.slane %v508, 1
    %v1030 = vrot.slane %v513, 1
    %v1031 = vsel %vm999, %v1029, %v1030
    %v1032 = vrot.slane %v518, 1
    %v1033 = vrot.slane %v523, 1
    %v1034 = vsel %vm999, %v1032, %v1033
    %v1035 = vrot.slane %v528, 1
    %v1036 = vrot.slane %v533, 1
    %v1037 = vsel %vm999, %v1035, %v1036
    %v1038 = vrot.slane %v538, 1
    %v1039 = vrot.slane %v543, 1
    %v1040 = vsel %vm999, %v1038, %v1039
    %v1041 = vrot.slane %v548, 1
    %v1042 = vrot.slane %v553, 1
    %v1043 = vsel %vm999, %v1041, %v1042
    %v1044 = vrot.slane %v558, 1
    %v1045 = vrot.slane %v563, 1
    %v1046 = vsel %vm999, %v1044, %v1045
    %v1047 = vrot.slane %v568, 1
    %v1048 = vrot.slane %v573, 1
    %v1049 = vsel %vm999, %v1047, %v1048
    %v1050 = vrot.slane %v578, 1
    %v1051 = vrot.slane %v583, 1
    %v1052 = vsel %vm999, %v1050, %v1051
    %v1053 = vrot.slane %v588, 1
    %v1054 = vrot.slane %v593, 1
    %v1055 = vsel %vm999, %v1053, %v1054
    %v1056 = vrot.slane %v598, 1
    %v1057 = vrot.slane %v603, 1
    %v1058 = vsel %vm999, %v1056, %v1057
    %v1059 = vrot.slane %v608, 1
    %v1060 = vrot.slane %v613, 1
    %v1061 = vsel %vm999, %v1059, %v1060
    %v1062 = vrot.slane %v618, 1
    %v1063 = vrot.slane %v623, 1
    %v1064 = vsel %vm999, %v1062, %v1063
    %v1065 = vrot.slane %v628, 1
    %v1066 = vrot.slane %v633, 1
    %v1067 = vsel %vm999, %v1065, %v1066
    %v1068 = vrot.slane %v638, 1
    %v1069 = vrot.slane %v643, 1
    %v1070 = vsel %vm999, %v1068, %v1069
    %v1071 = vrot.slane %v648, 1
    %v1072 = vrot.slane %v653, 1
    %v1073 = vsel %vm999, %v1071, %v1072
    %v1074 = vrot.slane %v658, 1
    %v1075 = vrot.slane %v663, 1
    %v1076 = vsel %vm999, %v1074, %v1075
    %v1077 = vrot.slane %v668, 1
    %v1078 = vrot.slane %v673, 1
    %v1079 = vsel %vm999, %v1077, %v1078
    %v1080 = vrot.slane %v678, 1
    %v1081 = vrot.slane %v683, 1
    %v1082 = vsel %vm999, %v1080, %v1081
    %v1083 = vrot.slane %v688, 1
    %v1084 = vrot.slane %v693, 1
    %v1085 = vsel %vm999, %v1083, %v1084
    %v1086 = vrot.slane %v698, 1
    %v1087 = vrot.slane %v703, 1
    %v1088 = vsel %vm999, %v1086, %v1087
    %v1089 = vrot.slane %v708, 1
    %v1090 = vrot.slane %v713, 1
    %v1091 = vsel %vm999, %v1089, %v1090
    %v1092 = vrot.slane %v718, 1
    %v1093 = vrot.slane %v723, 1
    %v1094 = vsel %vm999, %v1092, %v1093
    %v1095 = vrot.slane %v728, 1
    %v1096 = vrot.slane %v733, 1
    %v1097 = vsel %vm999, %v1095, %v1096
    %v1164 = vsel %vm999, %v1000, 0.0
    %v1165 = vsel %vm999, %v1003, 0.0
    %v1166 = vsel %vm999, %v1006, 0.0
    %v1167 = vsel %vm999, %v1009, 0.0
    %v1168 = vsel %vm999, %v1012, 0.0
    %v1169 = vsel %vm999, %v1015, 0.0
    %v1170 = vsel %vm999, %v1018, 0.0
    %v1171 = vsel %vm999, %v1021, 0.0
    %v1172 = vsel %vm999, %v1024, 0.0
    %v1173 = vsel %vm999, %v1027, 0.0
    %v1174 = vsel %vm999, %v1030, 0.0
    %v1175 = vsel %vm999, %v1033, 0.0
    %v1176 = vsel %vm999, %v1036, 0.0
    %v1177 = vsel %vm999, %v1039, 0.0
    %v1178 = vsel %vm999, %v1042, 0.0
    %v1179 = vsel %vm999, %v1045, 0.0
    %v1180 = vsel %vm999, %v1048, 0.0
    %v1181 = vsel %vm999, %v1051, 0.0
    %v1182 = vsel %vm999, %v1054, 0.0
    %v1183 = vsel %vm999, %v1057, 0.0
    %v1184 = vsel %vm999, %v1060, 0.0
    %v1185 = vsel %vm999, %v1063, 0.0
    %v1186 = vsel %vm999, %v1066, 0.0
    %v1187 = vsel %vm999, %v1069, 0.0
    %v1188 = vsel %vm999, %v1072, 0.0
    %v1189 = vsel %vm999, %v1075, 0.0
    %v1190 = vsel %vm999, %v1078, 0.0
    %v1191 = vsel %vm999, %v1081, 0.0
    %v1192 = vsel %vm999, %v1084, 0.0
    %v1193 = vsel %vm999, %v1087, 0.0
    %v1194 = vsel %vm999, %v1090, 0.0
    %v1195 = vsel %vm999, %v1093, 0.0
    %v1196 = vsel %vm999, %v1096, 0.0
    %v1197 = vlaneseq
    %v1198 = vshrl.u32 %v1197, 7
    %v1199 = vsub.s32 0, %v1198
    %v1200 = vrot.slane %v128, %v1199
    %v1201 = vmul.f32 %v966, %v1200
    %v1202 = vmul.f32 %v803, %v1200
    %v1203 = vmul.f32 %v967, %v1200
    %v1204 = vmul.f32 %v806, %v1200
    %v1205 = vmul.f32 %v968, %v1200
    %v1206 = vmul.f32 %v809, %v1200
    %v1207 = vmul.f32 %v969, %v1200
    %v1208 = vmul.f32 %v812, %v1200
    %v1209 = vmul.f32 %v970, %v1200
    %v1210 = vmul.f32 %v815, %v1200
    %v1211 = vmul.f32 %v971, %v1200
    %v1212 = vmul.f32 %v818, %v1200
    %v1213 = vmul.f32 %v972, %v1200
    %v1214 = vmul.f32 %v821, %v1200
    %v1215 = vmul.f32 %v973, %v1200
    %v1216 = vmul.f32 %v824, %v1200
    %v1217 = vmul.f32 %v974, %v1200
    %v1218 = vmul.f32 %v827, %v1200
    %v1219 = vmul.f32 %v975, %v1200
    %v1220 = vmul.f32 %v830, %v1200
    %v1221 = vmul.f32 %v976, %v1200
    %v1222 = vmul.f32 %v833, %v1200
    %v1223 = vmul.f32 %v977, %v1200
    %v1224 = vmul.f32 %v836, %v1200
    %v1225 = vmul.f32 %v978, %v1200
    %v1226 = vmul.f32 %v839, %v1200
    %v1227 = vmul.f32 %v979, %v1200
    %v1228 = vmul.f32 %v842, %v1200
    %v1229 = vmul.f32 %v980, %v1200
    %v1230 = vmul.f32 %v845, %v1200
    %v1231 = vmul.f32 %v981, %v1200
    %v1232 = vmul.f32 %v848, %v1200
    %v1233 = vmul.f32 %v983, %v1200
    %v1234 = vmul.f32 %v854, %v1200
    %v1235 = vmul.f32 %v984, %v1200
    %v1236 = vmul.f32 %v857, %v1200
    %v1237 = vmul.f32 %v985, %v1200
    %v1238 = vmul.f32 %v860, %v1200
    %v1239 = vmul.f32 %v986, %v1200
    %v1240 = vmul.f32 %v863, %v1200
    %v1241 = vmul.f32 %v987, %v1200
    %v1242 = vmul.f32 %v866, %v1200
    %v1243 = vmul.f32 %v988, %v1200
    %v1244 = vmul.f32 %v869, %v1200
    %v1245 = vmul.f32 %v989, %v1200
    %v1246 = vmul.f32 %v872, %v1200
    %v1247 = vmul.f32 %v990, %v1200
    %v1248 = vmul.f32 %v875, %v1200
    %v1249 = vmul.f32 %v991, %v1200
    %v1250 = vmul.f32 %v878, %v1200
    %v1251 = vmul.f32 %v992, %v1200
    %v1252 = vmul.f32 %v881, %v1200
    %v1253 = vmul.f32 %v993, %v1200
    %v1254 = vmul.f32 %v884, %v1200
    %v1255 = vmul.f32 %v994, %v1200
    %v1256 = vmul.f32 %v887, %v1200
    %v1257 = vmul.f32 %v995, %v1200
    %v1258 = vmul.f32 %v890, %v1200
    %v1259 = vmul.f32 %v996, %v1200
    %v1260 = vmul.f32 %v893, %v1200
    %v1261 = vmul.f32 %v997, %v1200
    %v1262 = vmul.f32 %v896, %v1200
    %v1263 = vadd.f32 %v1201, 0.0
    %v1264 = vadd.f32 %v1202, 0.0
    %v1265 = vadd.f32 %v1203, 0.0
    %v1266 = vadd.f32 %v1204, 0.0
    %v1267 = vadd.f32 %v1205, 0.0
    %v1268 = vadd.f32 %v1206, 0.0
    %v1269 = vadd.f32 %v1207, 0.0
    %v1270 = vadd.f32 %v1208, 0.0
    %v1271 = vadd.f32 %v1209, 0.0
    %v1272 = vadd.f32 %v1210, 0.0
    %v1273 = vadd.f32 %v1211, 0.0
    %v1274 = vadd.f32 %v1212, 0.0
    %v1275 = vadd.f32 %v1213, 0.0
    %v1276 = vadd.f32 %v1214, 0.0
    %v1277 = vadd.f32 %v1215, 0.0
    %v1278 = vadd.f32 %v1216, 0.0
    %v1279 = vadd.f32 %v1217, 0.0
    %v1280 = vadd.f32 %v1218, 0.0
    %v1281 = vadd.f32 %v1219, 0.0
    %v1282 = vadd.f32 %v1220, 0.0
    %v1283 = vadd.f32 %v1221, 0.0
    %v1284 = vadd.f32 %v1222, 0.0
    %v1285 = vadd.f32 %v1223, 0.0
    %v1286 = vadd.f32 %v1224, 0.0
    %v1287 = vadd.f32 %v1225, 0.0
    %v1288 = vadd.f32 %v1226, 0.0
    %v1289 = vadd.f32 %v1227, 0.0
    %v1290 = vadd.f32 %v1228, 0.0
    %v1291 = vadd.f32 %v1229, 0.0
    %v1292 = vadd.f32 %v1230, 0.0
    %v1293 = vadd.f32 %v1231, 0.0
    %v1294 = vadd.f32 %v1232, 0.0
    %v1295 = vadd.f32 %v1233, 0.0
    %v1296 = vadd.f32 %v1234, 0.0
    %v1297 = vadd.f32 %v1235, 0.0
    %v1298 = vadd.f32 %v1236, 0.0
    %v1299 = vadd.f32 %v1237, 0.0
    %v1300 = vadd.f32 %v1238, 0.0
    %v1301 = vadd.f32 %v1239, 0.0
    %v1302 = vadd.f32 %v1240, 0.0
    %v1303 = vadd.f32 %v1241, 0.0
    %v1304 = vadd.f32 %v1242, 0.0
    %v1305 = vadd.f32 %v1243, 0.0
    %v1306 = vadd.f32 %v1244, 0.0
    %v1307 = vadd.f32 %v1245, 0.0
    %v1308 = vadd.f32 %v1246, 0.0
    %v1309 = vadd.f32 %v1247, 0.0
    %v1310 = vadd.f32 %v1248, 0.0
    %v1311 = vadd.f32 %v1249, 0.0
    %v1312 = vadd.f32 %v1250, 0.0
    %v1313 = vadd.f32 %v1251, 0.0
    %v1314 = vadd.f32 %v1252, 0.0
    %v1315 = vadd.f32 %v1253, 0.0
    %v1316 = vadd.f32 %v1254, 0.0
    %v1317 = vadd.f32 %v1255, 0.0
    %v1318 = vadd.f32 %v1256, 0.0
    %v1319 = vadd.f32 %v1257, 0.0
    %v1320 = vadd.f32 %v1258, 0.0
    %v1321 = vadd.f32 %v1259, 0.0
    %v1322 = vadd.f32 %v1260, 0.0
    %v1323 = vadd.f32 %v1261, 0.0
    %v1324 = vadd.f32 %v1262, 0.0
    %v1325 = vlaneseq
    %v1326 = vshrl.u32 %v1325, 7
    %v1327 = vsub.s32 1, %v1326
    %v1328 = vrot.slane %v128, %v1327
    %v1329 = vmul.f32 %v1328, 0.0
    %v1330 = vmul.f32 %v418, %v1328
    %v1331 = vmul.f32 %v423, %v1328
    %v1332 = vmul.f32 %v428, %v1328
    %v1333 = vmul.f32 %v433, %v1328
    %v1334 = vmul.f32 %v438, %v1328
    %v1335 = vmul.f32 %v443, %v1328
    %v1336 = vmul.f32 %v448, %v1328
    %v1337 = vmul.f32 %v453, %v1328
    %v1338 = vmul.f32 %v458, %v1328
    %v1339 = vmul.f32 %v463, %v1328
    %v1340 = vmul.f32 %v468, %v1328
    %v1341 = vmul.f32 %v473, %v1328
    %v1342 = vmul.f32 %v478, %v1328
    %v1343 = vmul.f32 %v483, %v1328
    %v1344 = vmul.f32 %v488, %v1328
    %v1345 = vmul.f32 %v493, %v1328
    %v1346 = vmul.f32 %v498, %v1328
    %v1347 = vmul.f32 %v503, %v1328
    %v1348 = vmul.f32 %v508, %v1328
    %v1349 = vmul.f32 %v513, %v1328
    %v1350 = vmul.f32 %v518, %v1328
    %v1351 = vmul.f32 %v523, %v1328
    %v1352 = vmul.f32 %v528, %v1328
    %v1353 = vmul.f32 %v533, %v1328
    %v1354 = vmul.f32 %v538, %v1328
    %v1355 = vmul.f32 %v543, %v1328
    %v1356 = vmul.f32 %v548, %v1328
    %v1357 = vmul.f32 %v553, %v1328
    %v1358 = vmul.f32 %v558, %v1328
    %v1359 = vmul.f32 %v563, %v1328
    %v1360 = vmul.f32 %v578, %v1328
    %v1361 = vmul.f32 %v583, %v1328
    %v1362 = vmul.f32 %v588, %v1328
    %v1363 = vmul.f32 %v593, %v1328
    %v1364 = vmul.f32 %v598, %v1328
    %v1365 = vmul.f32 %v603, %v1328
    %v1366 = vmul.f32 %v608, %v1328
    %v1367 = vmul.f32 %v613, %v1328
    %v1368 = vmul.f32 %v618, %v1328
    %v1369 = vmul.f32 %v623, %v1328
    %v1370 = vmul.f32 %v628, %v1328
    %v1371 = vmul.f32 %v633, %v1328
    %v1372 = vmul.f32 %v638, %v1328
    %v1373 = vmul.f32 %v643, %v1328
    %v1374 = vmul.f32 %v648, %v1328
    %v1375 = vmul.f32 %v653, %v1328
    %v1376 = vmul.f32 %v658, %v1328
    %v1377 = vmul.f32 %v663, %v1328
    %v1378 = vmul.f32 %v668, %v1328
    %v1379 = vmul.f32 %v673, %v1328
    %v1380 = vmul.f32 %v678, %v1328
    %v1381 = vmul.f32 %v683, %v1328
    %v1382 = vmul.f32 %v688, %v1328
    %v1383 = vmul.f32 %v693, %v1328
    %v1384 = vmul.f32 %v698, %v1328
    %v1385 = vmul.f32 %v703, %v1328
    %v1386 = vmul.f32 %v708, %v1328
    %v1387 = vmul.f32 %v713, %v1328
    %v1388 = vmul.f32 %v718, %v1328
    %v1389 = vmul.f32 %v723, %v1328
    %v1390 = vadd.f32 %v1263, %v1329
    %v1391 = vadd.f32 %v1264, %v1329
    %v1392 = vadd.f32 %v1265, %v1330
    %v1393 = vadd.f32 %v1266, %v1331
    %v1394 = vadd.f32 %v1267, %v1332
    %v1395 = vadd.f32 %v1268, %v1333
    %v1396 = vadd.f32 %v1269, %v1334
    %v1397 = vadd.f32 %v1270, %v1335
    %v1398 = vadd.f32 %v1271, %v1336
    %v1399 = vadd.f32 %v1272, %v1337
    %v1400 = vadd.f32 %v1273, %v1338
    %v1401 = vadd.f32 %v1274, %v1339
    %v1402 = vadd.f32 %v1275, %v1340
    %v1403 = vadd.f32 %v1276, %v1341
    %v1404 = vadd.f32 %v1277, %v1342
    %v1405 = vadd.f32 %v1278, %v1343
    %v1406 = vadd.f32 %v1279, %v1344
    %v1407 = vadd.f32 %v1280, %v1345
    %v1408 = vadd.f32 %v1281, %v1346
    %v1409 = vadd.f32 %v1282, %v1347
    %v1410 = vadd.f32 %v1283, %v1348
    %v1411 = vadd.f32 %v1284, %v1349
    %v1412 = vadd.f32 %v1285, %v1350
    %v1413 = vadd.f32 %v1286, %v1351
    %v1414 = vadd.f32 %v1287, %v1352
    %v1415 = vadd.f32 %v1288, %v1353
    %v1416 = vadd.f32 %v1289, %v1354
    %v1417 = vadd.f32 %v1290, %v1355
    %v1418 = vadd.f32 %v1291, %v1356
    %v1419 = vadd.f32 %v1292, %v1357
    %v1420 = vadd.f32 %v1293, %v1358
    %v1421 = vadd.f32 %v1294, %v1359
    %v1422 = vadd.f32 %v1295, %v1360
    %v1423 = vadd.f32 %v1296, %v1361
    %v1424 = vadd.f32 %v1297, %v1362
    %v1425 = vadd.f32 %v1298, %v1363
    %v1426 = vadd.f32 %v1299, %v1364
    %v1427 = vadd.f32 %v1300, %v1365
    %v1428 = vadd.f32 %v1301, %v1366
    %v1429 = vadd.f32 %v1302, %v1367
    %v1430 = vadd.f32 %v1303, %v1368
    %v1431 = vadd.f32 %v1304, %v1369
    %v1432 = vadd.f32 %v1305, %v1370
    %v1433 = vadd.f32 %v1306, %v1371
    %v1434 = vadd.f32 %v1307, %v1372
    %v1435 = vadd.f32 %v1308, %v1373
    %v1436 = vadd.f32 %v1309, %v1374
    %v1437 = vadd.f32 %v1310, %v1375
    %v1438 = vadd.f32 %v1311, %v1376
    %v1439 = vadd.f32 %v1312, %v1377
    %v1440 = vadd.f32 %v1313, %v1378
    %v1441 = vadd.f32 %v1314, %v1379
    %v1442 = vadd.f32 %v1315, %v1380
    %v1443 = vadd.f32 %v1316, %v1381
    %v1444 = vadd.f32 %v1317, %v1382
    %v1445 = vadd.f32 %v1318, %v1383
    %v1446 = vadd.f32 %v1319, %v1384
    %v1447 = vadd.f32 %v1320, %v1385
    %v1448 = vadd.f32 %v1321, %v1386
    %v1449 = vadd.f32 %v1322, %v1387
    %v1450 = vadd.f32 %v1323, %v1388
    %v1451 = vadd.f32 %v1324, %v1389
    %v1452 = vlaneseq
    %v1453 = vshrl.u32 %v1452, 7
    %v1454 = vsub.s32 2, %v1453
    %v1455 = vrot.slane %v128, %v1454
    %v1456 = vmul.f32 %v1001, %v1455
    %v1457 = vmul.f32 %v1164, %v1455
    %v1458 = vmul.f32 %v1004, %v1455
    %v1459 = vmul.f32 %v1165, %v1455
    %v1460 = vmul.f32 %v1007, %v1455
    %v1461 = vmul.f32 %v1166, %v1455
    %v1462 = vmul.f32 %v1010, %v1455
    %v1463 = vmul.f32 %v1167, %v1455
    %v1464 = vmul.f32 %v1013, %v1455
    %v1465 = vmul.f32 %v1168, %v1455
    %v1466 = vmul.f32 %v1016, %v1455
    %v1467 = vmul.f32 %v1169, %v1455
    %v1468 = vmul.f32 %v1019, %v1455
    %v1469 = vmul.f32 %v1170, %v1455
    %v1470 = vmul.f32 %v1022, %v1455
    %v1471 = vmul.f32 %v1171, %v1455
    %v1472 = vmul.f32 %v1025, %v1455
    %v1473 = vmul.f32 %v1172, %v1455
    %v1474 = vmul.f32 %v1028, %v1455
    %v1475 = vmul.f32 %v1173, %v1455
    %v1476 = vmul.f32 %v1031, %v1455
    %v1477 = vmul.f32 %v1174, %v1455
    %v1478 = vmul.f32 %v1034, %v1455
    %v1479 = vmul.f32 %v1175, %v1455
    %v1480 = vmul.f32 %v1037, %v1455
    %v1481 = vmul.f32 %v1176, %v1455
    %v1482 = vmul.f32 %v1040, %v1455
    %v1483 = vmul.f32 %v1177, %v1455
    %v1484 = vmul.f32 %v1043, %v1455
    %v1485 = vmul.f32 %v1178, %v1455
    %v1486 = vmul.f32 %v1046, %v1455
    %v1487 = vmul.f32 %v1179, %v1455
    %v1488 = vmul.f32 %v1052, %v1455
    %v1489 = vmul.f32 %v1181, %v1455
    %v1490 = vmul.f32 %v1055, %v1455
    %v1491 = vmul.f32 %v1182, %v1455
    %v1492 = vmul.f32 %v1058, %v1455
    %v1493 = vmul.f32 %v1183, %v1455
    %v1494 = vmul.f32 %v1061, %v1455
    %v1495 = vmul.f32 %v1184, %v1455
    %v1496 = vmul.f32 %v1064, %v1455
    %v1497 = vmul.f32 %v1185, %v1455
    %v1498 = vmul.f32 %v1067, %v1455
    %v1499 = vmul.f32 %v1186, %v1455
    %v1500 = vmul.f32 %v1070, %v1455
    %v1501 = vmul.f32 %v1187, %v1455
    %v1502 = vmul.f32 %v1073, %v1455
    %v1503 = vmul.f32 %v1188, %v1455
    %v1504 = vmul.f32 %v1076, %v1455
    %v1505 = vmul.f32 %v1189, %v1455
    %v1506 = vmul.f32 %v1079, %v1455
    %v1507 = vmul.f32 %v1190, %v1455
    %v1508 = vmul.f32 %v1082, %v1455
    %v1509 = vmul.f32 %v1191, %v1455
    %v1510 = vmul.f32 %v1085, %v1455
    %v1511 = vmul.f32 %v1192, %v1455
    %v1512 = vmul.f32 %v1088, %v1455
    %v1513 = vmul.f32 %v1193, %v1455
    %v1514 = vmul.f32 %v1091, %v1455
    %v1515 = vmul.f32 %v1194, %v1455
    %v1516 = vmul.f32 %v1094, %v1455
    %v1517 = vmul.f32 %v1195, %v1455
    %v1518 = vadd.f32 %v1390, %v1456
    %v1519 = vadd.f32 %v1391, %v1457
    %v1520 = vadd.f32 %v1392, %v1458
    %v1521 = vadd.f32 %v1393, %v1459
    %v1522 = vadd.f32 %v1394, %v1460
    %v1523 = vadd.f32 %v1395, %v1461
    %v1524 = vadd.f32 %v1396, %v1462
    %v1525 = vadd.f32 %v1397, %v1463
    %v1526 = vadd.f32 %v1398, %v1464
    %v1527 = vadd.f32 %v1399, %v1465
    %v1528 = vadd.f32 %v1400, %v1466
    %v1529 = vadd.f32 %v1401, %v1467
    %v1530 = vadd.f32 %v1402, %v1468
    %v1531 = vadd.f32 %v1403, %v1469
    %v1532 = vadd.f32 %v1404, %v1470
    %v1533 = vadd.f32 %v1405, %v1471
    %v1534 = vadd.f32 %v1406, %v1472
    %v1535 = vadd.f32 %v1407, %v1473
    %v1536 = vadd.f32 %v1408, %v1474
    %v1537 = vadd.f32 %v1409, %v1475
    %v1538 = vadd.f32 %v1410, %v1476
    %v1539 = vadd.f32 %v1411, %v1477
    %v1540 = vadd.f32 %v1412, %v1478
    %v1541 = vadd.f32 %v1413, %v1479
    %v1542 = vadd.f32 %v1414, %v1480
    %v1543 = vadd.f32 %v1415, %v1481
    %v1544 = vadd.f32 %v1416, %v1482
    %v1545 = vadd.f32 %v1417, %v1483
    %v1546 = vadd.f32 %v1418, %v1484
    %v1547 = vadd.f32 %v1419, %v1485
    %v1548 = vadd.f32 %v1420, %v1486
    %v1549 = vadd.f32 %v1421, %v1487
    %v1550 = vadd.f32 %v1422, %v1488
    %v1551 = vadd.f32 %v1423, %v1489
    %v1552 = vadd.f32 %v1424, %v1490
    %v1553 = vadd.f32 %v1425, %v1491
    %v1554 = vadd.f32 %v1426, %v1492
    %v1555 = vadd.f32 %v1427, %v1493
    %v1556 = vadd.f32 %v1428, %v1494
    %v1557 = vadd.f32 %v1429, %v1495
    %v1558 = vadd.f32 %v1430, %v1496
    %v1559 = vadd.f32 %v1431, %v1497
    %v1560 = vadd.f32 %v1432, %v1498
    %v1561 = vadd.f32 %v1433, %v1499
    %v1562 = vadd.f32 %v1434, %v1500
    %v1563 = vadd.f32 %v1435, %v1501
    %v1564 = vadd.f32 %v1436, %v1502
    %v1565 = vadd.f32 %v1437, %v1503
    %v1566 = vadd.f32 %v1438, %v1504
    %v1567 = vadd.f32 %v1439, %v1505
    %v1568 = vadd.f32 %v1440, %v1506
    %v1569 = vadd.f32 %v1441, %v1507
    %v1570 = vadd.f32 %v1442, %v1508
    %v1571 = vadd.f32 %v1443, %v1509
    %v1572 = vadd.f32 %v1444, %v1510
    %v1573 = vadd.f32 %v1445, %v1511
    %v1574 = vadd.f32 %v1446, %v1512
    %v1575 = vadd.f32 %v1447, %v1513
    %v1576 = vadd.f32 %v1448, %v1514
    %v1577 = vadd.f32 %v1449, %v1515
    %v1578 = vadd.f32 %v1450, %v1516
    %v1579 = vadd.f32 %v1451, %v1517
    %v1580 = vlaneseq
    %v1581 = vshrl.u32 %v1580, 7
    %v1582 = vsub.s32 0, %v1581
    %v1583 = vrot.slane %v129, %v1582
    %v1584 = vmul.f32 %v967, %v1583
    %v1585 = vmul.f32 %v806, %v1583
    %v1586 = vmul.f32 %v968, %v1583
    %v1587 = vmul.f32 %v809, %v1583
    %v1588 = vmul.f32 %v969, %v1583
    %v1589 = vmul.f32 %v812, %v1583
    %v1590 = vmul.f32 %v970, %v1583
    %v1591 = vmul.f32 %v815, %v1583
    %v1592 = vmul.f32 %v971, %v1583
    %v1593 = vmul.f32 %v818, %v1583
    %v1594 = vmul.f32 %v972, %v1583
    %v1595 = vmul.f32 %v821, %v1583
    %v1596 = vmul.f32 %v973, %v1583
    %v1597 = vmul.f32 %v824, %v1583
    %v1598 = vmul.f32 %v974, %v1583
    %v1599 = vmul.f32 %v827, %v1583
    %v1600 = vmul.f32 %v975, %v1583
    %v1601 = vmul.f32 %v830, %v1583
    %v1602 = vmul.f32 %v976, %v1583
    %v1603 = vmul.f32 %v833, %v1583
    %v1604 = vmul.f32 %v977, %v1583
    %v1605 = vmul.f32 %v836, %v1583
    %v1606 = vmul.f32 %v978, %v1583
    %v1607 = vmul.f32 %v839, %v1583
    %v1608 = vmul.f32 %v979, %v1583
    %v1609 = vmul.f32 %v842, %v1583
    %v1610 = vmul.f32 %v980, %v1583
    %v1611 = vmul.f32 %v845, %v1583
    %v1612 = vmul.f32 %v981, %v1583
    %v1613 = vmul.f32 %v848, %v1583
    %v1614 = vmul.f32 %v982, %v1583
    %v1615 = vmul.f32 %v851, %v1583
    %v1616 = vmul.f32 %v983, %v1583
    %v1617 = vmul.f32 %v854, %v1583
    %v1618 = vmul.f32 %v984, %v1583
    %v1619 = vmul.f32 %v857, %v1583
    %v1620 = vmul.f32 %v985, %v1583
    %v1621 = vmul.f32 %v860, %v1583
    %v1622 = vmul.f32 %v986, %v1583
    %v1623 = vmul.f32 %v863, %v1583
    %v1624 = vmul.f32 %v987, %v1583
    %v1625 = vmul.f32 %v866, %v1583
    %v1626 = vmul.f32 %v988, %v1583
    %v1627 = vmul.f32 %v869, %v1583
    %v1628 = vmul.f32 %v989, %v1583
    %v1629 = vmul.f32 %v872, %v1583
    %v1630 = vmul.f32 %v990, %v1583
    %v1631 = vmul.f32 %v875, %v1583
    %v1632 = vmul.f32 %v991, %v1583
    %v1633 = vmul.f32 %v878, %v1583
    %v1634 = vmul.f32 %v992, %v1583
    %v1635 = vmul.f32 %v881, %v1583
    %v1636 = vmul.f32 %v993, %v1583
    %v1637 = vmul.f32 %v884, %v1583
    %v1638 = vmul.f32 %v994, %v1583
    %v1639 = vmul.f32 %v887, %v1583
    %v1640 = vmul.f32 %v995, %v1583
    %v1641 = vmul.f32 %v890, %v1583
    %v1642 = vmul.f32 %v996, %v1583
    %v1643 = vmul.f32 %v893, %v1583
    %v1644 = vmul.f32 %v997, %v1583
    %v1645 = vmul.f32 %v896, %v1583
    %v1646 = vmul.f32 %v998, %v1583
    %v1647 = vmul.f32 %v899, %v1583
    %v1648 = vadd.f32 %v1518, %v1584
    %v1649 = vadd.f32 %v1519, %v1585
    %v1650 = vadd.f32 %v1520, %v1586
    %v1651 = vadd.f32 %v1521, %v1587
    %v1652 = vadd.f32 %v1522, %v1588
    %v1653 = vadd.f32 %v1523, %v1589
    %v1654 = vadd.f32 %v1524, %v1590
    %v1655 = vadd.f32 %v1525, %v1591
    %v1656 = vadd.f32 %v1526, %v1592
    %v1657 = vadd.f32 %v1527, %v1593
    %v1658 = vadd.f32 %v1528, %v1594
    %v1659 = vadd.f32 %v1529, %v1595
    %v1660 = vadd.f32 %v1530, %v1596
    %v1661 = vadd.f32 %v1531, %v1597
    %v1662 = vadd.f32 %v1532, %v1598
    %v1663 = vadd.f32 %v1533, %v1599
    %v1664 = vadd.f32 %v1534, %v1600
    %v1665 = vadd.f32 %v1535, %v1601
    %v1666 = vadd.f32 %v1536, %v1602
    %v1667 = vadd.f32 %v1537, %v1603
    %v1668 = vadd.f32 %v1538, %v1604
    %v1669 = vadd.f32 %v1539, %v1605
    %v1670 = vadd.f32 %v1540, %v1606
    %v1671 = vadd.f32 %v1541, %v1607
    %v1672 = vadd.f32 %v1542, %v1608
    %v1673 = vadd.f32 %v1543, %v1609
    %v1674 = vadd.f32 %v1544, %v1610
    %v1675 = vadd.f32 %v1545, %v1611
    %v1676 = vadd.f32 %v1546, %v1612
    %v1677 = vadd.f32 %v1547, %v1613
    %v1678 = vadd.f32 %v1548, %v1614
    %v1679 = vadd.f32 %v1549, %v1615
    %v1680 = vadd.f32 %v1518, %v1616
    %v1681 = vadd.f32 %v1519, %v1617
    %v1682 = vadd.f32 %v1550, %v1618
    %v1683 = vadd.f32 %v1551, %v1619
    %v1684 = vadd.f32 %v1552, %v1620
    %v1685 = vadd.f32 %v1553, %v1621
    %v1686 = vadd.f32 %v1554, %v1622
    %v1687 = vadd.f32 %v1555, %v1623
    %v1688 = vadd.f32 %v1556, %v1624
    %v1689 = vadd.f32 %v1557, %v1625
    %v1690 = vadd.f32 %v1558, %v1626
    %v1691 = vadd.f32 %v1559, %v1627
    %v1692 = vadd.f32 %v1560, %v1628
    %v1693 = vadd.f32 %v1561, %v1629
    %v1694 = vadd.f32 %v1562, %v1630
    %v1695 = vadd.f32 %v1563, %v1631
    %v1696 = vadd.f32 %v1564, %v1632
    %v1697 = vadd.f32 %v1565, %v1633
    %v1698 = vadd.f32 %v1566, %v1634
    %v1699 = vadd.f32 %v1567, %v1635
    %v1700 = vadd.f32 %v1568, %v1636
    %v1701 = vadd.f32 %v1569, %v1637
    %v1702 = vadd.f32 %v1570, %v1638
    %v1703 = vadd.f32 %v1571, %v1639
    %v1704 = vadd.f32 %v1572, %v1640
    %v1705 = vadd.f32 %v1573, %v1641
    %v1706 = vadd.f32 %v1574, %v1642
    %v1707 = vadd.f32 %v1575, %v1643
    %v1708 = vadd.f32 %v1576, %v1644
    %v1709 = vadd.f32 %v1577, %v1645
    %v1710 = vadd.f32 %v1578, %v1646
    %v1711 = vadd.f32 %v1579, %v1647
    %v1712 = vlaneseq
    %v1713 = vshrl.u32 %v1712, 7
    %v1714 = vsub.s32 1, %v1713
    %v1715 = vrot.slane %v129, %v1714
    %v1716 = vmul.f32 %v418, %v1715
    %v1717 = vmul.f32 %v423, %v1715
    %v1718 = vmul.f32 %v428, %v1715
    %v1719 = vmul.f32 %v433, %v1715
    %v1720 = vmul.f32 %v438, %v1715
    %v1721 = vmul.f32 %v443, %v1715
    %v1722 = vmul.f32 %v448, %v1715
    %v1723 = vmul.f32 %v453, %v1715
    %v1724 = vmul.f32 %v458, %v1715
    %v1725 = vmul.f32 %v463, %v1715
    %v1726 = vmul.f32 %v468, %v1715
    %v1727 = vmul.f32 %v473, %v1715
    %v1728 = vmul.f32 %v478, %v1715
    %v1729 = vmul.f32 %v483, %v1715
    %v1730 = vmul.f32 %v488, %v1715
    %v1731 = vmul.f32 %v493, %v1715
    %v1732 = vmul.f32 %v498, %v1715
    %v1733 = vmul.f32 %v503, %v1715
    %v1734 = vmul.f32 %v508, %v1715
    %v1735 = vmul.f32 %v513, %v1715
    %v1736 = vmul.f32 %v518, %v1715
    %v1737 = vmul.f32 %v523, %v1715
    %v1738 = vmul.f32 %v528, %v1715
    %v1739 = vmul.f32 %v533, %v1715
    %v1740 = vmul.f32 %v538, %v1715
    %v1741 = vmul.f32 %v543, %v1715
    %v1742 = vmul.f32 %v548, %v1715
    %v1743 = vmul.f32 %v553, %v1715
    %v1744 = vmul.f32 %v558, %v1715
    %v1745 = vmul.f32 %v563, %v1715
    %v1746 = vmul.f32 %v568, %v1715
    %v1747 = vmul.f32 %v573, %v1715
    %v1748 = vmul.f32 %v578, %v1715
    %v1749 = vmul.f32 %v583, %v1715
    %v1750 = vmul.f32 %v588, %v1715
    %v1751 = vmul.f32 %v593, %v1715
    %v1752 = vmul.f32 %v598, %v1715
    %v1753 = vmul.f32 %v603, %v1715
    %v1754 = vmul.f32 %v608, %v1715
    %v1755 = vmul.f32 %v613, %v1715
    %v1756 = vmul.f32 %v618, %v1715
    %v1757 = vmul.f32 %v623, %v1715
    %v1758 = vmul.f32 %v628, %v1715
    %v1759 = vmul.f32 %v633, %v1715
    %v1760 = vmul.f32 %v638, %v1715
    %v1761 = vmul.f32 %v643, %v1715
    %v1762 = vmul.f32 %v648, %v1715
    %v1763 = vmul.f32 %v653, %v1715
    %v1764 = vmul.f32 %v658, %v1715
    %v1765 = vmul.f32 %v663, %v1715
    %v1766 = vmul.f32 %v668, %v1715
    %v1767 = vmul.f32 %v673, %v1715
    %v1768 = vmul.f32 %v678, %v1715
    %v1769 = vmul.f32 %v683, %v1715
    %v1770 = vmul.f32 %v688, %v1715
    %v1771 = vmul.f32 %v693, %v1715
    %v1772 = vmul.f32 %v698, %v1715
    %v1773 = vmul.f32 %v703, %v1715
    %v1774 = vmul.f32 %v708, %v1715
    %v1775 = vmul.f32 %v713, %v1715
    %v1776 = vmul.f32 %v718, %v1715
    %v1777 = vmul.f32 %v723, %v1715
    %v1778 = vmul.f32 %v728, %v1715
    %v1779 = vmul.f32 %v733, %v1715
    %v1780 = vadd.f32 %v1648, %v1716
    %v1781 = vadd.f32 %v1649, %v1717
    %v1782 = vadd.f32 %v1650, %v1718
    %v1783 = vadd.f32 %v1651, %v1719
    %v1784 = vadd.f32 %v1652, %v1720
    %v1785 = vadd.f32 %v1653, %v1721
    %v1786 = vadd.f32 %v1654, %v1722
    %v1787 = vadd.f32 %v1655, %v1723
    %v1788 = vadd.f32 %v1656, %v1724
    %v1789 = vadd.f32 %v1657, %v1725
    %v1790 = vadd.f32 %v1658, %v1726
    %v1791 = vadd.f32 %v1659, %v1727
    %v1792 = vadd.f32 %v1660, %v1728
    %v1793 = vadd.f32 %v1661, %v1729
    %v1794 = vadd.f32 %v1662, %v1730
    %v1795 = vadd.f32 %v1663, %v1731
    %v1796 = vadd.f32 %v1664, %v1732
    %v1797 = vadd.f32 %v1665, %v1733
    %v1798 = vadd.f32 %v1666, %v1734
    %v1799 = vadd.f32 %v1667, %v1735
    %v1800 = vadd.f32 %v1668, %v1736
    %v1801 = vadd.f32 %v1669, %v1737
    %v1802 = vadd.f32 %v1670, %v1738
    %v1803 = vadd.f32 %v1671, %v1739
    %v1804 = vadd.f32 %v1672, %v1740
    %v1805 = vadd.f32 %v1673, %v1741
    %v1806 = vadd.f32 %v1674, %v1742
    %v1807 = vadd.f32 %v1675, %v1743
    %v1808 = vadd.f32 %v1676, %v1744
    %v1809 = vadd.f32 %v1677, %v1745
    %v1810 = vadd.f32 %v1678, %v1746
    %v1811 = vadd.f32 %v1679, %v1747
    %v1812 = vadd.f32 %v1680, %v1748
    %v1813 = vadd.f32 %v1681, %v1749
    %v1814 = vadd.f32 %v1682, %v1750
    %v1815 = vadd.f32 %v1683, %v1751
    %v1816 = vadd.f32 %v1684, %v1752
    %v1817 = vadd.f32 %v1685, %v1753
    %v1818 = vadd.f32 %v1686, %v1754
    %v1819 = vadd.f32 %v1687, %v1755
    %v1820 = vadd.f32 %v1688, %v1756
    %v1821 = vadd.f32 %v1689, %v1757
    %v1822 = vadd.f32 %v1690, %v1758
    %v1823 = vadd.f32 %v1691, %v1759
    %v1824 = vadd.f32 %v1692, %v1760
    %v1825 = vadd.f32 %v1693, %v1761
    %v1826 = vadd.f32 %v1694, %v1762
    %v1827 = vadd.f32 %v1695, %v1763
    %v1828 = vadd.f32 %v1696, %v1764
    %v1829 = vadd.f32 %v1697, %v1765
    %v1830 = vadd.f32 %v1698, %v1766
    %v1831 = vadd.f32 %v1699, %v1767
    %v1832 = vadd.f32 %v1700, %v1768
    %v1833 = vadd.f32 %v1701, %v1769
    %v1834 = vadd.f32 %v1702, %v1770
    %v1835 = vadd.f32 %v1703, %v1771
    %v1836 = vadd.f32 %v1704, %v1772
    %v1837 = vadd.f32 %v1705, %v1773
    %v1838 = vadd.f32 %v1706, %v1774
    %v1839 = vadd.f32 %v1707, %v1775
    %v1840 = vadd.f32 %v1708, %v1776
    %v1841 = vadd.f32 %v1709, %v1777
    %v1842 = vadd.f32 %v1710, %v1778
    %v1843 = vadd.f32 %v1711, %v1779
    %v1844 = vlaneseq
    %v1845 = vshrl.u32 %v1844, 7
    %v1846 = vsub.s32 2, %v1845
    %v1847 = vrot.slane %v129, %v1846
    %v1848 = vmul.f32 %v1004, %v1847
    %v1849 = vmul.f32 %v1165, %v1847
    %v1850 = vmul.f32 %v1007, %v1847
    %v1851 = vmul.f32 %v1166, %v1847
    %v1852 = vmul.f32 %v1010, %v1847
    %v1853 = vmul.f32 %v1167, %v1847
    %v1854 = vmul.f32 %v1013, %v1847
    %v1855 = vmul.f32 %v1168, %v1847
    %v1856 = vmul.f32 %v1016, %v1847
    %v1857 = vmul.f32 %v1169, %v1847
    %v1858 = vmul.f32 %v1019, %v1847
    %v1859 = vmul.f32 %v1170, %v1847
    %v1860 = vmul.f32 %v1022, %v1847
    %v1861 = vmul.f32 %v1171, %v1847
    %v1862 = vmul.f32 %v1025, %v1847
    %v1863 = vmul.f32 %v1172, %v1847
    %v1864 = vmul.f32 %v1028, %v1847
    %v1865 = vmul.f32 %v1173, %v1847
    %v1866 = vmul.f32 %v1031, %v1847
    %v1867 = vmul.f32 %v1174, %v1847
    %v1868 = vmul.f32 %v1034, %v1847
    %v1869 = vmul.f32 %v1175, %v1847
    %v1870 = vmul.f32 %v1037, %v1847
    %v1871 = vmul.f32 %v1176, %v1847
    %v1872 = vmul.f32 %v1040, %v1847
    %v1873 = vmul.f32 %v1177, %v1847
    %v1874 = vmul.f32 %v1043, %v1847
    %v1875 = vmul.f32 %v1178, %v1847
    %v1876 = vmul.f32 %v1046, %v1847
    %v1877 = vmul.f32 %v1179, %v1847
    %v1878 = vmul.f32 %v1049, %v1847
    %v1879 = vmul.f32 %v1180, %v1847
    %v1880 = vmul.f32 %v1052, %v1847
    %v1881 = vmul.f32 %v1181, %v1847
    %v1882 = vmul.f32 %v1055, %v1847
    %v1883 = vmul.f32 %v1182, %v1847
    %v1884 = vmul.f32 %v1058, %v1847
    %v1885 = vmul.f32 %v1183, %v1847
    %v1886 = vmul.f32 %v1061, %v1847
    %v1887 = vmul.f32 %v1184, %v1847
    %v1888 = vmul.f32 %v1064, %v1847
    %v1889 = vmul.f32 %v1185, %v1847
    %v1890 = vmul.f32 %v1067, %v1847
    %v1891 = vmul.f32 %v1186, %v1847
    %v1892 = vmul.f32 %v1070, %v1847
    %v1893 = vmul.f32 %v1187, %v1847
    %v1894 = vmul.f32 %v1073, %v1847
    %v1895 = vmul.f32 %v1188, %v1847
    %v1896 = vmul.f32 %v1076, %v1847
    %v1897 = vmul.f32 %v1189, %v1847
    %v1898 = vmul.f32 %v1079, %v1847
    %v1899 = vmul.f32 %v1190, %v1847
    %v1900 = vmul.f32 %v1082, %v1847
    %v1901 = vmul.f32 %v1191, %v1847
    %v1902 = vmul.f32 %v1085, %v1847
    %v1903 = vmul.f32 %v1192, %v1847
    %v1904 = vmul.f32 %v1088, %v1847
    %v1905 = vmul.f32 %v1193, %v1847
    %v1906 = vmul.f32 %v1091, %v1847
    %v1907 = vmul.f32 %v1194, %v1847
    %v1908 = vmul.f32 %v1094, %v1847
    %v1909 = vmul.f32 %v1195, %v1847
    %v1910 = vmul.f32 %v1097, %v1847
    %v1911 = vmul.f32 %v1196, %v1847
    %v1912 = vadd.f32 %v1780, %v1848
    %v1913 = vadd.f32 %v1781, %v1849
    %v1914 = vadd.f32 %v1782, %v1850
    %v1915 = vadd.f32 %v1783, %v1851
    %v1916 = vadd.f32 %v1784, %v1852
    %v1917 = vadd.f32 %v1785, %v1853
    %v1918 = vadd.f32 %v1786, %v1854
    %v1919 = vadd.f32 %v1787, %v1855
    %v1920 = vadd.f32 %v1788, %v1856
    %v1921 = vadd.f32 %v1789, %v1857
    %v1922 = vadd.f32 %v1790, %v1858
    %v1923 = vadd.f32 %v1791, %v1859
    %v1924 = vadd.f32 %v1792, %v1860
    %v1925 = vadd.f32 %v1793, %v1861
    %v1926 = vadd.f32 %v1794, %v1862
    %v1927 = vadd.f32 %v1795, %v1863
    %v1928 = vadd.f32 %v1796, %v1864
    %v1929 = vadd.f32 %v1797, %v1865
    %v1930 = vadd.f32 %v1798, %v1866
    %v1931 = vadd.f32 %v1799, %v1867
    %v1932 = vadd.f32 %v1800, %v1868
    %v1933 = vadd.f32 %v1801, %v1869
    %v1934 = vadd.f32 %v1802, %v1870
    %v1935 = vadd.f32 %v1803, %v1871
    %v1936 = vadd.f32 %v1804, %v1872
    %v1937 = vadd.f32 %v1805, %v1873
    %v1938 = vadd.f32 %v1806, %v1874
    %v1939 = vadd.f32 %v1807, %v1875
    %v1940 = vadd.f32 %v1808, %v1876
    %v1941 = vadd.f32 %v1809, %v1877
    %v1942 = vadd.f32 %v1810, %v1878
    %v1943 = vadd.f32 %v1811, %v1879
    %v1944 = vadd.f32 %v1812, %v1880
    %v1945 = vadd.f32 %v1813, %v1881
    %v1946 = vadd.f32 %v1814, %v1882
    %v1947 = vadd.f32 %v1815, %v1883
    %v1948 = vadd.f32 %v1816, %v1884
    %v1949 = vadd.f32 %v1817, %v1885
    %v1950 = vadd.f32 %v1818, %v1886
    %v1951 = vadd.f32 %v1819, %v1887
    %v1952 = vadd.f32 %v1820, %v1888
    %v1953 = vadd.f32 %v1821, %v1889
    %v1954 = vadd.f32 %v1822, %v1890
    %v1955 = vadd.f32 %v1823, %v1891
    %v1956 = vadd.f32 %v1824, %v1892
    %v1957 = vadd.f32 %v1825, %v1893
    %v1958 = vadd.f32 %v1826, %v1894
    %v1959 = vadd.f32 %v1827, %v1895
    %v1960 = vadd.f32 %v1828, %v1896
    %v1961 = vadd.f32 %v1829, %v1897
    %v1962 = vadd.f32 %v1830, %v1898
    %v1963 = vadd.f32 %v1831, %v1899
    %v1964 = vadd.f32 %v1832, %v1900
    %v1965 = vadd.f32 %v1833, %v1901
    %v1966 = vadd.f32 %v1834, %v1902
    %v1967 = vadd.f32 %v1835, %v1903
    %v1968 = vadd.f32 %v1836, %v1904
    %v1969 = vadd.f32 %v1837, %v1905
    %v1970 = vadd.f32 %v1838, %v1906
    %v1971 = vadd.f32 %v1839, %v1907
    %v1972 = vadd.f32 %v1840, %v1908
    %v1973 = vadd.f32 %v1841, %v1909
    %v1974 = vadd.f32 %v1842, %v1910
    %v1975 = vadd.f32 %v1843, %v1911
    %v1976 = vlaneseq
    %v1977 = vshrl.u32 %v1976, 7
    %v1978 = vsub.s32 0, %v1977
    %v1979 = vrot.slane %v130, %v1978
    %v1980 = vmul.f32 %v968, %v1979
    %v1981 = vmul.f32 %v809, %v1979
    %v1982 = vmul.f32 %v969, %v1979
    %v1983 = vmul.f32 %v812, %v1979
    %v1984 = vmul.f32 %v970, %v1979
    %v1985 = vmul.f32 %v815, %v1979
    %v1986 = vmul.f32 %v971, %v1979
    %v1987 = vmul.f32 %v818, %v1979
    %v1988 = vmul.f32 %v972, %v1979
    %v1989 = vmul.f32 %v821, %v1979
    %v1990 = vmul.f32 %v973, %v1979
    %v1991 = vmul.f32 %v824, %v1979
    %v1992 = vmul.f32 %v974, %v1979
    %v1993 = vmul.f32 %v827, %v1979
    %v1994 = vmul.f32 %v975, %v1979
    %v1995 = vmul.f32 %v830, %v1979
    %v1996 = vmul.f32 %v976, %v1979
    %v1997 = vmul.f32 %v833, %v1979
    %v1998 = vmul.f32 %v977, %v1979
    %v1999 = vmul.f32 %v836, %v1979
    %v2000 = vmul.f32 %v978, %v1979
    %v2001 = vmul.f32 %v839, %v1979
    %v2002 = vmul.f32 %v979, %v1979
    %v2003 = vmul.f32 %v842, %v1979
    %v2004 = vmul.f32 %v980, %v1979
    %v2005 = vmul.f32 %v845, %v1979
    %v2006 = vmul.f32 %v981, %v1979
    %v2007 = vmul.f32 %v848, %v1979
    %v2008 = vmul.f32 %v982, %v1979
    %v2009 = vmul.f32 %v851, %v1979
    %v2010 = vmul.f32 %v966, %v1979
    %v2011 = vmul.f32 %v803, %v1979
    %v2012 = vmul.f32 %v984, %v1979
    %v2013 = vmul.f32 %v857, %v1979
    %v2014 = vmul.f32 %v985, %v1979
    %v2015 = vmul.f32 %v860, %v1979
    %v2016 = vmul.f32 %v986, %v1979
    %v2017 = vmul.f32 %v863, %v1979
    %v2018 = vmul.f32 %v987, %v1979
    %v2019 = vmul.f32 %v866, %v1979
    %v2020 = vmul.f32 %v988, %v1979
    %v2021 = vmul.f32 %v869, %v1979
    %v2022 = vmul.f32 %v989, %v1979
    %v2023 = vmul.f32 %v872, %v1979
    %v2024 = vmul.f32 %v990, %v1979
    %v2025 = vmul.f32 %v875, %v1979
    %v2026 = vmul.f32 %v991, %v1979
    %v2027 = vmul.f32 %v878, %v1979
    %v2028 = vmul.f32 %v992, %v1979
    %v2029 = vmul.f32 %v881, %v1979
    %v2030 = vmul.f32 %v993, %v1979
    %v2031 = vmul.f32 %v884, %v1979
    %v2032 = vmul.f32 %v994, %v1979
    %v2033 = vmul.f32 %v887, %v1979
    %v2034 = vmul.f32 %v995, %v1979
    %v2035 = vmul.f32 %v890, %v1979
    %v2036 = vmul.f32 %v996, %v1979
    %v2037 = vmul.f32 %v893, %v1979
    %v2038 = vmul.f32 %v997, %v1979
    %v2039 = vmul.f32 %v896, %v1979
    %v2040 = vmul.f32 %v998, %v1979
    %v2041 = vmul.f32 %v899, %v1979
    %v2042 = vadd.f32 %v1912, %v1980
    %v2043 = vadd.f32 %v1913, %v1981
    %v2044 = vadd.f32 %v1914, %v1982
    %v2045 = vadd.f32 %v1915, %v1983
    %v2046 = vadd.f32 %v1916, %v1984
    %v2047 = vadd.f32 %v1917, %v1985
    %v2048 = vadd.f32 %v1918, %v1986
    %v2049 = vadd.f32 %v1919, %v1987
    %v2050 = vadd.f32 %v1920, %v1988
    %v2051 = vadd.f32 %v1921, %v1989
    %v2052 = vadd.f32 %v1922, %v1990
    %v2053 = vadd.f32 %v1923, %v1991
    %v2054 = vadd.f32 %v1924, %v1992
    %v2055 = vadd.f32 %v1925, %v1993
    %v2056 = vadd.f32 %v1926, %v1994
    %v2057 = vadd.f32 %v1927, %v1995
    %v2058 = vadd.f32 %v1928, %v1996
    %v2059 = vadd.f32 %v1929, %v1997
    %v2060 = vadd.f32 %v1930, %v1998
    %v2061 = vadd.f32 %v1931, %v1999
    %v2062 = vadd.f32 %v1932, %v2000
    %v2063 = vadd.f32 %v1933, %v2001
    %v2064 = vadd.f32 %v1934, %v2002
    %v2065 = vadd.f32 %v1935, %v2003
    %v2066 = vadd.f32 %v1936, %v2004
    %v2067 = vadd.f32 %v1937, %v2005
    %v2068 = vadd.f32 %v1938, %v2006
    %v2069 = vadd.f32 %v1939, %v2007
    %v2070 = vadd.f32 %v1940, %v2008
    %v2071 = vadd.f32 %v1941, %v2009
    %v2072 = vadd.f32 %v1942, %v2010
    %v2073 = vadd.f32 %v1943, %v2011
    %v2074 = vadd.f32 %v1944, %v2012
    %v2075 = vadd.f32 %v1945, %v2013
    %v2076 = vadd.f32 %v1946, %v2014
    %v2077 = vadd.f32 %v1947, %v2015
    %v2078 = vadd.f32 %v1948, %v2016
    %v2079 = vadd.f32 %v1949, %v2017
    %v2080 = vadd.f32 %v1950, %v2018
    %v2081 = vadd.f32 %v1951, %v2019
    %v2082 = vadd.f32 %v1952, %v2020
    %v2083 = vadd.f32 %v1953, %v2021
    %v2084 = vadd.f32 %v1954, %v2022
    %v2085 = vadd.f32 %v1955, %v2023
    %v2086 = vadd.f32 %v1956, %v2024
    %v2087 = vadd.f32 %v1957, %v2025
    %v2088 = vadd.f32 %v1958, %v2026
    %v2089 = vadd.f32 %v1959, %v2027
    %v2090 = vadd.f32 %v1960, %v2028
    %v2091 = vadd.f32 %v1961, %v2029
    %v2092 = vadd.f32 %v1962, %v2030
    %v2093 = vadd.f32 %v1963, %v2031
    %v2094 = vadd.f32 %v1964, %v2032
    %v2095 = vadd.f32 %v1965, %v2033
    %v2096 = vadd.f32 %v1966, %v2034
    %v2097 = vadd.f32 %v1967, %v2035
    %v2098 = vadd.f32 %v1968, %v2036
    %v2099 = vadd.f32 %v1969, %v2037
    %v2100 = vadd.f32 %v1970, %v2038
    %v2101 = vadd.f32 %v1971, %v2039
    %v2102 = vadd.f32 %v1972, %v2040
    %v2103 = vadd.f32 %v1973, %v2041
    %v2104 = vadd.f32 %v1974, %v2010
    %v2105 = vadd.f32 %v1975, %v2011
    %v2106 = vlaneseq
    %v2107 = vshrl.u32 %v2106, 7
    %v2108 = vsub.s32 1, %v2107
    %v2109 = vrot.slane %v130, %v2108
    %v2110 = vmul.f32 %v428, %v2109
    %v2111 = vmul.f32 %v433, %v2109
    %v2112 = vmul.f32 %v438, %v2109
    %v2113 = vmul.f32 %v443, %v2109
    %v2114 = vmul.f32 %v448, %v2109
    %v2115 = vmul.f32 %v453, %v2109
    %v2116 = vmul.f32 %v458, %v2109
    %v2117 = vmul.f32 %v463, %v2109
    %v2118 = vmul.f32 %v468, %v2109
    %v2119 = vmul.f32 %v473, %v2109
    %v2120 = vmul.f32 %v478, %v2109
    %v2121 = vmul.f32 %v483, %v2109
    %v2122 = vmul.f32 %v488, %v2109
    %v2123 = vmul.f32 %v493, %v2109
    %v2124 = vmul.f32 %v498, %v2109
    %v2125 = vmul.f32 %v503, %v2109
    %v2126 = vmul.f32 %v508, %v2109
    %v2127 = vmul.f32 %v513, %v2109
    %v2128 = vmul.f32 %v518, %v2109
    %v2129 = vmul.f32 %v523, %v2109
    %v2130 = vmul.f32 %v528, %v2109
    %v2131 = vmul.f32 %v533, %v2109
    %v2132 = vmul.f32 %v538, %v2109
    %v2133 = vmul.f32 %v543, %v2109
    %v2134 = vmul.f32 %v548, %v2109
    %v2135 = vmul.f32 %v553, %v2109
    %v2136 = vmul.f32 %v558, %v2109
    %v2137 = vmul.f32 %v563, %v2109
    %v2138 = vmul.f32 %v568, %v2109
    %v2139 = vmul.f32 %v573, %v2109
    %v2140 = vmul.f32 %v2109, 0.0
    %v2141 = vmul.f32 %v588, %v2109
    %v2142 = vmul.f32 %v593, %v2109
    %v2143 = vmul.f32 %v598, %v2109
    %v2144 = vmul.f32 %v603, %v2109
    %v2145 = vmul.f32 %v608, %v2109
    %v2146 = vmul.f32 %v613, %v2109
    %v2147 = vmul.f32 %v618, %v2109
    %v2148 = vmul.f32 %v623, %v2109
    %v2149 = vmul.f32 %v628, %v2109
    %v2150 = vmul.f32 %v633, %v2109
    %v2151 = vmul.f32 %v638, %v2109
    %v2152 = vmul.f32 %v643, %v2109
    %v2153 = vmul.f32 %v648, %v2109
    %v2154 = vmul.f32 %v653, %v2109
    %v2155 = vmul.f32 %v658, %v2109
    %v2156 = vmul.f32 %v663, %v2109
    %v2157 = vmul.f32 %v668, %v2109
    %v2158 = vmul.f32 %v673, %v2109
    %v2159 = vmul.f32 %v678, %v2109
    %v2160 = vmul.f32 %v683, %v2109
    %v2161 = vmul.f32 %v688, %v2109
    %v2162 = vmul.f32 %v693, %v2109
    %v2163 = vmul.f32 %v698, %v2109
    %v2164 = vmul.f32 %v703, %v2109
    %v2165 = vmul.f32 %v708, %v2109
    %v2166 = vmul.f32 %v713, %v2109
    %v2167 = vmul.f32 %v718, %v2109
    %v2168 = vmul.f32 %v723, %v2109
    %v2169 = vmul.f32 %v728, %v2109
    %v2170 = vmul.f32 %v733, %v2109
    %v2171 = vadd.f32 %v2042, %v2110
    %v2172 = vadd.f32 %v2043, %v2111
    %v2173 = vadd.f32 %v2044, %v2112
    %v2174 = vadd.f32 %v2045, %v2113
    %v2175 = vadd.f32 %v2046, %v2114
    %v2176 = vadd.f32 %v2047, %v2115
    %v2177 = vadd.f32 %v2048, %v2116
    %v2178 = vadd.f32 %v2049, %v2117
    %v2179 = vadd.f32 %v2050, %v2118
    %v2180 = vadd.f32 %v2051, %v2119
    %v2181 = vadd.f32 %v2052, %v2120
    %v2182 = vadd.f32 %v2053, %v2121
    %v2183 = vadd.f32 %v2054, %v2122
    %v2184 = vadd.f32 %v2055, %v2123
    %v2185 = vadd.f32 %v2056, %v2124
    %v2186 = vadd.f32 %v2057, %v2125
    %v2187 = vadd.f32 %v2058, %v2126
    %v2188 = vadd.f32 %v2059, %v2127
    %v2189 = vadd.f32 %v2060, %v2128
    %v2190 = vadd.f32 %v2061, %v2129
    %v2191 = vadd.f32 %v2062, %v2130
    %v2192 = vadd.f32 %v2063, %v2131
    %v2193 = vadd.f32 %v2064, %v2132
    %v2194 = vadd.f32 %v2065, %v2133
    %v2195 = vadd.f32 %v2066, %v2134
    %v2196 = vadd.f32 %v2067, %v2135
    %v2197 = vadd.f32 %v2068, %v2136
    %v2198 = vadd.f32 %v2069, %v2137
    %v2199 = vadd.f32 %v2070, %v2138
    %v2200 = vadd.f32 %v2071, %v2139
    %v2201 = vadd.f32 %v2072, %v2140
    %v2202 = vadd.f32 %v2073, %v2140
    %v2203 = vadd.f32 %v2074, %v2141
    %v2204 = vadd.f32 %v2075, %v2142
    %v2205 = vadd.f32 %v2076, %v2143
    %v2206 = vadd.f32 %v2077, %v2144
    %v2207 = vadd.f32 %v2078, %v2145
    %v2208 = vadd.f32 %v2079, %v2146
    %v2209 = vadd.f32 %v2080, %v2147
    %v2210 = vadd.f32 %v2081, %v2148
    %v2211 = vadd.f32 %v2082, %v2149
    %v2212 = vadd.f32 %v2083, %v2150
    %v2213 = vadd.f32 %v2084, %v2151
    %v2214 = vadd.f32 %v2085, %v2152
    %v2215 = vadd.f32 %v2086, %v2153
    %v2216 = vadd.f32 %v2087, %v2154
    %v2217 = vadd.f32 %v2088, %v2155
    %v2218 = vadd.f32 %v2089, %v2156
    %v2219 = vadd.f32 %v2090, %v2157
    %v2220 = vadd.f32 %v2091, %v2158
    %v2221 = vadd.f32 %v2092, %v2159
    %v2222 = vadd.f32 %v2093, %v2160
    %v2223 = vadd.f32 %v2094, %v2161
    %v2224 = vadd.f32 %v2095, %v2162
    %v2225 = vadd.f32 %v2096, %v2163
    %v2226 = vadd.f32 %v2097, %v2164
    %v2227 = vadd.f32 %v2098, %v2165
    %v2228 = vadd.f32 %v2099, %v2166
    %v2229 = vadd.f32 %v2100, %v2167
    %v2230 = vadd.f32 %v2101, %v2168
    %v2231 = vadd.f32 %v2102, %v2169
    %v2232 = vadd.f32 %v2103, %v2170
    %v2233 = vadd.f32 %v2104, %v2140
    %v2234 = vadd.f32 %v2105, %v2140
    %v2235 = vlaneseq
    %v2236 = vshrl.u32 %v2235, 7
    %v2237 = vsub.s32 2, %v2236
    %v2238 = vrot.slane %v130, %v2237
    %v2239 = vmul.f32 %v1007, %v2238
    %v2240 = vmul.f32 %v1166, %v2238
    %v2241 = vmul.f32 %v1010, %v2238
    %v2242 = vmul.f32 %v1167, %v2238
    %v2243 = vmul.f32 %v1013, %v2238
    %v2244 = vmul.f32 %v1168, %v2238
    %v2245 = vmul.f32 %v1016, %v2238
    %v2246 = vmul.f32 %v1169, %v2238
    %v2247 = vmul.f32 %v1019, %v2238
    %v2248 = vmul.f32 %v1170, %v2238
    %v2249 = vmul.f32 %v1022, %v2238
    %v2250 = vmul.f32 %v1171, %v2238
    %v2251 = vmul.f32 %v1025, %v2238
    %v2252 = vmul.f32 %v1172, %v2238
    %v2253 = vmul.f32 %v1028, %v2238
    %v2254 = vmul.f32 %v1173, %v2238
    %v2255 = vmul.f32 %v1031, %v2238
    %v2256 = vmul.f32 %v1174, %v2238
    %v2257 = vmul.f32 %v1034, %v2238
    %v2258 = vmul.f32 %v1175, %v2238
    %v2259 = vmul.f32 %v1037, %v2238
    %v2260 = vmul.f32 %v1176, %v2238
    %v2261 = vmul.f32 %v1040, %v2238
    %v2262 = vmul.f32 %v1177, %v2238
    %v2263 = vmul.f32 %v1043, %v2238
    %v2264 = vmul.f32 %v1178, %v2238
    %v2265 = vmul.f32 %v1046, %v2238
    %v2266 = vmul.f32 %v1179, %v2238
    %v2267 = vmul.f32 %v1049, %v2238
    %v2268 = vmul.f32 %v1180, %v2238
    %v2269 = vmul.f32 %v1001, %v2238
    %v2270 = vmul.f32 %v1164, %v2238
    %v2271 = vmul.f32 %v1055, %v2238
    %v2272 = vmul.f32 %v1182, %v2238
    %v2273 = vmul.f32 %v1058, %v2238
    %v2274 = vmul.f32 %v1183, %v2238
    %v2275 = vmul.f32 %v1061, %v2238
    %v2276 = vmul.f32 %v1184, %v2238
    %v2277 = vmul.f32 %v1064, %v2238
    %v2278 = vmul.f32 %v1185, %v2238
    %v2279 = vmul.f32 %v1067, %v2238
    %v2280 = vmul.f32 %v1186, %v2238
    %v2281 = vmul.f32 %v1070, %v2238
    %v2282 = vmul.f32 %v1187, %v2238
    %v2283 = vmul.f32 %v1073, %v2238
    %v2284 = vmul.f32 %v1188, %v2238
    %v2285 = vmul.f32 %v1076, %v2238
    %v2286 = vmul.f32 %v1189, %v2238
    %v2287 = vmul.f32 %v1079, %v2238
    %v2288 = vmul.f32 %v1190, %v2238
    %v2289 = vmul.f32 %v1082, %v2238
    %v2290 = vmul.f32 %v1191, %v2238
    %v2291 = vmul.f32 %v1085, %v2238
    %v2292 = vmul.f32 %v1192, %v2238
    %v2293 = vmul.f32 %v1088, %v2238
    %v2294 = vmul.f32 %v1193, %v2238
    %v2295 = vmul.f32 %v1091, %v2238
    %v2296 = vmul.f32 %v1194, %v2238
    %v2297 = vmul.f32 %v1094, %v2238
    %v2298 = vmul.f32 %v1195, %v2238
    %v2299 = vmul.f32 %v1097, %v2238
    %v2300 = vmul.f32 %v1196, %v2238
    %v2301 = vadd.f32 %v2171, %v2239
    %v2302 = vadd.f32 %v2172, %v2240
    %v2303 = vadd.f32 %v2173, %v2241
    %v2304 = vadd.f32 %v2174, %v2242
    %v2305 = vadd.f32 %v2175, %v2243
    %v2306 = vadd.f32 %v2176, %v2244
    %v2307 = vadd.f32 %v2177, %v2245
    %v2308 = vadd.f32 %v2178, %v2246
    %v2309 = vadd.f32 %v2179, %v2247
    %v2310 = vadd.f32 %v2180, %v2248
    %v2311 = vadd.f32 %v2181, %v2249
    %v2312 = vadd.f32 %v2182, %v2250
    %v2313 = vadd.f32 %v2183, %v2251
    %v2314 = vadd.f32 %v2184, %v2252
    %v2315 = vadd.f32 %v2185, %v2253
    %v2316 = vadd.f32 %v2186, %v2254
    %v2317 = vadd.f32 %v2187, %v2255
    %v2318 = vadd.f32 %v2188, %v2256
    %v2319 = vadd.f32 %v2189, %v2257
    %v2320 = vadd.f32 %v2190, %v2258
    %v2321 = vadd.f32 %v2191, %v2259
    %v2322 = vadd.f32 %v2192, %v2260
    %v2323 = vadd.f32 %v2193, %v2261
    %v2324 = vadd.f32 %v2194, %v2262
    %v2325 = vadd.f32 %v2195, %v2263
    %v2326 = vadd.f32 %v2196, %v2264
    %v2327 = vadd.f32 %v2197, %v2265
    %v2328 = vadd.f32 %v2198, %v2266
    %v2329 = vadd.f32 %v2199, %v2267
    %v2330 = vadd.f32 %v2200, %v2268
    %v2331 = vadd.f32 %v2201, %v2269
    %v2332 = vadd.f32 %v2202, %v2270
    %v2333 = vadd.f32 %v2203, %v2271
    %v2334 = vadd.f32 %v2204, %v2272
    %v2335 = vadd.f32 %v2205, %v2273
    %v2336 = vadd.f32 %v2206, %v2274
    %v2337 = vadd.f32 %v2207, %v2275
    %v2338 = vadd.f32 %v2208, %v2276
    %v2339 = vadd.f32 %v2209, %v2277
    %v2340 = vadd.f32 %v2210, %v2278
    %v2341 = vadd.f32 %v2211, %v2279
    %v2342 = vadd.f32 %v2212, %v2280
    %v2343 = vadd.f32 %v2213, %v2281
    %v2344 = vadd.f32 %v2214, %v2282
    %v2345 = vadd.f32 %v2215, %v2283
    %v2346 = vadd.f32 %v2216, %v2284
    %v2347 = vadd.f32 %v2217, %v2285
    %v2348 = vadd.f32 %v2218, %v2286
    %v2349 = vadd.f32 %v2219, %v2287
    %v2350 = vadd.f32 %v2220, %v2288
    %v2351 = vadd.f32 %v2221, %v2289
    %v2352 = vadd.f32 %v2222, %v2290
    %v2353 = vadd.f32 %v2223, %v2291
    %v2354 = vadd.f32 %v2224, %v2292
    %v2355 = vadd.f32 %v2225, %v2293
    %v2356 = vadd.f32 %v2226, %v2294
    %v2357 = vadd.f32 %v2227, %v2295
    %v2358 = vadd.f32 %v2228, %v2296
    %v2359 = vadd.f32 %v2229, %v2297
    %v2360 = vadd.f32 %v2230, %v2298
    %v2361 = vadd.f32 %v2231, %v2299
    %v2362 = vadd.f32 %v2232, %v2300
    %v2363 = vadd.f32 %v2233, %v2269
    %v2364 = vadd.f32 %v2234, %v2270
    %vm2365 = vcmask 523264
    %v2366 = vsel %vm2365, %v2301, 0.0
    %v2367 = vsel %vm2365, %v2302, 0.0
    %v2368 = vadd.f32 %v2366, %v2367
    %v2369 = vsel %vm2365, %v2303, 0.0
    %v2370 = vadd.f32 %v2368, %v2369
    %v2371 = vsel %vm2365, %v2304, 0.0
    %v2372 = vadd.f32 %v2370, %v2371
    %v2373 = vsel %vm2365, %v2305, 0.0
    %v2374 = vadd.f32 %v2372, %v2373
    %v2375 = vsel %vm2365, %v2306, 0.0
    %v2376 = vadd.f32 %v2374, %v2375
    %v2377 = vsel %vm2365, %v2307, 0.0
    %v2378 = vadd.f32 %v2376, %v2377
    %v2379 = vsel %vm2365, %v2308, 0.0
    %v2380 = vadd.f32 %v2378, %v2379
    %v2381 = vsel %vm2365, %v2309, 0.0
    %v2382 = vadd.f32 %v2380, %v2381
    %v2383 = vsel %vm2365, %v2310, 0.0
    %v2384 = vadd.f32 %v2382, %v2383
    %v2385 = vsel %vm2365, %v2311, 0.0
    %v2386 = vadd.f32 %v2384, %v2385
    %v2387 = vsel %vm2365, %v2312, 0.0
    %v2388 = vadd.f32 %v2386, %v2387
    %v2389 = vsel %vm2365, %v2313, 0.0
    %v2390 = vadd.f32 %v2388, %v2389
    %v2391 = vsel %vm2365, %v2314, 0.0
    %v2392 = vadd.f32 %v2390, %v2391
    %v2393 = vsel %vm2365, %v2315, 0.0
    %v2394 = vadd.f32 %v2392, %v2393
    %v2395 = vsel %vm2365, %v2316, 0.0
    %v2396 = vadd.f32 %v2394, %v2395
    %v2397 = vsel %vm2365, %v2317, 0.0
    %v2398 = vadd.f32 %v2396, %v2397
    %v2399 = vsel %vm2365, %v2318, 0.0
    %v2400 = vadd.f32 %v2398, %v2399
    %v2401 = vsel %vm2365, %v2319, 0.0
    %v2402 = vadd.f32 %v2400, %v2401
    %v2403 = vsel %vm2365, %v2320, 0.0
    %v2404 = vadd.f32 %v2402, %v2403
    %v2405 = vsel %vm2365, %v2321, 0.0
    %v2406 = vadd.f32 %v2404, %v2405
    %v2407 = vsel %vm2365, %v2322, 0.0
    %v2408 = vadd.f32 %v2406, %v2407
    %v2409 = vsel %vm2365, %v2323, 0.0
    %v2410 = vadd.f32 %v2408, %v2409
    %v2411 = vsel %vm2365, %v2324, 0.0
    %v2412 = vadd.f32 %v2410, %v2411
    %v2413 = vsel %vm2365, %v2325, 0.0
    %v2414 = vadd.f32 %v2412, %v2413
    %v2415 = vsel %vm2365, %v2326, 0.0
    %v2416 = vadd.f32 %v2414, %v2415
    %v2417 = vsel %vm2365, %v2327, 0.0
    %v2418 = vadd.f32 %v2416, %v2417
    %v2419 = vsel %vm2365, %v2328, 0.0
    %v2420 = vadd.f32 %v2418, %v2419
    %v2421 = vsel %vm2365, %v2329, 0.0
    %v2422 = vadd.f32 %v2420, %v2421
    %v2423 = vsel %vm2365, %v2330, 0.0
    %v2424 = vadd.f32 %v2422, %v2423
    %v2425 = vsel %vm2365, %v2331, 0.0
    %v2426 = vadd.f32 %v2424, %v2425
    %v2427 = vsel %vm2365, %v2332, 0.0
    %v2428 = vadd.f32 %v2426, %v2427
    %v2429 = vsel %vm2365, %v2333, 0.0
    %v2430 = vadd.f32 %v2428, %v2429
    %v2431 = vsel %vm2365, %v2334, 0.0
    %v2432 = vadd.f32 %v2430, %v2431
    %v2433 = vsel %vm2365, %v2335, 0.0
    %v2434 = vadd.f32 %v2432, %v2433
    %v2435 = vsel %vm2365, %v2336, 0.0
    %v2436 = vadd.f32 %v2434, %v2435
    %v2437 = vsel %vm2365, %v2337, 0.0
    %v2438 = vadd.f32 %v2436, %v2437
    %v2439 = vsel %vm2365, %v2338, 0.0
    %v2440 = vadd.f32 %v2438, %v2439
    %v2441 = vsel %vm2365, %v2339, 0.0
    %v2442 = vadd.f32 %v2440, %v2441
    %v2443 = vsel %vm2365, %v2340, 0.0
    %v2444 = vadd.f32 %v2442, %v2443
    %v2445 = vsel %vm2365, %v2341, 0.0
    %v2446 = vadd.f32 %v2444, %v2445
    %v2447 = vsel %vm2365, %v2342, 0.0
    %v2448 = vadd.f32 %v2446, %v2447
    %v2449 = vsel %vm2365, %v2343, 0.0
    %v2450 = vadd.f32 %v2448, %v2449
    %v2451 = vsel %vm2365, %v2344, 0.0
    %v2452 = vadd.f32 %v2450, %v2451
    %v2453 = vsel %vm2365, %v2345, 0.0
    %v2454 = vadd.f32 %v2452, %v2453
    %v2455 = vsel %vm2365, %v2346, 0.0
    %v2456 = vadd.f32 %v2454, %v2455
    %v2457 = vsel %vm2365, %v2347, 0.0
    %v2458 = vadd.f32 %v2456, %v2457
    %v2459 = vsel %vm2365, %v2348, 0.0
    %v2460 = vadd.f32 %v2458, %v2459
    %v2461 = vsel %vm2365, %v2349, 0.0
    %v2462 = vadd.f32 %v2460, %v2461
    %v2463 = vsel %vm2365, %v2350, 0.0
    %v2464 = vadd.f32 %v2462, %v2463
    %v2465 = vsel %vm2365, %v2351, 0.0
    %v2466 = vadd.f32 %v2464, %v2465
    %v2467 = vsel %vm2365, %v2352, 0.0
    %v2468 = vadd.f32 %v2466, %v2467
    %v2469 = vsel %vm2365, %v2353, 0.0
    %v2470 = vadd.f32 %v2468, %v2469
    %v2471 = vsel %vm2365, %v2354, 0.0
    %v2472 = vadd.f32 %v2470, %v2471
    %v2473 = vsel %vm2365, %v2355, 0.0
    %v2474 = vadd.f32 %v2472, %v2473
    %v2475 = vsel %vm2365, %v2356, 0.0
    %v2476 = vadd.f32 %v2474, %v2475
    %v2477 = vsel %vm2365, %v2357, 0.0
    %v2478 = vadd.f32 %v2476, %v2477
    %v2479 = vsel %vm2365, %v2358, 0.0
    %v2480 = vadd.f32 %v2478, %v2479
    %v2481 = vsel %vm2365, %v2359, 0.0
    %v2482 = vadd.f32 %v2480, %v2481
    %v2483 = vsel %vm2365, %v2360, 0.0
    %v2484 = vadd.f32 %v2482, %v2483
    %v2485 = vsel %vm2365, %v2361, 0.0
    %v2486 = vadd.f32 %v2484, %v2485
    %v2487 = vsel %vm2365, %v2362, 0.0
    %v2488 = vadd.f32 %v2486, %v2487
    %v2489 = vsel %vm2365, %v2363, 0.0
    %v2490 = vadd.f32 %v2488, %v2489
    %v2491 = vsel %vm2365, %v2364, 0.0
    %v2492 = vadd.f32 %v2490, %v2491
    %v2493 = vrot.slane %v2492, 4
    %v2494 = vadd.f32 %v2492, %v2493
    %v2495 = vrot.slane %v2494, 2
    %v2496 = vadd.f32 %v2494, %v2495
    %v2497 = vrot.slane %v2496, 1
    %v2498 = vadd.f32 %v2496, %v2497
    %v2499 = vmul.f32 %v2498, 0.001953125
    %v2500 = vmul.f32 %v2301, %v2301
    %v2501 = vmul.f32 %v2302, %v2302
    %v2502 = vmul.f32 %v2303, %v2303
    %v2503 = vmul.f32 %v2304, %v2304
    %v2504 = vmul.f32 %v2305, %v2305
    %v2505 = vmul.f32 %v2306, %v2306
    %v2506 = vmul.f32 %v2307, %v2307
    %v2507 = vmul.f32 %v2308, %v2308
    %v2508 = vmul.f32 %v2309, %v2309
    %v2509 = vmul.f32 %v2310, %v2310
    %v2510 = vmul.f32 %v2311, %v2311
    %v2511 = vmul.f32 %v2312, %v2312
    %v2512 = vmul.f32 %v2313, %v2313
    %v2513 = vmul.f32 %v2314, %v2314
    %v2514 = vmul.f32 %v2315, %v2315
    %v2515 = vmul.f32 %v2316, %v2316
    %v2516 = vmul.f32 %v2317, %v2317
    %v2517 = vmul.f32 %v2318, %v2318
    %v2518 = vmul.f32 %v2319, %v2319
    %v2519 = vmul.f32 %v2320, %v2320
    %v2520 = vmul.f32 %v2321, %v2321
    %v2521 = vmul.f32 %v2322, %v2322
    %v2522 = vmul.f32 %v2323, %v2323
    %v2523 = vmul.f32 %v2324, %v2324
    %v2524 = vmul.f32 %v2325, %v2325
    %v2525 = vmul.f32 %v2326, %v2326
    %v2526 = vmul.f32 %v2327, %v2327
    %v2527 = vmul.f32 %v2328, %v2328
    %v2528 = vmul.f32 %v2329, %v2329
    %v2529 = vmul.f32 %v2330, %v2330
    %v2530 = vmul.f32 %v2331, %v2331
    %v2531 = vmul.f32 %v2332, %v2332
    %v2532 = vmul.f32 %v2333, %v2333
    %v2533 = vmul.f32 %v2334, %v2334
    %v2534 = vmul.f32 %v2335, %v2335
    %v2535 = vmul.f32 %v2336, %v2336
    %v2536 = vmul.f32 %v2337, %v2337
    %v2537 = vmul.f32 %v2338, %v2338
    %v2538 = vmul.f32 %v2339, %v2339
    %v2539 = vmul.f32 %v2340, %v2340
    %v2540 = vmul.f32 %v2341, %v2341
    %v2541 = vmul.f32 %v2342, %v2342
    %v2542 = vmul.f32 %v2343, %v2343
    %v2543 = vmul.f32 %v2344, %v2344
    %v2544 = vmul.f32 %v2345, %v2345
    %v2545 = vmul.f32 %v2346, %v2346
    %v2546 = vmul.f32 %v2347, %v2347
    %v2547 = vmul.f32 %v2348, %v2348
    %v2548 = vmul.f32 %v2349, %v2349
    %v2549 = vmul.f32 %v2350, %v2350
    %v2550 = vmul.f32 %v2351, %v2351
    %v2551 = vmul.f32 %v2352, %v2352
    %v2552 = vmul.f32 %v2353, %v2353
    %v2553 = vmul.f32 %v2354, %v2354
    %v2554 = vmul.f32 %v2355, %v2355
    %v2555 = vmul.f32 %v2356, %v2356
    %v2556 = vmul.f32 %v2357, %v2357
    %v2557 = vmul.f32 %v2358, %v2358
    %v2558 = vmul.f32 %v2359, %v2359
    %v2559 = vmul.f32 %v2360, %v2360
    %v2560 = vmul.f32 %v2361, %v2361
    %v2561 = vmul.f32 %v2362, %v2362
    %v2562 = vmul.f32 %v2363, %v2363
    %v2563 = vmul.f32 %v2364, %v2364
    %v2564 = vsel %vm2365, %v2500, 0.0
    %v2565 = vsel %vm2365, %v2501, 0.0
    %v2566 = vadd.f32 %v2564, %v2565
    %v2567 = vsel %vm2365, %v2502, 0.0
    %v2568 = vadd.f32 %v2566, %v2567
    %v2569 = vsel %vm2365, %v2503, 0.0
    %v2570 = vadd.f32 %v2568, %v2569
    %v2571 = vsel %vm2365, %v2504, 0.0
    %v2572 = vadd.f32 %v2570, %v2571
    %v2573 = vsel %vm2365, %v2505, 0.0
    %v2574 = vadd.f32 %v2572, %v2573
    %v2575 = vsel %vm2365, %v2506, 0.0
    %v2576 = vadd.f32 %v2574, %v2575
    %v2577 = vsel %vm2365, %v2507, 0.0
    %v2578 = vadd.f32 %v2576, %v2577
    %v2579 = vsel %vm2365, %v2508, 0.0
    %v2580 = vadd.f32 %v2578, %v2579
    %v2581 = vsel %vm2365, %v2509, 0.0
    %v2582 = vadd.f32 %v2580, %v2581
    %v2583 = vsel %vm2365, %v2510, 0.0
    %v2584 = vadd.f32 %v2582, %v2583
    %v2585 = vsel %vm2365, %v2511, 0.0
    %v2586 = vadd.f32 %v2584, %v2585
    %v2587 = vsel %vm2365, %v2512, 0.0
    %v2588 = vadd.f32 %v2586, %v2587
    %v2589 = vsel %vm2365, %v2513, 0.0
    %v2590 = vadd.f32 %v2588, %v2589
    %v2591 = vsel %vm2365, %v2514, 0.0
    %v2592 = vadd.f32 %v2590, %v2591
    %v2593 = vsel %vm2365, %v2515, 0.0
    %v2594 = vadd.f32 %v2592, %v2593
    %v2595 = vsel %vm2365, %v2516, 0.0
    %v2596 = vadd.f32 %v2594, %v2595
    %v2597 = vsel %vm2365, %v2517, 0.0
    %v2598 = vadd.f32 %v2596, %v2597
    %v2599 = vsel %vm2365, %v2518, 0.0
    %v2600 = vadd.f32 %v2598, %v2599
    %v2601 = vsel %vm2365, %v2519, 0.0
    %v2602 = vadd.f32 %v2600, %v2601
    %v2603 = vsel %vm2365, %v2520, 0.0
    %v2604 = vadd.f32 %v2602, %v2603
    %v2605 = vsel %vm2365, %v2521, 0.0
    %v2606 = vadd.f32 %v2604, %v2605
    %v2607 = vsel %vm2365, %v2522, 0.0
    %v2608 = vadd.f32 %v2606, %v2607
    %v2609 = vsel %vm2365, %v2523, 0.0
    %v2610 = vadd.f32 %v2608, %v2609
    %v2611 = vsel %vm2365, %v2524, 0.0
    %v2612 = vadd.f32 %v2610, %v2611
    %v2613 = vsel %vm2365, %v2525, 0.0
    %v2614 = vadd.f32 %v2612, %v2613
    %v2615 = vsel %vm2365, %v2526, 0.0
    %v2616 = vadd.f32 %v2614, %v2615
    %v2617 = vsel %vm2365, %v2527, 0.0
    %v2618 = vadd.f32 %v2616, %v2617
    %v2619 = vsel %vm2365, %v2528, 0.0
    %v2620 = vadd.f32 %v2618, %v2619
    %v2621 = vsel %vm2365, %v2529, 0.0
    %v2622 = vadd.f32 %v2620, %v2621
    %v2623 = vsel %vm2365, %v2530, 0.0
    %v2624 = vadd.f32 %v2622, %v2623
    %v2625 = vsel %vm2365, %v2531, 0.0
    %v2626 = vadd.f32 %v2624, %v2625
    %v2627 = vsel %vm2365, %v2532, 0.0
    %v2628 = vadd.f32 %v2626, %v2627
    %v2629 = vsel %vm2365, %v2533, 0.0
    %v2630 = vadd.f32 %v2628, %v2629
    %v2631 = vsel %vm2365, %v2534, 0.0
    %v2632 = vadd.f32 %v2630, %v2631
    %v2633 = vsel %vm2365, %v2535, 0.0
    %v2634 = vadd.f32 %v2632, %v2633
    %v2635 = vsel %vm2365, %v2536, 0.0
    %v2636 = vadd.f32 %v2634, %v2635
    %v2637 = vsel %vm2365, %v2537, 0.0
    %v2638 = vadd.f32 %v2636, %v2637
    %v2639 = vsel %vm2365, %v2538, 0.0
    %v2640 = vadd.f32 %v2638, %v2639
    %v2641 = vsel %vm2365, %v2539, 0.0
    %v2642 = vadd.f32 %v2640, %v2641
    %v2643 = vsel %vm2365, %v2540, 0.0
    %v2644 = vadd.f32 %v2642, %v2643
    %v2645 = vsel %vm2365, %v2541, 0.0
    %v2646 = vadd.f32 %v2644, %v2645
    %v2647 = vsel %vm2365, %v2542, 0.0
    %v2648 = vadd.f32 %v2646, %v2647
    %v2649 = vsel %vm2365, %v2543, 0.0
    %v2650 = vadd.f32 %v2648, %v2649
    %v2651 = vsel %vm2365, %v2544, 0.0
    %v2652 = vadd.f32 %v2650, %v2651
    %v2653 = vsel %vm2365, %v2545, 0.0
    %v2654 = vadd.f32 %v2652, %v2653
    %v2655 = vsel %vm2365, %v2546, 0.0
    %v2656 = vadd.f32 %v2654, %v2655
    %v2657 = vsel %vm2365, %v2547, 0.0
    %v2658 = vadd.f32 %v2656, %v2657
    %v2659 = vsel %vm2365, %v2548, 0.0
    %v2660 = vadd.f32 %v2658, %v2659
    %v2661 = vsel %vm2365, %v2549, 0.0
    %v2662 = vadd.f32 %v2660, %v2661
    %v2663 = vsel %vm2365, %v2550, 0.0
    %v2664 = vadd.f32 %v2662, %v2663
    %v2665 = vsel %vm2365, %v2551, 0.0
    %v2666 = vadd.f32 %v2664, %v2665
    %v2667 = vsel %vm2365, %v2552, 0.0
    %v2668 = vadd.f32 %v2666, %v2667
    %v2669 = vsel %vm2365, %v2553, 0.0
    %v2670 = vadd.f32 %v2668, %v2669
    %v2671 = vsel %vm2365, %v2554, 0.0
    %v2672 = vadd.f32 %v2670, %v2671
    %v2673 = vsel %vm2365, %v2555, 0.0
    %v2674 = vadd.f32 %v2672, %v2673
    %v2675 = vsel %vm2365, %v2556, 0.0
    %v2676 = vadd.f32 %v2674, %v2675
    %v2677 = vsel %vm2365, %v2557, 0.0
    %v2678 = vadd.f32 %v2676, %v2677
    %v2679 = vsel %vm2365, %v2558, 0.0
    %v2680 = vadd.f32 %v2678, %v2679
    %v2681 = vsel %vm2365, %v2559, 0.0
    %v2682 = vadd.f32 %v2680, %v2681
    %v2683 = vsel %vm2365, %v2560, 0.0
    %v2684 = vadd.f32 %v2682, %v2683
    %v2685 = vsel %vm2365, %v2561, 0.0
    %v2686 = vadd.f32 %v2684, %v2685
    %v2687 = vsel %vm2365, %v2562, 0.0
    %v2688 = vadd.f32 %v2686, %v2687
    %v2689 = vsel %vm2365, %v2563, 0.0
    %v2690 = vadd.f32 %v2688, %v2689
    %v2691 = vrot.slane %v2690, 4
    %v2692 = vadd.f32 %v2690, %v2691
    %v2693 = vrot.slane %v2692, 2
    %v2694 = vadd.f32 %v2692, %v2693
    %v2695 = vrot.slane %v2694, 1
    %v2696 = vadd.f32 %v2694, %v2695
    %v2697 = vmul.f32 %v2696, 0.001953125
    %v2698 = vmul.f32 %v2499, %v2499
    %v2699 = vsub.f32 %v2697, %v2698
    %v2700 = vmax.f32 %v2699, 0.0
    %v2701 = vadd.f32 %v2700, 1e-05
    %v2702 = vrsqrt.pop %v2701
    %v2703 = vmul.f32 %v2702, %v131
    %v2704 = vmul.f32 %v2499, %v2703
    %v2705 = vsub.f32 %v132, %v2704
    %v2706 = vlaneseq
    %v2707 = vshrl.u32 %v2706, 7
    %v2708 = vsub.s32 0, %v2707
    %v2709 = vrot.slane %v2703, %v2708
    %v2710 = vmul.f32 %v2301, %v2709
    %v2711 = vmul.f32 %v2302, %v2709
    %v2712 = vmul.f32 %v2303, %v2709
    %v2713 = vmul.f32 %v2304, %v2709
    %v2714 = vmul.f32 %v2305, %v2709
    %v2715 = vmul.f32 %v2306, %v2709
    %v2716 = vmul.f32 %v2307, %v2709
    %v2717 = vmul.f32 %v2308, %v2709
    %v2718 = vmul.f32 %v2309, %v2709
    %v2719 = vmul.f32 %v2310, %v2709
    %v2720 = vmul.f32 %v2311, %v2709
    %v2721 = vmul.f32 %v2312, %v2709
    %v2722 = vmul.f32 %v2313, %v2709
    %v2723 = vmul.f32 %v2314, %v2709
    %v2724 = vmul.f32 %v2315, %v2709
    %v2725 = vmul.f32 %v2316, %v2709
    %v2726 = vmul.f32 %v2317, %v2709
    %v2727 = vmul.f32 %v2318, %v2709
    %v2728 = vmul.f32 %v2319, %v2709
    %v2729 = vmul.f32 %v2320, %v2709
    %v2730 = vmul.f32 %v2321, %v2709
    %v2731 = vmul.f32 %v2322, %v2709
    %v2732 = vmul.f32 %v2323, %v2709
    %v2733 = vmul.f32 %v2324, %v2709
    %v2734 = vmul.f32 %v2325, %v2709
    %v2735 = vmul.f32 %v2326, %v2709
    %v2736 = vmul.f32 %v2327, %v2709
    %v2737 = vmul.f32 %v2328, %v2709
    %v2738 = vmul.f32 %v2329, %v2709
    %v2739 = vmul.f32 %v2330, %v2709
    %v2740 = vmul.f32 %v2331, %v2709
    %v2741 = vmul.f32 %v2332, %v2709
    %v2742 = vmul.f32 %v2333, %v2709
    %v2743 = vmul.f32 %v2334, %v2709
    %v2744 = vmul.f32 %v2335, %v2709
    %v2745 = vmul.f32 %v2336, %v2709
    %v2746 = vmul.f32 %v2337, %v2709
    %v2747 = vmul.f32 %v2338, %v2709
    %v2748 = vmul.f32 %v2339, %v2709
    %v2749 = vmul.f32 %v2340, %v2709
    %v2750 = vmul.f32 %v2341, %v2709
    %v2751 = vmul.f32 %v2342, %v2709
    %v2752 = vmul.f32 %v2343, %v2709
    %v2753 = vmul.f32 %v2344, %v2709
    %v2754 = vmul.f32 %v2345, %v2709
    %v2755 = vmul.f32 %v2346, %v2709
    %v2756 = vmul.f32 %v2347, %v2709
    %v2757 = vmul.f32 %v2348, %v2709
    %v2758 = vmul.f32 %v2349, %v2709
    %v2759 = vmul.f32 %v2350, %v2709
    %v2760 = vmul.f32 %v2351, %v2709
    %v2761 = vmul.f32 %v2352, %v2709
    %v2762 = vmul.f32 %v2353, %v2709
    %v2763 = vmul.f32 %v2354, %v2709
    %v2764 = vmul.f32 %v2355, %v2709
    %v2765 = vmul.f32 %v2356, %v2709
    %v2766 = vmul.f32 %v2357, %v2709
    %v2767 = vmul.f32 %v2358, %v2709
    %v2768 = vmul.f32 %v2359, %v2709
    %v2769 = vmul.f32 %v2360, %v2709
    %v2770 = vmul.f32 %v2361, %v2709
    %v2771 = vmul.f32 %v2362, %v2709
    %v2772 = vmul.f32 %v2363, %v2709
    %v2773 = vmul.f32 %v2364, %v2709
    %v2775 = vlaneseq
    %v2776 = vshrl.u32 %v2775, 7
    %v2777 = vsub.s32 0, %v2776
    %v2778 = vrot.slane %v2705, %v2777
    %v2780 = vadd.f32 %v2710, %v2778
    %v2781 = vadd.f32 %v2711, %v2778
    %v2782 = vadd.f32 %v2712, %v2778
    %v2783 = vadd.f32 %v2713, %v2778
    %v2784 = vadd.f32 %v2714, %v2778
    %v2785 = vadd.f32 %v2715, %v2778
    %v2786 = vadd.f32 %v2716, %v2778
    %v2787 = vadd.f32 %v2717, %v2778
    %v2788 = vadd.f32 %v2718, %v2778
    %v2789 = vadd.f32 %v2719, %v2778
    %v2790 = vadd.f32 %v2720, %v2778
    %v2791 = vadd.f32 %v2721, %v2778
    %v2792 = vadd.f32 %v2722, %v2778
    %v2793 = vadd.f32 %v2723, %v2778
    %v2794 = vadd.f32 %v2724, %v2778
    %v2795 = vadd.f32 %v2725, %v2778
    %v2796 = vadd.f32 %v2726, %v2778
    %v2797 = vadd.f32 %v2727, %v2778
    %v2798 = vadd.f32 %v2728, %v2778
    %v2799 = vadd.f32 %v2729, %v2778
    %v2800 = vadd.f32 %v2730, %v2778
    %v2801 = vadd.f32 %v2731, %v2778
    %v2802 = vadd.f32 %v2732, %v2778
    %v2803 = vadd.f32 %v2733, %v2778
    %v2804 = vadd.f32 %v2734, %v2778
    %v2805 = vadd.f32 %v2735, %v2778
    %v2806 = vadd.f32 %v2736, %v2778
    %v2807 = vadd.f32 %v2737, %v2778
    %v2808 = vadd.f32 %v2738, %v2778
    %v2809 = vadd.f32 %v2739, %v2778
    %v2810 = vadd.f32 %v2740, %v2778
    %v2811 = vadd.f32 %v2741, %v2778
    %v2812 = vadd.f32 %v2742, %v2778
    %v2813 = vadd.f32 %v2743, %v2778
    %v2814 = vadd.f32 %v2744, %v2778
    %v2815 = vadd.f32 %v2745, %v2778
    %v2816 = vadd.f32 %v2746, %v2778
    %v2817 = vadd.f32 %v2747, %v2778
    %v2818 = vadd.f32 %v2748, %v2778
    %v2819 = vadd.f32 %v2749, %v2778
    %v2820 = vadd.f32 %v2750, %v2778
    %v2821 = vadd.f32 %v2751, %v2778
    %v2822 = vadd.f32 %v2752, %v2778
    %v2823 = vadd.f32 %v2753, %v2778
    %v2824 = vadd.f32 %v2754, %v2778
    %v2825 = vadd.f32 %v2755, %v2778
    %v2826 = vadd.f32 %v2756, %v2778
    %v2827 = vadd.f32 %v2757, %v2778
    %v2828 = vadd.f32 %v2758, %v2778
    %v2829 = vadd.f32 %v2759, %v2778
    %v2830 = vadd.f32 %v2760, %v2778
    %v2831 = vadd.f32 %v2761, %v2778
    %v2832 = vadd.f32 %v2762, %v2778
    %v2833 = vadd.f32 %v2763, %v2778
    %v2834 = vadd.f32 %v2764, %v2778
    %v2835 = vadd.f32 %v2765, %v2778
    %v2836 = vadd.f32 %v2766, %v2778
    %v2837 = vadd.f32 %v2767, %v2778
    %v2838 = vadd.f32 %v2768, %v2778
    %v2839 = vadd.f32 %v2769, %v2778
    %v2840 = vadd.f32 %v2770, %v2778
    %v2841 = vadd.f32 %v2771, %v2778
    %v2842 = vadd.f32 %v2772, %v2778
    %v2843 = vadd.f32 %v2773, %v2778
    %v2844 = vmax.f32 %v2780, 0.0
    %v2845 = vmax.f32 %v2781, 0.0
    %v2846 = vmax.f32 %v2782, 0.0
    %v2847 = vmax.f32 %v2783, 0.0
    %v2848 = vmax.f32 %v2784, 0.0
    %v2849 = vmax.f32 %v2785, 0.0
    %v2850 = vmax.f32 %v2786, 0.0
    %v2851 = vmax.f32 %v2787, 0.0
    %v2852 = vmax.f32 %v2788, 0.0
    %v2853 = vmax.f32 %v2789, 0.0
    %v2854 = vmax.f32 %v2790, 0.0
    %v2855 = vmax.f32 %v2791, 0.0
    %v2856 = vmax.f32 %v2792, 0.0
    %v2857 = vmax.f32 %v2793, 0.0
    %v2858 = vmax.f32 %v2794, 0.0
    %v2859 = vmax.f32 %v2795, 0.0
    %v2860 = vmax.f32 %v2796, 0.0
    %v2861 = vmax.f32 %v2797, 0.0
    %v2862 = vmax.f32 %v2798, 0.0
    %v2863 = vmax.f32 %v2799, 0.0
    %v2864 = vmax.f32 %v2800, 0.0
    %v2865 = vmax.f32 %v2801, 0.0
    %v2866 = vmax.f32 %v2802, 0.0
    %v2867 = vmax.f32 %v2803, 0.0
    %v2868 = vmax.f32 %v2804, 0.0
    %v2869 = vmax.f32 %v2805, 0.0
    %v2870 = vmax.f32 %v2806, 0.0
    %v2871 = vmax.f32 %v2807, 0.0
    %v2872 = vmax.f32 %v2808, 0.0
    %v2873 = vmax.f32 %v2809, 0.0
    %v2874 = vmax.f32 %v2810, 0.0
    %v2875 = vmax.f32 %v2811, 0.0
    %v2876 = vmax.f32 %v2812, 0.0
    %v2877 = vmax.f32 %v2813, 0.0
    %v2878 = vmax.f32 %v2814, 0.0
    %v2879 = vmax.f32 %v2815, 0.0
    %v2880 = vmax.f32 %v2816, 0.0
    %v2881 = vmax.f32 %v2817, 0.0
    %v2882 = vmax.f32 %v2818, 0.0
    %v2883 = vmax.f32 %v2819, 0.0
    %v2884 = vmax.f32 %v2820, 0.0
    %v2885 = vmax.f32 %v2821, 0.0
    %v2886 = vmax.f32 %v2822, 0.0
    %v2887 = vmax.f32 %v2823, 0.0
    %v2888 = vmax.f32 %v2824, 0.0
    %v2889 = vmax.f32 %v2825, 0.0
    %v2890 = vmax.f32 %v2826, 0.0
    %v2891 = vmax.f32 %v2827, 0.0
    %v2892 = vmax.f32 %v2828, 0.0
    %v2893 = vmax.f32 %v2829, 0.0
    %v2894 = vmax.f32 %v2830, 0.0
    %v2895 = vmax.f32 %v2831, 0.0
    %v2896 = vmax.f32 %v2832, 0.0
    %v2897 = vmax.f32 %v2833, 0.0
    %v2898 = vmax.f32 %v2834, 0.0
    %v2899 = vmax.f32 %v2835, 0.0
    %v2900 = vmax.f32 %v2836, 0.0
    %v2901 = vmax.f32 %v2837, 0.0
    %v2902 = vmax.f32 %v2838, 0.0
    %v2903 = vmax.f32 %v2839, 0.0
    %v2904 = vmax.f32 %v2840, 0.0
    %v2905 = vmax.f32 %v2841, 0.0
    %v2906 = vmax.f32 %v2842, 0.0
    %v2907 = vmax.f32 %v2843, 0.0
    %v2908 = vpack.c.bf16 %v2845, %v2844
    %v2909 = vpack.c.bf16 %v2847, %v2846
    %v2910 = vpack.c.bf16 %v2849, %v2848
    %v2911 = vpack.c.bf16 %v2851, %v2850
    %v2912 = vpack.c.bf16 %v2853, %v2852
    %v2913 = vpack.c.bf16 %v2855, %v2854
    %v2914 = vpack.c.bf16 %v2857, %v2856
    %v2915 = vpack.c.bf16 %v2859, %v2858
    %v2916 = vpack.c.bf16 %v2861, %v2860
    %v2917 = vpack.c.bf16 %v2863, %v2862
    %v2918 = vpack.c.bf16 %v2865, %v2864
    %v2919 = vpack.c.bf16 %v2867, %v2866
    %v2920 = vpack.c.bf16 %v2869, %v2868
    %v2921 = vpack.c.bf16 %v2871, %v2870
    %v2922 = vpack.c.bf16 %v2873, %v2872
    %v2923 = vpack.c.bf16 %v2875, %v2874
    %v2924 = vpack.c.bf16 %v2877, %v2876
    %v2925 = vpack.c.bf16 %v2879, %v2878
    %v2926 = vpack.c.bf16 %v2881, %v2880
    %v2927 = vpack.c.bf16 %v2883, %v2882
    %v2928 = vpack.c.bf16 %v2885, %v2884
    %v2929 = vpack.c.bf16 %v2887, %v2886
    %v2930 = vpack.c.bf16 %v2889, %v2888
    %v2931 = vpack.c.bf16 %v2891, %v2890
    %v2932 = vpack.c.bf16 %v2893, %v2892
    %v2933 = vpack.c.bf16 %v2895, %v2894
    %v2934 = vpack.c.bf16 %v2897, %v2896
    %v2935 = vpack.c.bf16 %v2899, %v2898
    %v2936 = vpack.c.bf16 %v2901, %v2900
    %v2937 = vpack.c.bf16 %v2903, %v2902
    %v2938 = vpack.c.bf16 %v2905, %v2904
    %v2939 = vpack.c.bf16 %v2907, %v2906
    %v2948 = vunpack.c.l.b16 %v133
    %v2949 = vunpack.c.l.b16 %v134
    %v2950 = vunpack.c.l.b16 %v135
    %v2951 = vunpack.c.l.b16 %v136
    %v2952 = vunpack.c.l.b16 %v137
    %v2953 = vunpack.c.l.b16 %v138
    %v2954 = vunpack.c.l.b16 %v139
    %v2955 = vunpack.c.l.b16 %v140
    %v2956 = vpack.c.b16 %v2949, %v2948
    %v2957 = vpack.c.b16 %v2951, %v2950
    %v2958 = vpack.c.b16 %v2953, %v2952
    %v2959 = vpack.c.b16 %v2955, %v2954
    %v2965 = vsel %vm2365, %v2908, 0
    %v2968 = vsel %vm2365, %v2909, 0
    %v2971 = vsel %vm2365, %v2910, 0
    %v2974 = vsel %vm2365, %v2911, 0
    %v2977 = vsel %vm2365, %v2912, 0
    %v2980 = vsel %vm2365, %v2913, 0
    %v2983 = vsel %vm2365, %v2914, 0
    %v2986 = vsel %vm2365, %v2915, 0
    %v2989 = vsel %vm2365, %v2916, 0
    %v2992 = vsel %vm2365, %v2917, 0
    %v2995 = vsel %vm2365, %v2918, 0
    %v2998 = vsel %vm2365, %v2919, 0
    %v3001 = vsel %vm2365, %v2920, 0
    %v3004 = vsel %vm2365, %v2921, 0
    %v3007 = vsel %vm2365, %v2922, 0
    %v3010 = vsel %vm2365, %v2923, 0
    %v3013 = vsel %vm2365, %v2924, 0
    %v3016 = vsel %vm2365, %v2925, 0
    %v3019 = vsel %vm2365, %v2926, 0
    %v3022 = vsel %vm2365, %v2927, 0
    %v3025 = vsel %vm2365, %v2928, 0
    %v3028 = vsel %vm2365, %v2929, 0
    %v3031 = vsel %vm2365, %v2930, 0
    %v3034 = vsel %vm2365, %v2931, 0
    %v3037 = vsel %vm2365, %v2932, 0
    %v3040 = vsel %vm2365, %v2933, 0
    %v3043 = vsel %vm2365, %v2934, 0
    %v3046 = vsel %vm2365, %v2935, 0
    %v3049 = vsel %vm2365, %v2936, 0
    %v3052 = vsel %vm2365, %v2937, 0
    %v3055 = vsel %vm2365, %v2938, 0
    %v3058 = vsel %vm2365, %v2939, 0
    %3060 = vmatprep.subr.bf16.mxu0 0
    %3061 = vmatpush1.bf16.msra.mxu0 %v2956
    %3062 = vmatprep.subr.bf16.mxu0 0
    %3063 = vmatpush1.bf16.msra.mxu0 %v2957
    %3064 = vmatprep.subr.bf16.mxu0 0
    %3065 = vmatpush1.bf16.msra.mxu0 %v2958
    %3066 = vmatprep.subr.bf16.mxu0 0
    %3067 = vmatpush1.bf16.msra.mxu0 %v2959
    %3068 = vmatprep.subr.bf16.mxu0 0
    %3069 = vmatpush1.bf16.msra.mxu0 0
    %3070 = vmatprep.subr.bf16.mxu0 0
    %3071 = vmatpush1.bf16.msra.mxu0 0
    %3072 = vmatprep.subr.bf16.mxu0 0
    %3073 = vmatpush1.bf16.msra.mxu0 0
    %3074 = vmatprep.subr.bf16.mxu0 0
    %3075 = vmatpush1.bf16.msra.mxu0 0
    %3076 = vmatprep.subr.bf16.mxu0 0
    %3077 = vmatpush1.bf16.msra.mxu0 0
    %3078 = vmatprep.subr.bf16.mxu0 0
    %3079 = vmatpush1.bf16.msra.mxu0 0
    %3080 = vmatprep.subr.bf16.mxu0 0
    %3081 = vmatpush1.bf16.msra.mxu0 0
    %3082 = vmatprep.subr.bf16.mxu0 0
    %3083 = vmatpush1.bf16.msra.mxu0 0
    %3084 = vmatprep.subr.bf16.mxu0 0
    %3085 = vmatpush1.bf16.msra.mxu0 0
    %3086 = vmatprep.subr.bf16.mxu0 0
    %3087 = vmatpush1.bf16.msra.mxu0 0
    %3088 = vmatprep.subr.bf16.mxu0 0
    %3089 = vmatpush1.bf16.msra.mxu0 0
    %3090 = vmatprep.subr.bf16.mxu0 0
    %3091 = vmatpush1.bf16.msra.mxu0 0
    %3092 = vmatprep.mubr.bf16.mxu0 0
    %3093 = vmatmul.mubr.bf16.gmra.mrb[0].mxu0 %v2965
    %v3094 = vpop.f32.mrb[0].mxu0
    %v3095 = vadd.f32 0.0, %v3094
    %v3096 = vpop.f32.mrb[0].mxu0
    %v3097 = vpop.f32.mrb[0].mxu0
    %v3098 = vadd.f32 0.0, %v3097
    %v3099 = vpop.f32.mrb[0].mxu0
    %3100 = vmatprep.mubr.bf16.mxu0 0
    %3101 = vmatmul.mubr.bf16.gmra.mrb[0].mxu0 %v2968
    %v3102 = vpop.f32.mrb[0].mxu0
    %v3103 = vadd.f32 0.0, %v3102
    %v3104 = vpop.f32.mrb[0].mxu0
    %v3105 = vpop.f32.mrb[0].mxu0
    %v3106 = vadd.f32 0.0, %v3105
    %v3107 = vpop.f32.mrb[0].mxu0
    %3108 = vmatprep.mubr.bf16.mxu0 0
    %3109 = vmatmul.mubr.bf16.gmra.mrb[0].mxu0 %v2971
    %v3110 = vpop.f32.mrb[0].mxu0
    %v3111 = vadd.f32 0.0, %v3110
    %v3112 = vpop.f32.mrb[0].mxu0
    %v3113 = vpop.f32.mrb[0].mxu0
    %v3114 = vadd.f32 0.0, %v3113
    %v3115 = vpop.f32.mrb[0].mxu0
    %3116 = vmatprep.mubr.bf16.mxu0 0
    %3117 = vmatmul.mubr.bf16.gmra.mrb[0].mxu0 %v2974
    %v3118 = vpop.f32.mrb[0].mxu0
    %v3119 = vadd.f32 0.0, %v3118
    %v3120 = vpop.f32.mrb[0].mxu0
    %v3121 = vpop.f32.mrb[0].mxu0
    %v3122 = vadd.f32 0.0, %v3121
    %v3123 = vpop.f32.mrb[0].mxu0
    %3124 = vmatprep.mubr.bf16.mxu0 0
    %3125 = vmatmul.mubr.bf16.gmra.mrb[0].mxu0 %v2977
    %v3126 = vpop.f32.mrb[0].mxu0
    %v3127 = vadd.f32 0.0, %v3126
    %v3128 = vpop.f32.mrb[0].mxu0
    %v3129 = vpop.f32.mrb[0].mxu0
    %v3130 = vadd.f32 0.0, %v3129
    %v3131 = vpop.f32.mrb[0].mxu0
    %3132 = vmatprep.mubr.bf16.mxu0 0
    %3133 = vmatmul.mubr.bf16.gmra.mrb[0].mxu0 %v2980
    %v3134 = vpop.f32.mrb[0].mxu0
    %v3135 = vadd.f32 0.0, %v3134
    %v3136 = vpop.f32.mrb[0].mxu0
    %v3137 = vpop.f32.mrb[0].mxu0
    %v3138 = vadd.f32 0.0, %v3137
    %v3139 = vpop.f32.mrb[0].mxu0
    %3140 = vmatprep.mubr.bf16.mxu0 0
    %3141 = vmatmul.mubr.bf16.gmra.mrb[0].mxu0 %v2983
    %v3142 = vpop.f32.mrb[0].mxu0
    %v3143 = vadd.f32 0.0, %v3142
    %v3144 = vpop.f32.mrb[0].mxu0
    %v3145 = vpop.f32.mrb[0].mxu0
    %v3146 = vadd.f32 0.0, %v3145
    %v3147 = vpop.f32.mrb[0].mxu0
    %3148 = vmatprep.mubr.bf16.mxu0 0
    %3149 = vmatmul.mubr.bf16.gmra.mrb[0].mxu0 %v2986
    %v3150 = vpop.f32.mrb[0].mxu0
    %v3151 = vadd.f32 0.0, %v3150
    %v3152 = vpop.f32.mrb[0].mxu0
    %v3153 = vpop.f32.mrb[0].mxu0
    %v3154 = vadd.f32 0.0, %v3153
    %v3155 = vpop.f32.mrb[0].mxu0
    %3156 = vmatprep.mubr.bf16.mxu0 0
    %3157 = vmatmul.mubr.bf16.gmra.mrb[0].mxu0 %v2989
    %v3158 = vpop.f32.mrb[0].mxu0
    %v3159 = vadd.f32 0.0, %v3158
    %v3160 = vpop.f32.mrb[0].mxu0
    %v3161 = vpop.f32.mrb[0].mxu0
    %v3162 = vadd.f32 0.0, %v3161
    %v3163 = vpop.f32.mrb[0].mxu0
    %3164 = vmatprep.mubr.bf16.mxu0 0
    %3165 = vmatmul.mubr.bf16.gmra.mrb[0].mxu0 %v2992
    %v3166 = vpop.f32.mrb[0].mxu0
    %v3167 = vadd.f32 0.0, %v3166
    %v3168 = vpop.f32.mrb[0].mxu0
    %v3169 = vpop.f32.mrb[0].mxu0
    %v3170 = vadd.f32 0.0, %v3169
    %v3171 = vpop.f32.mrb[0].mxu0
    %3172 = vmatprep.mubr.bf16.mxu0 0
    %3173 = vmatmul.mubr.bf16.gmra.mrb[0].mxu0 %v2995
    %v3174 = vpop.f32.mrb[0].mxu0
    %v3175 = vadd.f32 0.0, %v3174
    %v3176 = vpop.f32.mrb[0].mxu0
    %v3177 = vpop.f32.mrb[0].mxu0
    %v3178 = vadd.f32 0.0, %v3177
    %v3179 = vpop.f32.mrb[0].mxu0
    %3180 = vmatprep.mubr.bf16.mxu0 0
    %3181 = vmatmul.mubr.bf16.gmra.mrb[0].mxu0 %v2998
    %v3182 = vpop.f32.mrb[0].mxu0
    %v3183 = vadd.f32 0.0, %v3182
    %v3184 = vpop.f32.mrb[0].mxu0
    %v3185 = vpop.f32.mrb[0].mxu0
    %v3186 = vadd.f32 0.0, %v3185
    %v3187 = vpop.f32.mrb[0].mxu0
    %3188 = vmatprep.mubr.bf16.mxu0 0
    %3189 = vmatmul.mubr.bf16.gmra.mrb[0].mxu0 %v3001
    %v3190 = vpop.f32.mrb[0].mxu0
    %v3191 = vadd.f32 0.0, %v3190
    %v3192 = vpop.f32.mrb[0].mxu0
    %v3193 = vpop.f32.mrb[0].mxu0
    %v3194 = vadd.f32 0.0, %v3193
    %v3195 = vpop.f32.mrb[0].mxu0
    %3196 = vmatprep.mubr.bf16.mxu0 0
    %3197 = vmatmul.mubr.bf16.gmra.mrb[0].mxu0 %v3004
    %v3198 = vpop.f32.mrb[0].mxu0
    %v3199 = vadd.f32 0.0, %v3198
    %v3200 = vpop.f32.mrb[0].mxu0
    %v3201 = vpop.f32.mrb[0].mxu0
    %v3202 = vadd.f32 0.0, %v3201
    %v3203 = vpop.f32.mrb[0].mxu0
    %3204 = vmatprep.mubr.bf16.mxu0 0
    %3205 = vmatmul.mubr.bf16.gmra.mrb[0].mxu0 %v3007
    %v3206 = vpop.f32.mrb[0].mxu0
    %v3207 = vadd.f32 0.0, %v3206
    %v3208 = vpop.f32.mrb[0].mxu0
    %v3209 = vpop.f32.mrb[0].mxu0
    %v3210 = vadd.f32 0.0, %v3209
    %v3211 = vpop.f32.mrb[0].mxu0
    %3212 = vmatprep.mubr.bf16.mxu0 0
    %3213 = vmatmul.mubr.bf16.gmra.mrb[0].mxu0 %v3010
    %v3214 = vpop.f32.mrb[0].mxu0
    %v3215 = vadd.f32 0.0, %v3214
    %v3216 = vpop.f32.mrb[0].mxu0
    %v3217 = vpop.f32.mrb[0].mxu0
    %v3218 = vadd.f32 0.0, %v3217
    %v3219 = vpop.f32.mrb[0].mxu0
    %3220 = vmatprep.mubr.bf16.mxu0 0
    %3221 = vmatmul.mubr.bf16.gmra.mrb[0].mxu0 %v3013
    %v3222 = vpop.f32.mrb[0].mxu0
    %v3223 = vadd.f32 0.0, %v3222
    %v3224 = vpop.f32.mrb[0].mxu0
    %v3225 = vpop.f32.mrb[0].mxu0
    %v3226 = vadd.f32 0.0, %v3225
    %v3227 = vpop.f32.mrb[0].mxu0
    %3228 = vmatprep.mubr.bf16.mxu0 0
    %3229 = vmatmul.mubr.bf16.gmra.mrb[0].mxu0 %v3016
    %v3230 = vpop.f32.mrb[0].mxu0
    %v3231 = vadd.f32 0.0, %v3230
    %v3232 = vpop.f32.mrb[0].mxu0
    %v3233 = vpop.f32.mrb[0].mxu0
    %v3234 = vadd.f32 0.0, %v3233
    %v3235 = vpop.f32.mrb[0].mxu0
    %3236 = vmatprep.mubr.bf16.mxu0 0
    %3237 = vmatmul.mubr.bf16.gmra.mrb[0].mxu0 %v3019
    %v3238 = vpop.f32.mrb[0].mxu0
    %v3239 = vadd.f32 0.0, %v3238
    %v3240 = vpop.f32.mrb[0].mxu0
    %v3241 = vpop.f32.mrb[0].mxu0
    %v3242 = vadd.f32 0.0, %v3241
    %v3243 = vpop.f32.mrb[0].mxu0
    %3244 = vmatprep.mubr.bf16.mxu0 0
    %3245 = vmatmul.mubr.bf16.gmra.mrb[0].mxu0 %v3022
    %v3246 = vpop.f32.mrb[0].mxu0
    %v3247 = vadd.f32 0.0, %v3246
    %v3248 = vpop.f32.mrb[0].mxu0
    %v3249 = vpop.f32.mrb[0].mxu0
    %v3250 = vadd.f32 0.0, %v3249
    %v3251 = vpop.f32.mrb[0].mxu0
    %3252 = vmatprep.mubr.bf16.mxu0 0
    %3253 = vmatmul.mubr.bf16.gmra.mrb[0].mxu0 %v3025
    %v3254 = vpop.f32.mrb[0].mxu0
    %v3255 = vadd.f32 0.0, %v3254
    %v3256 = vpop.f32.mrb[0].mxu0
    %v3257 = vpop.f32.mrb[0].mxu0
    %v3258 = vadd.f32 0.0, %v3257
    %v3259 = vpop.f32.mrb[0].mxu0
    %3260 = vmatprep.mubr.bf16.mxu0 0
    %3261 = vmatmul.mubr.bf16.gmra.mrb[0].mxu0 %v3028
    %v3262 = vpop.f32.mrb[0].mxu0
    %v3263 = vadd.f32 0.0, %v3262
    %v3264 = vpop.f32.mrb[0].mxu0
    %v3265 = vpop.f32.mrb[0].mxu0
    %v3266 = vadd.f32 0.0, %v3265
    %v3267 = vpop.f32.mrb[0].mxu0
    %3268 = vmatprep.mubr.bf16.mxu0 0
    %3269 = vmatmul.mubr.bf16.gmra.mrb[0].mxu0 %v3031
    %v3270 = vpop.f32.mrb[0].mxu0
    %v3271 = vadd.f32 0.0, %v3270
    %v3272 = vpop.f32.mrb[0].mxu0
    %v3273 = vpop.f32.mrb[0].mxu0
    %v3274 = vadd.f32 0.0, %v3273
    %v3275 = vpop.f32.mrb[0].mxu0
    %3276 = vmatprep.mubr.bf16.mxu0 0
    %3277 = vmatmul.mubr.bf16.gmra.mrb[0].mxu0 %v3034
    %v3278 = vpop.f32.mrb[0].mxu0
    %v3279 = vadd.f32 0.0, %v3278
    %v3280 = vpop.f32.mrb[0].mxu0
    %v3281 = vpop.f32.mrb[0].mxu0
    %v3282 = vadd.f32 0.0, %v3281
    %v3283 = vpop.f32.mrb[0].mxu0
    %3284 = vmatprep.mubr.bf16.mxu0 0
    %3285 = vmatmul.mubr.bf16.gmra.mrb[0].mxu0 %v3037
    %v3286 = vpop.f32.mrb[0].mxu0
    %v3287 = vadd.f32 0.0, %v3286
    %v3288 = vpop.f32.mrb[0].mxu0
    %v3289 = vpop.f32.mrb[0].mxu0
    %v3290 = vadd.f32 0.0, %v3289
    %v3291 = vpop.f32.mrb[0].mxu0
    %3292 = vmatprep.mubr.bf16.mxu0 0
    %3293 = vmatmul.mubr.bf16.gmra.mrb[0].mxu0 %v3040
    %v3294 = vpop.f32.mrb[0].mxu0
    %v3295 = vadd.f32 0.0, %v3294
    %v3296 = vpop.f32.mrb[0].mxu0
    %v3297 = vpop.f32.mrb[0].mxu0
    %v3298 = vadd.f32 0.0, %v3297
    %v3299 = vpop.f32.mrb[0].mxu0
    %3300 = vmatprep.mubr.bf16.mxu0 0
    %3301 = vmatmul.mubr.bf16.gmra.mrb[0].mxu0 %v3043
    %v3302 = vpop.f32.mrb[0].mxu0
    %v3303 = vadd.f32 0.0, %v3302
    %v3304 = vpop.f32.mrb[0].mxu0
    %v3305 = vpop.f32.mrb[0].mxu0
    %v3306 = vadd.f32 0.0, %v3305
    %v3307 = vpop.f32.mrb[0].mxu0
    %3308 = vmatprep.mubr.bf16.mxu0 0
    %3309 = vmatmul.mubr.bf16.gmra.mrb[0].mxu0 %v3046
    %v3310 = vpop.f32.mrb[0].mxu0
    %v3311 = vadd.f32 0.0, %v3310
    %v3312 = vpop.f32.mrb[0].mxu0
    %v3313 = vpop.f32.mrb[0].mxu0
    %v3314 = vadd.f32 0.0, %v3313
    %v3315 = vpop.f32.mrb[0].mxu0
    %3316 = vmatprep.mubr.bf16.mxu0 0
    %3317 = vmatmul.mubr.bf16.gmra.mrb[0].mxu0 %v3049
    %v3318 = vpop.f32.mrb[0].mxu0
    %v3319 = vadd.f32 0.0, %v3318
    %v3320 = vpop.f32.mrb[0].mxu0
    %v3321 = vpop.f32.mrb[0].mxu0
    %v3322 = vadd.f32 0.0, %v3321
    %v3323 = vpop.f32.mrb[0].mxu0
    %3324 = vmatprep.mubr.bf16.mxu0 0
    %3325 = vmatmul.mubr.bf16.gmra.mrb[0].mxu0 %v3052
    %v3326 = vpop.f32.mrb[0].mxu0
    %v3327 = vadd.f32 0.0, %v3326
    %v3328 = vpop.f32.mrb[0].mxu0
    %v3329 = vpop.f32.mrb[0].mxu0
    %v3330 = vadd.f32 0.0, %v3329
    %v3331 = vpop.f32.mrb[0].mxu0
    %3332 = vmatprep.mubr.bf16.mxu0 0
    %3333 = vmatmul.mubr.bf16.gmra.mrb[0].mxu0 %v3055
    %v3334 = vpop.f32.mrb[0].mxu0
    %v3335 = vadd.f32 0.0, %v3334
    %v3336 = vpop.f32.mrb[0].mxu0
    %v3337 = vpop.f32.mrb[0].mxu0
    %v3338 = vadd.f32 0.0, %v3337
    %v3339 = vpop.f32.mrb[0].mxu0
    %3340 = vmatprep.mubr.bf16.mxu0 0
    %3341 = vmatmul.mubr.bf16.gmra.mrb[0].mxu0 %v3058
    %v3342 = vpop.f32.mrb[0].mxu0
    %v3343 = vadd.f32 0.0, %v3342
    %v3344 = vpop.f32.mrb[0].mxu0
    %v3345 = vpop.f32.mrb[0].mxu0
    %v3346 = vadd.f32 0.0, %v3345
    %v3347 = vpop.f32.mrb[0].mxu0
    %3348 = vdwg.mxu0
    %v3349 = vsel %vm2365, %v3095, 0.0
    %v3350 = vsel %vm2365, %v3098, 0.0
    %v3351 = vadd.f32 %v3349, %v3350
    %v3352 = vsel %vm2365, %v3103, 0.0
    %v3353 = vadd.f32 %v3351, %v3352
    %v3354 = vsel %vm2365, %v3106, 0.0
    %v3355 = vadd.f32 %v3353, %v3354
    %v3356 = vsel %vm2365, %v3111, 0.0
    %v3357 = vadd.f32 %v3355, %v3356
    %v3358 = vsel %vm2365, %v3114, 0.0
    %v3359 = vadd.f32 %v3357, %v3358
    %v3360 = vsel %vm2365, %v3119, 0.0
    %v3361 = vadd.f32 %v3359, %v3360
    %v3362 = vsel %vm2365, %v3122, 0.0
    %v3363 = vadd.f32 %v3361, %v3362
    %v3364 = vsel %vm2365, %v3127, 0.0
    %v3365 = vadd.f32 %v3363, %v3364
    %v3366 = vsel %vm2365, %v3130, 0.0
    %v3367 = vadd.f32 %v3365, %v3366
    %v3368 = vsel %vm2365, %v3135, 0.0
    %v3369 = vadd.f32 %v3367, %v3368
    %v3370 = vsel %vm2365, %v3138, 0.0
    %v3371 = vadd.f32 %v3369, %v3370
    %v3372 = vsel %vm2365, %v3143, 0.0
    %v3373 = vadd.f32 %v3371, %v3372
    %v3374 = vsel %vm2365, %v3146, 0.0
    %v3375 = vadd.f32 %v3373, %v3374
    %v3376 = vsel %vm2365, %v3151, 0.0
    %v3377 = vadd.f32 %v3375, %v3376
    %v3378 = vsel %vm2365, %v3154, 0.0
    %v3379 = vadd.f32 %v3377, %v3378
    %v3380 = vsel %vm2365, %v3159, 0.0
    %v3381 = vadd.f32 %v3379, %v3380
    %v3382 = vsel %vm2365, %v3162, 0.0
    %v3383 = vadd.f32 %v3381, %v3382
    %v3384 = vsel %vm2365, %v3167, 0.0
    %v3385 = vadd.f32 %v3383, %v3384
    %v3386 = vsel %vm2365, %v3170, 0.0
    %v3387 = vadd.f32 %v3385, %v3386
    %v3388 = vsel %vm2365, %v3175, 0.0
    %v3389 = vadd.f32 %v3387, %v3388
    %v3390 = vsel %vm2365, %v3178, 0.0
    %v3391 = vadd.f32 %v3389, %v3390
    %v3392 = vsel %vm2365, %v3183, 0.0
    %v3393 = vadd.f32 %v3391, %v3392
    %v3394 = vsel %vm2365, %v3186, 0.0
    %v3395 = vadd.f32 %v3393, %v3394
    %v3396 = vsel %vm2365, %v3191, 0.0
    %v3397 = vadd.f32 %v3395, %v3396
    %v3398 = vsel %vm2365, %v3194, 0.0
    %v3399 = vadd.f32 %v3397, %v3398
    %v3400 = vsel %vm2365, %v3199, 0.0
    %v3401 = vadd.f32 %v3399, %v3400
    %v3402 = vsel %vm2365, %v3202, 0.0
    %v3403 = vadd.f32 %v3401, %v3402
    %v3404 = vsel %vm2365, %v3207, 0.0
    %v3405 = vadd.f32 %v3403, %v3404
    %v3406 = vsel %vm2365, %v3210, 0.0
    %v3407 = vadd.f32 %v3405, %v3406
    %v3408 = vsel %vm2365, %v3215, 0.0
    %v3409 = vadd.f32 %v3407, %v3408
    %v3410 = vsel %vm2365, %v3218, 0.0
    %v3411 = vadd.f32 %v3409, %v3410
    %v3412 = vsel %vm2365, %v3223, 0.0
    %v3413 = vadd.f32 %v3411, %v3412
    %v3414 = vsel %vm2365, %v3226, 0.0
    %v3415 = vadd.f32 %v3413, %v3414
    %v3416 = vsel %vm2365, %v3231, 0.0
    %v3417 = vadd.f32 %v3415, %v3416
    %v3418 = vsel %vm2365, %v3234, 0.0
    %v3419 = vadd.f32 %v3417, %v3418
    %v3420 = vsel %vm2365, %v3239, 0.0
    %v3421 = vadd.f32 %v3419, %v3420
    %v3422 = vsel %vm2365, %v3242, 0.0
    %v3423 = vadd.f32 %v3421, %v3422
    %v3424 = vsel %vm2365, %v3247, 0.0
    %v3425 = vadd.f32 %v3423, %v3424
    %v3426 = vsel %vm2365, %v3250, 0.0
    %v3427 = vadd.f32 %v3425, %v3426
    %v3428 = vsel %vm2365, %v3255, 0.0
    %v3429 = vadd.f32 %v3427, %v3428
    %v3430 = vsel %vm2365, %v3258, 0.0
    %v3431 = vadd.f32 %v3429, %v3430
    %v3432 = vsel %vm2365, %v3263, 0.0
    %v3433 = vadd.f32 %v3431, %v3432
    %v3434 = vsel %vm2365, %v3266, 0.0
    %v3435 = vadd.f32 %v3433, %v3434
    %v3436 = vsel %vm2365, %v3271, 0.0
    %v3437 = vadd.f32 %v3435, %v3436
    %v3438 = vsel %vm2365, %v3274, 0.0
    %v3439 = vadd.f32 %v3437, %v3438
    %v3440 = vsel %vm2365, %v3279, 0.0
    %v3441 = vadd.f32 %v3439, %v3440
    %v3442 = vsel %vm2365, %v3282, 0.0
    %v3443 = vadd.f32 %v3441, %v3442
    %v3444 = vsel %vm2365, %v3287, 0.0
    %v3445 = vadd.f32 %v3443, %v3444
    %v3446 = vsel %vm2365, %v3290, 0.0
    %v3447 = vadd.f32 %v3445, %v3446
    %v3448 = vsel %vm2365, %v3295, 0.0
    %v3449 = vadd.f32 %v3447, %v3448
    %v3450 = vsel %vm2365, %v3298, 0.0
    %v3451 = vadd.f32 %v3449, %v3450
    %v3452 = vsel %vm2365, %v3303, 0.0
    %v3453 = vadd.f32 %v3451, %v3452
    %v3454 = vsel %vm2365, %v3306, 0.0
    %v3455 = vadd.f32 %v3453, %v3454
    %v3456 = vsel %vm2365, %v3311, 0.0
    %v3457 = vadd.f32 %v3455, %v3456
    %v3458 = vsel %vm2365, %v3314, 0.0
    %v3459 = vadd.f32 %v3457, %v3458
    %v3460 = vsel %vm2365, %v3319, 0.0
    %v3461 = vadd.f32 %v3459, %v3460
    %v3462 = vsel %vm2365, %v3322, 0.0
    %v3463 = vadd.f32 %v3461, %v3462
    %v3464 = vsel %vm2365, %v3327, 0.0
    %v3465 = vadd.f32 %v3463, %v3464
    %v3466 = vsel %vm2365, %v3330, 0.0
    %v3467 = vadd.f32 %v3465, %v3466
    %v3468 = vsel %vm2365, %v3335, 0.0
    %v3469 = vadd.f32 %v3467, %v3468
    %v3470 = vsel %vm2365, %v3338, 0.0
    %v3471 = vadd.f32 %v3469, %v3470
    %v3472 = vsel %vm2365, %v3343, 0.0
    %v3473 = vadd.f32 %v3471, %v3472
    %v3474 = vsel %vm2365, %v3346, 0.0
    %v3475 = vadd.f32 %v3473, %v3474
    %v3476 = vrot.slane %v3475, 4
    %v3477 = vadd.f32 %v3475, %v3476
    %v3478 = vrot.slane %v3477, 2
    %v3479 = vadd.f32 %v3477, %v3478
    %v3480 = vrot.slane %v3479, 1
    %v3481 = vadd.f32 %v3479, %v3480
    %v3482 = vmul.f32 %v3481, 0.001953125
    %v3483 = vmul.f32 %v3095, %v3095
    %v3484 = vmul.f32 %v3098, %v3098
    %v3485 = vmul.f32 %v3103, %v3103
    %v3486 = vmul.f32 %v3106, %v3106
    %v3487 = vmul.f32 %v3111, %v3111
    %v3488 = vmul.f32 %v3114, %v3114
    %v3489 = vmul.f32 %v3119, %v3119
    %v3490 = vmul.f32 %v3122, %v3122
    %v3491 = vmul.f32 %v3127, %v3127
    %v3492 = vmul.f32 %v3130, %v3130
    %v3493 = vmul.f32 %v3135, %v3135
    %v3494 = vmul.f32 %v3138, %v3138
    %v3495 = vmul.f32 %v3143, %v3143
    %v3496 = vmul.f32 %v3146, %v3146
    %v3497 = vmul.f32 %v3151, %v3151
    %v3498 = vmul.f32 %v3154, %v3154
    %v3499 = vmul.f32 %v3159, %v3159
    %v3500 = vmul.f32 %v3162, %v3162
    %v3501 = vmul.f32 %v3167, %v3167
    %v3502 = vmul.f32 %v3170, %v3170
    %v3503 = vmul.f32 %v3175, %v3175
    %v3504 = vmul.f32 %v3178, %v3178
    %v3505 = vmul.f32 %v3183, %v3183
    %v3506 = vmul.f32 %v3186, %v3186
    %v3507 = vmul.f32 %v3191, %v3191
    %v3508 = vmul.f32 %v3194, %v3194
    %v3509 = vmul.f32 %v3199, %v3199
    %v3510 = vmul.f32 %v3202, %v3202
    %v3511 = vmul.f32 %v3207, %v3207
    %v3512 = vmul.f32 %v3210, %v3210
    %v3513 = vmul.f32 %v3215, %v3215
    %v3514 = vmul.f32 %v3218, %v3218
    %v3515 = vmul.f32 %v3223, %v3223
    %v3516 = vmul.f32 %v3226, %v3226
    %v3517 = vmul.f32 %v3231, %v3231
    %v3518 = vmul.f32 %v3234, %v3234
    %v3519 = vmul.f32 %v3239, %v3239
    %v3520 = vmul.f32 %v3242, %v3242
    %v3521 = vmul.f32 %v3247, %v3247
    %v3522 = vmul.f32 %v3250, %v3250
    %v3523 = vmul.f32 %v3255, %v3255
    %v3524 = vmul.f32 %v3258, %v3258
    %v3525 = vmul.f32 %v3263, %v3263
    %v3526 = vmul.f32 %v3266, %v3266
    %v3527 = vmul.f32 %v3271, %v3271
    %v3528 = vmul.f32 %v3274, %v3274
    %v3529 = vmul.f32 %v3279, %v3279
    %v3530 = vmul.f32 %v3282, %v3282
    %v3531 = vmul.f32 %v3287, %v3287
    %v3532 = vmul.f32 %v3290, %v3290
    %v3533 = vmul.f32 %v3295, %v3295
    %v3534 = vmul.f32 %v3298, %v3298
    %v3535 = vmul.f32 %v3303, %v3303
    %v3536 = vmul.f32 %v3306, %v3306
    %v3537 = vmul.f32 %v3311, %v3311
    %v3538 = vmul.f32 %v3314, %v3314
    %v3539 = vmul.f32 %v3319, %v3319
    %v3540 = vmul.f32 %v3322, %v3322
    %v3541 = vmul.f32 %v3327, %v3327
    %v3542 = vmul.f32 %v3330, %v3330
    %v3543 = vmul.f32 %v3335, %v3335
    %v3544 = vmul.f32 %v3338, %v3338
    %v3545 = vmul.f32 %v3343, %v3343
    %v3546 = vmul.f32 %v3346, %v3346
    %v3547 = vsel %vm2365, %v3483, 0.0
    %v3548 = vsel %vm2365, %v3484, 0.0
    %v3549 = vadd.f32 %v3547, %v3548
    %v3550 = vsel %vm2365, %v3485, 0.0
    %v3551 = vadd.f32 %v3549, %v3550
    %v3552 = vsel %vm2365, %v3486, 0.0
    %v3553 = vadd.f32 %v3551, %v3552
    %v3554 = vsel %vm2365, %v3487, 0.0
    %v3555 = vadd.f32 %v3553, %v3554
    %v3556 = vsel %vm2365, %v3488, 0.0
    %v3557 = vadd.f32 %v3555, %v3556
    %v3558 = vsel %vm2365, %v3489, 0.0
    %v3559 = vadd.f32 %v3557, %v3558
    %v3560 = vsel %vm2365, %v3490, 0.0
    %v3561 = vadd.f32 %v3559, %v3560
    %v3562 = vsel %vm2365, %v3491, 0.0
    %v3563 = vadd.f32 %v3561, %v3562
    %v3564 = vsel %vm2365, %v3492, 0.0
    %v3565 = vadd.f32 %v3563, %v3564
    %v3566 = vsel %vm2365, %v3493, 0.0
    %v3567 = vadd.f32 %v3565, %v3566
    %v3568 = vsel %vm2365, %v3494, 0.0
    %v3569 = vadd.f32 %v3567, %v3568
    %v3570 = vsel %vm2365, %v3495, 0.0
    %v3571 = vadd.f32 %v3569, %v3570
    %v3572 = vsel %vm2365, %v3496, 0.0
    %v3573 = vadd.f32 %v3571, %v3572
    %v3574 = vsel %vm2365, %v3497, 0.0
    %v3575 = vadd.f32 %v3573, %v3574
    %v3576 = vsel %vm2365, %v3498, 0.0
    %v3577 = vadd.f32 %v3575, %v3576
    %v3578 = vsel %vm2365, %v3499, 0.0
    %v3579 = vadd.f32 %v3577, %v3578
    %v3580 = vsel %vm2365, %v3500, 0.0
    %v3581 = vadd.f32 %v3579, %v3580
    %v3582 = vsel %vm2365, %v3501, 0.0
    %v3583 = vadd.f32 %v3581, %v3582
    %v3584 = vsel %vm2365, %v3502, 0.0
    %v3585 = vadd.f32 %v3583, %v3584
    %v3586 = vsel %vm2365, %v3503, 0.0
    %v3587 = vadd.f32 %v3585, %v3586
    %v3588 = vsel %vm2365, %v3504, 0.0
    %v3589 = vadd.f32 %v3587, %v3588
    %v3590 = vsel %vm2365, %v3505, 0.0
    %v3591 = vadd.f32 %v3589, %v3590
    %v3592 = vsel %vm2365, %v3506, 0.0
    %v3593 = vadd.f32 %v3591, %v3592
    %v3594 = vsel %vm2365, %v3507, 0.0
    %v3595 = vadd.f32 %v3593, %v3594
    %v3596 = vsel %vm2365, %v3508, 0.0
    %v3597 = vadd.f32 %v3595, %v3596
    %v3598 = vsel %vm2365, %v3509, 0.0
    %v3599 = vadd.f32 %v3597, %v3598
    %v3600 = vsel %vm2365, %v3510, 0.0
    %v3601 = vadd.f32 %v3599, %v3600
    %v3602 = vsel %vm2365, %v3511, 0.0
    %v3603 = vadd.f32 %v3601, %v3602
    %v3604 = vsel %vm2365, %v3512, 0.0
    %v3605 = vadd.f32 %v3603, %v3604
    %v3606 = vsel %vm2365, %v3513, 0.0
    %v3607 = vadd.f32 %v3605, %v3606
    %v3608 = vsel %vm2365, %v3514, 0.0
    %v3609 = vadd.f32 %v3607, %v3608
    %v3610 = vsel %vm2365, %v3515, 0.0
    %v3611 = vadd.f32 %v3609, %v3610
    %v3612 = vsel %vm2365, %v3516, 0.0
    %v3613 = vadd.f32 %v3611, %v3612
    %v3614 = vsel %vm2365, %v3517, 0.0
    %v3615 = vadd.f32 %v3613, %v3614
    %v3616 = vsel %vm2365, %v3518, 0.0
    %v3617 = vadd.f32 %v3615, %v3616
    %v3618 = vsel %vm2365, %v3519, 0.0
    %v3619 = vadd.f32 %v3617, %v3618
    %v3620 = vsel %vm2365, %v3520, 0.0
    %v3621 = vadd.f32 %v3619, %v3620
    %v3622 = vsel %vm2365, %v3521, 0.0
    %v3623 = vadd.f32 %v3621, %v3622
    %v3624 = vsel %vm2365, %v3522, 0.0
    %v3625 = vadd.f32 %v3623, %v3624
    %v3626 = vsel %vm2365, %v3523, 0.0
    %v3627 = vadd.f32 %v3625, %v3626
    %v3628 = vsel %vm2365, %v3524, 0.0
    %v3629 = vadd.f32 %v3627, %v3628
    %v3630 = vsel %vm2365, %v3525, 0.0
    %v3631 = vadd.f32 %v3629, %v3630
    %v3632 = vsel %vm2365, %v3526, 0.0
    %v3633 = vadd.f32 %v3631, %v3632
    %v3634 = vsel %vm2365, %v3527, 0.0
    %v3635 = vadd.f32 %v3633, %v3634
    %v3636 = vsel %vm2365, %v3528, 0.0
    %v3637 = vadd.f32 %v3635, %v3636
    %v3638 = vsel %vm2365, %v3529, 0.0
    %v3639 = vadd.f32 %v3637, %v3638
    %v3640 = vsel %vm2365, %v3530, 0.0
    %v3641 = vadd.f32 %v3639, %v3640
    %v3642 = vsel %vm2365, %v3531, 0.0
    %v3643 = vadd.f32 %v3641, %v3642
    %v3644 = vsel %vm2365, %v3532, 0.0
    %v3645 = vadd.f32 %v3643, %v3644
    %v3646 = vsel %vm2365, %v3533, 0.0
    %v3647 = vadd.f32 %v3645, %v3646
    %v3648 = vsel %vm2365, %v3534, 0.0
    %v3649 = vadd.f32 %v3647, %v3648
    %v3650 = vsel %vm2365, %v3535, 0.0
    %v3651 = vadd.f32 %v3649, %v3650
    %v3652 = vsel %vm2365, %v3536, 0.0
    %v3653 = vadd.f32 %v3651, %v3652
    %v3654 = vsel %vm2365, %v3537, 0.0
    %v3655 = vadd.f32 %v3653, %v3654
    %v3656 = vsel %vm2365, %v3538, 0.0
    %v3657 = vadd.f32 %v3655, %v3656
    %v3658 = vsel %vm2365, %v3539, 0.0
    %v3659 = vadd.f32 %v3657, %v3658
    %v3660 = vsel %vm2365, %v3540, 0.0
    %v3661 = vadd.f32 %v3659, %v3660
    %v3662 = vsel %vm2365, %v3541, 0.0
    %v3663 = vadd.f32 %v3661, %v3662
    %v3664 = vsel %vm2365, %v3542, 0.0
    %v3665 = vadd.f32 %v3663, %v3664
    %v3666 = vsel %vm2365, %v3543, 0.0
    %v3667 = vadd.f32 %v3665, %v3666
    %v3668 = vsel %vm2365, %v3544, 0.0
    %v3669 = vadd.f32 %v3667, %v3668
    %v3670 = vsel %vm2365, %v3545, 0.0
    %v3671 = vadd.f32 %v3669, %v3670
    %v3672 = vsel %vm2365, %v3546, 0.0
    %v3673 = vadd.f32 %v3671, %v3672
    %v3674 = vrot.slane %v3673, 4
    %v3675 = vadd.f32 %v3673, %v3674
    %v3676 = vrot.slane %v3675, 2
    %v3677 = vadd.f32 %v3675, %v3676
    %v3678 = vrot.slane %v3677, 1
    %v3679 = vadd.f32 %v3677, %v3678
    %v3680 = vmul.f32 %v3679, 0.001953125
    %v3681 = vmul.f32 %v3482, %v3482
    %v3682 = vsub.f32 %v3680, %v3681
    %v3683 = vmax.f32 %v3682, 0.0
    %v3684 = vadd.f32 %v3683, 1e-05
    %v3685 = vrsqrt.pop %v3684
    %v3686 = vmul.f32 %v3685, %v141
    %v3687 = vmul.f32 %v3482, %v3686
    %v3688 = vsub.f32 %v142, %v3687
    %v3689 = vlaneseq
    %v3690 = vshrl.u32 %v3689, 7
    %v3691 = vsub.s32 0, %v3690
    %v3692 = vrot.slane %v3686, %v3691
    %v3693 = vmul.f32 %v3095, %v3692
    %v3694 = vmul.f32 %v3098, %v3692
    %v3695 = vmul.f32 %v3103, %v3692
    %v3696 = vmul.f32 %v3106, %v3692
    %v3697 = vmul.f32 %v3111, %v3692
    %v3698 = vmul.f32 %v3114, %v3692
    %v3699 = vmul.f32 %v3119, %v3692
    %v3700 = vmul.f32 %v3122, %v3692
    %v3701 = vmul.f32 %v3127, %v3692
    %v3702 = vmul.f32 %v3130, %v3692
    %v3703 = vmul.f32 %v3135, %v3692
    %v3704 = vmul.f32 %v3138, %v3692
    %v3705 = vmul.f32 %v3143, %v3692
    %v3706 = vmul.f32 %v3146, %v3692
    %v3707 = vmul.f32 %v3151, %v3692
    %v3708 = vmul.f32 %v3154, %v3692
    %v3709 = vmul.f32 %v3159, %v3692
    %v3710 = vmul.f32 %v3162, %v3692
    %v3711 = vmul.f32 %v3167, %v3692
    %v3712 = vmul.f32 %v3170, %v3692
    %v3713 = vmul.f32 %v3175, %v3692
    %v3714 = vmul.f32 %v3178, %v3692
    %v3715 = vmul.f32 %v3183, %v3692
    %v3716 = vmul.f32 %v3186, %v3692
    %v3717 = vmul.f32 %v3191, %v3692
    %v3718 = vmul.f32 %v3194, %v3692
    %v3719 = vmul.f32 %v3199, %v3692
    %v3720 = vmul.f32 %v3202, %v3692
    %v3721 = vmul.f32 %v3207, %v3692
    %v3722 = vmul.f32 %v3210, %v3692
    %v3723 = vmul.f32 %v3215, %v3692
    %v3724 = vmul.f32 %v3218, %v3692
    %v3725 = vmul.f32 %v3223, %v3692
    %v3726 = vmul.f32 %v3226, %v3692
    %v3727 = vmul.f32 %v3231, %v3692
    %v3728 = vmul.f32 %v3234, %v3692
    %v3729 = vmul.f32 %v3239, %v3692
    %v3730 = vmul.f32 %v3242, %v3692
    %v3731 = vmul.f32 %v3247, %v3692
    %v3732 = vmul.f32 %v3250, %v3692
    %v3733 = vmul.f32 %v3255, %v3692
    %v3734 = vmul.f32 %v3258, %v3692
    %v3735 = vmul.f32 %v3263, %v3692
    %v3736 = vmul.f32 %v3266, %v3692
    %v3737 = vmul.f32 %v3271, %v3692
    %v3738 = vmul.f32 %v3274, %v3692
    %v3739 = vmul.f32 %v3279, %v3692
    %v3740 = vmul.f32 %v3282, %v3692
    %v3741 = vmul.f32 %v3287, %v3692
    %v3742 = vmul.f32 %v3290, %v3692
    %v3743 = vmul.f32 %v3295, %v3692
    %v3744 = vmul.f32 %v3298, %v3692
    %v3745 = vmul.f32 %v3303, %v3692
    %v3746 = vmul.f32 %v3306, %v3692
    %v3747 = vmul.f32 %v3311, %v3692
    %v3748 = vmul.f32 %v3314, %v3692
    %v3749 = vmul.f32 %v3319, %v3692
    %v3750 = vmul.f32 %v3322, %v3692
    %v3751 = vmul.f32 %v3327, %v3692
    %v3752 = vmul.f32 %v3330, %v3692
    %v3753 = vmul.f32 %v3335, %v3692
    %v3754 = vmul.f32 %v3338, %v3692
    %v3755 = vmul.f32 %v3343, %v3692
    %v3756 = vmul.f32 %v3346, %v3692
    %v3758 = vlaneseq
    %v3759 = vshrl.u32 %v3758, 7
    %v3760 = vsub.s32 0, %v3759
    %v3761 = vrot.slane %v3688, %v3760
    %v3763 = vadd.f32 %v3693, %v3761
    %v3764 = vadd.f32 %v3694, %v3761
    %v3765 = vadd.f32 %v3695, %v3761
    %v3766 = vadd.f32 %v3696, %v3761
    %v3767 = vadd.f32 %v3697, %v3761
    %v3768 = vadd.f32 %v3698, %v3761
    %v3769 = vadd.f32 %v3699, %v3761
    %v3770 = vadd.f32 %v3700, %v3761
    %v3771 = vadd.f32 %v3701, %v3761
    %v3772 = vadd.f32 %v3702, %v3761
    %v3773 = vadd.f32 %v3703, %v3761
    %v3774 = vadd.f32 %v3704, %v3761
    %v3775 = vadd.f32 %v3705, %v3761
    %v3776 = vadd.f32 %v3706, %v3761
    %v3777 = vadd.f32 %v3707, %v3761
    %v3778 = vadd.f32 %v3708, %v3761
    %v3779 = vadd.f32 %v3709, %v3761
    %v3780 = vadd.f32 %v3710, %v3761
    %v3781 = vadd.f32 %v3711, %v3761
    %v3782 = vadd.f32 %v3712, %v3761
    %v3783 = vadd.f32 %v3713, %v3761
    %v3784 = vadd.f32 %v3714, %v3761
    %v3785 = vadd.f32 %v3715, %v3761
    %v3786 = vadd.f32 %v3716, %v3761
    %v3787 = vadd.f32 %v3717, %v3761
    %v3788 = vadd.f32 %v3718, %v3761
    %v3789 = vadd.f32 %v3719, %v3761
    %v3790 = vadd.f32 %v3720, %v3761
    %v3791 = vadd.f32 %v3721, %v3761
    %v3792 = vadd.f32 %v3722, %v3761
    %v3793 = vadd.f32 %v3723, %v3761
    %v3794 = vadd.f32 %v3724, %v3761
    %v3795 = vadd.f32 %v3725, %v3761
    %v3796 = vadd.f32 %v3726, %v3761
    %v3797 = vadd.f32 %v3727, %v3761
    %v3798 = vadd.f32 %v3728, %v3761
    %v3799 = vadd.f32 %v3729, %v3761
    %v3800 = vadd.f32 %v3730, %v3761
    %v3801 = vadd.f32 %v3731, %v3761
    %v3802 = vadd.f32 %v3732, %v3761
    %v3803 = vadd.f32 %v3733, %v3761
    %v3804 = vadd.f32 %v3734, %v3761
    %v3805 = vadd.f32 %v3735, %v3761
    %v3806 = vadd.f32 %v3736, %v3761
    %v3807 = vadd.f32 %v3737, %v3761
    %v3808 = vadd.f32 %v3738, %v3761
    %v3809 = vadd.f32 %v3739, %v3761
    %v3810 = vadd.f32 %v3740, %v3761
    %v3811 = vadd.f32 %v3741, %v3761
    %v3812 = vadd.f32 %v3742, %v3761
    %v3813 = vadd.f32 %v3743, %v3761
    %v3814 = vadd.f32 %v3744, %v3761
    %v3815 = vadd.f32 %v3745, %v3761
    %v3816 = vadd.f32 %v3746, %v3761
    %v3817 = vadd.f32 %v3747, %v3761
    %v3818 = vadd.f32 %v3748, %v3761
    %v3819 = vadd.f32 %v3749, %v3761
    %v3820 = vadd.f32 %v3750, %v3761
    %v3821 = vadd.f32 %v3751, %v3761
    %v3822 = vadd.f32 %v3752, %v3761
    %v3823 = vadd.f32 %v3753, %v3761
    %v3824 = vadd.f32 %v3754, %v3761
    %v3825 = vadd.f32 %v3755, %v3761
    %v3826 = vadd.f32 %v3756, %v3761
    %v3827 = vmax.f32 %v3763, 0.0
    %v3828 = vmax.f32 %v3764, 0.0
    %v3829 = vmax.f32 %v3765, 0.0
    %v3830 = vmax.f32 %v3766, 0.0
    %v3831 = vmax.f32 %v3767, 0.0
    %v3832 = vmax.f32 %v3768, 0.0
    %v3833 = vmax.f32 %v3769, 0.0
    %v3834 = vmax.f32 %v3770, 0.0
    %v3835 = vmax.f32 %v3771, 0.0
    %v3836 = vmax.f32 %v3772, 0.0
    %v3837 = vmax.f32 %v3773, 0.0
    %v3838 = vmax.f32 %v3774, 0.0
    %v3839 = vmax.f32 %v3775, 0.0
    %v3840 = vmax.f32 %v3776, 0.0
    %v3841 = vmax.f32 %v3777, 0.0
    %v3842 = vmax.f32 %v3778, 0.0
    %v3843 = vmax.f32 %v3779, 0.0
    %v3844 = vmax.f32 %v3780, 0.0
    %v3845 = vmax.f32 %v3781, 0.0
    %v3846 = vmax.f32 %v3782, 0.0
    %v3847 = vmax.f32 %v3783, 0.0
    %v3848 = vmax.f32 %v3784, 0.0
    %v3849 = vmax.f32 %v3785, 0.0
    %v3850 = vmax.f32 %v3786, 0.0
    %v3851 = vmax.f32 %v3787, 0.0
    %v3852 = vmax.f32 %v3788, 0.0
    %v3853 = vmax.f32 %v3789, 0.0
    %v3854 = vmax.f32 %v3790, 0.0
    %v3855 = vmax.f32 %v3791, 0.0
    %v3856 = vmax.f32 %v3792, 0.0
    %v3857 = vmax.f32 %v3793, 0.0
    %v3858 = vmax.f32 %v3794, 0.0
    %v3859 = vmax.f32 %v3795, 0.0
    %v3860 = vmax.f32 %v3796, 0.0
    %v3861 = vmax.f32 %v3797, 0.0
    %v3862 = vmax.f32 %v3798, 0.0
    %v3863 = vmax.f32 %v3799, 0.0
    %v3864 = vmax.f32 %v3800, 0.0
    %v3865 = vmax.f32 %v3801, 0.0
    %v3866 = vmax.f32 %v3802, 0.0
    %v3867 = vmax.f32 %v3803, 0.0
    %v3868 = vmax.f32 %v3804, 0.0
    %v3869 = vmax.f32 %v3805, 0.0
    %v3870 = vmax.f32 %v3806, 0.0
    %v3871 = vmax.f32 %v3807, 0.0
    %v3872 = vmax.f32 %v3808, 0.0
    %v3873 = vmax.f32 %v3809, 0.0
    %v3874 = vmax.f32 %v3810, 0.0
    %v3875 = vmax.f32 %v3811, 0.0
    %v3876 = vmax.f32 %v3812, 0.0
    %v3877 = vmax.f32 %v3813, 0.0
    %v3878 = vmax.f32 %v3814, 0.0
    %v3879 = vmax.f32 %v3815, 0.0
    %v3880 = vmax.f32 %v3816, 0.0
    %v3881 = vmax.f32 %v3817, 0.0
    %v3882 = vmax.f32 %v3818, 0.0
    %v3883 = vmax.f32 %v3819, 0.0
    %v3884 = vmax.f32 %v3820, 0.0
    %v3885 = vmax.f32 %v3821, 0.0
    %v3886 = vmax.f32 %v3822, 0.0
    %v3887 = vmax.f32 %v3823, 0.0
    %v3888 = vmax.f32 %v3824, 0.0
    %v3889 = vmax.f32 %v3825, 0.0
    %v3890 = vmax.f32 %v3826, 0.0
    %v3891 = vld [vmem:[%s7] sm:$0x7]
    %v3892 = vld [vmem:[%s7 + $0x4] sm:$0x7]
    %v3893 = vld [vmem:[%s7 + $0x8] sm:$0x7]
    %v3894 = vld [vmem:[%s8] sm:$0x1]
    %v3895 = vld [vmem:[%s9] sm:$0x1]
    %v3896 = vld [vmem:[%s10] sm:$0xf]
    %v3897 = vld [vmem:[%s10 + $0x4] sm:$0xf]
    %v3898 = vld [vmem:[%s10 + $0x8] sm:$0xf]
    %v3899 = vld [vmem:[%s10 + $0xc] sm:$0xf]
    %v3900 = vld [vmem:[%s10 + $0x10] sm:$0xf]
    %v3901 = vld [vmem:[%s10 + $0x14] sm:$0xf]
    %v3902 = vld [vmem:[%s10 + $0x18] sm:$0xf]
    %v3903 = vld [vmem:[%s10 + $0x1c] sm:$0xf]
    %v3904 = vld [vmem:[%s10 + $0x20] sm:$0xf]
    %v3905 = vld [vmem:[%s10 + $0x24] sm:$0xf]
    %v3906 = vld [vmem:[%s10 + $0x28] sm:$0xf]
    %v3907 = vld [vmem:[%s10 + $0x2c] sm:$0xf]
    %v3908 = vld [vmem:[%s10 + $0x30] sm:$0xf]
    %v3909 = vld [vmem:[%s10 + $0x34] sm:$0xf]
    %v3910 = vld [vmem:[%s10 + $0x38] sm:$0xf]
    %v3911 = vld [vmem:[%s10 + $0x3c] sm:$0xf]
    %v3912 = vld [vmem:[%s11] sm:$0x1]
    %v3913 = vld [vmem:[%s12] sm:$0x1]
    %v3914 = vadd.s32 %v144, 8
    %v3915 = vadd.s32 %v144, 16
    %v3916 = vadd.s32 %v144, 24
    %v3917 = vadd.s32 %v144, 32
    %v3918 = vadd.s32 %v144, 40
    %v3919 = vadd.s32 %v144, 48
    %v3920 = vadd.s32 %v144, 56
    %v3921 = vmul.u32 %v144, 2
    %v3922 = vmul.u32 %v3914, 2
    %v3923 = vmul.u32 %v3915, 2
    %v3924 = vmul.u32 %v3916, 2
    %v3925 = vmul.u32 %v3917, 2
    %v3926 = vmul.u32 %v3918, 2
    %v3927 = vmul.u32 %v3919, 2
    %v3928 = vmul.u32 %v3920, 2
    %vm3929 = vcmp.ge.s32.totalorder %v146, %v3921
    %vm3930 = vcmp.ge.s32.totalorder %v146, %v3922
    %vm3931 = vcmp.ge.s32.totalorder %v146, %v3923
    %vm3932 = vcmp.ge.s32.totalorder %v146, %v3924
    %vm3933 = vcmp.ge.s32.totalorder %v146, %v3925
    %vm3934 = vcmp.ge.s32.totalorder %v146, %v3926
    %vm3935 = vcmp.ge.s32.totalorder %v146, %v3927
    %vm3936 = vcmp.ge.s32.totalorder %v146, %v3928
    %v3937 = vadd.s32 %v3921, 2
    %v3938 = vadd.s32 %v3922, 2
    %v3939 = vadd.s32 %v3923, 2
    %v3940 = vadd.s32 %v3924, 2
    %v3941 = vadd.s32 %v3925, 2
    %v3942 = vadd.s32 %v3926, 2
    %v3943 = vadd.s32 %v3927, 2
    %v3944 = vadd.s32 %v3928, 2
    %vm3945 = vcmp.lt.s32.totalorder %v146, %v3937
    %vm3946 = vcmp.lt.s32.totalorder %v146, %v3938
    %vm3947 = vcmp.lt.s32.totalorder %v146, %v3939
    %vm3948 = vcmp.lt.s32.totalorder %v146, %v3940
    %vm3949 = vcmp.lt.s32.totalorder %v146, %v3941
    %vm3950 = vcmp.lt.s32.totalorder %v146, %v3942
    %vm3951 = vcmp.lt.s32.totalorder %v146, %v3943
    %vm3952 = vcmp.lt.s32.totalorder %v146, %v3944
    %vm3953 = vmand %vm3929, %vm3945
    %vm3954 = vmand %vm3930, %vm3946
    %vm3955 = vmand %vm3931, %vm3947
    %vm3956 = vmand %vm3932, %vm3948
    %vm3957 = vmand %vm3933, %vm3949
    %vm3958 = vmand %vm3934, %vm3950
    %vm3959 = vmand %vm3935, %vm3951
    %vm3960 = vmand %vm3936, %vm3952
    %v3961 = vsel %vm3953, 1, 0
    %v3962 = vsel %vm3954, 1, 0
    %v3963 = vsel %vm3955, 1, 0
    %v3964 = vsel %vm3956, 1, 0
    %v3965 = vsel %vm3957, 1, 0
    %v3966 = vsel %vm3958, 1, 0
    %v3967 = vsel %vm3959, 1, 0
    %v3968 = vsel %vm3960, 1, 0
    %v3969 = vcvt.s32.f32 %v3961
    %v3970 = vcvt.s32.f32 %v3962
    %v3971 = vcvt.s32.f32 %v3963
    %v3972 = vcvt.s32.f32 %v3964
    %v3973 = vcvt.s32.f32 %v3965
    %v3974 = vcvt.s32.f32 %v3966
    %v3975 = vcvt.s32.f32 %v3967
    %v3976 = vcvt.s32.f32 %v3968
    %v3978 = vsel %vm2365, %v3827, 0
    %v3981 = vsel %vm2365, %v3828, 0
    %v3984 = vsel %vm2365, %v3829, 0
    %v3987 = vsel %vm2365, %v3830, 0
    %v3990 = vsel %vm2365, %v3831, 0
    %v3993 = vsel %vm2365, %v3832, 0
    %v3996 = vsel %vm2365, %v3833, 0
    %v3999 = vsel %vm2365, %v3834, 0
    %v4002 = vsel %vm2365, %v3835, 0
    %v4005 = vsel %vm2365, %v3836, 0
    %v4008 = vsel %vm2365, %v3837, 0
    %v4011 = vsel %vm2365, %v3838, 0
    %v4014 = vsel %vm2365, %v3839, 0
    %v4017 = vsel %vm2365, %v3840, 0
    %v4020 = vsel %vm2365, %v3841, 0
    %v4023 = vsel %vm2365, %v3842, 0
    %v4026 = vsel %vm2365, %v3843, 0
    %v4029 = vsel %vm2365, %v3844, 0
    %v4032 = vsel %vm2365, %v3845, 0
    %v4035 = vsel %vm2365, %v3846, 0
    %v4038 = vsel %vm2365, %v3847, 0
    %v4041 = vsel %vm2365, %v3848, 0
    %v4044 = vsel %vm2365, %v3849, 0
    %v4047 = vsel %vm2365, %v3850, 0
    %v4050 = vsel %vm2365, %v3851, 0
    %v4053 = vsel %vm2365, %v3852, 0
    %v4056 = vsel %vm2365, %v3853, 0
    %v4059 = vsel %vm2365, %v3854, 0
    %v4062 = vsel %vm2365, %v3855, 0
    %v4065 = vsel %vm2365, %v3856, 0
    %v4068 = vsel %vm2365, %v3857, 0
    %v4071 = vsel %vm2365, %v3858, 0
    %v4074 = vsel %vm2365, %v3859, 0
    %v4077 = vsel %vm2365, %v3860, 0
    %v4080 = vsel %vm2365, %v3861, 0
    %v4083 = vsel %vm2365, %v3862, 0
    %v4086 = vsel %vm2365, %v3863, 0
    %v4089 = vsel %vm2365, %v3864, 0
    %v4092 = vsel %vm2365, %v3865, 0
    %v4095 = vsel %vm2365, %v3866, 0
    %v4098 = vsel %vm2365, %v3867, 0
    %v4101 = vsel %vm2365, %v3868, 0
    %v4104 = vsel %vm2365, %v3869, 0
    %v4107 = vsel %vm2365, %v3870, 0
    %v4110 = vsel %vm2365, %v3871, 0
    %v4113 = vsel %vm2365, %v3872, 0
    %v4116 = vsel %vm2365, %v3873, 0
    %v4119 = vsel %vm2365, %v3874, 0
    %v4122 = vsel %vm2365, %v3875, 0
    %v4125 = vsel %vm2365, %v3876, 0
    %v4128 = vsel %vm2365, %v3877, 0
    %v4131 = vsel %vm2365, %v3878, 0
    %v4134 = vsel %vm2365, %v3879, 0
    %v4137 = vsel %vm2365, %v3880, 0
    %v4140 = vsel %vm2365, %v3881, 0
    %v4143 = vsel %vm2365, %v3882, 0
    %v4146 = vsel %vm2365, %v3883, 0
    %v4149 = vsel %vm2365, %v3884, 0
    %v4152 = vsel %vm2365, %v3885, 0
    %v4155 = vsel %vm2365, %v3886, 0
    %v4158 = vsel %vm2365, %v3887, 0
    %v4161 = vsel %vm2365, %v3888, 0
    %v4164 = vsel %vm2365, %v3889, 0
    %v4167 = vsel %vm2365, %v3890, 0
    %4169 = vmatprep.subr.mxu0 0.0
    %4170 = vmatpush1.msra.mxu0 %v3969
    %4171 = vmatprep.subr.mxu0 0.0
    %4172 = vmatpush1.msra.mxu0 %v3970
    %4173 = vmatprep.subr.mxu0 0.0
    %4174 = vmatpush1.msra.mxu0 %v3971
    %4175 = vmatprep.subr.mxu0 0.0
    %4176 = vmatpush1.msra.mxu0 %v3972
    %4177 = vmatprep.subr.mxu0 0.0
    %4178 = vmatpush1.msra.mxu0 %v3973
    %4179 = vmatprep.subr.mxu0 0.0
    %4180 = vmatpush1.msra.mxu0 %v3974
    %4181 = vmatprep.subr.mxu0 0.0
    %4182 = vmatpush1.msra.mxu0 %v3975
    %4183 = vmatprep.subr.mxu0 0.0
    %4184 = vmatpush1.msra.mxu0 %v3976
    %4185 = vmatprep.subr.mxu0 0.0
    %4186 = vmatpush1.msra.mxu0 0.0
    %4187 = vmatprep.subr.mxu0 0.0
    %4188 = vmatpush1.msra.mxu0 0.0
    %4189 = vmatprep.subr.mxu0 0.0
    %4190 = vmatpush1.msra.mxu0 0.0
    %4191 = vmatprep.subr.mxu0 0.0
    %4192 = vmatpush1.msra.mxu0 0.0
    %4193 = vmatprep.subr.mxu0 0.0
    %4194 = vmatpush1.msra.mxu0 0.0
    %4195 = vmatprep.subr.mxu0 0.0
    %4196 = vmatpush1.msra.mxu0 0.0
    %4197 = vmatprep.subr.mxu0 0.0
    %4198 = vmatpush1.msra.mxu0 0.0
    %4199 = vmatprep.subr.mxu0 0.0
    %4200 = vmatpush1.msra.mxu0 0.0
    %4201 = vmatprep.subr.mxu0 0.0
    %4202 = vmatpush1.msra.mxu0 0.0
    %4203 = vmatprep.subr.mxu0 0.0
    %4204 = vmatpush1.msra.mxu0 0.0
    %4205 = vmatprep.subr.mxu0 0.0
    %4206 = vmatpush1.msra.mxu0 0.0
    %4207 = vmatprep.subr.mxu0 0.0
    %4208 = vmatpush1.msra.mxu0 0.0
    %4209 = vmatprep.subr.mxu0 0.0
    %4210 = vmatpush1.msra.mxu0 0.0
    %4211 = vmatprep.subr.mxu0 0.0
    %4212 = vmatpush1.msra.mxu0 0.0
    %4213 = vmatprep.subr.mxu0 0.0
    %4214 = vmatpush1.msra.mxu0 0.0
    %4215 = vmatprep.subr.mxu0 0.0
    %4216 = vmatpush1.msra.mxu0 0.0
    %4217 = vmatprep.subr.mxu0 0.0
    %4218 = vmatpush1.msra.mxu0 0.0
    %4219 = vmatprep.subr.mxu0 0.0
    %4220 = vmatpush1.msra.mxu0 0.0
    %4221 = vmatprep.subr.mxu0 0.0
    %4222 = vmatpush1.msra.mxu0 0.0
    %4223 = vmatprep.subr.mxu0 0.0
    %4224 = vmatpush1.msra.mxu0 0.0
    %4225 = vmatprep.subr.mxu0 0.0
    %4226 = vmatpush1.msra.mxu0 0.0
    %4227 = vmatprep.subr.mxu0 0.0
    %4228 = vmatpush1.msra.mxu0 0.0
    %4229 = vmatprep.subr.mxu0 0.0
    %4230 = vmatpush1.msra.mxu0 0.0
    %4231 = vmatprep.subr.mxu0 0.0
    %4232 = vmatpush1.msra.mxu0 0.0
    %4233 = vmatprep.mubr.f32.mxu0 0.0
    %4234 = vmatmul.mubr.f32.gmra.mrb[0].mxu0 %v3978
    %v4235 = vpop.f32.mrb[0].mxu0
    %v4236 = vadd.f32 0.0, %v4235
    %v4237 = vpop.f32.mrb[0].mxu0
    %4238 = vmatprep.mubr.f32.mxu0 0.0
    %4239 = vmatmul.mubr.f32.gmra.mrb[0].mxu0 %v3981
    %v4240 = vpop.f32.mrb[0].mxu0
    %v4241 = vadd.f32 0.0, %v4240
    %v4242 = vpop.f32.mrb[0].mxu0
    %4243 = vmatprep.mubr.f32.mxu0 0.0
    %4244 = vmatmul.mubr.f32.gmra.mrb[0].mxu0 %v3984
    %v4245 = vpop.f32.mrb[0].mxu0
    %v4246 = vadd.f32 0.0, %v4245
    %v4247 = vpop.f32.mrb[0].mxu0
    %4248 = vmatprep.mubr.f32.mxu0 0.0
    %4249 = vmatmul.mubr.f32.gmra.mrb[0].mxu0 %v3987
    %v4250 = vpop.f32.mrb[0].mxu0
    %v4251 = vadd.f32 0.0, %v4250
    %v4252 = vpop.f32.mrb[0].mxu0
    %4253 = vmatprep.mubr.f32.mxu0 0.0
    %4254 = vmatmul.mubr.f32.gmra.mrb[0].mxu0 %v3990
    %v4255 = vpop.f32.mrb[0].mxu0
    %v4256 = vadd.f32 0.0, %v4255
    %v4257 = vpop.f32.mrb[0].mxu0
    %4258 = vmatprep.mubr.f32.mxu0 0.0
    %4259 = vmatmul.mubr.f32.gmra.mrb[0].mxu0 %v3993
    %v4260 = vpop.f32.mrb[0].mxu0
    %v4261 = vadd.f32 0.0, %v4260
    %v4262 = vpop.f32.mrb[0].mxu0
    %4263 = vmatprep.mubr.f32.mxu0 0.0
    %4264 = vmatmul.mubr.f32.gmra.mrb[0].mxu0 %v3996
    %v4265 = vpop.f32.mrb[0].mxu0
    %v4266 = vadd.f32 0.0, %v4265
    %v4267 = vpop.f32.mrb[0].mxu0
    %4268 = vmatprep.mubr.f32.mxu0 0.0
    %4269 = vmatmul.mubr.f32.gmra.mrb[0].mxu0 %v3999
    %v4270 = vpop.f32.mrb[0].mxu0
    %v4271 = vadd.f32 0.0, %v4270
    %v4272 = vpop.f32.mrb[0].mxu0
    %4273 = vmatprep.mubr.f32.mxu0 0.0
    %4274 = vmatmul.mubr.f32.gmra.mrb[0].mxu0 %v4002
    %v4275 = vpop.f32.mrb[0].mxu0
    %v4276 = vadd.f32 0.0, %v4275
    %v4277 = vpop.f32.mrb[0].mxu0
    %4278 = vmatprep.mubr.f32.mxu0 0.0
    %4279 = vmatmul.mubr.f32.gmra.mrb[0].mxu0 %v4005
    %v4280 = vpop.f32.mrb[0].mxu0
    %v4281 = vadd.f32 0.0, %v4280
    %v4282 = vpop.f32.mrb[0].mxu0
    %4283 = vmatprep.mubr.f32.mxu0 0.0
    %4284 = vmatmul.mubr.f32.gmra.mrb[0].mxu0 %v4008
    %v4285 = vpop.f32.mrb[0].mxu0
    %v4286 = vadd.f32 0.0, %v4285
    %v4287 = vpop.f32.mrb[0].mxu0
    %4288 = vmatprep.mubr.f32.mxu0 0.0
    %4289 = vmatmul.mubr.f32.gmra.mrb[0].mxu0 %v4011
    %v4290 = vpop.f32.mrb[0].mxu0
    %v4291 = vadd.f32 0.0, %v4290
    %v4292 = vpop.f32.mrb[0].mxu0
    %4293 = vmatprep.mubr.f32.mxu0 0.0
    %4294 = vmatmul.mubr.f32.gmra.mrb[0].mxu0 %v4014
    %v4295 = vpop.f32.mrb[0].mxu0
    %v4296 = vadd.f32 0.0, %v4295
    %v4297 = vpop.f32.mrb[0].mxu0
    %4298 = vmatprep.mubr.f32.mxu0 0.0
    %4299 = vmatmul.mubr.f32.gmra.mrb[0].mxu0 %v4017
    %v4300 = vpop.f32.mrb[0].mxu0
    %v4301 = vadd.f32 0.0, %v4300
    %v4302 = vpop.f32.mrb[0].mxu0
    %4303 = vmatprep.mubr.f32.mxu0 0.0
    %4304 = vmatmul.mubr.f32.gmra.mrb[0].mxu0 %v4020
    %v4305 = vpop.f32.mrb[0].mxu0
    %v4306 = vadd.f32 0.0, %v4305
    %v4307 = vpop.f32.mrb[0].mxu0
    %4308 = vmatprep.mubr.f32.mxu0 0.0
    %4309 = vmatmul.mubr.f32.gmra.mrb[0].mxu0 %v4023
    %v4310 = vpop.f32.mrb[0].mxu0
    %v4311 = vadd.f32 0.0, %v4310
    %v4312 = vpop.f32.mrb[0].mxu0
    %4313 = vmatprep.mubr.f32.mxu0 0.0
    %4314 = vmatmul.mubr.f32.gmra.mrb[0].mxu0 %v4026
    %v4315 = vpop.f32.mrb[0].mxu0
    %v4316 = vadd.f32 0.0, %v4315
    %v4317 = vpop.f32.mrb[0].mxu0
    %4318 = vmatprep.mubr.f32.mxu0 0.0
    %4319 = vmatmul.mubr.f32.gmra.mrb[0].mxu0 %v4029
    %v4320 = vpop.f32.mrb[0].mxu0
    %v4321 = vadd.f32 0.0, %v4320
    %v4322 = vpop.f32.mrb[0].mxu0
    %4323 = vmatprep.mubr.f32.mxu0 0.0
    %4324 = vmatmul.mubr.f32.gmra.mrb[0].mxu0 %v4032
    %v4325 = vpop.f32.mrb[0].mxu0
    %v4326 = vadd.f32 0.0, %v4325
    %v4327 = vpop.f32.mrb[0].mxu0
    %4328 = vmatprep.mubr.f32.mxu0 0.0
    %4329 = vmatmul.mubr.f32.gmra.mrb[0].mxu0 %v4035
    %v4330 = vpop.f32.mrb[0].mxu0
    %v4331 = vadd.f32 0.0, %v4330
    %v4332 = vpop.f32.mrb[0].mxu0
    %4333 = vmatprep.mubr.f32.mxu0 0.0
    %4334 = vmatmul.mubr.f32.gmra.mrb[0].mxu0 %v4038
    %v4335 = vpop.f32.mrb[0].mxu0
    %v4336 = vadd.f32 0.0, %v4335
    %v4337 = vpop.f32.mrb[0].mxu0
    %4338 = vmatprep.mubr.f32.mxu0 0.0
    %4339 = vmatmul.mubr.f32.gmra.mrb[0].mxu0 %v4041
    %v4340 = vpop.f32.mrb[0].mxu0
    %v4341 = vadd.f32 0.0, %v4340
    %v4342 = vpop.f32.mrb[0].mxu0
    %4343 = vmatprep.mubr.f32.mxu0 0.0
    %4344 = vmatmul.mubr.f32.gmra.mrb[0].mxu0 %v4044
    %v4345 = vpop.f32.mrb[0].mxu0
    %v4346 = vadd.f32 0.0, %v4345
    %v4347 = vpop.f32.mrb[0].mxu0
    %4348 = vmatprep.mubr.f32.mxu0 0.0
    %4349 = vmatmul.mubr.f32.gmra.mrb[0].mxu0 %v4047
    %v4350 = vpop.f32.mrb[0].mxu0
    %v4351 = vadd.f32 0.0, %v4350
    %v4352 = vpop.f32.mrb[0].mxu0
    %4353 = vmatprep.mubr.f32.mxu0 0.0
    %4354 = vmatmul.mubr.f32.gmra.mrb[0].mxu0 %v4050
    %v4355 = vpop.f32.mrb[0].mxu0
    %v4356 = vadd.f32 0.0, %v4355
    %v4357 = vpop.f32.mrb[0].mxu0
    %4358 = vmatprep.mubr.f32.mxu0 0.0
    %4359 = vmatmul.mubr.f32.gmra.mrb[0].mxu0 %v4053
    %v4360 = vpop.f32.mrb[0].mxu0
    %v4361 = vadd.f32 0.0, %v4360
    %v4362 = vpop.f32.mrb[0].mxu0
    %4363 = vmatprep.mubr.f32.mxu0 0.0
    %4364 = vmatmul.mubr.f32.gmra.mrb[0].mxu0 %v4056
    %v4365 = vpop.f32.mrb[0].mxu0
    %v4366 = vadd.f32 0.0, %v4365
    %v4367 = vpop.f32.mrb[0].mxu0
    %4368 = vmatprep.mubr.f32.mxu0 0.0
    %4369 = vmatmul.mubr.f32.gmra.mrb[0].mxu0 %v4059
    %v4370 = vpop.f32.mrb[0].mxu0
    %v4371 = vadd.f32 0.0, %v4370
    %v4372 = vpop.f32.mrb[0].mxu0
    %4373 = vmatprep.mubr.f32.mxu0 0.0
    %4374 = vmatmul.mubr.f32.gmra.mrb[0].mxu0 %v4062
    %v4375 = vpop.f32.mrb[0].mxu0
    %v4376 = vadd.f32 0.0, %v4375
    %v4377 = vpop.f32.mrb[0].mxu0
    %4378 = vmatprep.mubr.f32.mxu0 0.0
    %4379 = vmatmul.mubr.f32.gmra.mrb[0].mxu0 %v4065
    %v4380 = vpop.f32.mrb[0].mxu0
    %v4381 = vadd.f32 0.0, %v4380
    %v4382 = vpop.f32.mrb[0].mxu0
    %4383 = vmatprep.mubr.f32.mxu0 0.0
    %4384 = vmatmul.mubr.f32.gmra.mrb[0].mxu0 %v4068
    %v4385 = vpop.f32.mrb[0].mxu0
    %v4386 = vadd.f32 0.0, %v4385
    %v4387 = vpop.f32.mrb[0].mxu0
    %4388 = vmatprep.mubr.f32.mxu0 0.0
    %4389 = vmatmul.mubr.f32.gmra.mrb[0].mxu0 %v4071
    %v4390 = vpop.f32.mrb[0].mxu0
    %v4391 = vadd.f32 0.0, %v4390
    %v4392 = vpop.f32.mrb[0].mxu0
    %4393 = vmatprep.mubr.f32.mxu0 0.0
    %4394 = vmatmul.mubr.f32.gmra.mrb[0].mxu0 %v4074
    %v4395 = vpop.f32.mrb[0].mxu0
    %v4396 = vadd.f32 0.0, %v4395
    %v4397 = vpop.f32.mrb[0].mxu0
    %4398 = vmatprep.mubr.f32.mxu0 0.0
    %4399 = vmatmul.mubr.f32.gmra.mrb[0].mxu0 %v4077
    %v4400 = vpop.f32.mrb[0].mxu0
    %v4401 = vadd.f32 0.0, %v4400
    %v4402 = vpop.f32.mrb[0].mxu0
    %4403 = vmatprep.mubr.f32.mxu0 0.0
    %4404 = vmatmul.mubr.f32.gmra.mrb[0].mxu0 %v4080
    %v4405 = vpop.f32.mrb[0].mxu0
    %v4406 = vadd.f32 0.0, %v4405
    %v4407 = vpop.f32.mrb[0].mxu0
    %4408 = vmatprep.mubr.f32.mxu0 0.0
    %4409 = vmatmul.mubr.f32.gmra.mrb[0].mxu0 %v4083
    %v4410 = vpop.f32.mrb[0].mxu0
    %v4411 = vadd.f32 0.0, %v4410
    %v4412 = vpop.f32.mrb[0].mxu0
    %4413 = vmatprep.mubr.f32.mxu0 0.0
    %4414 = vmatmul.mubr.f32.gmra.mrb[0].mxu0 %v4086
    %v4415 = vpop.f32.mrb[0].mxu0
    %v4416 = vadd.f32 0.0, %v4415
    %v4417 = vpop.f32.mrb[0].mxu0
    %4418 = vmatprep.mubr.f32.mxu0 0.0
    %4419 = vmatmul.mubr.f32.gmra.mrb[0].mxu0 %v4089
    %v4420 = vpop.f32.mrb[0].mxu0
    %v4421 = vadd.f32 0.0, %v4420
    %v4422 = vpop.f32.mrb[0].mxu0
    %4423 = vmatprep.mubr.f32.mxu0 0.0
    %4424 = vmatmul.mubr.f32.gmra.mrb[0].mxu0 %v4092
    %v4425 = vpop.f32.mrb[0].mxu0
    %v4426 = vadd.f32 0.0, %v4425
    %v4427 = vpop.f32.mrb[0].mxu0
    %4428 = vmatprep.mubr.f32.mxu0 0.0
    %4429 = vmatmul.mubr.f32.gmra.mrb[0].mxu0 %v4095
    %v4430 = vpop.f32.mrb[0].mxu0
    %v4431 = vadd.f32 0.0, %v4430
    %v4432 = vpop.f32.mrb[0].mxu0
    %4433 = vmatprep.mubr.f32.mxu0 0.0
    %4434 = vmatmul.mubr.f32.gmra.mrb[0].mxu0 %v4098
    %v4435 = vpop.f32.mrb[0].mxu0
    %v4436 = vadd.f32 0.0, %v4435
    %v4437 = vpop.f32.mrb[0].mxu0
    %4438 = vmatprep.mubr.f32.mxu0 0.0
    %4439 = vmatmul.mubr.f32.gmra.mrb[0].mxu0 %v4101
    %v4440 = vpop.f32.mrb[0].mxu0
    %v4441 = vadd.f32 0.0, %v4440
    %v4442 = vpop.f32.mrb[0].mxu0
    %4443 = vmatprep.mubr.f32.mxu0 0.0
    %4444 = vmatmul.mubr.f32.gmra.mrb[0].mxu0 %v4104
    %v4445 = vpop.f32.mrb[0].mxu0
    %v4446 = vadd.f32 0.0, %v4445
    %v4447 = vpop.f32.mrb[0].mxu0
    %4448 = vmatprep.mubr.f32.mxu0 0.0
    %4449 = vmatmul.mubr.f32.gmra.mrb[0].mxu0 %v4107
    %v4450 = vpop.f32.mrb[0].mxu0
    %v4451 = vadd.f32 0.0, %v4450
    %v4452 = vpop.f32.mrb[0].mxu0
    %4453 = vmatprep.mubr.f32.mxu0 0.0
    %4454 = vmatmul.mubr.f32.gmra.mrb[0].mxu0 %v4110
    %v4455 = vpop.f32.mrb[0].mxu0
    %v4456 = vadd.f32 0.0, %v4455
    %v4457 = vpop.f32.mrb[0].mxu0
    %4458 = vmatprep.mubr.f32.mxu0 0.0
    %4459 = vmatmul.mubr.f32.gmra.mrb[0].mxu0 %v4113
    %v4460 = vpop.f32.mrb[0].mxu0
    %v4461 = vadd.f32 0.0, %v4460
    %v4462 = vpop.f32.mrb[0].mxu0
    %4463 = vmatprep.mubr.f32.mxu0 0.0
    %4464 = vmatmul.mubr.f32.gmra.mrb[0].mxu0 %v4116
    %v4465 = vpop.f32.mrb[0].mxu0
    %v4466 = vadd.f32 0.0, %v4465
    %v4467 = vpop.f32.mrb[0].mxu0
    %4468 = vmatprep.mubr.f32.mxu0 0.0
    %4469 = vmatmul.mubr.f32.gmra.mrb[0].mxu0 %v4119
    %v4470 = vpop.f32.mrb[0].mxu0
    %v4471 = vadd.f32 0.0, %v4470
    %v4472 = vpop.f32.mrb[0].mxu0
    %4473 = vmatprep.mubr.f32.mxu0 0.0
    %4474 = vmatmul.mubr.f32.gmra.mrb[0].mxu0 %v4122
    %v4475 = vpop.f32.mrb[0].mxu0
    %v4476 = vadd.f32 0.0, %v4475
    %v4477 = vpop.f32.mrb[0].mxu0
    %4478 = vmatprep.mubr.f32.mxu0 0.0
    %4479 = vmatmul.mubr.f32.gmra.mrb[0].mxu0 %v4125
    %v4480 = vpop.f32.mrb[0].mxu0
    %v4481 = vadd.f32 0.0, %v4480
    %v4482 = vpop.f32.mrb[0].mxu0
    %4483 = vmatprep.mubr.f32.mxu0 0.0
    %4484 = vmatmul.mubr.f32.gmra.mrb[0].mxu0 %v4128
    %v4485 = vpop.f32.mrb[0].mxu0
    %v4486 = vadd.f32 0.0, %v4485
    %v4487 = vpop.f32.mrb[0].mxu0
    %4488 = vmatprep.mubr.f32.mxu0 0.0
    %4489 = vmatmul.mubr.f32.gmra.mrb[0].mxu0 %v4131
    %v4490 = vpop.f32.mrb[0].mxu0
    %v4491 = vadd.f32 0.0, %v4490
    %v4492 = vpop.f32.mrb[0].mxu0
    %4493 = vmatprep.mubr.f32.mxu0 0.0
    %4494 = vmatmul.mubr.f32.gmra.mrb[0].mxu0 %v4134
    %v4495 = vpop.f32.mrb[0].mxu0
    %v4496 = vadd.f32 0.0, %v4495
    %v4497 = vpop.f32.mrb[0].mxu0
    %4498 = vmatprep.mubr.f32.mxu0 0.0
    %4499 = vmatmul.mubr.f32.gmra.mrb[0].mxu0 %v4137
    %v4500 = vpop.f32.mrb[0].mxu0
    %v4501 = vadd.f32 0.0, %v4500
    %v4502 = vpop.f32.mrb[0].mxu0
    %4503 = vmatprep.mubr.f32.mxu0 0.0
    %4504 = vmatmul.mubr.f32.gmra.mrb[0].mxu0 %v4140
    %v4505 = vpop.f32.mrb[0].mxu0
    %v4506 = vadd.f32 0.0, %v4505
    %v4507 = vpop.f32.mrb[0].mxu0
    %4508 = vmatprep.mubr.f32.mxu0 0.0
    %4509 = vmatmul.mubr.f32.gmra.mrb[0].mxu0 %v4143
    %v4510 = vpop.f32.mrb[0].mxu0
    %v4511 = vadd.f32 0.0, %v4510
    %v4512 = vpop.f32.mrb[0].mxu0
    %4513 = vmatprep.mubr.f32.mxu0 0.0
    %4514 = vmatmul.mubr.f32.gmra.mrb[0].mxu0 %v4146
    %v4515 = vpop.f32.mrb[0].mxu0
    %v4516 = vadd.f32 0.0, %v4515
    %v4517 = vpop.f32.mrb[0].mxu0
    %4518 = vmatprep.mubr.f32.mxu0 0.0
    %4519 = vmatmul.mubr.f32.gmra.mrb[0].mxu0 %v4149
    %v4520 = vpop.f32.mrb[0].mxu0
    %v4521 = vadd.f32 0.0, %v4520
    %v4522 = vpop.f32.mrb[0].mxu0
    %4523 = vmatprep.mubr.f32.mxu0 0.0
    %4524 = vmatmul.mubr.f32.gmra.mrb[0].mxu0 %v4152
    %v4525 = vpop.f32.mrb[0].mxu0
    %v4526 = vadd.f32 0.0, %v4525
    %v4527 = vpop.f32.mrb[0].mxu0
    %4528 = vmatprep.mubr.f32.mxu0 0.0
    %4529 = vmatmul.mubr.f32.gmra.mrb[0].mxu0 %v4155
    %v4530 = vpop.f32.mrb[0].mxu0
    %v4531 = vadd.f32 0.0, %v4530
    %v4532 = vpop.f32.mrb[0].mxu0
    %4533 = vmatprep.mubr.f32.mxu0 0.0
    %4534 = vmatmul.mubr.f32.gmra.mrb[0].mxu0 %v4158
    %v4535 = vpop.f32.mrb[0].mxu0
    %v4536 = vadd.f32 0.0, %v4535
    %v4537 = vpop.f32.mrb[0].mxu0
    %4538 = vmatprep.mubr.f32.mxu0 0.0
    %4539 = vmatmul.mubr.f32.gmra.mrb[0].mxu0 %v4161
    %v4540 = vpop.f32.mrb[0].mxu0
    %v4541 = vadd.f32 0.0, %v4540
    %v4542 = vpop.f32.mrb[0].mxu0
    %4543 = vmatprep.mubr.f32.mxu0 0.0
    %4544 = vmatmul.mubr.f32.gmra.mrb[0].mxu0 %v4164
    %v4545 = vpop.f32.mrb[0].mxu0
    %v4546 = vadd.f32 0.0, %v4545
    %v4547 = vpop.f32.mrb[0].mxu0
    %4548 = vmatprep.mubr.f32.mxu0 0.0
    %4549 = vmatmul.mubr.f32.gmra.mrb[0].mxu0 %v4167
    %v4550 = vpop.f32.mrb[0].mxu0
    %v4551 = vadd.f32 0.0, %v4550
    %v4552 = vpop.f32.mrb[0].mxu0
    %4553 = vdwg.mxu0
    %v4618 = vrot.slane %v4236, 7
    %v4619 = vrot.slane %v4241, 7
    %v4620 = vsel %vm801, %v4618, %v4619
    %v4621 = vrot.slane %v4246, 7
    %v4622 = vrot.slane %v4251, 7
    %v4623 = vsel %vm801, %v4621, %v4622
    %v4624 = vrot.slane %v4256, 7
    %v4625 = vrot.slane %v4261, 7
    %v4626 = vsel %vm801, %v4624, %v4625
    %v4627 = vrot.slane %v4266, 7
    %v4628 = vrot.slane %v4271, 7
    %v4629 = vsel %vm801, %v4627, %v4628
    %v4630 = vrot.slane %v4276, 7
    %v4631 = vrot.slane %v4281, 7
    %v4632 = vsel %vm801, %v4630, %v4631
    %v4633 = vrot.slane %v4286, 7
    %v4634 = vrot.slane %v4291, 7
    %v4635 = vsel %vm801, %v4633, %v4634
    %v4636 = vrot.slane %v4296, 7
    %v4637 = vrot.slane %v4301, 7
    %v4638 = vsel %vm801, %v4636, %v4637
    %v4639 = vrot.slane %v4306, 7
    %v4640 = vrot.slane %v4311, 7
    %v4641 = vsel %vm801, %v4639, %v4640
    %v4642 = vrot.slane %v4316, 7
    %v4643 = vrot.slane %v4321, 7
    %v4644 = vsel %vm801, %v4642, %v4643
    %v4645 = vrot.slane %v4326, 7
    %v4646 = vrot.slane %v4331, 7
    %v4647 = vsel %vm801, %v4645, %v4646
    %v4648 = vrot.slane %v4336, 7
    %v4649 = vrot.slane %v4341, 7
    %v4650 = vsel %vm801, %v4648, %v4649
    %v4651 = vrot.slane %v4346, 7
    %v4652 = vrot.slane %v4351, 7
    %v4653 = vsel %vm801, %v4651, %v4652
    %v4654 = vrot.slane %v4356, 7
    %v4655 = vrot.slane %v4361, 7
    %v4656 = vsel %vm801, %v4654, %v4655
    %v4657 = vrot.slane %v4366, 7
    %v4658 = vrot.slane %v4371, 7
    %v4659 = vsel %vm801, %v4657, %v4658
    %v4660 = vrot.slane %v4376, 7
    %v4661 = vrot.slane %v4381, 7
    %v4662 = vsel %vm801, %v4660, %v4661
    %v4663 = vrot.slane %v4386, 7
    %v4664 = vrot.slane %v4391, 7
    %v4665 = vsel %vm801, %v4663, %v4664
    %v4666 = vrot.slane %v4396, 7
    %v4667 = vrot.slane %v4401, 7
    %v4668 = vsel %vm801, %v4666, %v4667
    %v4669 = vrot.slane %v4406, 7
    %v4670 = vrot.slane %v4411, 7
    %v4671 = vsel %vm801, %v4669, %v4670
    %v4672 = vrot.slane %v4416, 7
    %v4673 = vrot.slane %v4421, 7
    %v4674 = vsel %vm801, %v4672, %v4673
    %v4675 = vrot.slane %v4426, 7
    %v4676 = vrot.slane %v4431, 7
    %v4677 = vsel %vm801, %v4675, %v4676
    %v4678 = vrot.slane %v4436, 7
    %v4679 = vrot.slane %v4441, 7
    %v4680 = vsel %vm801, %v4678, %v4679
    %v4681 = vrot.slane %v4446, 7
    %v4682 = vrot.slane %v4451, 7
    %v4683 = vsel %vm801, %v4681, %v4682
    %v4684 = vrot.slane %v4456, 7
    %v4685 = vrot.slane %v4461, 7
    %v4686 = vsel %vm801, %v4684, %v4685
    %v4687 = vrot.slane %v4466, 7
    %v4688 = vrot.slane %v4471, 7
    %v4689 = vsel %vm801, %v4687, %v4688
    %v4690 = vrot.slane %v4476, 7
    %v4691 = vrot.slane %v4481, 7
    %v4692 = vsel %vm801, %v4690, %v4691
    %v4693 = vrot.slane %v4486, 7
    %v4694 = vrot.slane %v4491, 7
    %v4695 = vsel %vm801, %v4693, %v4694
    %v4696 = vrot.slane %v4496, 7
    %v4697 = vrot.slane %v4501, 7
    %v4698 = vsel %vm801, %v4696, %v4697
    %v4699 = vrot.slane %v4506, 7
    %v4700 = vrot.slane %v4511, 7
    %v4701 = vsel %vm801, %v4699, %v4700
    %v4702 = vrot.slane %v4516, 7
    %v4703 = vrot.slane %v4521, 7
    %v4704 = vsel %vm801, %v4702, %v4703
    %v4705 = vrot.slane %v4526, 7
    %v4706 = vrot.slane %v4531, 7
    %v4707 = vsel %vm801, %v4705, %v4706
    %v4708 = vrot.slane %v4536, 7
    %v4709 = vrot.slane %v4541, 7
    %v4710 = vsel %vm801, %v4708, %v4709
    %v4711 = vrot.slane %v4546, 7
    %v4712 = vrot.slane %v4551, 7
    %v4713 = vsel %vm801, %v4711, %v4712
    %v4778 = vsel %vm801, 0.0, %v4618
    %v4779 = vsel %vm801, 0.0, %v4621
    %v4780 = vsel %vm801, 0.0, %v4624
    %v4781 = vsel %vm801, 0.0, %v4627
    %v4782 = vsel %vm801, 0.0, %v4630
    %v4783 = vsel %vm801, 0.0, %v4633
    %v4784 = vsel %vm801, 0.0, %v4636
    %v4785 = vsel %vm801, 0.0, %v4639
    %v4786 = vsel %vm801, 0.0, %v4642
    %v4787 = vsel %vm801, 0.0, %v4645
    %v4788 = vsel %vm801, 0.0, %v4648
    %v4789 = vsel %vm801, 0.0, %v4651
    %v4790 = vsel %vm801, 0.0, %v4654
    %v4791 = vsel %vm801, 0.0, %v4657
    %v4792 = vsel %vm801, 0.0, %v4660
    %v4793 = vsel %vm801, 0.0, %v4663
    %v4794 = vsel %vm801, 0.0, %v4666
    %v4795 = vsel %vm801, 0.0, %v4669
    %v4796 = vsel %vm801, 0.0, %v4672
    %v4797 = vsel %vm801, 0.0, %v4675
    %v4798 = vsel %vm801, 0.0, %v4678
    %v4799 = vsel %vm801, 0.0, %v4681
    %v4800 = vsel %vm801, 0.0, %v4684
    %v4801 = vsel %vm801, 0.0, %v4687
    %v4802 = vsel %vm801, 0.0, %v4690
    %v4803 = vsel %vm801, 0.0, %v4693
    %v4804 = vsel %vm801, 0.0, %v4696
    %v4805 = vsel %vm801, 0.0, %v4699
    %v4806 = vsel %vm801, 0.0, %v4702
    %v4807 = vsel %vm801, 0.0, %v4705
    %v4808 = vsel %vm801, 0.0, %v4708
    %v4809 = vsel %vm801, 0.0, %v4711
    %v4810 = vrot.slane %v4236, 1
    %v4811 = vrot.slane %v4241, 1
    %v4812 = vsel %vm999, %v4810, %v4811
    %v4813 = vrot.slane %v4246, 1
    %v4814 = vrot.slane %v4251, 1
    %v4815 = vsel %vm999, %v4813, %v4814
    %v4816 = vrot.slane %v4256, 1
    %v4817 = vrot.slane %v4261, 1
    %v4818 = vsel %vm999, %v4816, %v4817
    %v4819 = vrot.slane %v4266, 1
    %v4820 = vrot.slane %v4271, 1
    %v4821 = vsel %vm999, %v4819, %v4820
    %v4822 = vrot.slane %v4276, 1
    %v4823 = vrot.slane %v4281, 1
    %v4824 = vsel %vm999, %v4822, %v4823
    %v4825 = vrot.slane %v4286, 1
    %v4826 = vrot.slane %v4291, 1
    %v4827 = vsel %vm999, %v4825, %v4826
    %v4828 = vrot.slane %v4296, 1
    %v4829 = vrot.slane %v4301, 1
    %v4830 = vsel %vm999, %v4828, %v4829
    %v4831 = vrot.slane %v4306, 1
    %v4832 = vrot.slane %v4311, 1
    %v4833 = vsel %vm999, %v4831, %v4832
    %v4834 = vrot.slane %v4316, 1
    %v4835 = vrot.slane %v4321, 1
    %v4836 = vsel %vm999, %v4834, %v4835
    %v4837 = vrot.slane %v4326, 1
    %v4838 = vrot.slane %v4331, 1
    %v4839 = vsel %vm999, %v4837, %v4838
    %v4840 = vrot.slane %v4336, 1
    %v4841 = vrot.slane %v4341, 1
    %v4842 = vsel %vm999, %v4840, %v4841
    %v4843 = vrot.slane %v4346, 1
    %v4844 = vrot.slane %v4351, 1
    %v4845 = vsel %vm999, %v4843, %v4844
    %v4846 = vrot.slane %v4356, 1
    %v4847 = vrot.slane %v4361, 1
    %v4848 = vsel %vm999, %v4846, %v4847
    %v4849 = vrot.slane %v4366, 1
    %v4850 = vrot.slane %v4371, 1
    %v4851 = vsel %vm999, %v4849, %v4850
    %v4852 = vrot.slane %v4376, 1
    %v4853 = vrot.slane %v4381, 1
    %v4854 = vsel %vm999, %v4852, %v4853
    %v4855 = vrot.slane %v4386, 1
    %v4856 = vrot.slane %v4391, 1
    %v4857 = vsel %vm999, %v4855, %v4856
    %v4858 = vrot.slane %v4396, 1
    %v4859 = vrot.slane %v4401, 1
    %v4860 = vsel %vm999, %v4858, %v4859
    %v4861 = vrot.slane %v4406, 1
    %v4862 = vrot.slane %v4411, 1
    %v4863 = vsel %vm999, %v4861, %v4862
    %v4864 = vrot.slane %v4416, 1
    %v4865 = vrot.slane %v4421, 1
    %v4866 = vsel %vm999, %v4864, %v4865
    %v4867 = vrot.slane %v4426, 1
    %v4868 = vrot.slane %v4431, 1
    %v4869 = vsel %vm999, %v4867, %v4868
    %v4870 = vrot.slane %v4436, 1
    %v4871 = vrot.slane %v4441, 1
    %v4872 = vsel %vm999, %v4870, %v4871
    %v4873 = vrot.slane %v4446, 1
    %v4874 = vrot.slane %v4451, 1
    %v4875 = vsel %vm999, %v4873, %v4874
    %v4876 = vrot.slane %v4456, 1
    %v4877 = vrot.slane %v4461, 1
    %v4878 = vsel %vm999, %v4876, %v4877
    %v4879 = vrot.slane %v4466, 1
    %v4880 = vrot.slane %v4471, 1
    %v4881 = vsel %vm999, %v4879, %v4880
    %v4882 = vrot.slane %v4476, 1
    %v4883 = vrot.slane %v4481, 1
    %v4884 = vsel %vm999, %v4882, %v4883
    %v4885 = vrot.slane %v4486, 1
    %v4886 = vrot.slane %v4491, 1
    %v4887 = vsel %vm999, %v4885, %v4886
    %v4888 = vrot.slane %v4496, 1
    %v4889 = vrot.slane %v4501, 1
    %v4890 = vsel %vm999, %v4888, %v4889
    %v4891 = vrot.slane %v4506, 1
    %v4892 = vrot.slane %v4511, 1
    %v4893 = vsel %vm999, %v4891, %v4892
    %v4894 = vrot.slane %v4516, 1
    %v4895 = vrot.slane %v4521, 1
    %v4896 = vsel %vm999, %v4894, %v4895
    %v4897 = vrot.slane %v4526, 1
    %v4898 = vrot.slane %v4531, 1
    %v4899 = vsel %vm999, %v4897, %v4898
    %v4900 = vrot.slane %v4536, 1
    %v4901 = vrot.slane %v4541, 1
    %v4902 = vsel %vm999, %v4900, %v4901
    %v4903 = vrot.slane %v4546, 1
    %v4904 = vrot.slane %v4551, 1
    %v4905 = vsel %vm999, %v4903, %v4904
    %v4970 = vsel %vm999, %v4811, 0.0
    %v4971 = vsel %vm999, %v4814, 0.0
    %v4972 = vsel %vm999, %v4817, 0.0
    %v4973 = vsel %vm999, %v4820, 0.0
    %v4974 = vsel %vm999, %v4823, 0.0
    %v4975 = vsel %vm999, %v4826, 0.0
    %v4976 = vsel %vm999, %v4829, 0.0
    %v4977 = vsel %vm999, %v4832, 0.0
    %v4978 = vsel %vm999, %v4835, 0.0
    %v4979 = vsel %vm999, %v4838, 0.0
    %v4980 = vsel %vm999, %v4841, 0.0
    %v4981 = vsel %vm999, %v4844, 0.0
    %v4982 = vsel %vm999, %v4847, 0.0
    %v4983 = vsel %vm999, %v4850, 0.0
    %v4984 = vsel %vm999, %v4853, 0.0
    %v4985 = vsel %vm999, %v4856, 0.0
    %v4986 = vsel %vm999, %v4859, 0.0
    %v4987 = vsel %vm999, %v4862, 0.0
    %v4988 = vsel %vm999, %v4865, 0.0
    %v4989 = vsel %vm999, %v4868, 0.0
    %v4990 = vsel %vm999, %v4871, 0.0
    %v4991 = vsel %vm999, %v4874, 0.0
    %v4992 = vsel %vm999, %v4877, 0.0
    %v4993 = vsel %vm999, %v4880, 0.0
    %v4994 = vsel %vm999, %v4883, 0.0
    %v4995 = vsel %vm999, %v4886, 0.0
    %v4996 = vsel %vm999, %v4889, 0.0
    %v4997 = vsel %vm999, %v4892, 0.0
    %v4998 = vsel %vm999, %v4895, 0.0
    %v4999 = vsel %vm999, %v4898, 0.0
    %v5000 = vsel %vm999, %v4901, 0.0
    %v5001 = vsel %vm999, %v4904, 0.0
    %v5002 = vlaneseq
    %v5003 = vshrl.u32 %v5002, 7
    %v5004 = vsub.s32 0, %v5003
    %v5005 = vrot.slane %v3891, %v5004
    %v5006 = vmul.f32 %v966, %v5005
    %v5007 = vmul.f32 %v803, %v5005
    %v5008 = vmul.f32 %v4778, %v5005
    %v5009 = vmul.f32 %v4620, %v5005
    %v5010 = vmul.f32 %v4779, %v5005
    %v5011 = vmul.f32 %v4623, %v5005
    %v5012 = vmul.f32 %v4780, %v5005
    %v5013 = vmul.f32 %v4626, %v5005
    %v5014 = vmul.f32 %v4781, %v5005
    %v5015 = vmul.f32 %v4629, %v5005
    %v5016 = vmul.f32 %v4782, %v5005
    %v5017 = vmul.f32 %v4632, %v5005
    %v5018 = vmul.f32 %v4783, %v5005
    %v5019 = vmul.f32 %v4635, %v5005
    %v5020 = vmul.f32 %v4784, %v5005
    %v5021 = vmul.f32 %v4638, %v5005
    %v5022 = vmul.f32 %v4785, %v5005
    %v5023 = vmul.f32 %v4641, %v5005
    %v5024 = vmul.f32 %v4786, %v5005
    %v5025 = vmul.f32 %v4644, %v5005
    %v5026 = vmul.f32 %v4787, %v5005
    %v5027 = vmul.f32 %v4647, %v5005
    %v5028 = vmul.f32 %v4788, %v5005
    %v5029 = vmul.f32 %v4650, %v5005
    %v5030 = vmul.f32 %v4789, %v5005
    %v5031 = vmul.f32 %v4653, %v5005
    %v5032 = vmul.f32 %v4790, %v5005
    %v5033 = vmul.f32 %v4656, %v5005
    %v5034 = vmul.f32 %v4791, %v5005
    %v5035 = vmul.f32 %v4659, %v5005
    %v5036 = vmul.f32 %v4792, %v5005
    %v5037 = vmul.f32 %v4662, %v5005
    %v5038 = vmul.f32 %v4794, %v5005
    %v5039 = vmul.f32 %v4668, %v5005
    %v5040 = vmul.f32 %v4795, %v5005
    %v5041 = vmul.f32 %v4671, %v5005
    %v5042 = vmul.f32 %v4796, %v5005
    %v5043 = vmul.f32 %v4674, %v5005
    %v5044 = vmul.f32 %v4797, %v5005
    %v5045 = vmul.f32 %v4677, %v5005
    %v5046 = vmul.f32 %v4798, %v5005
    %v5047 = vmul.f32 %v4680, %v5005
    %v5048 = vmul.f32 %v4799, %v5005
    %v5049 = vmul.f32 %v4683, %v5005
    %v5050 = vmul.f32 %v4800, %v5005
    %v5051 = vmul.f32 %v4686, %v5005
    %v5052 = vmul.f32 %v4801, %v5005
    %v5053 = vmul.f32 %v4689, %v5005
    %v5054 = vmul.f32 %v4802, %v5005
    %v5055 = vmul.f32 %v4692, %v5005
    %v5056 = vmul.f32 %v4803, %v5005
    %v5057 = vmul.f32 %v4695, %v5005
    %v5058 = vmul.f32 %v4804, %v5005
    %v5059 = vmul.f32 %v4698, %v5005
    %v5060 = vmul.f32 %v4805, %v5005
    %v5061 = vmul.f32 %v4701, %v5005
    %v5062 = vmul.f32 %v4806, %v5005
    %v5063 = vmul.f32 %v4704, %v5005
    %v5064 = vmul.f32 %v4807, %v5005
    %v5065 = vmul.f32 %v4707, %v5005
    %v5066 = vmul.f32 %v4808, %v5005
    %v5067 = vmul.f32 %v4710, %v5005
    %v5068 = vadd.f32 %v5006, 0.0
    %v5069 = vadd.f32 %v5007, 0.0
    %v5070 = vadd.f32 %v5008, 0.0
    %v5071 = vadd.f32 %v5009, 0.0
    %v5072 = vadd.f32 %v5010, 0.0
    %v5073 = vadd.f32 %v5011, 0.0
    %v5074 = vadd.f32 %v5012, 0.0
    %v5075 = vadd.f32 %v5013, 0.0
    %v5076 = vadd.f32 %v5014, 0.0
    %v5077 = vadd.f32 %v5015, 0.0
    %v5078 = vadd.f32 %v5016, 0.0
    %v5079 = vadd.f32 %v5017, 0.0
    %v5080 = vadd.f32 %v5018, 0.0
    %v5081 = vadd.f32 %v5019, 0.0
    %v5082 = vadd.f32 %v5020, 0.0
    %v5083 = vadd.f32 %v5021, 0.0
    %v5084 = vadd.f32 %v5022, 0.0
    %v5085 = vadd.f32 %v5023, 0.0
    %v5086 = vadd.f32 %v5024, 0.0
    %v5087 = vadd.f32 %v5025, 0.0
    %v5088 = vadd.f32 %v5026, 0.0
    %v5089 = vadd.f32 %v5027, 0.0
    %v5090 = vadd.f32 %v5028, 0.0
    %v5091 = vadd.f32 %v5029, 0.0
    %v5092 = vadd.f32 %v5030, 0.0
    %v5093 = vadd.f32 %v5031, 0.0
    %v5094 = vadd.f32 %v5032, 0.0
    %v5095 = vadd.f32 %v5033, 0.0
    %v5096 = vadd.f32 %v5034, 0.0
    %v5097 = vadd.f32 %v5035, 0.0
    %v5098 = vadd.f32 %v5036, 0.0
    %v5099 = vadd.f32 %v5037, 0.0
    %v5100 = vadd.f32 %v5038, 0.0
    %v5101 = vadd.f32 %v5039, 0.0
    %v5102 = vadd.f32 %v5040, 0.0
    %v5103 = vadd.f32 %v5041, 0.0
    %v5104 = vadd.f32 %v5042, 0.0
    %v5105 = vadd.f32 %v5043, 0.0
    %v5106 = vadd.f32 %v5044, 0.0
    %v5107 = vadd.f32 %v5045, 0.0
    %v5108 = vadd.f32 %v5046, 0.0
    %v5109 = vadd.f32 %v5047, 0.0
    %v5110 = vadd.f32 %v5048, 0.0
    %v5111 = vadd.f32 %v5049, 0.0
    %v5112 = vadd.f32 %v5050, 0.0
    %v5113 = vadd.f32 %v5051, 0.0
    %v5114 = vadd.f32 %v5052, 0.0
    %v5115 = vadd.f32 %v5053, 0.0
    %v5116 = vadd.f32 %v5054, 0.0
    %v5117 = vadd.f32 %v5055, 0.0
    %v5118 = vadd.f32 %v5056, 0.0
    %v5119 = vadd.f32 %v5057, 0.0
    %v5120 = vadd.f32 %v5058, 0.0
    %v5121 = vadd.f32 %v5059, 0.0
    %v5122 = vadd.f32 %v5060, 0.0
    %v5123 = vadd.f32 %v5061, 0.0
    %v5124 = vadd.f32 %v5062, 0.0
    %v5125 = vadd.f32 %v5063, 0.0
    %v5126 = vadd.f32 %v5064, 0.0
    %v5127 = vadd.f32 %v5065, 0.0
    %v5128 = vadd.f32 %v5066, 0.0
    %v5129 = vadd.f32 %v5067, 0.0
    %v5130 = vlaneseq
    %v5131 = vshrl.u32 %v5130, 7
    %v5132 = vsub.s32 1, %v5131
    %v5133 = vrot.slane %v3891, %v5132
    %v5134 = vmul.f32 %v5133, 0.0
    %v5135 = vmul.f32 %v4236, %v5133
    %v5136 = vmul.f32 %v4241, %v5133
    %v5137 = vmul.f32 %v4246, %v5133
    %v5138 = vmul.f32 %v4251, %v5133
    %v5139 = vmul.f32 %v4256, %v5133
    %v5140 = vmul.f32 %v4261, %v5133
    %v5141 = vmul.f32 %v4266, %v5133
    %v5142 = vmul.f32 %v4271, %v5133
    %v5143 = vmul.f32 %v4276, %v5133
    %v5144 = vmul.f32 %v4281, %v5133
    %v5145 = vmul.f32 %v4286, %v5133
    %v5146 = vmul.f32 %v4291, %v5133
    %v5147 = vmul.f32 %v4296, %v5133
    %v5148 = vmul.f32 %v4301, %v5133
    %v5149 = vmul.f32 %v4306, %v5133
    %v5150 = vmul.f32 %v4311, %v5133
    %v5151 = vmul.f32 %v4316, %v5133
    %v5152 = vmul.f32 %v4321, %v5133
    %v5153 = vmul.f32 %v4326, %v5133
    %v5154 = vmul.f32 %v4331, %v5133
    %v5155 = vmul.f32 %v4336, %v5133
    %v5156 = vmul.f32 %v4341, %v5133
    %v5157 = vmul.f32 %v4346, %v5133
    %v5158 = vmul.f32 %v4351, %v5133
    %v5159 = vmul.f32 %v4356, %v5133
    %v5160 = vmul.f32 %v4361, %v5133
    %v5161 = vmul.f32 %v4366, %v5133
    %v5162 = vmul.f32 %v4371, %v5133
    %v5163 = vmul.f32 %v4376, %v5133
    %v5164 = vmul.f32 %v4381, %v5133
    %v5165 = vmul.f32 %v4396, %v5133
    %v5166 = vmul.f32 %v4401, %v5133
    %v5167 = vmul.f32 %v4406, %v5133
    %v5168 = vmul.f32 %v4411, %v5133
    %v5169 = vmul.f32 %v4416, %v5133
    %v5170 = vmul.f32 %v4421, %v5133
    %v5171 = vmul.f32 %v4426, %v5133
    %v5172 = vmul.f32 %v4431, %v5133
    %v5173 = vmul.f32 %v4436, %v5133
    %v5174 = vmul.f32 %v4441, %v5133
    %v5175 = vmul.f32 %v4446, %v5133
    %v5176 = vmul.f32 %v4451, %v5133
    %v5177 = vmul.f32 %v4456, %v5133
    %v5178 = vmul.f32 %v4461, %v5133
    %v5179 = vmul.f32 %v4466, %v5133
    %v5180 = vmul.f32 %v4471, %v5133
    %v5181 = vmul.f32 %v4476, %v5133
    %v5182 = vmul.f32 %v4481, %v5133
    %v5183 = vmul.f32 %v4486, %v5133
    %v5184 = vmul.f32 %v4491, %v5133
    %v5185 = vmul.f32 %v4496, %v5133
    %v5186 = vmul.f32 %v4501, %v5133
    %v5187 = vmul.f32 %v4506, %v5133
    %v5188 = vmul.f32 %v4511, %v5133
    %v5189 = vmul.f32 %v4516, %v5133
    %v5190 = vmul.f32 %v4521, %v5133
    %v5191 = vmul.f32 %v4526, %v5133
    %v5192 = vmul.f32 %v4531, %v5133
    %v5193 = vmul.f32 %v4536, %v5133
    %v5194 = vmul.f32 %v4541, %v5133
    %v5195 = vadd.f32 %v5068, %v5134
    %v5196 = vadd.f32 %v5069, %v5134
    %v5197 = vadd.f32 %v5070, %v5135
    %v5198 = vadd.f32 %v5071, %v5136
    %v5199 = vadd.f32 %v5072, %v5137
    %v5200 = vadd.f32 %v5073, %v5138
    %v5201 = vadd.f32 %v5074, %v5139
    %v5202 = vadd.f32 %v5075, %v5140
    %v5203 = vadd.f32 %v5076, %v5141
    %v5204 = vadd.f32 %v5077, %v5142
    %v5205 = vadd.f32 %v5078, %v5143
    %v5206 = vadd.f32 %v5079, %v5144
    %v5207 = vadd.f32 %v5080, %v5145
    %v5208 = vadd.f32 %v5081, %v5146
    %v5209 = vadd.f32 %v5082, %v5147
    %v5210 = vadd.f32 %v5083, %v5148
    %v5211 = vadd.f32 %v5084, %v5149
    %v5212 = vadd.f32 %v5085, %v5150
    %v5213 = vadd.f32 %v5086, %v5151
    %v5214 = vadd.f32 %v5087, %v5152
    %v5215 = vadd.f32 %v5088, %v5153
    %v5216 = vadd.f32 %v5089, %v5154
    %v5217 = vadd.f32 %v5090, %v5155
    %v5218 = vadd.f32 %v5091, %v5156
    %v5219 = vadd.f32 %v5092, %v5157
    %v5220 = vadd.f32 %v5093, %v5158
    %v5221 = vadd.f32 %v5094, %v5159
    %v5222 = vadd.f32 %v5095, %v5160
    %v5223 = vadd.f32 %v5096, %v5161
    %v5224 = vadd.f32 %v5097, %v5162
    %v5225 = vadd.f32 %v5098, %v5163
    %v5226 = vadd.f32 %v5099, %v5164
    %v5227 = vadd.f32 %v5100, %v5165
    %v5228 = vadd.f32 %v5101, %v5166
    %v5229 = vadd.f32 %v5102, %v5167
    %v5230 = vadd.f32 %v5103, %v5168
    %v5231 = vadd.f32 %v5104, %v5169
    %v5232 = vadd.f32 %v5105, %v5170
    %v5233 = vadd.f32 %v5106, %v5171
    %v5234 = vadd.f32 %v5107, %v5172
    %v5235 = vadd.f32 %v5108, %v5173
    %v5236 = vadd.f32 %v5109, %v5174
    %v5237 = vadd.f32 %v5110, %v5175
    %v5238 = vadd.f32 %v5111, %v5176
    %v5239 = vadd.f32 %v5112, %v5177
    %v5240 = vadd.f32 %v5113, %v5178
    %v5241 = vadd.f32 %v5114, %v5179
    %v5242 = vadd.f32 %v5115, %v5180
    %v5243 = vadd.f32 %v5116, %v5181
    %v5244 = vadd.f32 %v5117, %v5182
    %v5245 = vadd.f32 %v5118, %v5183
    %v5246 = vadd.f32 %v5119, %v5184
    %v5247 = vadd.f32 %v5120, %v5185
    %v5248 = vadd.f32 %v5121, %v5186
    %v5249 = vadd.f32 %v5122, %v5187
    %v5250 = vadd.f32 %v5123, %v5188
    %v5251 = vadd.f32 %v5124, %v5189
    %v5252 = vadd.f32 %v5125, %v5190
    %v5253 = vadd.f32 %v5126, %v5191
    %v5254 = vadd.f32 %v5127, %v5192
    %v5255 = vadd.f32 %v5128, %v5193
    %v5256 = vadd.f32 %v5129, %v5194
    %v5257 = vlaneseq
    %v5258 = vshrl.u32 %v5257, 7
    %v5259 = vsub.s32 2, %v5258
    %v5260 = vrot.slane %v3891, %v5259
    %v5261 = vmul.f32 %v1001, %v5260
    %v5262 = vmul.f32 %v1164, %v5260
    %v5263 = vmul.f32 %v4812, %v5260
    %v5264 = vmul.f32 %v4970, %v5260
    %v5265 = vmul.f32 %v4815, %v5260
    %v5266 = vmul.f32 %v4971, %v5260
    %v5267 = vmul.f32 %v4818, %v5260
    %v5268 = vmul.f32 %v4972, %v5260
    %v5269 = vmul.f32 %v4821, %v5260
    %v5270 = vmul.f32 %v4973, %v5260
    %v5271 = vmul.f32 %v4824, %v5260
    %v5272 = vmul.f32 %v4974, %v5260
    %v5273 = vmul.f32 %v4827, %v5260
    %v5274 = vmul.f32 %v4975, %v5260
    %v5275 = vmul.f32 %v4830, %v5260
    %v5276 = vmul.f32 %v4976, %v5260
    %v5277 = vmul.f32 %v4833, %v5260
    %v5278 = vmul.f32 %v4977, %v5260
    %v5279 = vmul.f32 %v4836, %v5260
    %v5280 = vmul.f32 %v4978, %v5260
    %v5281 = vmul.f32 %v4839, %v5260
    %v5282 = vmul.f32 %v4979, %v5260
    %v5283 = vmul.f32 %v4842, %v5260
    %v5284 = vmul.f32 %v4980, %v5260
    %v5285 = vmul.f32 %v4845, %v5260
    %v5286 = vmul.f32 %v4981, %v5260
    %v5287 = vmul.f32 %v4848, %v5260
    %v5288 = vmul.f32 %v4982, %v5260
    %v5289 = vmul.f32 %v4851, %v5260
    %v5290 = vmul.f32 %v4983, %v5260
    %v5291 = vmul.f32 %v4854, %v5260
    %v5292 = vmul.f32 %v4984, %v5260
    %v5293 = vmul.f32 %v4860, %v5260
    %v5294 = vmul.f32 %v4986, %v5260
    %v5295 = vmul.f32 %v4863, %v5260
    %v5296 = vmul.f32 %v4987, %v5260
    %v5297 = vmul.f32 %v4866, %v5260
    %v5298 = vmul.f32 %v4988, %v5260
    %v5299 = vmul.f32 %v4869, %v5260
    %v5300 = vmul.f32 %v4989, %v5260
    %v5301 = vmul.f32 %v4872, %v5260
    %v5302 = vmul.f32 %v4990, %v5260
    %v5303 = vmul.f32 %v4875, %v5260
    %v5304 = vmul.f32 %v4991, %v5260
    %v5305 = vmul.f32 %v4878, %v5260
    %v5306 = vmul.f32 %v4992, %v5260
    %v5307 = vmul.f32 %v4881, %v5260
    %v5308 = vmul.f32 %v4993, %v5260
    %v5309 = vmul.f32 %v4884, %v5260
    %v5310 = vmul.f32 %v4994, %v5260
    %v5311 = vmul.f32 %v4887, %v5260
    %v5312 = vmul.f32 %v4995, %v5260
    %v5313 = vmul.f32 %v4890, %v5260
    %v5314 = vmul.f32 %v4996, %v5260
    %v5315 = vmul.f32 %v4893, %v5260
    %v5316 = vmul.f32 %v4997, %v5260
    %v5317 = vmul.f32 %v4896, %v5260
    %v5318 = vmul.f32 %v4998, %v5260
    %v5319 = vmul.f32 %v4899, %v5260
    %v5320 = vmul.f32 %v4999, %v5260
    %v5321 = vmul.f32 %v4902, %v5260
    %v5322 = vmul.f32 %v5000, %v5260
    %v5323 = vadd.f32 %v5195, %v5261
    %v5324 = vadd.f32 %v5196, %v5262
    %v5325 = vadd.f32 %v5197, %v5263
    %v5326 = vadd.f32 %v5198, %v5264
    %v5327 = vadd.f32 %v5199, %v5265
    %v5328 = vadd.f32 %v5200, %v5266
    %v5329 = vadd.f32 %v5201, %v5267
    %v5330 = vadd.f32 %v5202, %v5268
    %v5331 = vadd.f32 %v5203, %v5269
    %v5332 = vadd.f32 %v5204, %v5270
    %v5333 = vadd.f32 %v5205, %v5271
    %v5334 = vadd.f32 %v5206, %v5272
    %v5335 = vadd.f32 %v5207, %v5273
    %v5336 = vadd.f32 %v5208, %v5274
    %v5337 = vadd.f32 %v5209, %v5275
    %v5338 = vadd.f32 %v5210, %v5276
    %v5339 = vadd.f32 %v5211, %v5277
    %v5340 = vadd.f32 %v5212, %v5278
    %v5341 = vadd.f32 %v5213, %v5279
    %v5342 = vadd.f32 %v5214, %v5280
    %v5343 = vadd.f32 %v5215, %v5281
    %v5344 = vadd.f32 %v5216, %v5282
    %v5345 = vadd.f32 %v5217, %v5283
    %v5346 = vadd.f32 %v5218, %v5284
    %v5347 = vadd.f32 %v5219, %v5285
    %v5348 = vadd.f32 %v5220, %v5286
    %v5349 = vadd.f32 %v5221, %v5287
    %v5350 = vadd.f32 %v5222, %v5288
    %v5351 = vadd.f32 %v5223, %v5289
    %v5352 = vadd.f32 %v5224, %v5290
    %v5353 = vadd.f32 %v5225, %v5291
    %v5354 = vadd.f32 %v5226, %v5292
    %v5355 = vadd.f32 %v5227, %v5293
    %v5356 = vadd.f32 %v5228, %v5294
    %v5357 = vadd.f32 %v5229, %v5295
    %v5358 = vadd.f32 %v5230, %v5296
    %v5359 = vadd.f32 %v5231, %v5297
    %v5360 = vadd.f32 %v5232, %v5298
    %v5361 = vadd.f32 %v5233, %v5299
    %v5362 = vadd.f32 %v5234, %v5300
    %v5363 = vadd.f32 %v5235, %v5301
    %v5364 = vadd.f32 %v5236, %v5302
    %v5365 = vadd.f32 %v5237, %v5303
    %v5366 = vadd.f32 %v5238, %v5304
    %v5367 = vadd.f32 %v5239, %v5305
    %v5368 = vadd.f32 %v5240, %v5306
    %v5369 = vadd.f32 %v5241, %v5307
    %v5370 = vadd.f32 %v5242, %v5308
    %v5371 = vadd.f32 %v5243, %v5309
    %v5372 = vadd.f32 %v5244, %v5310
    %v5373 = vadd.f32 %v5245, %v5311
    %v5374 = vadd.f32 %v5246, %v5312
    %v5375 = vadd.f32 %v5247, %v5313
    %v5376 = vadd.f32 %v5248, %v5314
    %v5377 = vadd.f32 %v5249, %v5315
    %v5378 = vadd.f32 %v5250, %v5316
    %v5379 = vadd.f32 %v5251, %v5317
    %v5380 = vadd.f32 %v5252, %v5318
    %v5381 = vadd.f32 %v5253, %v5319
    %v5382 = vadd.f32 %v5254, %v5320
    %v5383 = vadd.f32 %v5255, %v5321
    %v5384 = vadd.f32 %v5256, %v5322
    %v5385 = vlaneseq
    %v5386 = vshrl.u32 %v5385, 7
    %v5387 = vsub.s32 0, %v5386
    %v5388 = vrot.slane %v3892, %v5387
    %v5389 = vmul.f32 %v4778, %v5388
    %v5390 = vmul.f32 %v4620, %v5388
    %v5391 = vmul.f32 %v4779, %v5388
    %v5392 = vmul.f32 %v4623, %v5388
    %v5393 = vmul.f32 %v4780, %v5388
    %v5394 = vmul.f32 %v4626, %v5388
    %v5395 = vmul.f32 %v4781, %v5388
    %v5396 = vmul.f32 %v4629, %v5388
    %v5397 = vmul.f32 %v4782, %v5388
    %v5398 = vmul.f32 %v4632, %v5388
    %v5399 = vmul.f32 %v4783, %v5388
    %v5400 = vmul.f32 %v4635, %v5388
    %v5401 = vmul.f32 %v4784, %v5388
    %v5402 = vmul.f32 %v4638, %v5388
    %v5403 = vmul.f32 %v4785, %v5388
    %v5404 = vmul.f32 %v4641, %v5388
    %v5405 = vmul.f32 %v4786, %v5388
    %v5406 = vmul.f32 %v4644, %v5388
    %v5407 = vmul.f32 %v4787, %v5388
    %v5408 = vmul.f32 %v4647, %v5388
    %v5409 = vmul.f32 %v4788, %v5388
    %v5410 = vmul.f32 %v4650, %v5388
    %v5411 = vmul.f32 %v4789, %v5388
    %v5412 = vmul.f32 %v4653, %v5388
    %v5413 = vmul.f32 %v4790, %v5388
    %v5414 = vmul.f32 %v4656, %v5388
    %v5415 = vmul.f32 %v4791, %v5388
    %v5416 = vmul.f32 %v4659, %v5388
    %v5417 = vmul.f32 %v4792, %v5388
    %v5418 = vmul.f32 %v4662, %v5388
    %v5419 = vmul.f32 %v4793, %v5388
    %v5420 = vmul.f32 %v4665, %v5388
    %v5421 = vmul.f32 %v4794, %v5388
    %v5422 = vmul.f32 %v4668, %v5388
    %v5423 = vmul.f32 %v4795, %v5388
    %v5424 = vmul.f32 %v4671, %v5388
    %v5425 = vmul.f32 %v4796, %v5388
    %v5426 = vmul.f32 %v4674, %v5388
    %v5427 = vmul.f32 %v4797, %v5388
    %v5428 = vmul.f32 %v4677, %v5388
    %v5429 = vmul.f32 %v4798, %v5388
    %v5430 = vmul.f32 %v4680, %v5388
    %v5431 = vmul.f32 %v4799, %v5388
    %v5432 = vmul.f32 %v4683, %v5388
    %v5433 = vmul.f32 %v4800, %v5388
    %v5434 = vmul.f32 %v4686, %v5388
    %v5435 = vmul.f32 %v4801, %v5388
    %v5436 = vmul.f32 %v4689, %v5388
    %v5437 = vmul.f32 %v4802, %v5388
    %v5438 = vmul.f32 %v4692, %v5388
    %v5439 = vmul.f32 %v4803, %v5388
    %v5440 = vmul.f32 %v4695, %v5388
    %v5441 = vmul.f32 %v4804, %v5388
    %v5442 = vmul.f32 %v4698, %v5388
    %v5443 = vmul.f32 %v4805, %v5388
    %v5444 = vmul.f32 %v4701, %v5388
    %v5445 = vmul.f32 %v4806, %v5388
    %v5446 = vmul.f32 %v4704, %v5388
    %v5447 = vmul.f32 %v4807, %v5388
    %v5448 = vmul.f32 %v4707, %v5388
    %v5449 = vmul.f32 %v4808, %v5388
    %v5450 = vmul.f32 %v4710, %v5388
    %v5451 = vmul.f32 %v4809, %v5388
    %v5452 = vmul.f32 %v4713, %v5388
    %v5453 = vadd.f32 %v5323, %v5389
    %v5454 = vadd.f32 %v5324, %v5390
    %v5455 = vadd.f32 %v5325, %v5391
    %v5456 = vadd.f32 %v5326, %v5392
    %v5457 = vadd.f32 %v5327, %v5393
    %v5458 = vadd.f32 %v5328, %v5394
    %v5459 = vadd.f32 %v5329, %v5395
    %v5460 = vadd.f32 %v5330, %v5396
    %v5461 = vadd.f32 %v5331, %v5397
    %v5462 = vadd.f32 %v5332, %v5398
    %v5463 = vadd.f32 %v5333, %v5399
    %v5464 = vadd.f32 %v5334, %v5400
    %v5465 = vadd.f32 %v5335, %v5401
    %v5466 = vadd.f32 %v5336, %v5402
    %v5467 = vadd.f32 %v5337, %v5403
    %v5468 = vadd.f32 %v5338, %v5404
    %v5469 = vadd.f32 %v5339, %v5405
    %v5470 = vadd.f32 %v5340, %v5406
    %v5471 = vadd.f32 %v5341, %v5407
    %v5472 = vadd.f32 %v5342, %v5408
    %v5473 = vadd.f32 %v5343, %v5409
    %v5474 = vadd.f32 %v5344, %v5410
    %v5475 = vadd.f32 %v5345, %v5411
    %v5476 = vadd.f32 %v5346, %v5412
    %v5477 = vadd.f32 %v5347, %v5413
    %v5478 = vadd.f32 %v5348, %v5414
    %v5479 = vadd.f32 %v5349, %v5415
    %v5480 = vadd.f32 %v5350, %v5416
    %v5481 = vadd.f32 %v5351, %v5417
    %v5482 = vadd.f32 %v5352, %v5418
    %v5483 = vadd.f32 %v5353, %v5419
    %v5484 = vadd.f32 %v5354, %v5420
    %v5485 = vadd.f32 %v5323, %v5421
    %v5486 = vadd.f32 %v5324, %v5422
    %v5487 = vadd.f32 %v5355, %v5423
    %v5488 = vadd.f32 %v5356, %v5424
    %v5489 = vadd.f32 %v5357, %v5425
    %v5490 = vadd.f32 %v5358, %v5426
    %v5491 = vadd.f32 %v5359, %v5427
    %v5492 = vadd.f32 %v5360, %v5428
    %v5493 = vadd.f32 %v5361, %v5429
    %v5494 = vadd.f32 %v5362, %v5430
    %v5495 = vadd.f32 %v5363, %v5431
    %v5496 = vadd.f32 %v5364, %v5432
    %v5497 = vadd.f32 %v5365, %v5433
    %v5498 = vadd.f32 %v5366, %v5434
    %v5499 = vadd.f32 %v5367, %v5435
    %v5500 = vadd.f32 %v5368, %v5436
    %v5501 = vadd.f32 %v5369, %v5437
    %v5502 = vadd.f32 %v5370, %v5438
    %v5503 = vadd.f32 %v5371, %v5439
    %v5504 = vadd.f32 %v5372, %v5440
    %v5505 = vadd.f32 %v5373, %v5441
    %v5506 = vadd.f32 %v5374, %v5442
    %v5507 = vadd.f32 %v5375, %v5443
    %v5508 = vadd.f32 %v5376, %v5444
    %v5509 = vadd.f32 %v5377, %v5445
    %v5510 = vadd.f32 %v5378, %v5446
    %v5511 = vadd.f32 %v5379, %v5447
    %v5512 = vadd.f32 %v5380, %v5448
    %v5513 = vadd.f32 %v5381, %v5449
    %v5514 = vadd.f32 %v5382, %v5450
    %v5515 = vadd.f32 %v5383, %v5451
    %v5516 = vadd.f32 %v5384, %v5452
    %v5517 = vlaneseq
    %v5518 = vshrl.u32 %v5517, 7
    %v5519 = vsub.s32 1, %v5518
    %v5520 = vrot.slane %v3892, %v5519
    %v5521 = vmul.f32 %v4236, %v5520
    %v5522 = vmul.f32 %v4241, %v5520
    %v5523 = vmul.f32 %v4246, %v5520
    %v5524 = vmul.f32 %v4251, %v5520
    %v5525 = vmul.f32 %v4256, %v5520
    %v5526 = vmul.f32 %v4261, %v5520
    %v5527 = vmul.f32 %v4266, %v5520
    %v5528 = vmul.f32 %v4271, %v5520
    %v5529 = vmul.f32 %v4276, %v5520
    %v5530 = vmul.f32 %v4281, %v5520
    %v5531 = vmul.f32 %v4286, %v5520
    %v5532 = vmul.f32 %v4291, %v5520
    %v5533 = vmul.f32 %v4296, %v5520
    %v5534 = vmul.f32 %v4301, %v5520
    %v5535 = vmul.f32 %v4306, %v5520
    %v5536 = vmul.f32 %v4311, %v5520
    %v5537 = vmul.f32 %v4316, %v5520
    %v5538 = vmul.f32 %v4321, %v5520
    %v5539 = vmul.f32 %v4326, %v5520
    %v5540 = vmul.f32 %v4331, %v5520
    %v5541 = vmul.f32 %v4336, %v5520
    %v5542 = vmul.f32 %v4341, %v5520
    %v5543 = vmul.f32 %v4346, %v5520
    %v5544 = vmul.f32 %v4351, %v5520
    %v5545 = vmul.f32 %v4356, %v5520
    %v5546 = vmul.f32 %v4361, %v5520
    %v5547 = vmul.f32 %v4366, %v5520
    %v5548 = vmul.f32 %v4371, %v5520
    %v5549 = vmul.f32 %v4376, %v5520
    %v5550 = vmul.f32 %v4381, %v5520
    %v5551 = vmul.f32 %v4386, %v5520
    %v5552 = vmul.f32 %v4391, %v5520
    %v5553 = vmul.f32 %v4396, %v5520
    %v5554 = vmul.f32 %v4401, %v5520
    %v5555 = vmul.f32 %v4406, %v5520
    %v5556 = vmul.f32 %v4411, %v5520
    %v5557 = vmul.f32 %v4416, %v5520
    %v5558 = vmul.f32 %v4421, %v5520
    %v5559 = vmul.f32 %v4426, %v5520
    %v5560 = vmul.f32 %v4431, %v5520
    %v5561 = vmul.f32 %v4436, %v5520
    %v5562 = vmul.f32 %v4441, %v5520
    %v5563 = vmul.f32 %v4446, %v5520
    %v5564 = vmul.f32 %v4451, %v5520
    %v5565 = vmul.f32 %v4456, %v5520
    %v5566 = vmul.f32 %v4461, %v5520
    %v5567 = vmul.f32 %v4466, %v5520
    %v5568 = vmul.f32 %v4471, %v5520
    %v5569 = vmul.f32 %v4476, %v5520
    %v5570 = vmul.f32 %v4481, %v5520
    %v5571 = vmul.f32 %v4486, %v5520
    %v5572 = vmul.f32 %v4491, %v5520
    %v5573 = vmul.f32 %v4496, %v5520
    %v5574 = vmul.f32 %v4501, %v5520
    %v5575 = vmul.f32 %v4506, %v5520
    %v5576 = vmul.f32 %v4511, %v5520
    %v5577 = vmul.f32 %v4516, %v5520
    %v5578 = vmul.f32 %v4521, %v5520
    %v5579 = vmul.f32 %v4526, %v5520
    %v5580 = vmul.f32 %v4531, %v5520
    %v5581 = vmul.f32 %v4536, %v5520
    %v5582 = vmul.f32 %v4541, %v5520
    %v5583 = vmul.f32 %v4546, %v5520
    %v5584 = vmul.f32 %v4551, %v5520
    %v5585 = vadd.f32 %v5453, %v5521
    %v5586 = vadd.f32 %v5454, %v5522
    %v5587 = vadd.f32 %v5455, %v5523
    %v5588 = vadd.f32 %v5456, %v5524
    %v5589 = vadd.f32 %v5457, %v5525
    %v5590 = vadd.f32 %v5458, %v5526
    %v5591 = vadd.f32 %v5459, %v5527
    %v5592 = vadd.f32 %v5460, %v5528
    %v5593 = vadd.f32 %v5461, %v5529
    %v5594 = vadd.f32 %v5462, %v5530
    %v5595 = vadd.f32 %v5463, %v5531
    %v5596 = vadd.f32 %v5464, %v5532
    %v5597 = vadd.f32 %v5465, %v5533
    %v5598 = vadd.f32 %v5466, %v5534
    %v5599 = vadd.f32 %v5467, %v5535
    %v5600 = vadd.f32 %v5468, %v5536
    %v5601 = vadd.f32 %v5469, %v5537
    %v5602 = vadd.f32 %v5470, %v5538
    %v5603 = vadd.f32 %v5471, %v5539
    %v5604 = vadd.f32 %v5472, %v5540
    %v5605 = vadd.f32 %v5473, %v5541
    %v5606 = vadd.f32 %v5474, %v5542
    %v5607 = vadd.f32 %v5475, %v5543
    %v5608 = vadd.f32 %v5476, %v5544
    %v5609 = vadd.f32 %v5477, %v5545
    %v5610 = vadd.f32 %v5478, %v5546
    %v5611 = vadd.f32 %v5479, %v5547
    %v5612 = vadd.f32 %v5480, %v5548
    %v5613 = vadd.f32 %v5481, %v5549
    %v5614 = vadd.f32 %v5482, %v5550
    %v5615 = vadd.f32 %v5483, %v5551
    %v5616 = vadd.f32 %v5484, %v5552
    %v5617 = vadd.f32 %v5485, %v5553
    %v5618 = vadd.f32 %v5486, %v5554
    %v5619 = vadd.f32 %v5487, %v5555
    %v5620 = vadd.f32 %v5488, %v5556
    %v5621 = vadd.f32 %v5489, %v5557
    %v5622 = vadd.f32 %v5490, %v5558
    %v5623 = vadd.f32 %v5491, %v5559
    %v5624 = vadd.f32 %v5492, %v5560
    %v5625 = vadd.f32 %v5493, %v5561
    %v5626 = vadd.f32 %v5494, %v5562
    %v5627 = vadd.f32 %v5495, %v5563
    %v5628 = vadd.f32 %v5496, %v5564
    %v5629 = vadd.f32 %v5497, %v5565
    %v5630 = vadd.f32 %v5498, %v5566
    %v5631 = vadd.f32 %v5499, %v5567
    %v5632 = vadd.f32 %v5500, %v5568
    %v5633 = vadd.f32 %v5501, %v5569
    %v5634 = vadd.f32 %v5502, %v5570
    %v5635 = vadd.f32 %v5503, %v5571
    %v5636 = vadd.f32 %v5504, %v5572
    %v5637 = vadd.f32 %v5505, %v5573
    %v5638 = vadd.f32 %v5506, %v5574
    %v5639 = vadd.f32 %v5507, %v5575
    %v5640 = vadd.f32 %v5508, %v5576
    %v5641 = vadd.f32 %v5509, %v5577
    %v5642 = vadd.f32 %v5510, %v5578
    %v5643 = vadd.f32 %v5511, %v5579
    %v5644 = vadd.f32 %v5512, %v5580
    %v5645 = vadd.f32 %v5513, %v5581
    %v5646 = vadd.f32 %v5514, %v5582
    %v5647 = vadd.f32 %v5515, %v5583
    %v5648 = vadd.f32 %v5516, %v5584
    %v5649 = vlaneseq
    %v5650 = vshrl.u32 %v5649, 7
    %v5651 = vsub.s32 2, %v5650
    %v5652 = vrot.slane %v3892, %v5651
    %v5653 = vmul.f32 %v4812, %v5652
    %v5654 = vmul.f32 %v4970, %v5652
    %v5655 = vmul.f32 %v4815, %v5652
    %v5656 = vmul.f32 %v4971, %v5652
    %v5657 = vmul.f32 %v4818, %v5652
    %v5658 = vmul.f32 %v4972, %v5652
    %v5659 = vmul.f32 %v4821, %v5652
    %v5660 = vmul.f32 %v4973, %v5652
    %v5661 = vmul.f32 %v4824, %v5652
    %v5662 = vmul.f32 %v4974, %v5652
    %v5663 = vmul.f32 %v4827, %v5652
    %v5664 = vmul.f32 %v4975, %v5652
    %v5665 = vmul.f32 %v4830, %v5652
    %v5666 = vmul.f32 %v4976, %v5652
    %v5667 = vmul.f32 %v4833, %v5652
    %v5668 = vmul.f32 %v4977, %v5652
    %v5669 = vmul.f32 %v4836, %v5652
    %v5670 = vmul.f32 %v4978, %v5652
    %v5671 = vmul.f32 %v4839, %v5652
    %v5672 = vmul.f32 %v4979, %v5652
    %v5673 = vmul.f32 %v4842, %v5652
    %v5674 = vmul.f32 %v4980, %v5652
    %v5675 = vmul.f32 %v4845, %v5652
    %v5676 = vmul.f32 %v4981, %v5652
    %v5677 = vmul.f32 %v4848, %v5652
    %v5678 = vmul.f32 %v4982, %v5652
    %v5679 = vmul.f32 %v4851, %v5652
    %v5680 = vmul.f32 %v4983, %v5652
    %v5681 = vmul.f32 %v4854, %v5652
    %v5682 = vmul.f32 %v4984, %v5652
    %v5683 = vmul.f32 %v4857, %v5652
    %v5684 = vmul.f32 %v4985, %v5652
    %v5685 = vmul.f32 %v4860, %v5652
    %v5686 = vmul.f32 %v4986, %v5652
    %v5687 = vmul.f32 %v4863, %v5652
    %v5688 = vmul.f32 %v4987, %v5652
    %v5689 = vmul.f32 %v4866, %v5652
    %v5690 = vmul.f32 %v4988, %v5652
    %v5691 = vmul.f32 %v4869, %v5652
    %v5692 = vmul.f32 %v4989, %v5652
    %v5693 = vmul.f32 %v4872, %v5652
    %v5694 = vmul.f32 %v4990, %v5652
    %v5695 = vmul.f32 %v4875, %v5652
    %v5696 = vmul.f32 %v4991, %v5652
    %v5697 = vmul.f32 %v4878, %v5652
    %v5698 = vmul.f32 %v4992, %v5652
    %v5699 = vmul.f32 %v4881, %v5652
    %v5700 = vmul.f32 %v4993, %v5652
    %v5701 = vmul.f32 %v4884, %v5652
    %v5702 = vmul.f32 %v4994, %v5652
    %v5703 = vmul.f32 %v4887, %v5652
    %v5704 = vmul.f32 %v4995, %v5652
    %v5705 = vmul.f32 %v4890, %v5652
    %v5706 = vmul.f32 %v4996, %v5652
    %v5707 = vmul.f32 %v4893, %v5652
    %v5708 = vmul.f32 %v4997, %v5652
    %v5709 = vmul.f32 %v4896, %v5652
    %v5710 = vmul.f32 %v4998, %v5652
    %v5711 = vmul.f32 %v4899, %v5652
    %v5712 = vmul.f32 %v4999, %v5652
    %v5713 = vmul.f32 %v4902, %v5652
    %v5714 = vmul.f32 %v5000, %v5652
    %v5715 = vmul.f32 %v4905, %v5652
    %v5716 = vmul.f32 %v5001, %v5652
    %v5717 = vadd.f32 %v5585, %v5653
    %v5718 = vadd.f32 %v5586, %v5654
    %v5719 = vadd.f32 %v5587, %v5655
    %v5720 = vadd.f32 %v5588, %v5656
    %v5721 = vadd.f32 %v5589, %v5657
    %v5722 = vadd.f32 %v5590, %v5658
    %v5723 = vadd.f32 %v5591, %v5659
    %v5724 = vadd.f32 %v5592, %v5660
    %v5725 = vadd.f32 %v5593, %v5661
    %v5726 = vadd.f32 %v5594, %v5662
    %v5727 = vadd.f32 %v5595, %v5663
    %v5728 = vadd.f32 %v5596, %v5664
    %v5729 = vadd.f32 %v5597, %v5665
    %v5730 = vadd.f32 %v5598, %v5666
    %v5731 = vadd.f32 %v5599, %v5667
    %v5732 = vadd.f32 %v5600, %v5668
    %v5733 = vadd.f32 %v5601, %v5669
    %v5734 = vadd.f32 %v5602, %v5670
    %v5735 = vadd.f32 %v5603, %v5671
    %v5736 = vadd.f32 %v5604, %v5672
    %v5737 = vadd.f32 %v5605, %v5673
    %v5738 = vadd.f32 %v5606, %v5674
    %v5739 = vadd.f32 %v5607, %v5675
    %v5740 = vadd.f32 %v5608, %v5676
    %v5741 = vadd.f32 %v5609, %v5677
    %v5742 = vadd.f32 %v5610, %v5678
    %v5743 = vadd.f32 %v5611, %v5679
    %v5744 = vadd.f32 %v5612, %v5680
    %v5745 = vadd.f32 %v5613, %v5681
    %v5746 = vadd.f32 %v5614, %v5682
    %v5747 = vadd.f32 %v5615, %v5683
    %v5748 = vadd.f32 %v5616, %v5684
    %v5749 = vadd.f32 %v5617, %v5685
    %v5750 = vadd.f32 %v5618, %v5686
    %v5751 = vadd.f32 %v5619, %v5687
    %v5752 = vadd.f32 %v5620, %v5688
    %v5753 = vadd.f32 %v5621, %v5689
    %v5754 = vadd.f32 %v5622, %v5690
    %v5755 = vadd.f32 %v5623, %v5691
    %v5756 = vadd.f32 %v5624, %v5692
    %v5757 = vadd.f32 %v5625, %v5693
    %v5758 = vadd.f32 %v5626, %v5694
    %v5759 = vadd.f32 %v5627, %v5695
    %v5760 = vadd.f32 %v5628, %v5696
    %v5761 = vadd.f32 %v5629, %v5697
    %v5762 = vadd.f32 %v5630, %v5698
    %v5763 = vadd.f32 %v5631, %v5699
    %v5764 = vadd.f32 %v5632, %v5700
    %v5765 = vadd.f32 %v5633, %v5701
    %v5766 = vadd.f32 %v5634, %v5702
    %v5767 = vadd.f32 %v5635, %v5703
    %v5768 = vadd.f32 %v5636, %v5704
    %v5769 = vadd.f32 %v5637, %v5705
    %v5770 = vadd.f32 %v5638, %v5706
    %v5771 = vadd.f32 %v5639, %v5707
    %v5772 = vadd.f32 %v5640, %v5708
    %v5773 = vadd.f32 %v5641, %v5709
    %v5774 = vadd.f32 %v5642, %v5710
    %v5775 = vadd.f32 %v5643, %v5711
    %v5776 = vadd.f32 %v5644, %v5712
    %v5777 = vadd.f32 %v5645, %v5713
    %v5778 = vadd.f32 %v5646, %v5714
    %v5779 = vadd.f32 %v5647, %v5715
    %v5780 = vadd.f32 %v5648, %v5716
    %v5781 = vlaneseq
    %v5782 = vshrl.u32 %v5781, 7
    %v5783 = vsub.s32 0, %v5782
    %v5784 = vrot.slane %v3893, %v5783
    %v5785 = vmul.f32 %v4779, %v5784
    %v5786 = vmul.f32 %v4623, %v5784
    %v5787 = vmul.f32 %v4780, %v5784
    %v5788 = vmul.f32 %v4626, %v5784
    %v5789 = vmul.f32 %v4781, %v5784
    %v5790 = vmul.f32 %v4629, %v5784
    %v5791 = vmul.f32 %v4782, %v5784
    %v5792 = vmul.f32 %v4632, %v5784
    %v5793 = vmul.f32 %v4783, %v5784
    %v5794 = vmul.f32 %v4635, %v5784
    %v5795 = vmul.f32 %v4784, %v5784
    %v5796 = vmul.f32 %v4638, %v5784
    %v5797 = vmul.f32 %v4785, %v5784
    %v5798 = vmul.f32 %v4641, %v5784
    %v5799 = vmul.f32 %v4786, %v5784
    %v5800 = vmul.f32 %v4644, %v5784
    %v5801 = vmul.f32 %v4787, %v5784
    %v5802 = vmul.f32 %v4647, %v5784
    %v5803 = vmul.f32 %v4788, %v5784
    %v5804 = vmul.f32 %v4650, %v5784
    %v5805 = vmul.f32 %v4789, %v5784
    %v5806 = vmul.f32 %v4653, %v5784
    %v5807 = vmul.f32 %v4790, %v5784
    %v5808 = vmul.f32 %v4656, %v5784
    %v5809 = vmul.f32 %v4791, %v5784
    %v5810 = vmul.f32 %v4659, %v5784
    %v5811 = vmul.f32 %v4792, %v5784
    %v5812 = vmul.f32 %v4662, %v5784
    %v5813 = vmul.f32 %v4793, %v5784
    %v5814 = vmul.f32 %v4665, %v5784
    %v5815 = vmul.f32 %v966, %v5784
    %v5816 = vmul.f32 %v803, %v5784
    %v5817 = vmul.f32 %v4795, %v5784
    %v5818 = vmul.f32 %v4671, %v5784
    %v5819 = vmul.f32 %v4796, %v5784
    %v5820 = vmul.f32 %v4674, %v5784
    %v5821 = vmul.f32 %v4797, %v5784
    %v5822 = vmul.f32 %v4677, %v5784
    %v5823 = vmul.f32 %v4798, %v5784
    %v5824 = vmul.f32 %v4680, %v5784
    %v5825 = vmul.f32 %v4799, %v5784
    %v5826 = vmul.f32 %v4683, %v5784
    %v5827 = vmul.f32 %v4800, %v5784
    %v5828 = vmul.f32 %v4686, %v5784
    %v5829 = vmul.f32 %v4801, %v5784
    %v5830 = vmul.f32 %v4689, %v5784
    %v5831 = vmul.f32 %v4802, %v5784
    %v5832 = vmul.f32 %v4692, %v5784
    %v5833 = vmul.f32 %v4803, %v5784
    %v5834 = vmul.f32 %v4695, %v5784
    %v5835 = vmul.f32 %v4804, %v5784
    %v5836 = vmul.f32 %v4698, %v5784
    %v5837 = vmul.f32 %v4805, %v5784
    %v5838 = vmul.f32 %v4701, %v5784
    %v5839 = vmul.f32 %v4806, %v5784
    %v5840 = vmul.f32 %v4704, %v5784
    %v5841 = vmul.f32 %v4807, %v5784
    %v5842 = vmul.f32 %v4707, %v5784
    %v5843 = vmul.f32 %v4808, %v5784
    %v5844 = vmul.f32 %v4710, %v5784
    %v5845 = vmul.f32 %v4809, %v5784
    %v5846 = vmul.f32 %v4713, %v5784
    %v5847 = vadd.f32 %v5717, %v5785
    %v5848 = vadd.f32 %v5718, %v5786
    %v5849 = vadd.f32 %v5719, %v5787
    %v5850 = vadd.f32 %v5720, %v5788
    %v5851 = vadd.f32 %v5721, %v5789
    %v5852 = vadd.f32 %v5722, %v5790
    %v5853 = vadd.f32 %v5723, %v5791
    %v5854 = vadd.f32 %v5724, %v5792
    %v5855 = vadd.f32 %v5725, %v5793
    %v5856 = vadd.f32 %v5726, %v5794
    %v5857 = vadd.f32 %v5727, %v5795
    %v5858 = vadd.f32 %v5728, %v5796
    %v5859 = vadd.f32 %v5729, %v5797
    %v5860 = vadd.f32 %v5730, %v5798
    %v5861 = vadd.f32 %v5731, %v5799
    %v5862 = vadd.f32 %v5732, %v5800
    %v5863 = vadd.f32 %v5733, %v5801
    %v5864 = vadd.f32 %v5734, %v5802
    %v5865 = vadd.f32 %v5735, %v5803
    %v5866 = vadd.f32 %v5736, %v5804
    %v5867 = vadd.f32 %v5737, %v5805
    %v5868 = vadd.f32 %v5738, %v5806
    %v5869 = vadd.f32 %v5739, %v5807
    %v5870 = vadd.f32 %v5740, %v5808
    %v5871 = vadd.f32 %v5741, %v5809
    %v5872 = vadd.f32 %v5742, %v5810
    %v5873 = vadd.f32 %v5743, %v5811
    %v5874 = vadd.f32 %v5744, %v5812
    %v5875 = vadd.f32 %v5745, %v5813
    %v5876 = vadd.f32 %v5746, %v5814
    %v5877 = vadd.f32 %v5747, %v5815
    %v5878 = vadd.f32 %v5748, %v5816
    %v5879 = vadd.f32 %v5749, %v5817
    %v5880 = vadd.f32 %v5750, %v5818
    %v5881 = vadd.f32 %v5751, %v5819
    %v5882 = vadd.f32 %v5752, %v5820
    %v5883 = vadd.f32 %v5753, %v5821
    %v5884 = vadd.f32 %v5754, %v5822
    %v5885 = vadd.f32 %v5755, %v5823
    %v5886 = vadd.f32 %v5756, %v5824
    %v5887 = vadd.f32 %v5757, %v5825
    %v5888 = vadd.f32 %v5758, %v5826
    %v5889 = vadd.f32 %v5759, %v5827
    %v5890 = vadd.f32 %v5760, %v5828
    %v5891 = vadd.f32 %v5761, %v5829
    %v5892 = vadd.f32 %v5762, %v5830
    %v5893 = vadd.f32 %v5763, %v5831
    %v5894 = vadd.f32 %v5764, %v5832
    %v5895 = vadd.f32 %v5765, %v5833
    %v5896 = vadd.f32 %v5766, %v5834
    %v5897 = vadd.f32 %v5767, %v5835
    %v5898 = vadd.f32 %v5768, %v5836
    %v5899 = vadd.f32 %v5769, %v5837
    %v5900 = vadd.f32 %v5770, %v5838
    %v5901 = vadd.f32 %v5771, %v5839
    %v5902 = vadd.f32 %v5772, %v5840
    %v5903 = vadd.f32 %v5773, %v5841
    %v5904 = vadd.f32 %v5774, %v5842
    %v5905 = vadd.f32 %v5775, %v5843
    %v5906 = vadd.f32 %v5776, %v5844
    %v5907 = vadd.f32 %v5777, %v5845
    %v5908 = vadd.f32 %v5778, %v5846
    %v5909 = vadd.f32 %v5779, %v5815
    %v5910 = vadd.f32 %v5780, %v5816
    %v5911 = vlaneseq
    %v5912 = vshrl.u32 %v5911, 7
    %v5913 = vsub.s32 1, %v5912
    %v5914 = vrot.slane %v3893, %v5913
    %v5915 = vmul.f32 %v4246, %v5914
    %v5916 = vmul.f32 %v4251, %v5914
    %v5917 = vmul.f32 %v4256, %v5914
    %v5918 = vmul.f32 %v4261, %v5914
    %v5919 = vmul.f32 %v4266, %v5914
    %v5920 = vmul.f32 %v4271, %v5914
    %v5921 = vmul.f32 %v4276, %v5914
    %v5922 = vmul.f32 %v4281, %v5914
    %v5923 = vmul.f32 %v4286, %v5914
    %v5924 = vmul.f32 %v4291, %v5914
    %v5925 = vmul.f32 %v4296, %v5914
    %v5926 = vmul.f32 %v4301, %v5914
    %v5927 = vmul.f32 %v4306, %v5914
    %v5928 = vmul.f32 %v4311, %v5914
    %v5929 = vmul.f32 %v4316, %v5914
    %v5930 = vmul.f32 %v4321, %v5914
    %v5931 = vmul.f32 %v4326, %v5914
    %v5932 = vmul.f32 %v4331, %v5914
    %v5933 = vmul.f32 %v4336, %v5914
    %v5934 = vmul.f32 %v4341, %v5914
    %v5935 = vmul.f32 %v4346, %v5914
    %v5936 = vmul.f32 %v4351, %v5914
    %v5937 = vmul.f32 %v4356, %v5914
    %v5938 = vmul.f32 %v4361, %v5914
    %v5939 = vmul.f32 %v4366, %v5914
    %v5940 = vmul.f32 %v4371, %v5914
    %v5941 = vmul.f32 %v4376, %v5914
    %v5942 = vmul.f32 %v4381, %v5914
    %v5943 = vmul.f32 %v4386, %v5914
    %v5944 = vmul.f32 %v4391, %v5914
    %v5945 = vmul.f32 %v5914, 0.0
    %v5946 = vmul.f32 %v4406, %v5914
    %v5947 = vmul.f32 %v4411, %v5914
    %v5948 = vmul.f32 %v4416, %v5914
    %v5949 = vmul.f32 %v4421, %v5914
    %v5950 = vmul.f32 %v4426, %v5914
    %v5951 = vmul.f32 %v4431, %v5914
    %v5952 = vmul.f32 %v4436, %v5914
    %v5953 = vmul.f32 %v4441, %v5914
    %v5954 = vmul.f32 %v4446, %v5914
    %v5955 = vmul.f32 %v4451, %v5914
    %v5956 = vmul.f32 %v4456, %v5914
    %v5957 = vmul.f32 %v4461, %v5914
    %v5958 = vmul.f32 %v4466, %v5914
    %v5959 = vmul.f32 %v4471, %v5914
    %v5960 = vmul.f32 %v4476, %v5914
    %v5961 = vmul.f32 %v4481, %v5914
    %v5962 = vmul.f32 %v4486, %v5914
    %v5963 = vmul.f32 %v4491, %v5914
    %v5964 = vmul.f32 %v4496, %v5914
    %v5965 = vmul.f32 %v4501, %v5914
    %v5966 = vmul.f32 %v4506, %v5914
    %v5967 = vmul.f32 %v4511, %v5914
    %v5968 = vmul.f32 %v4516, %v5914
    %v5969 = vmul.f32 %v4521, %v5914
    %v5970 = vmul.f32 %v4526, %v5914
    %v5971 = vmul.f32 %v4531, %v5914
    %v5972 = vmul.f32 %v4536, %v5914
    %v5973 = vmul.f32 %v4541, %v5914
    %v5974 = vmul.f32 %v4546, %v5914
    %v5975 = vmul.f32 %v4551, %v5914
    %v5976 = vadd.f32 %v5847, %v5915
    %v5977 = vadd.f32 %v5848, %v5916
    %v5978 = vadd.f32 %v5849, %v5917
    %v5979 = vadd.f32 %v5850, %v5918
    %v5980 = vadd.f32 %v5851, %v5919
    %v5981 = vadd.f32 %v5852, %v5920
    %v5982 = vadd.f32 %v5853, %v5921
    %v5983 = vadd.f32 %v5854, %v5922
    %v5984 = vadd.f32 %v5855, %v5923
    %v5985 = vadd.f32 %v5856, %v5924
    %v5986 = vadd.f32 %v5857, %v5925
    %v5987 = vadd.f32 %v5858, %v5926
    %v5988 = vadd.f32 %v5859, %v5927
    %v5989 = vadd.f32 %v5860, %v5928
    %v5990 = vadd.f32 %v5861, %v5929
    %v5991 = vadd.f32 %v5862, %v5930
    %v5992 = vadd.f32 %v5863, %v5931
    %v5993 = vadd.f32 %v5864, %v5932
    %v5994 = vadd.f32 %v5865, %v5933
    %v5995 = vadd.f32 %v5866, %v5934
    %v5996 = vadd.f32 %v5867, %v5935
    %v5997 = vadd.f32 %v5868, %v5936
    %v5998 = vadd.f32 %v5869, %v5937
    %v5999 = vadd.f32 %v5870, %v5938
    %v6000 = vadd.f32 %v5871, %v5939
    %v6001 = vadd.f32 %v5872, %v5940
    %v6002 = vadd.f32 %v5873, %v5941
    %v6003 = vadd.f32 %v5874, %v5942
    %v6004 = vadd.f32 %v5875, %v5943
    %v6005 = vadd.f32 %v5876, %v5944
    %v6006 = vadd.f32 %v5877, %v5945
    %v6007 = vadd.f32 %v5878, %v5945
    %v6008 = vadd.f32 %v5879, %v5946
    %v6009 = vadd.f32 %v5880, %v5947
    %v6010 = vadd.f32 %v5881, %v5948
    %v6011 = vadd.f32 %v5882, %v5949
    %v6012 = vadd.f32 %v5883, %v5950
    %v6013 = vadd.f32 %v5884, %v5951
    %v6014 = vadd.f32 %v5885, %v5952
    %v6015 = vadd.f32 %v5886, %v5953
    %v6016 = vadd.f32 %v5887, %v5954
    %v6017 = vadd.f32 %v5888, %v5955
    %v6018 = vadd.f32 %v5889, %v5956
    %v6019 = vadd.f32 %v5890, %v5957
    %v6020 = vadd.f32 %v5891, %v5958
    %v6021 = vadd.f32 %v5892, %v5959
    %v6022 = vadd.f32 %v5893, %v5960
    %v6023 = vadd.f32 %v5894, %v5961
    %v6024 = vadd.f32 %v5895, %v5962
    %v6025 = vadd.f32 %v5896, %v5963
    %v6026 = vadd.f32 %v5897, %v5964
    %v6027 = vadd.f32 %v5898, %v5965
    %v6028 = vadd.f32 %v5899, %v5966
    %v6029 = vadd.f32 %v5900, %v5967
    %v6030 = vadd.f32 %v5901, %v5968
    %v6031 = vadd.f32 %v5902, %v5969
    %v6032 = vadd.f32 %v5903, %v5970
    %v6033 = vadd.f32 %v5904, %v5971
    %v6034 = vadd.f32 %v5905, %v5972
    %v6035 = vadd.f32 %v5906, %v5973
    %v6036 = vadd.f32 %v5907, %v5974
    %v6037 = vadd.f32 %v5908, %v5975
    %v6038 = vadd.f32 %v5909, %v5945
    %v6039 = vadd.f32 %v5910, %v5945
    %v6040 = vlaneseq
    %v6041 = vshrl.u32 %v6040, 7
    %v6042 = vsub.s32 2, %v6041
    %v6043 = vrot.slane %v3893, %v6042
    %v6044 = vmul.f32 %v4815, %v6043
    %v6045 = vmul.f32 %v4971, %v6043
    %v6046 = vmul.f32 %v4818, %v6043
    %v6047 = vmul.f32 %v4972, %v6043
    %v6048 = vmul.f32 %v4821, %v6043
    %v6049 = vmul.f32 %v4973, %v6043
    %v6050 = vmul.f32 %v4824, %v6043
    %v6051 = vmul.f32 %v4974, %v6043
    %v6052 = vmul.f32 %v4827, %v6043
    %v6053 = vmul.f32 %v4975, %v6043
    %v6054 = vmul.f32 %v4830, %v6043
    %v6055 = vmul.f32 %v4976, %v6043
    %v6056 = vmul.f32 %v4833, %v6043
    %v6057 = vmul.f32 %v4977, %v6043
    %v6058 = vmul.f32 %v4836, %v6043
    %v6059 = vmul.f32 %v4978, %v6043
    %v6060 = vmul.f32 %v4839, %v6043
    %v6061 = vmul.f32 %v4979, %v6043
    %v6062 = vmul.f32 %v4842, %v6043
    %v6063 = vmul.f32 %v4980, %v6043
    %v6064 = vmul.f32 %v4845, %v6043
    %v6065 = vmul.f32 %v4981, %v6043
    %v6066 = vmul.f32 %v4848, %v6043
    %v6067 = vmul.f32 %v4982, %v6043
    %v6068 = vmul.f32 %v4851, %v6043
    %v6069 = vmul.f32 %v4983, %v6043
    %v6070 = vmul.f32 %v4854, %v6043
    %v6071 = vmul.f32 %v4984, %v6043
    %v6072 = vmul.f32 %v4857, %v6043
    %v6073 = vmul.f32 %v4985, %v6043
    %v6074 = vmul.f32 %v1001, %v6043
    %v6075 = vmul.f32 %v1164, %v6043
    %v6076 = vmul.f32 %v4863, %v6043
    %v6077 = vmul.f32 %v4987, %v6043
    %v6078 = vmul.f32 %v4866, %v6043
    %v6079 = vmul.f32 %v4988, %v6043
    %v6080 = vmul.f32 %v4869, %v6043
    %v6081 = vmul.f32 %v4989, %v6043
    %v6082 = vmul.f32 %v4872, %v6043
    %v6083 = vmul.f32 %v4990, %v6043
    %v6084 = vmul.f32 %v4875, %v6043
    %v6085 = vmul.f32 %v4991, %v6043
    %v6086 = vmul.f32 %v4878, %v6043
    %v6087 = vmul.f32 %v4992, %v6043
    %v6088 = vmul.f32 %v4881, %v6043
    %v6089 = vmul.f32 %v4993, %v6043
    %v6090 = vmul.f32 %v4884, %v6043
    %v6091 = vmul.f32 %v4994, %v6043
    %v6092 = vmul.f32 %v4887, %v6043
    %v6093 = vmul.f32 %v4995, %v6043
    %v6094 = vmul.f32 %v4890, %v6043
    %v6095 = vmul.f32 %v4996, %v6043
    %v6096 = vmul.f32 %v4893, %v6043
    %v6097 = vmul.f32 %v4997, %v6043
    %v6098 = vmul.f32 %v4896, %v6043
    %v6099 = vmul.f32 %v4998, %v6043
    %v6100 = vmul.f32 %v4899, %v6043
    %v6101 = vmul.f32 %v4999, %v6043
    %v6102 = vmul.f32 %v4902, %v6043
    %v6103 = vmul.f32 %v5000, %v6043
    %v6104 = vmul.f32 %v4905, %v6043
    %v6105 = vmul.f32 %v5001, %v6043
    %v6106 = vadd.f32 %v5976, %v6044
    %v6107 = vadd.f32 %v5977, %v6045
    %v6108 = vadd.f32 %v5978, %v6046
    %v6109 = vadd.f32 %v5979, %v6047
    %v6110 = vadd.f32 %v5980, %v6048
    %v6111 = vadd.f32 %v5981, %v6049
    %v6112 = vadd.f32 %v5982, %v6050
    %v6113 = vadd.f32 %v5983, %v6051
    %v6114 = vadd.f32 %v5984, %v6052
    %v6115 = vadd.f32 %v5985, %v6053
    %v6116 = vadd.f32 %v5986, %v6054
    %v6117 = vadd.f32 %v5987, %v6055
    %v6118 = vadd.f32 %v5988, %v6056
    %v6119 = vadd.f32 %v5989, %v6057
    %v6120 = vadd.f32 %v5990, %v6058
    %v6121 = vadd.f32 %v5991, %v6059
    %v6122 = vadd.f32 %v5992, %v6060
    %v6123 = vadd.f32 %v5993, %v6061
    %v6124 = vadd.f32 %v5994, %v6062
    %v6125 = vadd.f32 %v5995, %v6063
    %v6126 = vadd.f32 %v5996, %v6064
    %v6127 = vadd.f32 %v5997, %v6065
    %v6128 = vadd.f32 %v5998, %v6066
    %v6129 = vadd.f32 %v5999, %v6067
    %v6130 = vadd.f32 %v6000, %v6068
    %v6131 = vadd.f32 %v6001, %v6069
    %v6132 = vadd.f32 %v6002, %v6070
    %v6133 = vadd.f32 %v6003, %v6071
    %v6134 = vadd.f32 %v6004, %v6072
    %v6135 = vadd.f32 %v6005, %v6073
    %v6136 = vadd.f32 %v6006, %v6074
    %v6137 = vadd.f32 %v6007, %v6075
    %v6138 = vadd.f32 %v6008, %v6076
    %v6139 = vadd.f32 %v6009, %v6077
    %v6140 = vadd.f32 %v6010, %v6078
    %v6141 = vadd.f32 %v6011, %v6079
    %v6142 = vadd.f32 %v6012, %v6080
    %v6143 = vadd.f32 %v6013, %v6081
    %v6144 = vadd.f32 %v6014, %v6082
    %v6145 = vadd.f32 %v6015, %v6083
    %v6146 = vadd.f32 %v6016, %v6084
    %v6147 = vadd.f32 %v6017, %v6085
    %v6148 = vadd.f32 %v6018, %v6086
    %v6149 = vadd.f32 %v6019, %v6087
    %v6150 = vadd.f32 %v6020, %v6088
    %v6151 = vadd.f32 %v6021, %v6089
    %v6152 = vadd.f32 %v6022, %v6090
    %v6153 = vadd.f32 %v6023, %v6091
    %v6154 = vadd.f32 %v6024, %v6092
    %v6155 = vadd.f32 %v6025, %v6093
    %v6156 = vadd.f32 %v6026, %v6094
    %v6157 = vadd.f32 %v6027, %v6095
    %v6158 = vadd.f32 %v6028, %v6096
    %v6159 = vadd.f32 %v6029, %v6097
    %v6160 = vadd.f32 %v6030, %v6098
    %v6161 = vadd.f32 %v6031, %v6099
    %v6162 = vadd.f32 %v6032, %v6100
    %v6163 = vadd.f32 %v6033, %v6101
    %v6164 = vadd.f32 %v6034, %v6102
    %v6165 = vadd.f32 %v6035, %v6103
    %v6166 = vadd.f32 %v6036, %v6104
    %v6167 = vadd.f32 %v6037, %v6105
    %v6168 = vadd.f32 %v6038, %v6074
    %v6169 = vadd.f32 %v6039, %v6075
    %v6170 = vadd.f32 %v6106, %v6107
    %v6171 = vadd.f32 %v6170, %v6108
    %v6172 = vadd.f32 %v6171, %v6109
    %v6173 = vadd.f32 %v6172, %v6110
    %v6174 = vadd.f32 %v6173, %v6111
    %v6175 = vadd.f32 %v6174, %v6112
    %v6176 = vadd.f32 %v6175, %v6113
    %v6177 = vadd.f32 %v6176, %v6114
    %v6178 = vadd.f32 %v6177, %v6115
    %v6179 = vadd.f32 %v6178, %v6116
    %v6180 = vadd.f32 %v6179, %v6117
    %v6181 = vadd.f32 %v6180, %v6118
    %v6182 = vadd.f32 %v6181, %v6119
    %v6183 = vadd.f32 %v6182, %v6120
    %v6184 = vadd.f32 %v6183, %v6121
    %v6185 = vadd.f32 %v6184, %v6122
    %v6186 = vadd.f32 %v6185, %v6123
    %v6187 = vadd.f32 %v6186, %v6124
    %v6188 = vadd.f32 %v6187, %v6125
    %v6189 = vadd.f32 %v6188, %v6126
    %v6190 = vadd.f32 %v6189, %v6127
    %v6191 = vadd.f32 %v6190, %v6128
    %v6192 = vadd.f32 %v6191, %v6129
    %v6193 = vadd.f32 %v6192, %v6130
    %v6194 = vadd.f32 %v6193, %v6131
    %v6195 = vadd.f32 %v6194, %v6132
    %v6196 = vadd.f32 %v6195, %v6133
    %v6197 = vadd.f32 %v6196, %v6134
    %v6198 = vadd.f32 %v6197, %v6135
    %v6199 = vadd.f32 %v6198, %v6136
    %v6200 = vadd.f32 %v6199, %v6137
    %v6201 = vadd.f32 %v6200, %v6138
    %v6202 = vadd.f32 %v6201, %v6139
    %v6203 = vadd.f32 %v6202, %v6140
    %v6204 = vadd.f32 %v6203, %v6141
    %v6205 = vadd.f32 %v6204, %v6142
    %v6206 = vadd.f32 %v6205, %v6143
    %v6207 = vadd.f32 %v6206, %v6144
    %v6208 = vadd.f32 %v6207, %v6145
    %v6209 = vadd.f32 %v6208, %v6146
    %v6210 = vadd.f32 %v6209, %v6147
    %v6211 = vadd.f32 %v6210, %v6148
    %v6212 = vadd.f32 %v6211, %v6149
    %v6213 = vadd.f32 %v6212, %v6150
    %v6214 = vadd.f32 %v6213, %v6151
    %v6215 = vadd.f32 %v6214, %v6152
    %v6216 = vadd.f32 %v6215, %v6153
    %v6217 = vadd.f32 %v6216, %v6154
    %v6218 = vadd.f32 %v6217, %v6155
    %v6219 = vadd.f32 %v6218, %v6156
    %v6220 = vadd.f32 %v6219, %v6157
    %v6221 = vadd.f32 %v6220, %v6158
    %v6222 = vadd.f32 %v6221, %v6159
    %v6223 = vadd.f32 %v6222, %v6160
    %v6224 = vadd.f32 %v6223, %v6161
    %v6225 = vadd.f32 %v6224, %v6162
    %v6226 = vadd.f32 %v6225, %v6163
    %v6227 = vadd.f32 %v6226, %v6164
    %v6228 = vadd.f32 %v6227, %v6165
    %v6229 = vadd.f32 %v6228, %v6166
    %v6230 = vadd.f32 %v6229, %v6167
    %v6231 = vadd.f32 %v6230, %v6168
    %v6232 = vadd.f32 %v6231, %v6169
    %v6233 = vrot.slane %v6232, 4
    %v6234 = vadd.f32 %v6232, %v6233
    %v6235 = vrot.slane %v6234, 2
    %v6236 = vadd.f32 %v6234, %v6235
    %v6237 = vrot.slane %v6236, 1
    %v6238 = vadd.f32 %v6236, %v6237
    %v6239 = vmul.f32 %v6238, 0.001953125
    %v6240 = vmul.f32 %v6106, %v6106
    %v6241 = vmul.f32 %v6107, %v6107
    %v6242 = vmul.f32 %v6108, %v6108
    %v6243 = vmul.f32 %v6109, %v6109
    %v6244 = vmul.f32 %v6110, %v6110
    %v6245 = vmul.f32 %v6111, %v6111
    %v6246 = vmul.f32 %v6112, %v6112
    %v6247 = vmul.f32 %v6113, %v6113
    %v6248 = vmul.f32 %v6114, %v6114
    %v6249 = vmul.f32 %v6115, %v6115
    %v6250 = vmul.f32 %v6116, %v6116
    %v6251 = vmul.f32 %v6117, %v6117
    %v6252 = vmul.f32 %v6118, %v6118
    %v6253 = vmul.f32 %v6119, %v6119
    %v6254 = vmul.f32 %v6120, %v6120
    %v6255 = vmul.f32 %v6121, %v6121
    %v6256 = vmul.f32 %v6122, %v6122
    %v6257 = vmul.f32 %v6123, %v6123
    %v6258 = vmul.f32 %v6124, %v6124
    %v6259 = vmul.f32 %v6125, %v6125
    %v6260 = vmul.f32 %v6126, %v6126
    %v6261 = vmul.f32 %v6127, %v6127
    %v6262 = vmul.f32 %v6128, %v6128
    %v6263 = vmul.f32 %v6129, %v6129
    %v6264 = vmul.f32 %v6130, %v6130
    %v6265 = vmul.f32 %v6131, %v6131
    %v6266 = vmul.f32 %v6132, %v6132
    %v6267 = vmul.f32 %v6133, %v6133
    %v6268 = vmul.f32 %v6134, %v6134
    %v6269 = vmul.f32 %v6135, %v6135
    %v6270 = vmul.f32 %v6136, %v6136
    %v6271 = vmul.f32 %v6137, %v6137
    %v6272 = vmul.f32 %v6138, %v6138
    %v6273 = vmul.f32 %v6139, %v6139
    %v6274 = vmul.f32 %v6140, %v6140
    %v6275 = vmul.f32 %v6141, %v6141
    %v6276 = vmul.f32 %v6142, %v6142
    %v6277 = vmul.f32 %v6143, %v6143
    %v6278 = vmul.f32 %v6144, %v6144
    %v6279 = vmul.f32 %v6145, %v6145
    %v6280 = vmul.f32 %v6146, %v6146
    %v6281 = vmul.f32 %v6147, %v6147
    %v6282 = vmul.f32 %v6148, %v6148
    %v6283 = vmul.f32 %v6149, %v6149
    %v6284 = vmul.f32 %v6150, %v6150
    %v6285 = vmul.f32 %v6151, %v6151
    %v6286 = vmul.f32 %v6152, %v6152
    %v6287 = vmul.f32 %v6153, %v6153
    %v6288 = vmul.f32 %v6154, %v6154
    %v6289 = vmul.f32 %v6155, %v6155
    %v6290 = vmul.f32 %v6156, %v6156
    %v6291 = vmul.f32 %v6157, %v6157
    %v6292 = vmul.f32 %v6158, %v6158
    %v6293 = vmul.f32 %v6159, %v6159
    %v6294 = vmul.f32 %v6160, %v6160
    %v6295 = vmul.f32 %v6161, %v6161
    %v6296 = vmul.f32 %v6162, %v6162
    %v6297 = vmul.f32 %v6163, %v6163
    %v6298 = vmul.f32 %v6164, %v6164
    %v6299 = vmul.f32 %v6165, %v6165
    %v6300 = vmul.f32 %v6166, %v6166
    %v6301 = vmul.f32 %v6167, %v6167
    %v6302 = vmul.f32 %v6168, %v6168
    %v6303 = vmul.f32 %v6169, %v6169
    %v6304 = vadd.f32 %v6240, %v6241
    %v6305 = vadd.f32 %v6304, %v6242
    %v6306 = vadd.f32 %v6305, %v6243
    %v6307 = vadd.f32 %v6306, %v6244
    %v6308 = vadd.f32 %v6307, %v6245
    %v6309 = vadd.f32 %v6308, %v6246
    %v6310 = vadd.f32 %v6309, %v6247
    %v6311 = vadd.f32 %v6310, %v6248
    %v6312 = vadd.f32 %v6311, %v6249
    %v6313 = vadd.f32 %v6312, %v6250
    %v6314 = vadd.f32 %v6313, %v6251
    %v6315 = vadd.f32 %v6314, %v6252
    %v6316 = vadd.f32 %v6315, %v6253
    %v6317 = vadd.f32 %v6316, %v6254
    %v6318 = vadd.f32 %v6317, %v6255
    %v6319 = vadd.f32 %v6318, %v6256
    %v6320 = vadd.f32 %v6319, %v6257
    %v6321 = vadd.f32 %v6320, %v6258
    %v6322 = vadd.f32 %v6321, %v6259
    %v6323 = vadd.f32 %v6322, %v6260
    %v6324 = vadd.f32 %v6323, %v6261
    %v6325 = vadd.f32 %v6324, %v6262
    %v6326 = vadd.f32 %v6325, %v6263
    %v6327 = vadd.f32 %v6326, %v6264
    %v6328 = vadd.f32 %v6327, %v6265
    %v6329 = vadd.f32 %v6328, %v6266
    %v6330 = vadd.f32 %v6329, %v6267
    %v6331 = vadd.f32 %v6330, %v6268
    %v6332 = vadd.f32 %v6331, %v6269
    %v6333 = vadd.f32 %v6332, %v6270
    %v6334 = vadd.f32 %v6333, %v6271
    %v6335 = vadd.f32 %v6334, %v6272
    %v6336 = vadd.f32 %v6335, %v6273
    %v6337 = vadd.f32 %v6336, %v6274
    %v6338 = vadd.f32 %v6337, %v6275
    %v6339 = vadd.f32 %v6338, %v6276
    %v6340 = vadd.f32 %v6339, %v6277
    %v6341 = vadd.f32 %v6340, %v6278
    %v6342 = vadd.f32 %v6341, %v6279
    %v6343 = vadd.f32 %v6342, %v6280
    %v6344 = vadd.f32 %v6343, %v6281
    %v6345 = vadd.f32 %v6344, %v6282
    %v6346 = vadd.f32 %v6345, %v6283
    %v6347 = vadd.f32 %v6346, %v6284
    %v6348 = vadd.f32 %v6347, %v6285
    %v6349 = vadd.f32 %v6348, %v6286
    %v6350 = vadd.f32 %v6349, %v6287
    %v6351 = vadd.f32 %v6350, %v6288
    %v6352 = vadd.f32 %v6351, %v6289
    %v6353 = vadd.f32 %v6352, %v6290
    %v6354 = vadd.f32 %v6353, %v6291
    %v6355 = vadd.f32 %v6354, %v6292
    %v6356 = vadd.f32 %v6355, %v6293
    %v6357 = vadd.f32 %v6356, %v6294
    %v6358 = vadd.f32 %v6357, %v6295
    %v6359 = vadd.f32 %v6358, %v6296
    %v6360 = vadd.f32 %v6359, %v6297
    %v6361 = vadd.f32 %v6360, %v6298
    %v6362 = vadd.f32 %v6361, %v6299
    %v6363 = vadd.f32 %v6362, %v6300
    %v6364 = vadd.f32 %v6363, %v6301
    %v6365 = vadd.f32 %v6364, %v6302
    %v6366 = vadd.f32 %v6365, %v6303
    %v6367 = vrot.slane %v6366, 4
    %v6368 = vadd.f32 %v6366, %v6367
    %v6369 = vrot.slane %v6368, 2
    %v6370 = vadd.f32 %v6368, %v6369
    %v6371 = vrot.slane %v6370, 1
    %v6372 = vadd.f32 %v6370, %v6371
    %v6373 = vmul.f32 %v6372, 0.001953125
    %v6374 = vmul.f32 %v6239, %v6239
    %v6375 = vsub.f32 %v6373, %v6374
    %v6376 = vmax.f32 %v6375, 0.0
    %v6377 = vadd.f32 %v6376, 1e-05
    %v6378 = vrsqrt.pop %v6377
    %v6379 = vmul.f32 %v6378, %v3894
    %v6380 = vmul.f32 %v6239, %v6379
    %v6381 = vsub.f32 %v3895, %v6380
    %v6382 = vlaneseq
    %v6383 = vshrl.u32 %v6382, 7
    %v6384 = vsub.s32 0, %v6383
    %v6385 = vrot.slane %v6379, %v6384
    %v6386 = vmul.f32 %v6106, %v6385
    %v6387 = vmul.f32 %v6107, %v6385
    %v6388 = vmul.f32 %v6108, %v6385
    %v6389 = vmul.f32 %v6109, %v6385
    %v6390 = vmul.f32 %v6110, %v6385
    %v6391 = vmul.f32 %v6111, %v6385
    %v6392 = vmul.f32 %v6112, %v6385
    %v6393 = vmul.f32 %v6113, %v6385
    %v6394 = vmul.f32 %v6114, %v6385
    %v6395 = vmul.f32 %v6115, %v6385
    %v6396 = vmul.f32 %v6116, %v6385
    %v6397 = vmul.f32 %v6117, %v6385
    %v6398 = vmul.f32 %v6118, %v6385
    %v6399 = vmul.f32 %v6119, %v6385
    %v6400 = vmul.f32 %v6120, %v6385
    %v6401 = vmul.f32 %v6121, %v6385
    %v6402 = vmul.f32 %v6122, %v6385
    %v6403 = vmul.f32 %v6123, %v6385
    %v6404 = vmul.f32 %v6124, %v6385
    %v6405 = vmul.f32 %v6125, %v6385
    %v6406 = vmul.f32 %v6126, %v6385
    %v6407 = vmul.f32 %v6127, %v6385
    %v6408 = vmul.f32 %v6128, %v6385
    %v6409 = vmul.f32 %v6129, %v6385
    %v6410 = vmul.f32 %v6130, %v6385
    %v6411 = vmul.f32 %v6131, %v6385
    %v6412 = vmul.f32 %v6132, %v6385
    %v6413 = vmul.f32 %v6133, %v6385
    %v6414 = vmul.f32 %v6134, %v6385
    %v6415 = vmul.f32 %v6135, %v6385
    %v6416 = vmul.f32 %v6136, %v6385
    %v6417 = vmul.f32 %v6137, %v6385
    %v6418 = vmul.f32 %v6138, %v6385
    %v6419 = vmul.f32 %v6139, %v6385
    %v6420 = vmul.f32 %v6140, %v6385
    %v6421 = vmul.f32 %v6141, %v6385
    %v6422 = vmul.f32 %v6142, %v6385
    %v6423 = vmul.f32 %v6143, %v6385
    %v6424 = vmul.f32 %v6144, %v6385
    %v6425 = vmul.f32 %v6145, %v6385
    %v6426 = vmul.f32 %v6146, %v6385
    %v6427 = vmul.f32 %v6147, %v6385
    %v6428 = vmul.f32 %v6148, %v6385
    %v6429 = vmul.f32 %v6149, %v6385
    %v6430 = vmul.f32 %v6150, %v6385
    %v6431 = vmul.f32 %v6151, %v6385
    %v6432 = vmul.f32 %v6152, %v6385
    %v6433 = vmul.f32 %v6153, %v6385
    %v6434 = vmul.f32 %v6154, %v6385
    %v6435 = vmul.f32 %v6155, %v6385
    %v6436 = vmul.f32 %v6156, %v6385
    %v6437 = vmul.f32 %v6157, %v6385
    %v6438 = vmul.f32 %v6158, %v6385
    %v6439 = vmul.f32 %v6159, %v6385
    %v6440 = vmul.f32 %v6160, %v6385
    %v6441 = vmul.f32 %v6161, %v6385
    %v6442 = vmul.f32 %v6162, %v6385
    %v6443 = vmul.f32 %v6163, %v6385
    %v6444 = vmul.f32 %v6164, %v6385
    %v6445 = vmul.f32 %v6165, %v6385
    %v6446 = vmul.f32 %v6166, %v6385
    %v6447 = vmul.f32 %v6167, %v6385
    %v6448 = vmul.f32 %v6168, %v6385
    %v6449 = vmul.f32 %v6169, %v6385
    %v6451 = vlaneseq
    %v6452 = vshrl.u32 %v6451, 7
    %v6453 = vsub.s32 0, %v6452
    %v6454 = vrot.slane %v6381, %v6453
    %v6456 = vadd.f32 %v6386, %v6454
    %v6457 = vadd.f32 %v6387, %v6454
    %v6458 = vadd.f32 %v6388, %v6454
    %v6459 = vadd.f32 %v6389, %v6454
    %v6460 = vadd.f32 %v6390, %v6454
    %v6461 = vadd.f32 %v6391, %v6454
    %v6462 = vadd.f32 %v6392, %v6454
    %v6463 = vadd.f32 %v6393, %v6454
    %v6464 = vadd.f32 %v6394, %v6454
    %v6465 = vadd.f32 %v6395, %v6454
    %v6466 = vadd.f32 %v6396, %v6454
    %v6467 = vadd.f32 %v6397, %v6454
    %v6468 = vadd.f32 %v6398, %v6454
    %v6469 = vadd.f32 %v6399, %v6454
    %v6470 = vadd.f32 %v6400, %v6454
    %v6471 = vadd.f32 %v6401, %v6454
    %v6472 = vadd.f32 %v6402, %v6454
    %v6473 = vadd.f32 %v6403, %v6454
    %v6474 = vadd.f32 %v6404, %v6454
    %v6475 = vadd.f32 %v6405, %v6454
    %v6476 = vadd.f32 %v6406, %v6454
    %v6477 = vadd.f32 %v6407, %v6454
    %v6478 = vadd.f32 %v6408, %v6454
    %v6479 = vadd.f32 %v6409, %v6454
    %v6480 = vadd.f32 %v6410, %v6454
    %v6481 = vadd.f32 %v6411, %v6454
    %v6482 = vadd.f32 %v6412, %v6454
    %v6483 = vadd.f32 %v6413, %v6454
    %v6484 = vadd.f32 %v6414, %v6454
    %v6485 = vadd.f32 %v6415, %v6454
    %v6486 = vadd.f32 %v6416, %v6454
    %v6487 = vadd.f32 %v6417, %v6454
    %v6488 = vadd.f32 %v6418, %v6454
    %v6489 = vadd.f32 %v6419, %v6454
    %v6490 = vadd.f32 %v6420, %v6454
    %v6491 = vadd.f32 %v6421, %v6454
    %v6492 = vadd.f32 %v6422, %v6454
    %v6493 = vadd.f32 %v6423, %v6454
    %v6494 = vadd.f32 %v6424, %v6454
    %v6495 = vadd.f32 %v6425, %v6454
    %v6496 = vadd.f32 %v6426, %v6454
    %v6497 = vadd.f32 %v6427, %v6454
    %v6498 = vadd.f32 %v6428, %v6454
    %v6499 = vadd.f32 %v6429, %v6454
    %v6500 = vadd.f32 %v6430, %v6454
    %v6501 = vadd.f32 %v6431, %v6454
    %v6502 = vadd.f32 %v6432, %v6454
    %v6503 = vadd.f32 %v6433, %v6454
    %v6504 = vadd.f32 %v6434, %v6454
    %v6505 = vadd.f32 %v6435, %v6454
    %v6506 = vadd.f32 %v6436, %v6454
    %v6507 = vadd.f32 %v6437, %v6454
    %v6508 = vadd.f32 %v6438, %v6454
    %v6509 = vadd.f32 %v6439, %v6454
    %v6510 = vadd.f32 %v6440, %v6454
    %v6511 = vadd.f32 %v6441, %v6454
    %v6512 = vadd.f32 %v6442, %v6454
    %v6513 = vadd.f32 %v6443, %v6454
    %v6514 = vadd.f32 %v6444, %v6454
    %v6515 = vadd.f32 %v6445, %v6454
    %v6516 = vadd.f32 %v6446, %v6454
    %v6517 = vadd.f32 %v6447, %v6454
    %v6518 = vadd.f32 %v6448, %v6454
    %v6519 = vadd.f32 %v6449, %v6454
    %v6520 = vmax.f32 %v6456, 0.0
    %v6521 = vmax.f32 %v6457, 0.0
    %v6522 = vmax.f32 %v6458, 0.0
    %v6523 = vmax.f32 %v6459, 0.0
    %v6524 = vmax.f32 %v6460, 0.0
    %v6525 = vmax.f32 %v6461, 0.0
    %v6526 = vmax.f32 %v6462, 0.0
    %v6527 = vmax.f32 %v6463, 0.0
    %v6528 = vmax.f32 %v6464, 0.0
    %v6529 = vmax.f32 %v6465, 0.0
    %v6530 = vmax.f32 %v6466, 0.0
    %v6531 = vmax.f32 %v6467, 0.0
    %v6532 = vmax.f32 %v6468, 0.0
    %v6533 = vmax.f32 %v6469, 0.0
    %v6534 = vmax.f32 %v6470, 0.0
    %v6535 = vmax.f32 %v6471, 0.0
    %v6536 = vmax.f32 %v6472, 0.0
    %v6537 = vmax.f32 %v6473, 0.0
    %v6538 = vmax.f32 %v6474, 0.0
    %v6539 = vmax.f32 %v6475, 0.0
    %v6540 = vmax.f32 %v6476, 0.0
    %v6541 = vmax.f32 %v6477, 0.0
    %v6542 = vmax.f32 %v6478, 0.0
    %v6543 = vmax.f32 %v6479, 0.0
    %v6544 = vmax.f32 %v6480, 0.0
    %v6545 = vmax.f32 %v6481, 0.0
    %v6546 = vmax.f32 %v6482, 0.0
    %v6547 = vmax.f32 %v6483, 0.0
    %v6548 = vmax.f32 %v6484, 0.0
    %v6549 = vmax.f32 %v6485, 0.0
    %v6550 = vmax.f32 %v6486, 0.0
    %v6551 = vmax.f32 %v6487, 0.0
    %v6552 = vmax.f32 %v6488, 0.0
    %v6553 = vmax.f32 %v6489, 0.0
    %v6554 = vmax.f32 %v6490, 0.0
    %v6555 = vmax.f32 %v6491, 0.0
    %v6556 = vmax.f32 %v6492, 0.0
    %v6557 = vmax.f32 %v6493, 0.0
    %v6558 = vmax.f32 %v6494, 0.0
    %v6559 = vmax.f32 %v6495, 0.0
    %v6560 = vmax.f32 %v6496, 0.0
    %v6561 = vmax.f32 %v6497, 0.0
    %v6562 = vmax.f32 %v6498, 0.0
    %v6563 = vmax.f32 %v6499, 0.0
    %v6564 = vmax.f32 %v6500, 0.0
    %v6565 = vmax.f32 %v6501, 0.0
    %v6566 = vmax.f32 %v6502, 0.0
    %v6567 = vmax.f32 %v6503, 0.0
    %v6568 = vmax.f32 %v6504, 0.0
    %v6569 = vmax.f32 %v6505, 0.0
    %v6570 = vmax.f32 %v6506, 0.0
    %v6571 = vmax.f32 %v6507, 0.0
    %v6572 = vmax.f32 %v6508, 0.0
    %v6573 = vmax.f32 %v6509, 0.0
    %v6574 = vmax.f32 %v6510, 0.0
    %v6575 = vmax.f32 %v6511, 0.0
    %v6576 = vmax.f32 %v6512, 0.0
    %v6577 = vmax.f32 %v6513, 0.0
    %v6578 = vmax.f32 %v6514, 0.0
    %v6579 = vmax.f32 %v6515, 0.0
    %v6580 = vmax.f32 %v6516, 0.0
    %v6581 = vmax.f32 %v6517, 0.0
    %v6582 = vmax.f32 %v6518, 0.0
    %v6583 = vmax.f32 %v6519, 0.0
    %v6584 = vpack.c.bf16 %v6521, %v6520
    %v6585 = vpack.c.bf16 %v6523, %v6522
    %v6586 = vpack.c.bf16 %v6525, %v6524
    %v6587 = vpack.c.bf16 %v6527, %v6526
    %v6588 = vpack.c.bf16 %v6529, %v6528
    %v6589 = vpack.c.bf16 %v6531, %v6530
    %v6590 = vpack.c.bf16 %v6533, %v6532
    %v6591 = vpack.c.bf16 %v6535, %v6534
    %v6592 = vpack.c.bf16 %v6537, %v6536
    %v6593 = vpack.c.bf16 %v6539, %v6538
    %v6594 = vpack.c.bf16 %v6541, %v6540
    %v6595 = vpack.c.bf16 %v6543, %v6542
    %v6596 = vpack.c.bf16 %v6545, %v6544
    %v6597 = vpack.c.bf16 %v6547, %v6546
    %v6598 = vpack.c.bf16 %v6549, %v6548
    %v6599 = vpack.c.bf16 %v6551, %v6550
    %v6600 = vpack.c.bf16 %v6553, %v6552
    %v6601 = vpack.c.bf16 %v6555, %v6554
    %v6602 = vpack.c.bf16 %v6557, %v6556
    %v6603 = vpack.c.bf16 %v6559, %v6558
    %v6604 = vpack.c.bf16 %v6561, %v6560
    %v6605 = vpack.c.bf16 %v6563, %v6562
    %v6606 = vpack.c.bf16 %v6565, %v6564
    %v6607 = vpack.c.bf16 %v6567, %v6566
    %v6608 = vpack.c.bf16 %v6569, %v6568
    %v6609 = vpack.c.bf16 %v6571, %v6570
    %v6610 = vpack.c.bf16 %v6573, %v6572
    %v6611 = vpack.c.bf16 %v6575, %v6574
    %v6612 = vpack.c.bf16 %v6577, %v6576
    %v6613 = vpack.c.bf16 %v6579, %v6578
    %v6614 = vpack.c.bf16 %v6581, %v6580
    %v6615 = vpack.c.bf16 %v6583, %v6582
    %v6632 = vunpack.c.l.b16 %v3896
    %v6633 = vunpack.c.l.b16 %v3897
    %v6634 = vunpack.c.l.b16 %v3898
    %v6635 = vunpack.c.l.b16 %v3899
    %v6636 = vunpack.c.l.b16 %v3900
    %v6637 = vunpack.c.l.b16 %v3901
    %v6638 = vunpack.c.l.b16 %v3902
    %v6639 = vunpack.c.l.b16 %v3903
    %v6640 = vunpack.c.l.b16 %v3904
    %v6641 = vunpack.c.l.b16 %v3905
    %v6642 = vunpack.c.l.b16 %v3906
    %v6643 = vunpack.c.l.b16 %v3907
    %v6644 = vunpack.c.l.b16 %v3908
    %v6645 = vunpack.c.l.b16 %v3909
    %v6646 = vunpack.c.l.b16 %v3910
    %v6647 = vunpack.c.l.b16 %v3911
    %v6648 = vpack.c.b16 %v6633, %v6632
    %v6649 = vpack.c.b16 %v6635, %v6634
    %v6650 = vpack.c.b16 %v6637, %v6636
    %v6651 = vpack.c.b16 %v6639, %v6638
    %v6652 = vpack.c.b16 %v6641, %v6640
    %v6653 = vpack.c.b16 %v6643, %v6642
    %v6654 = vpack.c.b16 %v6645, %v6644
    %v6655 = vpack.c.b16 %v6647, %v6646
    %6664 = vmatprep.subr.bf16.mxu0 0
    %6665 = vmatpush1.bf16.msra.mxu0 %v6648
    %6666 = vmatprep.subr.bf16.mxu0 0
    %6667 = vmatpush1.bf16.msra.mxu0 %v6649
    %6668 = vmatprep.subr.bf16.mxu0 0
    %6669 = vmatpush1.bf16.msra.mxu0 %v6650
    %6670 = vmatprep.subr.bf16.mxu0 0
    %6671 = vmatpush1.bf16.msra.mxu0 %v6651
    %6672 = vmatprep.subr.bf16.mxu0 0
    %6673 = vmatpush1.bf16.msra.mxu0 %v6652
    %6674 = vmatprep.subr.bf16.mxu0 0
    %6675 = vmatpush1.bf16.msra.mxu0 %v6653
    %6676 = vmatprep.subr.bf16.mxu0 0
    %6677 = vmatpush1.bf16.msra.mxu0 %v6654
    %6678 = vmatprep.subr.bf16.mxu0 0
    %6679 = vmatpush1.bf16.msra.mxu0 %v6655
    %6680 = vmatprep.subr.bf16.mxu0 0
    %6681 = vmatpush1.bf16.msra.mxu0 0
    %6682 = vmatprep.subr.bf16.mxu0 0
    %6683 = vmatpush1.bf16.msra.mxu0 0
    %6684 = vmatprep.subr.bf16.mxu0 0
    %6685 = vmatpush1.bf16.msra.mxu0 0
    %6686 = vmatprep.subr.bf16.mxu0 0
    %6687 = vmatpush1.bf16.msra.mxu0 0
    %6688 = vmatprep.subr.bf16.mxu0 0
    %6689 = vmatpush1.bf16.msra.mxu0 0
    %6690 = vmatprep.subr.bf16.mxu0 0
    %6691 = vmatpush1.bf16.msra.mxu0 0
    %6692 = vmatprep.subr.bf16.mxu0 0
    %6693 = vmatpush1.bf16.msra.mxu0 0
    %6694 = vmatprep.subr.bf16.mxu0 0
    %6695 = vmatpush1.bf16.msra.mxu0 0
    %6696 = vmatprep.mubr.bf16.mxu0 0
    %6697 = vmatmul.mubr.bf16.gmra.mrb[0].mxu0 %v6584
    %v6698 = vpop.f32.mrb[0].mxu0
    %v6699 = vadd.f32 0.0, %v6698
    %v6700 = vpop.f32.mrb[0].mxu0
    %v6701 = vpop.f32.mrb[0].mxu0
    %v6702 = vadd.f32 0.0, %v6701
    %v6703 = vpop.f32.mrb[0].mxu0
    %6704 = vmatprep.mubr.bf16.mxu0 0
    %6705 = vmatmul.mubr.bf16.gmra.mrb[0].mxu0 %v6585
    %v6706 = vpop.f32.mrb[0].mxu0
    %v6707 = vadd.f32 0.0, %v6706
    %v6708 = vpop.f32.mrb[0].mxu0
    %v6709 = vpop.f32.mrb[0].mxu0
    %v6710 = vadd.f32 0.0, %v6709
    %v6711 = vpop.f32.mrb[0].mxu0
    %6712 = vmatprep.mubr.bf16.mxu0 0
    %6713 = vmatmul.mubr.bf16.gmra.mrb[0].mxu0 %v6586
    %v6714 = vpop.f32.mrb[0].mxu0
    %v6715 = vadd.f32 0.0, %v6714
    %v6716 = vpop.f32.mrb[0].mxu0
    %v6717 = vpop.f32.mrb[0].mxu0
    %v6718 = vadd.f32 0.0, %v6717
    %v6719 = vpop.f32.mrb[0].mxu0
    %6720 = vmatprep.mubr.bf16.mxu0 0
    %6721 = vmatmul.mubr.bf16.gmra.mrb[0].mxu0 %v6587
    %v6722 = vpop.f32.mrb[0].mxu0
    %v6723 = vadd.f32 0.0, %v6722
    %v6724 = vpop.f32.mrb[0].mxu0
    %v6725 = vpop.f32.mrb[0].mxu0
    %v6726 = vadd.f32 0.0, %v6725
    %v6727 = vpop.f32.mrb[0].mxu0
    %6728 = vmatprep.mubr.bf16.mxu0 0
    %6729 = vmatmul.mubr.bf16.gmra.mrb[0].mxu0 %v6588
    %v6730 = vpop.f32.mrb[0].mxu0
    %v6731 = vadd.f32 0.0, %v6730
    %v6732 = vpop.f32.mrb[0].mxu0
    %v6733 = vpop.f32.mrb[0].mxu0
    %v6734 = vadd.f32 0.0, %v6733
    %v6735 = vpop.f32.mrb[0].mxu0
    %6736 = vmatprep.mubr.bf16.mxu0 0
    %6737 = vmatmul.mubr.bf16.gmra.mrb[0].mxu0 %v6589
    %v6738 = vpop.f32.mrb[0].mxu0
    %v6739 = vadd.f32 0.0, %v6738
    %v6740 = vpop.f32.mrb[0].mxu0
    %v6741 = vpop.f32.mrb[0].mxu0
    %v6742 = vadd.f32 0.0, %v6741
    %v6743 = vpop.f32.mrb[0].mxu0
    %6744 = vmatprep.mubr.bf16.mxu0 0
    %6745 = vmatmul.mubr.bf16.gmra.mrb[0].mxu0 %v6590
    %v6746 = vpop.f32.mrb[0].mxu0
    %v6747 = vadd.f32 0.0, %v6746
    %v6748 = vpop.f32.mrb[0].mxu0
    %v6749 = vpop.f32.mrb[0].mxu0
    %v6750 = vadd.f32 0.0, %v6749
    %v6751 = vpop.f32.mrb[0].mxu0
    %6752 = vmatprep.mubr.bf16.mxu0 0
    %6753 = vmatmul.mubr.bf16.gmra.mrb[0].mxu0 %v6591
    %v6754 = vpop.f32.mrb[0].mxu0
    %v6755 = vadd.f32 0.0, %v6754
    %v6756 = vpop.f32.mrb[0].mxu0
    %v6757 = vpop.f32.mrb[0].mxu0
    %v6758 = vadd.f32 0.0, %v6757
    %v6759 = vpop.f32.mrb[0].mxu0
    %6760 = vmatprep.mubr.bf16.mxu0 0
    %6761 = vmatmul.mubr.bf16.gmra.mrb[0].mxu0 %v6592
    %v6762 = vpop.f32.mrb[0].mxu0
    %v6763 = vadd.f32 0.0, %v6762
    %v6764 = vpop.f32.mrb[0].mxu0
    %v6765 = vpop.f32.mrb[0].mxu0
    %v6766 = vadd.f32 0.0, %v6765
    %v6767 = vpop.f32.mrb[0].mxu0
    %6768 = vmatprep.mubr.bf16.mxu0 0
    %6769 = vmatmul.mubr.bf16.gmra.mrb[0].mxu0 %v6593
    %v6770 = vpop.f32.mrb[0].mxu0
    %v6771 = vadd.f32 0.0, %v6770
    %v6772 = vpop.f32.mrb[0].mxu0
    %v6773 = vpop.f32.mrb[0].mxu0
    %v6774 = vadd.f32 0.0, %v6773
    %v6775 = vpop.f32.mrb[0].mxu0
    %6776 = vmatprep.mubr.bf16.mxu0 0
    %6777 = vmatmul.mubr.bf16.gmra.mrb[0].mxu0 %v6594
    %v6778 = vpop.f32.mrb[0].mxu0
    %v6779 = vadd.f32 0.0, %v6778
    %v6780 = vpop.f32.mrb[0].mxu0
    %v6781 = vpop.f32.mrb[0].mxu0
    %v6782 = vadd.f32 0.0, %v6781
    %v6783 = vpop.f32.mrb[0].mxu0
    %6784 = vmatprep.mubr.bf16.mxu0 0
    %6785 = vmatmul.mubr.bf16.gmra.mrb[0].mxu0 %v6595
    %v6786 = vpop.f32.mrb[0].mxu0
    %v6787 = vadd.f32 0.0, %v6786
    %v6788 = vpop.f32.mrb[0].mxu0
    %v6789 = vpop.f32.mrb[0].mxu0
    %v6790 = vadd.f32 0.0, %v6789
    %v6791 = vpop.f32.mrb[0].mxu0
    %6792 = vmatprep.mubr.bf16.mxu0 0
    %6793 = vmatmul.mubr.bf16.gmra.mrb[0].mxu0 %v6596
    %v6794 = vpop.f32.mrb[0].mxu0
    %v6795 = vadd.f32 0.0, %v6794
    %v6796 = vpop.f32.mrb[0].mxu0
    %v6797 = vpop.f32.mrb[0].mxu0
    %v6798 = vadd.f32 0.0, %v6797
    %v6799 = vpop.f32.mrb[0].mxu0
    %6800 = vmatprep.mubr.bf16.mxu0 0
    %6801 = vmatmul.mubr.bf16.gmra.mrb[0].mxu0 %v6597
    %v6802 = vpop.f32.mrb[0].mxu0
    %v6803 = vadd.f32 0.0, %v6802
    %v6804 = vpop.f32.mrb[0].mxu0
    %v6805 = vpop.f32.mrb[0].mxu0
    %v6806 = vadd.f32 0.0, %v6805
    %v6807 = vpop.f32.mrb[0].mxu0
    %6808 = vmatprep.mubr.bf16.mxu0 0
    %6809 = vmatmul.mubr.bf16.gmra.mrb[0].mxu0 %v6598
    %v6810 = vpop.f32.mrb[0].mxu0
    %v6811 = vadd.f32 0.0, %v6810
    %v6812 = vpop.f32.mrb[0].mxu0
    %v6813 = vpop.f32.mrb[0].mxu0
    %v6814 = vadd.f32 0.0, %v6813
    %v6815 = vpop.f32.mrb[0].mxu0
    %6816 = vmatprep.mubr.bf16.mxu0 0
    %6817 = vmatmul.mubr.bf16.gmra.mrb[0].mxu0 %v6599
    %v6818 = vpop.f32.mrb[0].mxu0
    %v6819 = vadd.f32 0.0, %v6818
    %v6820 = vpop.f32.mrb[0].mxu0
    %v6821 = vpop.f32.mrb[0].mxu0
    %v6822 = vadd.f32 0.0, %v6821
    %v6823 = vpop.f32.mrb[0].mxu0
    %6824 = vmatprep.mubr.bf16.mxu0 0
    %6825 = vmatmul.mubr.bf16.gmra.mrb[0].mxu0 %v6600
    %v6826 = vpop.f32.mrb[0].mxu0
    %v6827 = vadd.f32 0.0, %v6826
    %v6828 = vpop.f32.mrb[0].mxu0
    %v6829 = vpop.f32.mrb[0].mxu0
    %v6830 = vadd.f32 0.0, %v6829
    %v6831 = vpop.f32.mrb[0].mxu0
    %6832 = vmatprep.mubr.bf16.mxu0 0
    %6833 = vmatmul.mubr.bf16.gmra.mrb[0].mxu0 %v6601
    %v6834 = vpop.f32.mrb[0].mxu0
    %v6835 = vadd.f32 0.0, %v6834
    %v6836 = vpop.f32.mrb[0].mxu0
    %v6837 = vpop.f32.mrb[0].mxu0
    %v6838 = vadd.f32 0.0, %v6837
    %v6839 = vpop.f32.mrb[0].mxu0
    %6840 = vmatprep.mubr.bf16.mxu0 0
    %6841 = vmatmul.mubr.bf16.gmra.mrb[0].mxu0 %v6602
    %v6842 = vpop.f32.mrb[0].mxu0
    %v6843 = vadd.f32 0.0, %v6842
    %v6844 = vpop.f32.mrb[0].mxu0
    %v6845 = vpop.f32.mrb[0].mxu0
    %v6846 = vadd.f32 0.0, %v6845
    %v6847 = vpop.f32.mrb[0].mxu0
    %6848 = vmatprep.mubr.bf16.mxu0 0
    %6849 = vmatmul.mubr.bf16.gmra.mrb[0].mxu0 %v6603
    %v6850 = vpop.f32.mrb[0].mxu0
    %v6851 = vadd.f32 0.0, %v6850
    %v6852 = vpop.f32.mrb[0].mxu0
    %v6853 = vpop.f32.mrb[0].mxu0
    %v6854 = vadd.f32 0.0, %v6853
    %v6855 = vpop.f32.mrb[0].mxu0
    %6856 = vmatprep.mubr.bf16.mxu0 0
    %6857 = vmatmul.mubr.bf16.gmra.mrb[0].mxu0 %v6604
    %v6858 = vpop.f32.mrb[0].mxu0
    %v6859 = vadd.f32 0.0, %v6858
    %v6860 = vpop.f32.mrb[0].mxu0
    %v6861 = vpop.f32.mrb[0].mxu0
    %v6862 = vadd.f32 0.0, %v6861
    %v6863 = vpop.f32.mrb[0].mxu0
    %6864 = vmatprep.mubr.bf16.mxu0 0
    %6865 = vmatmul.mubr.bf16.gmra.mrb[0].mxu0 %v6605
    %v6866 = vpop.f32.mrb[0].mxu0
    %v6867 = vadd.f32 0.0, %v6866
    %v6868 = vpop.f32.mrb[0].mxu0
    %v6869 = vpop.f32.mrb[0].mxu0
    %v6870 = vadd.f32 0.0, %v6869
    %v6871 = vpop.f32.mrb[0].mxu0
    %6872 = vmatprep.mubr.bf16.mxu0 0
    %6873 = vmatmul.mubr.bf16.gmra.mrb[0].mxu0 %v6606
    %v6874 = vpop.f32.mrb[0].mxu0
    %v6875 = vadd.f32 0.0, %v6874
    %v6876 = vpop.f32.mrb[0].mxu0
    %v6877 = vpop.f32.mrb[0].mxu0
    %v6878 = vadd.f32 0.0, %v6877
    %v6879 = vpop.f32.mrb[0].mxu0
    %6880 = vmatprep.mubr.bf16.mxu0 0
    %6881 = vmatmul.mubr.bf16.gmra.mrb[0].mxu0 %v6607
    %v6882 = vpop.f32.mrb[0].mxu0
    %v6883 = vadd.f32 0.0, %v6882
    %v6884 = vpop.f32.mrb[0].mxu0
    %v6885 = vpop.f32.mrb[0].mxu0
    %v6886 = vadd.f32 0.0, %v6885
    %v6887 = vpop.f32.mrb[0].mxu0
    %6888 = vmatprep.mubr.bf16.mxu0 0
    %6889 = vmatmul.mubr.bf16.gmra.mrb[0].mxu0 %v6608
    %v6890 = vpop.f32.mrb[0].mxu0
    %v6891 = vadd.f32 0.0, %v6890
    %v6892 = vpop.f32.mrb[0].mxu0
    %v6893 = vpop.f32.mrb[0].mxu0
    %v6894 = vadd.f32 0.0, %v6893
    %v6895 = vpop.f32.mrb[0].mxu0
    %6896 = vmatprep.mubr.bf16.mxu0 0
    %6897 = vmatmul.mubr.bf16.gmra.mrb[0].mxu0 %v6609
    %v6898 = vpop.f32.mrb[0].mxu0
    %v6899 = vadd.f32 0.0, %v6898
    %v6900 = vpop.f32.mrb[0].mxu0
    %v6901 = vpop.f32.mrb[0].mxu0
    %v6902 = vadd.f32 0.0, %v6901
    %v6903 = vpop.f32.mrb[0].mxu0
    %6904 = vmatprep.mubr.bf16.mxu0 0
    %6905 = vmatmul.mubr.bf16.gmra.mrb[0].mxu0 %v6610
    %v6906 = vpop.f32.mrb[0].mxu0
    %v6907 = vadd.f32 0.0, %v6906
    %v6908 = vpop.f32.mrb[0].mxu0
    %v6909 = vpop.f32.mrb[0].mxu0
    %v6910 = vadd.f32 0.0, %v6909
    %v6911 = vpop.f32.mrb[0].mxu0
    %6912 = vmatprep.mubr.bf16.mxu0 0
    %6913 = vmatmul.mubr.bf16.gmra.mrb[0].mxu0 %v6611
    %v6914 = vpop.f32.mrb[0].mxu0
    %v6915 = vadd.f32 0.0, %v6914
    %v6916 = vpop.f32.mrb[0].mxu0
    %v6917 = vpop.f32.mrb[0].mxu0
    %v6918 = vadd.f32 0.0, %v6917
    %v6919 = vpop.f32.mrb[0].mxu0
    %6920 = vmatprep.mubr.bf16.mxu0 0
    %6921 = vmatmul.mubr.bf16.gmra.mrb[0].mxu0 %v6612
    %v6922 = vpop.f32.mrb[0].mxu0
    %v6923 = vadd.f32 0.0, %v6922
    %v6924 = vpop.f32.mrb[0].mxu0
    %v6925 = vpop.f32.mrb[0].mxu0
    %v6926 = vadd.f32 0.0, %v6925
    %v6927 = vpop.f32.mrb[0].mxu0
    %6928 = vmatprep.mubr.bf16.mxu0 0
    %6929 = vmatmul.mubr.bf16.gmra.mrb[0].mxu0 %v6613
    %v6930 = vpop.f32.mrb[0].mxu0
    %v6931 = vadd.f32 0.0, %v6930
    %v6932 = vpop.f32.mrb[0].mxu0
    %v6933 = vpop.f32.mrb[0].mxu0
    %v6934 = vadd.f32 0.0, %v6933
    %v6935 = vpop.f32.mrb[0].mxu0
    %6936 = vmatprep.mubr.bf16.mxu0 0
    %6937 = vmatmul.mubr.bf16.gmra.mrb[0].mxu0 %v6614
    %v6938 = vpop.f32.mrb[0].mxu0
    %v6939 = vadd.f32 0.0, %v6938
    %v6940 = vpop.f32.mrb[0].mxu0
    %v6941 = vpop.f32.mrb[0].mxu0
    %v6942 = vadd.f32 0.0, %v6941
    %v6943 = vpop.f32.mrb[0].mxu0
    %6944 = vmatprep.mubr.bf16.mxu0 0
    %6945 = vmatmul.mubr.bf16.gmra.mrb[0].mxu0 %v6615
    %v6946 = vpop.f32.mrb[0].mxu0
    %v6947 = vadd.f32 0.0, %v6946
    %v6948 = vpop.f32.mrb[0].mxu0
    %v6949 = vpop.f32.mrb[0].mxu0
    %v6950 = vadd.f32 0.0, %v6949
    %v6951 = vpop.f32.mrb[0].mxu0
    %6952 = vdwg.mxu0
    %v6953 = vadd.f32 %v6699, %v6702
    %v6954 = vadd.f32 %v6953, %v6707
    %v6955 = vadd.f32 %v6954, %v6710
    %v6956 = vadd.f32 %v6955, %v6715
    %v6957 = vadd.f32 %v6956, %v6718
    %v6958 = vadd.f32 %v6957, %v6723
    %v6959 = vadd.f32 %v6958, %v6726
    %v6960 = vadd.f32 %v6959, %v6731
    %v6961 = vadd.f32 %v6960, %v6734
    %v6962 = vadd.f32 %v6961, %v6739
    %v6963 = vadd.f32 %v6962, %v6742
    %v6964 = vadd.f32 %v6963, %v6747
    %v6965 = vadd.f32 %v6964, %v6750
    %v6966 = vadd.f32 %v6965, %v6755
    %v6967 = vadd.f32 %v6966, %v6758
    %v6968 = vadd.f32 %v6967, %v6763
    %v6969 = vadd.f32 %v6968, %v6766
    %v6970 = vadd.f32 %v6969, %v6771
    %v6971 = vadd.f32 %v6970, %v6774
    %v6972 = vadd.f32 %v6971, %v6779
    %v6973 = vadd.f32 %v6972, %v6782
    %v6974 = vadd.f32 %v6973, %v6787
    %v6975 = vadd.f32 %v6974, %v6790
    %v6976 = vadd.f32 %v6975, %v6795
    %v6977 = vadd.f32 %v6976, %v6798
    %v6978 = vadd.f32 %v6977, %v6803
    %v6979 = vadd.f32 %v6978, %v6806
    %v6980 = vadd.f32 %v6979, %v6811
    %v6981 = vadd.f32 %v6980, %v6814
    %v6982 = vadd.f32 %v6981, %v6819
    %v6983 = vadd.f32 %v6982, %v6822
    %v6984 = vadd.f32 %v6983, %v6827
    %v6985 = vadd.f32 %v6984, %v6830
    %v6986 = vadd.f32 %v6985, %v6835
    %v6987 = vadd.f32 %v6986, %v6838
    %v6988 = vadd.f32 %v6987, %v6843
    %v6989 = vadd.f32 %v6988, %v6846
    %v6990 = vadd.f32 %v6989, %v6851
    %v6991 = vadd.f32 %v6990, %v6854
    %v6992 = vadd.f32 %v6991, %v6859
    %v6993 = vadd.f32 %v6992, %v6862
    %v6994 = vadd.f32 %v6993, %v6867
    %v6995 = vadd.f32 %v6994, %v6870
    %v6996 = vadd.f32 %v6995, %v6875
    %v6997 = vadd.f32 %v6996, %v6878
    %v6998 = vadd.f32 %v6997, %v6883
    %v6999 = vadd.f32 %v6998, %v6886
    %v7000 = vadd.f32 %v6999, %v6891
    %v7001 = vadd.f32 %v7000, %v6894
    %v7002 = vadd.f32 %v7001, %v6899
    %v7003 = vadd.f32 %v7002, %v6902
    %v7004 = vadd.f32 %v7003, %v6907
    %v7005 = vadd.f32 %v7004, %v6910
    %v7006 = vadd.f32 %v7005, %v6915
    %v7007 = vadd.f32 %v7006, %v6918
    %v7008 = vadd.f32 %v7007, %v6923
    %v7009 = vadd.f32 %v7008, %v6926
    %v7010 = vadd.f32 %v7009, %v6931
    %v7011 = vadd.f32 %v7010, %v6934
    %v7012 = vadd.f32 %v7011, %v6939
    %v7013 = vadd.f32 %v7012, %v6942
    %v7014 = vadd.f32 %v7013, %v6947
    %v7015 = vadd.f32 %v7014, %v6950
    %v7016 = vrot.slane %v7015, 4
    %v7017 = vadd.f32 %v7015, %v7016
    %v7018 = vrot.slane %v7017, 2
    %v7019 = vadd.f32 %v7017, %v7018
    %v7020 = vrot.slane %v7019, 1
    %v7021 = vadd.f32 %v7019, %v7020
    %v7022 = vmul.f32 %v7021, 0.001953125
    %v7023 = vmul.f32 %v6699, %v6699
    %v7024 = vmul.f32 %v6702, %v6702
    %v7025 = vmul.f32 %v6707, %v6707
    %v7026 = vmul.f32 %v6710, %v6710
    %v7027 = vmul.f32 %v6715, %v6715
    %v7028 = vmul.f32 %v6718, %v6718
    %v7029 = vmul.f32 %v6723, %v6723
    %v7030 = vmul.f32 %v6726, %v6726
    %v7031 = vmul.f32 %v6731, %v6731
    %v7032 = vmul.f32 %v6734, %v6734
    %v7033 = vmul.f32 %v6739, %v6739
    %v7034 = vmul.f32 %v6742, %v6742
    %v7035 = vmul.f32 %v6747, %v6747
    %v7036 = vmul.f32 %v6750, %v6750
    %v7037 = vmul.f32 %v6755, %v6755
    %v7038 = vmul.f32 %v6758, %v6758
    %v7039 = vmul.f32 %v6763, %v6763
    %v7040 = vmul.f32 %v6766, %v6766
    %v7041 = vmul.f32 %v6771, %v6771
    %v7042 = vmul.f32 %v6774, %v6774
    %v7043 = vmul.f32 %v6779, %v6779
    %v7044 = vmul.f32 %v6782, %v6782
    %v7045 = vmul.f32 %v6787, %v6787
    %v7046 = vmul.f32 %v6790, %v6790
    %v7047 = vmul.f32 %v6795, %v6795
    %v7048 = vmul.f32 %v6798, %v6798
    %v7049 = vmul.f32 %v6803, %v6803
    %v7050 = vmul.f32 %v6806, %v6806
    %v7051 = vmul.f32 %v6811, %v6811
    %v7052 = vmul.f32 %v6814, %v6814
    %v7053 = vmul.f32 %v6819, %v6819
    %v7054 = vmul.f32 %v6822, %v6822
    %v7055 = vmul.f32 %v6827, %v6827
    %v7056 = vmul.f32 %v6830, %v6830
    %v7057 = vmul.f32 %v6835, %v6835
    %v7058 = vmul.f32 %v6838, %v6838
    %v7059 = vmul.f32 %v6843, %v6843
    %v7060 = vmul.f32 %v6846, %v6846
    %v7061 = vmul.f32 %v6851, %v6851
    %v7062 = vmul.f32 %v6854, %v6854
    %v7063 = vmul.f32 %v6859, %v6859
    %v7064 = vmul.f32 %v6862, %v6862
    %v7065 = vmul.f32 %v6867, %v6867
    %v7066 = vmul.f32 %v6870, %v6870
    %v7067 = vmul.f32 %v6875, %v6875
    %v7068 = vmul.f32 %v6878, %v6878
    %v7069 = vmul.f32 %v6883, %v6883
    %v7070 = vmul.f32 %v6886, %v6886
    %v7071 = vmul.f32 %v6891, %v6891
    %v7072 = vmul.f32 %v6894, %v6894
    %v7073 = vmul.f32 %v6899, %v6899
    %v7074 = vmul.f32 %v6902, %v6902
    %v7075 = vmul.f32 %v6907, %v6907
    %v7076 = vmul.f32 %v6910, %v6910
    %v7077 = vmul.f32 %v6915, %v6915
    %v7078 = vmul.f32 %v6918, %v6918
    %v7079 = vmul.f32 %v6923, %v6923
    %v7080 = vmul.f32 %v6926, %v6926
    %v7081 = vmul.f32 %v6931, %v6931
    %v7082 = vmul.f32 %v6934, %v6934
    %v7083 = vmul.f32 %v6939, %v6939
    %v7084 = vmul.f32 %v6942, %v6942
    %v7085 = vmul.f32 %v6947, %v6947
    %v7086 = vmul.f32 %v6950, %v6950
    %v7087 = vadd.f32 %v7023, %v7024
    %v7088 = vadd.f32 %v7087, %v7025
    %v7089 = vadd.f32 %v7088, %v7026
    %v7090 = vadd.f32 %v7089, %v7027
    %v7091 = vadd.f32 %v7090, %v7028
    %v7092 = vadd.f32 %v7091, %v7029
    %v7093 = vadd.f32 %v7092, %v7030
    %v7094 = vadd.f32 %v7093, %v7031
    %v7095 = vadd.f32 %v7094, %v7032
    %v7096 = vadd.f32 %v7095, %v7033
    %v7097 = vadd.f32 %v7096, %v7034
    %v7098 = vadd.f32 %v7097, %v7035
    %v7099 = vadd.f32 %v7098, %v7036
    %v7100 = vadd.f32 %v7099, %v7037
    %v7101 = vadd.f32 %v7100, %v7038
    %v7102 = vadd.f32 %v7101, %v7039
    %v7103 = vadd.f32 %v7102, %v7040
    %v7104 = vadd.f32 %v7103, %v7041
    %v7105 = vadd.f32 %v7104, %v7042
    %v7106 = vadd.f32 %v7105, %v7043
    %v7107 = vadd.f32 %v7106, %v7044
    %v7108 = vadd.f32 %v7107, %v7045
    %v7109 = vadd.f32 %v7108, %v7046
    %v7110 = vadd.f32 %v7109, %v7047
    %v7111 = vadd.f32 %v7110, %v7048
    %v7112 = vadd.f32 %v7111, %v7049
    %v7113 = vadd.f32 %v7112, %v7050
    %v7114 = vadd.f32 %v7113, %v7051
    %v7115 = vadd.f32 %v7114, %v7052
    %v7116 = vadd.f32 %v7115, %v7053
    %v7117 = vadd.f32 %v7116, %v7054
    %v7118 = vadd.f32 %v7117, %v7055
    %v7119 = vadd.f32 %v7118, %v7056
    %v7120 = vadd.f32 %v7119, %v7057
    %v7121 = vadd.f32 %v7120, %v7058
    %v7122 = vadd.f32 %v7121, %v7059
    %v7123 = vadd.f32 %v7122, %v7060
    %v7124 = vadd.f32 %v7123, %v7061
    %v7125 = vadd.f32 %v7124, %v7062
    %v7126 = vadd.f32 %v7125, %v7063
    %v7127 = vadd.f32 %v7126, %v7064
    %v7128 = vadd.f32 %v7127, %v7065
    %v7129 = vadd.f32 %v7128, %v7066
    %v7130 = vadd.f32 %v7129, %v7067
    %v7131 = vadd.f32 %v7130, %v7068
    %v7132 = vadd.f32 %v7131, %v7069
    %v7133 = vadd.f32 %v7132, %v7070
    %v7134 = vadd.f32 %v7133, %v7071
    %v7135 = vadd.f32 %v7134, %v7072
    %v7136 = vadd.f32 %v7135, %v7073
    %v7137 = vadd.f32 %v7136, %v7074
    %v7138 = vadd.f32 %v7137, %v7075
    %v7139 = vadd.f32 %v7138, %v7076
    %v7140 = vadd.f32 %v7139, %v7077
    %v7141 = vadd.f32 %v7140, %v7078
    %v7142 = vadd.f32 %v7141, %v7079
    %v7143 = vadd.f32 %v7142, %v7080
    %v7144 = vadd.f32 %v7143, %v7081
    %v7145 = vadd.f32 %v7144, %v7082
    %v7146 = vadd.f32 %v7145, %v7083
    %v7147 = vadd.f32 %v7146, %v7084
    %v7148 = vadd.f32 %v7147, %v7085
    %v7149 = vadd.f32 %v7148, %v7086
    %v7150 = vrot.slane %v7149, 4
    %v7151 = vadd.f32 %v7149, %v7150
    %v7152 = vrot.slane %v7151, 2
    %v7153 = vadd.f32 %v7151, %v7152
    %v7154 = vrot.slane %v7153, 1
    %v7155 = vadd.f32 %v7153, %v7154
    %v7156 = vmul.f32 %v7155, 0.001953125
    %v7157 = vmul.f32 %v7022, %v7022
    %v7158 = vsub.f32 %v7156, %v7157
    %v7159 = vmax.f32 %v7158, 0.0
    %v7160 = vadd.f32 %v7159, 1e-05
    %v7161 = vrsqrt.pop %v7160
    %v7162 = vmul.f32 %v7161, %v3912
    %v7163 = vmul.f32 %v7022, %v7162
    %v7164 = vsub.f32 %v3913, %v7163
    %v7165 = vlaneseq
    %v7166 = vshrl.u32 %v7165, 7
    %v7167 = vsub.s32 0, %v7166
    %v7168 = vrot.slane %v7162, %v7167
    %v7169 = vmul.f32 %v6699, %v7168
    %v7170 = vmul.f32 %v6702, %v7168
    %v7171 = vmul.f32 %v6707, %v7168
    %v7172 = vmul.f32 %v6710, %v7168
    %v7173 = vmul.f32 %v6715, %v7168
    %v7174 = vmul.f32 %v6718, %v7168
    %v7175 = vmul.f32 %v6723, %v7168
    %v7176 = vmul.f32 %v6726, %v7168
    %v7177 = vmul.f32 %v6731, %v7168
    %v7178 = vmul.f32 %v6734, %v7168
    %v7179 = vmul.f32 %v6739, %v7168
    %v7180 = vmul.f32 %v6742, %v7168
    %v7181 = vmul.f32 %v6747, %v7168
    %v7182 = vmul.f32 %v6750, %v7168
    %v7183 = vmul.f32 %v6755, %v7168
    %v7184 = vmul.f32 %v6758, %v7168
    %v7185 = vmul.f32 %v6763, %v7168
    %v7186 = vmul.f32 %v6766, %v7168
    %v7187 = vmul.f32 %v6771, %v7168
    %v7188 = vmul.f32 %v6774, %v7168
    %v7189 = vmul.f32 %v6779, %v7168
    %v7190 = vmul.f32 %v6782, %v7168
    %v7191 = vmul.f32 %v6787, %v7168
    %v7192 = vmul.f32 %v6790, %v7168
    %v7193 = vmul.f32 %v6795, %v7168
    %v7194 = vmul.f32 %v6798, %v7168
    %v7195 = vmul.f32 %v6803, %v7168
    %v7196 = vmul.f32 %v6806, %v7168
    %v7197 = vmul.f32 %v6811, %v7168
    %v7198 = vmul.f32 %v6814, %v7168
    %v7199 = vmul.f32 %v6819, %v7168
    %v7200 = vmul.f32 %v6822, %v7168
    %v7201 = vmul.f32 %v6827, %v7168
    %v7202 = vmul.f32 %v6830, %v7168
    %v7203 = vmul.f32 %v6835, %v7168
    %v7204 = vmul.f32 %v6838, %v7168
    %v7205 = vmul.f32 %v6843, %v7168
    %v7206 = vmul.f32 %v6846, %v7168
    %v7207 = vmul.f32 %v6851, %v7168
    %v7208 = vmul.f32 %v6854, %v7168
    %v7209 = vmul.f32 %v6859, %v7168
    %v7210 = vmul.f32 %v6862, %v7168
    %v7211 = vmul.f32 %v6867, %v7168
    %v7212 = vmul.f32 %v6870, %v7168
    %v7213 = vmul.f32 %v6875, %v7168
    %v7214 = vmul.f32 %v6878, %v7168
    %v7215 = vmul.f32 %v6883, %v7168
    %v7216 = vmul.f32 %v6886, %v7168
    %v7217 = vmul.f32 %v6891, %v7168
    %v7218 = vmul.f32 %v6894, %v7168
    %v7219 = vmul.f32 %v6899, %v7168
    %v7220 = vmul.f32 %v6902, %v7168
    %v7221 = vmul.f32 %v6907, %v7168
    %v7222 = vmul.f32 %v6910, %v7168
    %v7223 = vmul.f32 %v6915, %v7168
    %v7224 = vmul.f32 %v6918, %v7168
    %v7225 = vmul.f32 %v6923, %v7168
    %v7226 = vmul.f32 %v6926, %v7168
    %v7227 = vmul.f32 %v6931, %v7168
    %v7228 = vmul.f32 %v6934, %v7168
    %v7229 = vmul.f32 %v6939, %v7168
    %v7230 = vmul.f32 %v6942, %v7168
    %v7231 = vmul.f32 %v6947, %v7168
    %v7232 = vmul.f32 %v6950, %v7168
    %v7234 = vlaneseq
    %v7235 = vshrl.u32 %v7234, 7
    %v7236 = vsub.s32 0, %v7235
    %v7237 = vrot.slane %v7164, %v7236
    %v7239 = vadd.f32 %v7169, %v7237
    %v7240 = vadd.f32 %v7170, %v7237
    %v7241 = vadd.f32 %v7171, %v7237
    %v7242 = vadd.f32 %v7172, %v7237
    %v7243 = vadd.f32 %v7173, %v7237
    %v7244 = vadd.f32 %v7174, %v7237
    %v7245 = vadd.f32 %v7175, %v7237
    %v7246 = vadd.f32 %v7176, %v7237
    %v7247 = vadd.f32 %v7177, %v7237
    %v7248 = vadd.f32 %v7178, %v7237
    %v7249 = vadd.f32 %v7179, %v7237
    %v7250 = vadd.f32 %v7180, %v7237
    %v7251 = vadd.f32 %v7181, %v7237
    %v7252 = vadd.f32 %v7182, %v7237
    %v7253 = vadd.f32 %v7183, %v7237
    %v7254 = vadd.f32 %v7184, %v7237
    %v7255 = vadd.f32 %v7185, %v7237
    %v7256 = vadd.f32 %v7186, %v7237
    %v7257 = vadd.f32 %v7187, %v7237
    %v7258 = vadd.f32 %v7188, %v7237
    %v7259 = vadd.f32 %v7189, %v7237
    %v7260 = vadd.f32 %v7190, %v7237
    %v7261 = vadd.f32 %v7191, %v7237
    %v7262 = vadd.f32 %v7192, %v7237
    %v7263 = vadd.f32 %v7193, %v7237
    %v7264 = vadd.f32 %v7194, %v7237
    %v7265 = vadd.f32 %v7195, %v7237
    %v7266 = vadd.f32 %v7196, %v7237
    %v7267 = vadd.f32 %v7197, %v7237
    %v7268 = vadd.f32 %v7198, %v7237
    %v7269 = vadd.f32 %v7199, %v7237
    %v7270 = vadd.f32 %v7200, %v7237
    %v7271 = vadd.f32 %v7201, %v7237
    %v7272 = vadd.f32 %v7202, %v7237
    %v7273 = vadd.f32 %v7203, %v7237
    %v7274 = vadd.f32 %v7204, %v7237
    %v7275 = vadd.f32 %v7205, %v7237
    %v7276 = vadd.f32 %v7206, %v7237
    %v7277 = vadd.f32 %v7207, %v7237
    %v7278 = vadd.f32 %v7208, %v7237
    %v7279 = vadd.f32 %v7209, %v7237
    %v7280 = vadd.f32 %v7210, %v7237
    %v7281 = vadd.f32 %v7211, %v7237
    %v7282 = vadd.f32 %v7212, %v7237
    %v7283 = vadd.f32 %v7213, %v7237
    %v7284 = vadd.f32 %v7214, %v7237
    %v7285 = vadd.f32 %v7215, %v7237
    %v7286 = vadd.f32 %v7216, %v7237
    %v7287 = vadd.f32 %v7217, %v7237
    %v7288 = vadd.f32 %v7218, %v7237
    %v7289 = vadd.f32 %v7219, %v7237
    %v7290 = vadd.f32 %v7220, %v7237
    %v7291 = vadd.f32 %v7221, %v7237
    %v7292 = vadd.f32 %v7222, %v7237
    %v7293 = vadd.f32 %v7223, %v7237
    %v7294 = vadd.f32 %v7224, %v7237
    %v7295 = vadd.f32 %v7225, %v7237
    %v7296 = vadd.f32 %v7226, %v7237
    %v7297 = vadd.f32 %v7227, %v7237
    %v7298 = vadd.f32 %v7228, %v7237
    %v7299 = vadd.f32 %v7229, %v7237
    %v7300 = vadd.f32 %v7230, %v7237
    %v7301 = vadd.f32 %v7231, %v7237
    %v7302 = vadd.f32 %v7232, %v7237
    %v7303 = vmax.f32 %v7239, 0.0
    %v7304 = vmax.f32 %v7240, 0.0
    %v7305 = vmax.f32 %v7241, 0.0
    %v7306 = vmax.f32 %v7242, 0.0
    %v7307 = vmax.f32 %v7243, 0.0
    %v7308 = vmax.f32 %v7244, 0.0
    %v7309 = vmax.f32 %v7245, 0.0
    %v7310 = vmax.f32 %v7246, 0.0
    %v7311 = vmax.f32 %v7247, 0.0
    %v7312 = vmax.f32 %v7248, 0.0
    %v7313 = vmax.f32 %v7249, 0.0
    %v7314 = vmax.f32 %v7250, 0.0
    %v7315 = vmax.f32 %v7251, 0.0
    %v7316 = vmax.f32 %v7252, 0.0
    %v7317 = vmax.f32 %v7253, 0.0
    %v7318 = vmax.f32 %v7254, 0.0
    %v7319 = vmax.f32 %v7255, 0.0
    %v7320 = vmax.f32 %v7256, 0.0
    %v7321 = vmax.f32 %v7257, 0.0
    %v7322 = vmax.f32 %v7258, 0.0
    %v7323 = vmax.f32 %v7259, 0.0
    %v7324 = vmax.f32 %v7260, 0.0
    %v7325 = vmax.f32 %v7261, 0.0
    %v7326 = vmax.f32 %v7262, 0.0
    %v7327 = vmax.f32 %v7263, 0.0
    %v7328 = vmax.f32 %v7264, 0.0
    %v7329 = vmax.f32 %v7265, 0.0
    %v7330 = vmax.f32 %v7266, 0.0
    %v7331 = vmax.f32 %v7267, 0.0
    %v7332 = vmax.f32 %v7268, 0.0
    %v7333 = vmax.f32 %v7269, 0.0
    %v7334 = vmax.f32 %v7270, 0.0
    %v7335 = vmax.f32 %v7271, 0.0
    %v7336 = vmax.f32 %v7272, 0.0
    %v7337 = vmax.f32 %v7273, 0.0
    %v7338 = vmax.f32 %v7274, 0.0
    %v7339 = vmax.f32 %v7275, 0.0
    %v7340 = vmax.f32 %v7276, 0.0
    %v7341 = vmax.f32 %v7277, 0.0
    %v7342 = vmax.f32 %v7278, 0.0
    %v7343 = vmax.f32 %v7279, 0.0
    %v7344 = vmax.f32 %v7280, 0.0
    %v7345 = vmax.f32 %v7281, 0.0
    %v7346 = vmax.f32 %v7282, 0.0
    %v7347 = vmax.f32 %v7283, 0.0
    %v7348 = vmax.f32 %v7284, 0.0
    %v7349 = vmax.f32 %v7285, 0.0
    %v7350 = vmax.f32 %v7286, 0.0
    %v7351 = vmax.f32 %v7287, 0.0
    %v7352 = vmax.f32 %v7288, 0.0
    %v7353 = vmax.f32 %v7289, 0.0
    %v7354 = vmax.f32 %v7290, 0.0
    %v7355 = vmax.f32 %v7291, 0.0
    %v7356 = vmax.f32 %v7292, 0.0
    %v7357 = vmax.f32 %v7293, 0.0
    %v7358 = vmax.f32 %v7294, 0.0
    %v7359 = vmax.f32 %v7295, 0.0
    %v7360 = vmax.f32 %v7296, 0.0
    %v7361 = vmax.f32 %v7297, 0.0
    %v7362 = vmax.f32 %v7298, 0.0
    %v7363 = vmax.f32 %v7299, 0.0
    %v7364 = vmax.f32 %v7300, 0.0
    %v7365 = vmax.f32 %v7301, 0.0
    %v7366 = vmax.f32 %v7302, 0.0
    %v7367 = vld [vmem:[%s13] sm:$0x7]
    %v7368 = vld [vmem:[%s13 + $0x4] sm:$0x7]
    %v7369 = vld [vmem:[%s13 + $0x8] sm:$0x7]
    %v7370 = vld [vmem:[%s14] sm:$0x1]
    %v7371 = vld [vmem:[%s15] sm:$0x1]
    %v7372 = vld [vmem:[%s16] sm:$0xf]
    %v7373 = vld [vmem:[%s16 + $0x4] sm:$0xf]
    %v7374 = vld [vmem:[%s16 + $0x8] sm:$0xf]
    %v7375 = vld [vmem:[%s16 + $0xc] sm:$0xf]
    %v7376 = vld [vmem:[%s16 + $0x10] sm:$0xf]
    %v7377 = vld [vmem:[%s16 + $0x14] sm:$0xf]
    %v7378 = vld [vmem:[%s16 + $0x18] sm:$0xf]
    %v7379 = vld [vmem:[%s16 + $0x1c] sm:$0xf]
    %v7380 = vld [vmem:[%s16 + $0x20] sm:$0xf]
    %v7381 = vld [vmem:[%s16 + $0x24] sm:$0xf]
    %v7382 = vld [vmem:[%s16 + $0x28] sm:$0xf]
    %v7383 = vld [vmem:[%s16 + $0x2c] sm:$0xf]
    %v7384 = vld [vmem:[%s16 + $0x30] sm:$0xf]
    %v7385 = vld [vmem:[%s16 + $0x34] sm:$0xf]
    %v7386 = vld [vmem:[%s16 + $0x38] sm:$0xf]
    %v7387 = vld [vmem:[%s16 + $0x3c] sm:$0xf]
    %v7388 = vld [vmem:[%s17] sm:$0x1]
    %v7389 = vld [vmem:[%s18] sm:$0x1]
    %v7454 = vrot.slane %v7303, 7
    %v7455 = vrot.slane %v7304, 7
    %v7456 = vsel %vm801, %v7454, %v7455
    %v7457 = vrot.slane %v7305, 7
    %v7458 = vrot.slane %v7306, 7
    %v7459 = vsel %vm801, %v7457, %v7458
    %v7460 = vrot.slane %v7307, 7
    %v7461 = vrot.slane %v7308, 7
    %v7462 = vsel %vm801, %v7460, %v7461
    %v7463 = vrot.slane %v7309, 7
    %v7464 = vrot.slane %v7310, 7
    %v7465 = vsel %vm801, %v7463, %v7464
    %v7466 = vrot.slane %v7311, 7
    %v7467 = vrot.slane %v7312, 7
    %v7468 = vsel %vm801, %v7466, %v7467
    %v7469 = vrot.slane %v7313, 7
    %v7470 = vrot.slane %v7314, 7
    %v7471 = vsel %vm801, %v7469, %v7470
    %v7472 = vrot.slane %v7315, 7
    %v7473 = vrot.slane %v7316, 7
    %v7474 = vsel %vm801, %v7472, %v7473
    %v7475 = vrot.slane %v7317, 7
    %v7476 = vrot.slane %v7318, 7
    %v7477 = vsel %vm801, %v7475, %v7476
    %v7478 = vrot.slane %v7319, 7
    %v7479 = vrot.slane %v7320, 7
    %v7480 = vsel %vm801, %v7478, %v7479
    %v7481 = vrot.slane %v7321, 7
    %v7482 = vrot.slane %v7322, 7
    %v7483 = vsel %vm801, %v7481, %v7482
    %v7484 = vrot.slane %v7323, 7
    %v7485 = vrot.slane %v7324, 7
    %v7486 = vsel %vm801, %v7484, %v7485
    %v7487 = vrot.slane %v7325, 7
    %v7488 = vrot.slane %v7326, 7
    %v7489 = vsel %vm801, %v7487, %v7488
    %v7490 = vrot.slane %v7327, 7
    %v7491 = vrot.slane %v7328, 7
    %v7492 = vsel %vm801, %v7490, %v7491
    %v7493 = vrot.slane %v7329, 7
    %v7494 = vrot.slane %v7330, 7
    %v7495 = vsel %vm801, %v7493, %v7494
    %v7496 = vrot.slane %v7331, 7
    %v7497 = vrot.slane %v7332, 7
    %v7498 = vsel %vm801, %v7496, %v7497
    %v7499 = vrot.slane %v7333, 7
    %v7500 = vrot.slane %v7334, 7
    %v7501 = vsel %vm801, %v7499, %v7500
    %v7502 = vrot.slane %v7335, 7
    %v7503 = vrot.slane %v7336, 7
    %v7504 = vsel %vm801, %v7502, %v7503
    %v7505 = vrot.slane %v7337, 7
    %v7506 = vrot.slane %v7338, 7
    %v7507 = vsel %vm801, %v7505, %v7506
    %v7508 = vrot.slane %v7339, 7
    %v7509 = vrot.slane %v7340, 7
    %v7510 = vsel %vm801, %v7508, %v7509
    %v7511 = vrot.slane %v7341, 7
    %v7512 = vrot.slane %v7342, 7
    %v7513 = vsel %vm801, %v7511, %v7512
    %v7514 = vrot.slane %v7343, 7
    %v7515 = vrot.slane %v7344, 7
    %v7516 = vsel %vm801, %v7514, %v7515
    %v7517 = vrot.slane %v7345, 7
    %v7518 = vrot.slane %v7346, 7
    %v7519 = vsel %vm801, %v7517, %v7518
    %v7520 = vrot.slane %v7347, 7
    %v7521 = vrot.slane %v7348, 7
    %v7522 = vsel %vm801, %v7520, %v7521
    %v7523 = vrot.slane %v7349, 7
    %v7524 = vrot.slane %v7350, 7
    %v7525 = vsel %vm801, %v7523, %v7524
    %v7526 = vrot.slane %v7351, 7
    %v7527 = vrot.slane %v7352, 7
    %v7528 = vsel %vm801, %v7526, %v7527
    %v7529 = vrot.slane %v7353, 7
    %v7530 = vrot.slane %v7354, 7
    %v7531 = vsel %vm801, %v7529, %v7530
    %v7532 = vrot.slane %v7355, 7
    %v7533 = vrot.slane %v7356, 7
    %v7534 = vsel %vm801, %v7532, %v7533
    %v7535 = vrot.slane %v7357, 7
    %v7536 = vrot.slane %v7358, 7
    %v7537 = vsel %vm801, %v7535, %v7536
    %v7538 = vrot.slane %v7359, 7
    %v7539 = vrot.slane %v7360, 7
    %v7540 = vsel %vm801, %v7538, %v7539
    %v7541 = vrot.slane %v7361, 7
    %v7542 = vrot.slane %v7362, 7
    %v7543 = vsel %vm801, %v7541, %v7542
    %v7544 = vrot.slane %v7363, 7
    %v7545 = vrot.slane %v7364, 7
    %v7546 = vsel %vm801, %v7544, %v7545
    %v7547 = vrot.slane %v7365, 7
    %v7548 = vrot.slane %v7366, 7
    %v7549 = vsel %vm801, %v7547, %v7548
    %v7614 = vsel %vm801, 0.0, %v7454
    %v7615 = vsel %vm801, 0.0, %v7457
    %v7616 = vsel %vm801, 0.0, %v7460
    %v7617 = vsel %vm801, 0.0, %v7463
    %v7618 = vsel %vm801, 0.0, %v7466
    %v7619 = vsel %vm801, 0.0, %v7469
    %v7620 = vsel %vm801, 0.0, %v7472
    %v7621 = vsel %vm801, 0.0, %v7475
    %v7622 = vsel %vm801, 0.0, %v7478
    %v7623 = vsel %vm801, 0.0, %v7481
    %v7624 = vsel %vm801, 0.0, %v7484
    %v7625 = vsel %vm801, 0.0, %v7487
    %v7626 = vsel %vm801, 0.0, %v7490
    %v7627 = vsel %vm801, 0.0, %v7493
    %v7628 = vsel %vm801, 0.0, %v7496
    %v7629 = vsel %vm801, 0.0, %v7499
    %v7630 = vsel %vm801, 0.0, %v7502
    %v7631 = vsel %vm801, 0.0, %v7505
    %v7632 = vsel %vm801, 0.0, %v7508
    %v7633 = vsel %vm801, 0.0, %v7511
    %v7634 = vsel %vm801, 0.0, %v7514
    %v7635 = vsel %vm801, 0.0, %v7517
    %v7636 = vsel %vm801, 0.0, %v7520
    %v7637 = vsel %vm801, 0.0, %v7523
    %v7638 = vsel %vm801, 0.0, %v7526
    %v7639 = vsel %vm801, 0.0, %v7529
    %v7640 = vsel %vm801, 0.0, %v7532
    %v7641 = vsel %vm801, 0.0, %v7535
    %v7642 = vsel %vm801, 0.0, %v7538
    %v7643 = vsel %vm801, 0.0, %v7541
    %v7644 = vsel %vm801, 0.0, %v7544
    %v7645 = vsel %vm801, 0.0, %v7547
    %v7646 = vrot.slane %v7303, 1
    %v7647 = vrot.slane %v7304, 1
    %v7648 = vsel %vm999, %v7646, %v7647
    %v7649 = vrot.slane %v7305, 1
    %v7650 = vrot.slane %v7306, 1
    %v7651 = vsel %vm999, %v7649, %v7650
    %v7652 = vrot.slane %v7307, 1
    %v7653 = vrot.slane %v7308, 1
    %v7654 = vsel %vm999, %v7652, %v7653
    %v7655 = vrot.slane %v7309, 1
    %v7656 = vrot.slane %v7310, 1
    %v7657 = vsel %vm999, %v7655, %v7656
    %v7658 = vrot.slane %v7311, 1
    %v7659 = vrot.slane %v7312, 1
    %v7660 = vsel %vm999, %v7658, %v7659
    %v7661 = vrot.slane %v7313, 1
    %v7662 = vrot.slane %v7314, 1
    %v7663 = vsel %vm999, %v7661, %v7662
    %v7664 = vrot.slane %v7315, 1
    %v7665 = vrot.slane %v7316, 1
    %v7666 = vsel %vm999, %v7664, %v7665
    %v7667 = vrot.slane %v7317, 1
    %v7668 = vrot.slane %v7318, 1
    %v7669 = vsel %vm999, %v7667, %v7668
    %v7670 = vrot.slane %v7319, 1
    %v7671 = vrot.slane %v7320, 1
    %v7672 = vsel %vm999, %v7670, %v7671
    %v7673 = vrot.slane %v7321, 1
    %v7674 = vrot.slane %v7322, 1
    %v7675 = vsel %vm999, %v7673, %v7674
    %v7676 = vrot.slane %v7323, 1
    %v7677 = vrot.slane %v7324, 1
    %v7678 = vsel %vm999, %v7676, %v7677
    %v7679 = vrot.slane %v7325, 1
    %v7680 = vrot.slane %v7326, 1
    %v7681 = vsel %vm999, %v7679, %v7680
    %v7682 = vrot.slane %v7327, 1
    %v7683 = vrot.slane %v7328, 1
    %v7684 = vsel %vm999, %v7682, %v7683
    %v7685 = vrot.slane %v7329, 1
    %v7686 = vrot.slane %v7330, 1
    %v7687 = vsel %vm999, %v7685, %v7686
    %v7688 = vrot.slane %v7331, 1
    %v7689 = vrot.slane %v7332, 1
    %v7690 = vsel %vm999, %v7688, %v7689
    %v7691 = vrot.slane %v7333, 1
    %v7692 = vrot.slane %v7334, 1
    %v7693 = vsel %vm999, %v7691, %v7692
    %v7694 = vrot.slane %v7335, 1
    %v7695 = vrot.slane %v7336, 1
    %v7696 = vsel %vm999, %v7694, %v7695
    %v7697 = vrot.slane %v7337, 1
    %v7698 = vrot.slane %v7338, 1
    %v7699 = vsel %vm999, %v7697, %v7698
    %v7700 = vrot.slane %v7339, 1
    %v7701 = vrot.slane %v7340, 1
    %v7702 = vsel %vm999, %v7700, %v7701
    %v7703 = vrot.slane %v7341, 1
    %v7704 = vrot.slane %v7342, 1
    %v7705 = vsel %vm999, %v7703, %v7704
    %v7706 = vrot.slane %v7343, 1
    %v7707 = vrot.slane %v7344, 1
    %v7708 = vsel %vm999, %v7706, %v7707
    %v7709 = vrot.slane %v7345, 1
    %v7710 = vrot.slane %v7346, 1
    %v7711 = vsel %vm999, %v7709, %v7710
    %v7712 = vrot.slane %v7347, 1
    %v7713 = vrot.slane %v7348, 1
    %v7714 = vsel %vm999, %v7712, %v7713
    %v7715 = vrot.slane %v7349, 1
    %v7716 = vrot.slane %v7350, 1
    %v7717 = vsel %vm999, %v7715, %v7716
    %v7718 = vrot.slane %v7351, 1
    %v7719 = vrot.slane %v7352, 1
    %v7720 = vsel %vm999, %v7718, %v7719
    %v7721 = vrot.slane %v7353, 1
    %v7722 = vrot.slane %v7354, 1
    %v7723 = vsel %vm999, %v7721, %v7722
    %v7724 = vrot.slane %v7355, 1
    %v7725 = vrot.slane %v7356, 1
    %v7726 = vsel %vm999, %v7724, %v7725
    %v7727 = vrot.slane %v7357, 1
    %v7728 = vrot.slane %v7358, 1
    %v7729 = vsel %vm999, %v7727, %v7728
    %v7730 = vrot.slane %v7359, 1
    %v7731 = vrot.slane %v7360, 1
    %v7732 = vsel %vm999, %v7730, %v7731
    %v7733 = vrot.slane %v7361, 1
    %v7734 = vrot.slane %v7362, 1
    %v7735 = vsel %vm999, %v7733, %v7734
    %v7736 = vrot.slane %v7363, 1
    %v7737 = vrot.slane %v7364, 1
    %v7738 = vsel %vm999, %v7736, %v7737
    %v7739 = vrot.slane %v7365, 1
    %v7740 = vrot.slane %v7366, 1
    %v7741 = vsel %vm999, %v7739, %v7740
    %v7806 = vsel %vm999, %v7647, 0.0
    %v7807 = vsel %vm999, %v7650, 0.0
    %v7808 = vsel %vm999, %v7653, 0.0
    %v7809 = vsel %vm999, %v7656, 0.0
    %v7810 = vsel %vm999, %v7659, 0.0
    %v7811 = vsel %vm999, %v7662, 0.0
    %v7812 = vsel %vm999, %v7665, 0.0
    %v7813 = vsel %vm999, %v7668, 0.0
    %v7814 = vsel %vm999, %v7671, 0.0
    %v7815 = vsel %vm999, %v7674, 0.0
    %v7816 = vsel %vm999, %v7677, 0.0
    %v7817 = vsel %vm999, %v7680, 0.0
    %v7818 = vsel %vm999, %v7683, 0.0
    %v7819 = vsel %vm999, %v7686, 0.0
    %v7820 = vsel %vm999, %v7689, 0.0
    %v7821 = vsel %vm999, %v7692, 0.0
    %v7822 = vsel %vm999, %v7695, 0.0
    %v7823 = vsel %vm999, %v7698, 0.0
    %v7824 = vsel %vm999, %v7701, 0.0
    %v7825 = vsel %vm999, %v7704, 0.0
    %v7826 = vsel %vm999, %v7707, 0.0
    %v7827 = vsel %vm999, %v7710, 0.0
    %v7828 = vsel %vm999, %v7713, 0.0
    %v7829 = vsel %vm999, %v7716, 0.0
    %v7830 = vsel %vm999, %v7719, 0.0
    %v7831 = vsel %vm999, %v7722, 0.0
    %v7832 = vsel %vm999, %v7725, 0.0
    %v7833 = vsel %vm999, %v7728, 0.0
    %v7834 = vsel %vm999, %v7731, 0.0
    %v7835 = vsel %vm999, %v7734, 0.0
    %v7836 = vsel %vm999, %v7737, 0.0
    %v7837 = vsel %vm999, %v7740, 0.0
    %v7838 = vlaneseq
    %v7839 = vshrl.u32 %v7838, 7
    %v7840 = vsub.s32 0, %v7839
    %v7841 = vrot.slane %v7367, %v7840
    %v7842 = vmul.f32 %v966, %v7841
    %v7843 = vmul.f32 %v803, %v7841
    %v7844 = vmul.f32 %v7614, %v7841
    %v7845 = vmul.f32 %v7456, %v7841
    %v7846 = vmul.f32 %v7615, %v7841
    %v7847 = vmul.f32 %v7459, %v7841
    %v7848 = vmul.f32 %v7616, %v7841
    %v7849 = vmul.f32 %v7462, %v7841
    %v7850 = vmul.f32 %v7617, %v7841
    %v7851 = vmul.f32 %v7465, %v7841
    %v7852 = vmul.f32 %v7618, %v7841
    %v7853 = vmul.f32 %v7468, %v7841
    %v7854 = vmul.f32 %v7619, %v7841
    %v7855 = vmul.f32 %v7471, %v7841
    %v7856 = vmul.f32 %v7620, %v7841
    %v7857 = vmul.f32 %v7474, %v7841
    %v7858 = vmul.f32 %v7621, %v7841
    %v7859 = vmul.f32 %v7477, %v7841
    %v7860 = vmul.f32 %v7622, %v7841
    %v7861 = vmul.f32 %v7480, %v7841
    %v7862 = vmul.f32 %v7623, %v7841
    %v7863 = vmul.f32 %v7483, %v7841
    %v7864 = vmul.f32 %v7624, %v7841
    %v7865 = vmul.f32 %v7486, %v7841
    %v7866 = vmul.f32 %v7625, %v7841
    %v7867 = vmul.f32 %v7489, %v7841
    %v7868 = vmul.f32 %v7626, %v7841
    %v7869 = vmul.f32 %v7492, %v7841
    %v7870 = vmul.f32 %v7627, %v7841
    %v7871 = vmul.f32 %v7495, %v7841
    %v7872 = vmul.f32 %v7628, %v7841
    %v7873 = vmul.f32 %v7498, %v7841
    %v7874 = vmul.f32 %v7630, %v7841
    %v7875 = vmul.f32 %v7504, %v7841
    %v7876 = vmul.f32 %v7631, %v7841
    %v7877 = vmul.f32 %v7507, %v7841
    %v7878 = vmul.f32 %v7632, %v7841
    %v7879 = vmul.f32 %v7510, %v7841
    %v7880 = vmul.f32 %v7633, %v7841
    %v7881 = vmul.f32 %v7513, %v7841
    %v7882 = vmul.f32 %v7634, %v7841
    %v7883 = vmul.f32 %v7516, %v7841
    %v7884 = vmul.f32 %v7635, %v7841
    %v7885 = vmul.f32 %v7519, %v7841
    %v7886 = vmul.f32 %v7636, %v7841
    %v7887 = vmul.f32 %v7522, %v7841
    %v7888 = vmul.f32 %v7637, %v7841
    %v7889 = vmul.f32 %v7525, %v7841
    %v7890 = vmul.f32 %v7638, %v7841
    %v7891 = vmul.f32 %v7528, %v7841
    %v7892 = vmul.f32 %v7639, %v7841
    %v7893 = vmul.f32 %v7531, %v7841
    %v7894 = vmul.f32 %v7640, %v7841
    %v7895 = vmul.f32 %v7534, %v7841
    %v7896 = vmul.f32 %v7641, %v7841
    %v7897 = vmul.f32 %v7537, %v7841
    %v7898 = vmul.f32 %v7642, %v7841
    %v7899 = vmul.f32 %v7540, %v7841
    %v7900 = vmul.f32 %v7643, %v7841
    %v7901 = vmul.f32 %v7543, %v7841
    %v7902 = vmul.f32 %v7644, %v7841
    %v7903 = vmul.f32 %v7546, %v7841
    %v7904 = vadd.f32 %v7842, 0.0
    %v7905 = vadd.f32 %v7843, 0.0
    %v7906 = vadd.f32 %v7844, 0.0
    %v7907 = vadd.f32 %v7845, 0.0
    %v7908 = vadd.f32 %v7846, 0.0
    %v7909 = vadd.f32 %v7847, 0.0
    %v7910 = vadd.f32 %v7848, 0.0
    %v7911 = vadd.f32 %v7849, 0.0
    %v7912 = vadd.f32 %v7850, 0.0
    %v7913 = vadd.f32 %v7851, 0.0
    %v7914 = vadd.f32 %v7852, 0.0
    %v7915 = vadd.f32 %v7853, 0.0
    %v7916 = vadd.f32 %v7854, 0.0
    %v7917 = vadd.f32 %v7855, 0.0
    %v7918 = vadd.f32 %v7856, 0.0
    %v7919 = vadd.f32 %v7857, 0.0
    %v7920 = vadd.f32 %v7858, 0.0
    %v7921 = vadd.f32 %v7859, 0.0
    %v7922 = vadd.f32 %v7860, 0.0
    %v7923 = vadd.f32 %v7861, 0.0
    %v7924 = vadd.f32 %v7862, 0.0
    %v7925 = vadd.f32 %v7863, 0.0
    %v7926 = vadd.f32 %v7864, 0.0
    %v7927 = vadd.f32 %v7865, 0.0
    %v7928 = vadd.f32 %v7866, 0.0
    %v7929 = vadd.f32 %v7867, 0.0
    %v7930 = vadd.f32 %v7868, 0.0
    %v7931 = vadd.f32 %v7869, 0.0
    %v7932 = vadd.f32 %v7870, 0.0
    %v7933 = vadd.f32 %v7871, 0.0
    %v7934 = vadd.f32 %v7872, 0.0
    %v7935 = vadd.f32 %v7873, 0.0
    %v7936 = vadd.f32 %v7874, 0.0
    %v7937 = vadd.f32 %v7875, 0.0
    %v7938 = vadd.f32 %v7876, 0.0
    %v7939 = vadd.f32 %v7877, 0.0
    %v7940 = vadd.f32 %v7878, 0.0
    %v7941 = vadd.f32 %v7879, 0.0
    %v7942 = vadd.f32 %v7880, 0.0
    %v7943 = vadd.f32 %v7881, 0.0
    %v7944 = vadd.f32 %v7882, 0.0
    %v7945 = vadd.f32 %v7883, 0.0
    %v7946 = vadd.f32 %v7884, 0.0
    %v7947 = vadd.f32 %v7885, 0.0
    %v7948 = vadd.f32 %v7886, 0.0
    %v7949 = vadd.f32 %v7887, 0.0
    %v7950 = vadd.f32 %v7888, 0.0
    %v7951 = vadd.f32 %v7889, 0.0
    %v7952 = vadd.f32 %v7890, 0.0
    %v7953 = vadd.f32 %v7891, 0.0
    %v7954 = vadd.f32 %v7892, 0.0
    %v7955 = vadd.f32 %v7893, 0.0
    %v7956 = vadd.f32 %v7894, 0.0
    %v7957 = vadd.f32 %v7895, 0.0
    %v7958 = vadd.f32 %v7896, 0.0
    %v7959 = vadd.f32 %v7897, 0.0
    %v7960 = vadd.f32 %v7898, 0.0
    %v7961 = vadd.f32 %v7899, 0.0
    %v7962 = vadd.f32 %v7900, 0.0
    %v7963 = vadd.f32 %v7901, 0.0
    %v7964 = vadd.f32 %v7902, 0.0
    %v7965 = vadd.f32 %v7903, 0.0
    %v7966 = vlaneseq
    %v7967 = vshrl.u32 %v7966, 7
    %v7968 = vsub.s32 1, %v7967
    %v7969 = vrot.slane %v7367, %v7968
    %v7970 = vmul.f32 %v7969, 0.0
    %v7971 = vmul.f32 %v7303, %v7969
    %v7972 = vmul.f32 %v7304, %v7969
    %v7973 = vmul.f32 %v7305, %v7969
    %v7974 = vmul.f32 %v7306, %v7969
    %v7975 = vmul.f32 %v7307, %v7969
    %v7976 = vmul.f32 %v7308, %v7969
    %v7977 = vmul.f32 %v7309, %v7969
    %v7978 = vmul.f32 %v7310, %v7969
    %v7979 = vmul.f32 %v7311, %v7969
    %v7980 = vmul.f32 %v7312, %v7969
    %v7981 = vmul.f32 %v7313, %v7969
    %v7982 = vmul.f32 %v7314, %v7969
    %v7983 = vmul.f32 %v7315, %v7969
    %v7984 = vmul.f32 %v7316, %v7969
    %v7985 = vmul.f32 %v7317, %v7969
    %v7986 = vmul.f32 %v7318, %v7969
    %v7987 = vmul.f32 %v7319, %v7969
    %v7988 = vmul.f32 %v7320, %v7969
    %v7989 = vmul.f32 %v7321, %v7969
    %v7990 = vmul.f32 %v7322, %v7969
    %v7991 = vmul.f32 %v7323, %v7969
    %v7992 = vmul.f32 %v7324, %v7969
    %v7993 = vmul.f32 %v7325, %v7969
    %v7994 = vmul.f32 %v7326, %v7969
    %v7995 = vmul.f32 %v7327, %v7969
    %v7996 = vmul.f32 %v7328, %v7969
    %v7997 = vmul.f32 %v7329, %v7969
    %v7998 = vmul.f32 %v7330, %v7969
    %v7999 = vmul.f32 %v7331, %v7969
    %v8000 = vmul.f32 %v7332, %v7969
    %v8001 = vmul.f32 %v7335, %v7969
    %v8002 = vmul.f32 %v7336, %v7969
    %v8003 = vmul.f32 %v7337, %v7969
    %v8004 = vmul.f32 %v7338, %v7969
    %v8005 = vmul.f32 %v7339, %v7969
    %v8006 = vmul.f32 %v7340, %v7969
    %v8007 = vmul.f32 %v7341, %v7969
    %v8008 = vmul.f32 %v7342, %v7969
    %v8009 = vmul.f32 %v7343, %v7969
    %v8010 = vmul.f32 %v7344, %v7969
    %v8011 = vmul.f32 %v7345, %v7969
    %v8012 = vmul.f32 %v7346, %v7969
    %v8013 = vmul.f32 %v7347, %v7969
    %v8014 = vmul.f32 %v7348, %v7969
    %v8015 = vmul.f32 %v7349, %v7969
    %v8016 = vmul.f32 %v7350, %v7969
    %v8017 = vmul.f32 %v7351, %v7969
    %v8018 = vmul.f32 %v7352, %v7969
    %v8019 = vmul.f32 %v7353, %v7969
    %v8020 = vmul.f32 %v7354, %v7969
    %v8021 = vmul.f32 %v7355, %v7969
    %v8022 = vmul.f32 %v7356, %v7969
    %v8023 = vmul.f32 %v7357, %v7969
    %v8024 = vmul.f32 %v7358, %v7969
    %v8025 = vmul.f32 %v7359, %v7969
    %v8026 = vmul.f32 %v7360, %v7969
    %v8027 = vmul.f32 %v7361, %v7969
    %v8028 = vmul.f32 %v7362, %v7969
    %v8029 = vmul.f32 %v7363, %v7969
    %v8030 = vmul.f32 %v7364, %v7969
    %v8031 = vadd.f32 %v7904, %v7970
    %v8032 = vadd.f32 %v7905, %v7970
    %v8033 = vadd.f32 %v7906, %v7971
    %v8034 = vadd.f32 %v7907, %v7972
    %v8035 = vadd.f32 %v7908, %v7973
    %v8036 = vadd.f32 %v7909, %v7974
    %v8037 = vadd.f32 %v7910, %v7975
    %v8038 = vadd.f32 %v7911, %v7976
    %v8039 = vadd.f32 %v7912, %v7977
    %v8040 = vadd.f32 %v7913, %v7978
    %v8041 = vadd.f32 %v7914, %v7979
    %v8042 = vadd.f32 %v7915, %v7980
    %v8043 = vadd.f32 %v7916, %v7981
    %v8044 = vadd.f32 %v7917, %v7982
    %v8045 = vadd.f32 %v7918, %v7983
    %v8046 = vadd.f32 %v7919, %v7984
    %v8047 = vadd.f32 %v7920, %v7985
    %v8048 = vadd.f32 %v7921, %v7986
    %v8049 = vadd.f32 %v7922, %v7987
    %v8050 = vadd.f32 %v7923, %v7988
    %v8051 = vadd.f32 %v7924, %v7989
    %v8052 = vadd.f32 %v7925, %v7990
    %v8053 = vadd.f32 %v7926, %v7991
    %v8054 = vadd.f32 %v7927, %v7992
    %v8055 = vadd.f32 %v7928, %v7993
    %v8056 = vadd.f32 %v7929, %v7994
    %v8057 = vadd.f32 %v7930, %v7995
    %v8058 = vadd.f32 %v7931, %v7996
    %v8059 = vadd.f32 %v7932, %v7997
    %v8060 = vadd.f32 %v7933, %v7998
    %v8061 = vadd.f32 %v7934, %v7999
    %v8062 = vadd.f32 %v7935, %v8000
    %v8063 = vadd.f32 %v7936, %v8001
    %v8064 = vadd.f32 %v7937, %v8002
    %v8065 = vadd.f32 %v7938, %v8003
    %v8066 = vadd.f32 %v7939, %v8004
    %v8067 = vadd.f32 %v7940, %v8005
    %v8068 = vadd.f32 %v7941, %v8006
    %v8069 = vadd.f32 %v7942, %v8007
    %v8070 = vadd.f32 %v7943, %v8008
    %v8071 = vadd.f32 %v7944, %v8009
    %v8072 = vadd.f32 %v7945, %v8010
    %v8073 = vadd.f32 %v7946, %v8011
    %v8074 = vadd.f32 %v7947, %v8012
    %v8075 = vadd.f32 %v7948, %v8013
    %v8076 = vadd.f32 %v7949, %v8014
    %v8077 = vadd.f32 %v7950, %v8015
    %v8078 = vadd.f32 %v7951, %v8016
    %v8079 = vadd.f32 %v7952, %v8017
    %v8080 = vadd.f32 %v7953, %v8018
    %v8081 = vadd.f32 %v7954, %v8019
    %v8082 = vadd.f32 %v7955, %v8020
    %v8083 = vadd.f32 %v7956, %v8021
    %v8084 = vadd.f32 %v7957, %v8022
    %v8085 = vadd.f32 %v7958, %v8023
    %v8086 = vadd.f32 %v7959, %v8024
    %v8087 = vadd.f32 %v7960, %v8025
    %v8088 = vadd.f32 %v7961, %v8026
    %v8089 = vadd.f32 %v7962, %v8027
    %v8090 = vadd.f32 %v7963, %v8028
    %v8091 = vadd.f32 %v7964, %v8029
    %v8092 = vadd.f32 %v7965, %v8030
    %v8093 = vlaneseq
    %v8094 = vshrl.u32 %v8093, 7
    %v8095 = vsub.s32 2, %v8094
    %v8096 = vrot.slane %v7367, %v8095
    %v8097 = vmul.f32 %v1001, %v8096
    %v8098 = vmul.f32 %v1164, %v8096
    %v8099 = vmul.f32 %v7648, %v8096
    %v8100 = vmul.f32 %v7806, %v8096
    %v8101 = vmul.f32 %v7651, %v8096
    %v8102 = vmul.f32 %v7807, %v8096
    %v8103 = vmul.f32 %v7654, %v8096
    %v8104 = vmul.f32 %v7808, %v8096
    %v8105 = vmul.f32 %v7657, %v8096
    %v8106 = vmul.f32 %v7809, %v8096
    %v8107 = vmul.f32 %v7660, %v8096
    %v8108 = vmul.f32 %v7810, %v8096
    %v8109 = vmul.f32 %v7663, %v8096
    %v8110 = vmul.f32 %v7811, %v8096
    %v8111 = vmul.f32 %v7666, %v8096
    %v8112 = vmul.f32 %v7812, %v8096
    %v8113 = vmul.f32 %v7669, %v8096
    %v8114 = vmul.f32 %v7813, %v8096
    %v8115 = vmul.f32 %v7672, %v8096
    %v8116 = vmul.f32 %v7814, %v8096
    %v8117 = vmul.f32 %v7675, %v8096
    %v8118 = vmul.f32 %v7815, %v8096
    %v8119 = vmul.f32 %v7678, %v8096
    %v8120 = vmul.f32 %v7816, %v8096
    %v8121 = vmul.f32 %v7681, %v8096
    %v8122 = vmul.f32 %v7817, %v8096
    %v8123 = vmul.f32 %v7684, %v8096
    %v8124 = vmul.f32 %v7818, %v8096
    %v8125 = vmul.f32 %v7687, %v8096
    %v8126 = vmul.f32 %v7819, %v8096
    %v8127 = vmul.f32 %v7690, %v8096
    %v8128 = vmul.f32 %v7820, %v8096
    %v8129 = vmul.f32 %v7696, %v8096
    %v8130 = vmul.f32 %v7822, %v8096
    %v8131 = vmul.f32 %v7699, %v8096
    %v8132 = vmul.f32 %v7823, %v8096
    %v8133 = vmul.f32 %v7702, %v8096
    %v8134 = vmul.f32 %v7824, %v8096
    %v8135 = vmul.f32 %v7705, %v8096
    %v8136 = vmul.f32 %v7825, %v8096
    %v8137 = vmul.f32 %v7708, %v8096
    %v8138 = vmul.f32 %v7826, %v8096
    %v8139 = vmul.f32 %v7711, %v8096
    %v8140 = vmul.f32 %v7827, %v8096
    %v8141 = vmul.f32 %v7714, %v8096
    %v8142 = vmul.f32 %v7828, %v8096
    %v8143 = vmul.f32 %v7717, %v8096
    %v8144 = vmul.f32 %v7829, %v8096
    %v8145 = vmul.f32 %v7720, %v8096
    %v8146 = vmul.f32 %v7830, %v8096
    %v8147 = vmul.f32 %v7723, %v8096
    %v8148 = vmul.f32 %v7831, %v8096
    %v8149 = vmul.f32 %v7726, %v8096
    %v8150 = vmul.f32 %v7832, %v8096
    %v8151 = vmul.f32 %v7729, %v8096
    %v8152 = vmul.f32 %v7833, %v8096
    %v8153 = vmul.f32 %v7732, %v8096
    %v8154 = vmul.f32 %v7834, %v8096
    %v8155 = vmul.f32 %v7735, %v8096
    %v8156 = vmul.f32 %v7835, %v8096
    %v8157 = vmul.f32 %v7738, %v8096
    %v8158 = vmul.f32 %v7836, %v8096
    %v8159 = vadd.f32 %v8031, %v8097
    %v8160 = vadd.f32 %v8032, %v8098
    %v8161 = vadd.f32 %v8033, %v8099
    %v8162 = vadd.f32 %v8034, %v8100
    %v8163 = vadd.f32 %v8035, %v8101
    %v8164 = vadd.f32 %v8036, %v8102
    %v8165 = vadd.f32 %v8037, %v8103
    %v8166 = vadd.f32 %v8038, %v8104
    %v8167 = vadd.f32 %v8039, %v8105
    %v8168 = vadd.f32 %v8040, %v8106
    %v8169 = vadd.f32 %v8041, %v8107
    %v8170 = vadd.f32 %v8042, %v8108
    %v8171 = vadd.f32 %v8043, %v8109
    %v8172 = vadd.f32 %v8044, %v8110
    %v8173 = vadd.f32 %v8045, %v8111
    %v8174 = vadd.f32 %v8046, %v8112
    %v8175 = vadd.f32 %v8047, %v8113
    %v8176 = vadd.f32 %v8048, %v8114
    %v8177 = vadd.f32 %v8049, %v8115
    %v8178 = vadd.f32 %v8050, %v8116
    %v8179 = vadd.f32 %v8051, %v8117
    %v8180 = vadd.f32 %v8052, %v8118
    %v8181 = vadd.f32 %v8053, %v8119
    %v8182 = vadd.f32 %v8054, %v8120
    %v8183 = vadd.f32 %v8055, %v8121
    %v8184 = vadd.f32 %v8056, %v8122
    %v8185 = vadd.f32 %v8057, %v8123
    %v8186 = vadd.f32 %v8058, %v8124
    %v8187 = vadd.f32 %v8059, %v8125
    %v8188 = vadd.f32 %v8060, %v8126
    %v8189 = vadd.f32 %v8061, %v8127
    %v8190 = vadd.f32 %v8062, %v8128
    %v8191 = vadd.f32 %v8063, %v8129
    %v8192 = vadd.f32 %v8064, %v8130
    %v8193 = vadd.f32 %v8065, %v8131
    %v8194 = vadd.f32 %v8066, %v8132
    %v8195 = vadd.f32 %v8067, %v8133
    %v8196 = vadd.f32 %v8068, %v8134
    %v8197 = vadd.f32 %v8069, %v8135
    %v8198 = vadd.f32 %v8070, %v8136
    %v8199 = vadd.f32 %v8071, %v8137
    %v8200 = vadd.f32 %v8072, %v8138
    %v8201 = vadd.f32 %v8073, %v8139
    %v8202 = vadd.f32 %v8074, %v8140
    %v8203 = vadd.f32 %v8075, %v8141
    %v8204 = vadd.f32 %v8076, %v8142
    %v8205 = vadd.f32 %v8077, %v8143
    %v8206 = vadd.f32 %v8078, %v8144
    %v8207 = vadd.f32 %v8079, %v8145
    %v8208 = vadd.f32 %v8080, %v8146
    %v8209 = vadd.f32 %v8081, %v8147
    %v8210 = vadd.f32 %v8082, %v8148
    %v8211 = vadd.f32 %v8083, %v8149
    %v8212 = vadd.f32 %v8084, %v8150
    %v8213 = vadd.f32 %v8085, %v8151
    %v8214 = vadd.f32 %v8086, %v8152
    %v8215 = vadd.f32 %v8087, %v8153
    %v8216 = vadd.f32 %v8088, %v8154
    %v8217 = vadd.f32 %v8089, %v8155
    %v8218 = vadd.f32 %v8090, %v8156
    %v8219 = vadd.f32 %v8091, %v8157
    %v8220 = vadd.f32 %v8092, %v8158
    %v8221 = vlaneseq
    %v8222 = vshrl.u32 %v8221, 7
    %v8223 = vsub.s32 0, %v8222
    %v8224 = vrot.slane %v7368, %v8223
    %v8225 = vmul.f32 %v7614, %v8224
    %v8226 = vmul.f32 %v7456, %v8224
    %v8227 = vmul.f32 %v7615, %v8224
    %v8228 = vmul.f32 %v7459, %v8224
    %v8229 = vmul.f32 %v7616, %v8224
    %v8230 = vmul.f32 %v7462, %v8224
    %v8231 = vmul.f32 %v7617, %v8224
    %v8232 = vmul.f32 %v7465, %v8224
    %v8233 = vmul.f32 %v7618, %v8224
    %v8234 = vmul.f32 %v7468, %v8224
    %v8235 = vmul.f32 %v7619, %v8224
    %v8236 = vmul.f32 %v7471, %v8224
    %v8237 = vmul.f32 %v7620, %v8224
    %v8238 = vmul.f32 %v7474, %v8224
    %v8239 = vmul.f32 %v7621, %v8224
    %v8240 = vmul.f32 %v7477, %v8224
    %v8241 = vmul.f32 %v7622, %v8224
    %v8242 = vmul.f32 %v7480, %v8224
    %v8243 = vmul.f32 %v7623, %v8224
    %v8244 = vmul.f32 %v7483, %v8224
    %v8245 = vmul.f32 %v7624, %v8224
    %v8246 = vmul.f32 %v7486, %v8224
    %v8247 = vmul.f32 %v7625, %v8224
    %v8248 = vmul.f32 %v7489, %v8224
    %v8249 = vmul.f32 %v7626, %v8224
    %v8250 = vmul.f32 %v7492, %v8224
    %v8251 = vmul.f32 %v7627, %v8224
    %v8252 = vmul.f32 %v7495, %v8224
    %v8253 = vmul.f32 %v7628, %v8224
    %v8254 = vmul.f32 %v7498, %v8224
    %v8255 = vmul.f32 %v7629, %v8224
    %v8256 = vmul.f32 %v7501, %v8224
    %v8257 = vmul.f32 %v7630, %v8224
    %v8258 = vmul.f32 %v7504, %v8224
    %v8259 = vmul.f32 %v7631, %v8224
    %v8260 = vmul.f32 %v7507, %v8224
    %v8261 = vmul.f32 %v7632, %v8224
    %v8262 = vmul.f32 %v7510, %v8224
    %v8263 = vmul.f32 %v7633, %v8224
    %v8264 = vmul.f32 %v7513, %v8224
    %v8265 = vmul.f32 %v7634, %v8224
    %v8266 = vmul.f32 %v7516, %v8224
    %v8267 = vmul.f32 %v7635, %v8224
    %v8268 = vmul.f32 %v7519, %v8224
    %v8269 = vmul.f32 %v7636, %v8224
    %v8270 = vmul.f32 %v7522, %v8224
    %v8271 = vmul.f32 %v7637, %v8224
    %v8272 = vmul.f32 %v7525, %v8224
    %v8273 = vmul.f32 %v7638, %v8224
    %v8274 = vmul.f32 %v7528, %v8224
    %v8275 = vmul.f32 %v7639, %v8224
    %v8276 = vmul.f32 %v7531, %v8224
    %v8277 = vmul.f32 %v7640, %v8224
    %v8278 = vmul.f32 %v7534, %v8224
    %v8279 = vmul.f32 %v7641, %v8224
    %v8280 = vmul.f32 %v7537, %v8224
    %v8281 = vmul.f32 %v7642, %v8224
    %v8282 = vmul.f32 %v7540, %v8224
    %v8283 = vmul.f32 %v7643, %v8224
    %v8284 = vmul.f32 %v7543, %v8224
    %v8285 = vmul.f32 %v7644, %v8224
    %v8286 = vmul.f32 %v7546, %v8224
    %v8287 = vmul.f32 %v7645, %v8224
    %v8288 = vmul.f32 %v7549, %v8224
    %v8289 = vadd.f32 %v8159, %v8225
    %v8290 = vadd.f32 %v8160, %v8226
    %v8291 = vadd.f32 %v8161, %v8227
    %v8292 = vadd.f32 %v8162, %v8228
    %v8293 = vadd.f32 %v8163, %v8229
    %v8294 = vadd.f32 %v8164, %v8230
    %v8295 = vadd.f32 %v8165, %v8231
    %v8296 = vadd.f32 %v8166, %v8232
    %v8297 = vadd.f32 %v8167, %v8233
    %v8298 = vadd.f32 %v8168, %v8234
    %v8299 = vadd.f32 %v8169, %v8235
    %v8300 = vadd.f32 %v8170, %v8236
    %v8301 = vadd.f32 %v8171, %v8237
    %v8302 = vadd.f32 %v8172, %v8238
    %v8303 = vadd.f32 %v8173, %v8239
    %v8304 = vadd.f32 %v8174, %v8240
    %v8305 = vadd.f32 %v8175, %v8241
    %v8306 = vadd.f32 %v8176, %v8242
    %v8307 = vadd.f32 %v8177, %v8243
    %v8308 = vadd.f32 %v8178, %v8244
    %v8309 = vadd.f32 %v8179, %v8245
    %v8310 = vadd.f32 %v8180, %v8246
    %v8311 = vadd.f32 %v8181, %v8247
    %v8312 = vadd.f32 %v8182, %v8248
    %v8313 = vadd.f32 %v8183, %v8249
    %v8314 = vadd.f32 %v8184, %v8250
    %v8315 = vadd.f32 %v8185, %v8251
    %v8316 = vadd.f32 %v8186, %v8252
    %v8317 = vadd.f32 %v8187, %v8253
    %v8318 = vadd.f32 %v8188, %v8254
    %v8319 = vadd.f32 %v8189, %v8255
    %v8320 = vadd.f32 %v8190, %v8256
    %v8321 = vadd.f32 %v8159, %v8257
    %v8322 = vadd.f32 %v8160, %v8258
    %v8323 = vadd.f32 %v8191, %v8259
    %v8324 = vadd.f32 %v8192, %v8260
    %v8325 = vadd.f32 %v8193, %v8261
    %v8326 = vadd.f32 %v8194, %v8262
    %v8327 = vadd.f32 %v8195, %v8263
    %v8328 = vadd.f32 %v8196, %v8264
    %v8329 = vadd.f32 %v8197, %v8265
    %v8330 = vadd.f32 %v8198, %v8266
    %v8331 = vadd.f32 %v8199, %v8267
    %v8332 = vadd.f32 %v8200, %v8268
    %v8333 = vadd.f32 %v8201, %v8269
    %v8334 = vadd.f32 %v8202, %v8270
    %v8335 = vadd.f32 %v8203, %v8271
    %v8336 = vadd.f32 %v8204, %v8272
    %v8337 = vadd.f32 %v8205, %v8273
    %v8338 = vadd.f32 %v8206, %v8274
    %v8339 = vadd.f32 %v8207, %v8275
    %v8340 = vadd.f32 %v8208, %v8276
    %v8341 = vadd.f32 %v8209, %v8277
    %v8342 = vadd.f32 %v8210, %v8278
    %v8343 = vadd.f32 %v8211, %v8279
    %v8344 = vadd.f32 %v8212, %v8280
    %v8345 = vadd.f32 %v8213, %v8281
    %v8346 = vadd.f32 %v8214, %v8282
    %v8347 = vadd.f32 %v8215, %v8283
    %v8348 = vadd.f32 %v8216, %v8284
    %v8349 = vadd.f32 %v8217, %v8285
    %v8350 = vadd.f32 %v8218, %v8286
    %v8351 = vadd.f32 %v8219, %v8287
    %v8352 = vadd.f32 %v8220, %v8288
    %v8353 = vlaneseq
    %v8354 = vshrl.u32 %v8353, 7
    %v8355 = vsub.s32 1, %v8354
    %v8356 = vrot.slane %v7368, %v8355
    %v8357 = vmul.f32 %v7303, %v8356
    %v8358 = vmul.f32 %v7304, %v8356
    %v8359 = vmul.f32 %v7305, %v8356
    %v8360 = vmul.f32 %v7306, %v8356
    %v8361 = vmul.f32 %v7307, %v8356
    %v8362 = vmul.f32 %v7308, %v8356
    %v8363 = vmul.f32 %v7309, %v8356
    %v8364 = vmul.f32 %v7310, %v8356
    %v8365 = vmul.f32 %v7311, %v8356
    %v8366 = vmul.f32 %v7312, %v8356
    %v8367 = vmul.f32 %v7313, %v8356
    %v8368 = vmul.f32 %v7314, %v8356
    %v8369 = vmul.f32 %v7315, %v8356
    %v8370 = vmul.f32 %v7316, %v8356
    %v8371 = vmul.f32 %v7317, %v8356
    %v8372 = vmul.f32 %v7318, %v8356
    %v8373 = vmul.f32 %v7319, %v8356
    %v8374 = vmul.f32 %v7320, %v8356
    %v8375 = vmul.f32 %v7321, %v8356
    %v8376 = vmul.f32 %v7322, %v8356
    %v8377 = vmul.f32 %v7323, %v8356
    %v8378 = vmul.f32 %v7324, %v8356
    %v8379 = vmul.f32 %v7325, %v8356
    %v8380 = vmul.f32 %v7326, %v8356
    %v8381 = vmul.f32 %v7327, %v8356
    %v8382 = vmul.f32 %v7328, %v8356
    %v8383 = vmul.f32 %v7329, %v8356
    %v8384 = vmul.f32 %v7330, %v8356
    %v8385 = vmul.f32 %v7331, %v8356
    %v8386 = vmul.f32 %v7332, %v8356
    %v8387 = vmul.f32 %v7333, %v8356
    %v8388 = vmul.f32 %v7334, %v8356
    %v8389 = vmul.f32 %v7335, %v8356
    %v8390 = vmul.f32 %v7336, %v8356
    %v8391 = vmul.f32 %v7337, %v8356
    %v8392 = vmul.f32 %v7338, %v8356
    %v8393 = vmul.f32 %v7339, %v8356
    %v8394 = vmul.f32 %v7340, %v8356
    %v8395 = vmul.f32 %v7341, %v8356
    %v8396 = vmul.f32 %v7342, %v8356
    %v8397 = vmul.f32 %v7343, %v8356
    %v8398 = vmul.f32 %v7344, %v8356
    %v8399 = vmul.f32 %v7345, %v8356
    %v8400 = vmul.f32 %v7346, %v8356
    %v8401 = vmul.f32 %v7347, %v8356
    %v8402 = vmul.f32 %v7348, %v8356
    %v8403 = vmul.f32 %v7349, %v8356
    %v8404 = vmul.f32 %v7350, %v8356
    %v8405 = vmul.f32 %v7351, %v8356
    %v8406 = vmul.f32 %v7352, %v8356
    %v8407 = vmul.f32 %v7353, %v8356
    %v8408 = vmul.f32 %v7354, %v8356
    %v8409 = vmul.f32 %v7355, %v8356
    %v8410 = vmul.f32 %v7356, %v8356
    %v8411 = vmul.f32 %v7357, %v8356
    %v8412 = vmul.f32 %v7358, %v8356
    %v8413 = vmul.f32 %v7359, %v8356
    %v8414 = vmul.f32 %v7360, %v8356
    %v8415 = vmul.f32 %v7361, %v8356
    %v8416 = vmul.f32 %v7362, %v8356
    %v8417 = vmul.f32 %v7363, %v8356
    %v8418 = vmul.f32 %v7364, %v8356
    %v8419 = vmul.f32 %v7365, %v8356
    %v8420 = vmul.f32 %v7366, %v8356
    %v8421 = vadd.f32 %v8289, %v8357
    %v8422 = vadd.f32 %v8290, %v8358
    %v8423 = vadd.f32 %v8291, %v8359
    %v8424 = vadd.f32 %v8292, %v8360
    %v8425 = vadd.f32 %v8293, %v8361
    %v8426 = vadd.f32 %v8294, %v8362
    %v8427 = vadd.f32 %v8295, %v8363
    %v8428 = vadd.f32 %v8296, %v8364
    %v8429 = vadd.f32 %v8297, %v8365
    %v8430 = vadd.f32 %v8298, %v8366
    %v8431 = vadd.f32 %v8299, %v8367
    %v8432 = vadd.f32 %v8300, %v8368
    %v8433 = vadd.f32 %v8301, %v8369
    %v8434 = vadd.f32 %v8302, %v8370
    %v8435 = vadd.f32 %v8303, %v8371
    %v8436 = vadd.f32 %v8304, %v8372
    %v8437 = vadd.f32 %v8305, %v8373
    %v8438 = vadd.f32 %v8306, %v8374
    %v8439 = vadd.f32 %v8307, %v8375
    %v8440 = vadd.f32 %v8308, %v8376
    %v8441 = vadd.f32 %v8309, %v8377
    %v8442 = vadd.f32 %v8310, %v8378
    %v8443 = vadd.f32 %v8311, %v8379
    %v8444 = vadd.f32 %v8312, %v8380
    %v8445 = vadd.f32 %v8313, %v8381
    %v8446 = vadd.f32 %v8314, %v8382
    %v8447 = vadd.f32 %v8315, %v8383
    %v8448 = vadd.f32 %v8316, %v8384
    %v8449 = vadd.f32 %v8317, %v8385
    %v8450 = vadd.f32 %v8318, %v8386
    %v8451 = vadd.f32 %v8319, %v8387
    %v8452 = vadd.f32 %v8320, %v8388
    %v8453 = vadd.f32 %v8321, %v8389
    %v8454 = vadd.f32 %v8322, %v8390
    %v8455 = vadd.f32 %v8323, %v8391
    %v8456 = vadd.f32 %v8324, %v8392
    %v8457 = vadd.f32 %v8325, %v8393
    %v8458 = vadd.f32 %v8326, %v8394
    %v8459 = vadd.f32 %v8327, %v8395
    %v8460 = vadd.f32 %v8328, %v8396
    %v8461 = vadd.f32 %v8329, %v8397
    %v8462 = vadd.f32 %v8330, %v8398
    %v8463 = vadd.f32 %v8331, %v8399
    %v8464 = vadd.f32 %v8332, %v8400
    %v8465 = vadd.f32 %v8333, %v8401
    %v8466 = vadd.f32 %v8334, %v8402
    %v8467 = vadd.f32 %v8335, %v8403
    %v8468 = vadd.f32 %v8336, %v8404
    %v8469 = vadd.f32 %v8337, %v8405
    %v8470 = vadd.f32 %v8338, %v8406
    %v8471 = vadd.f32 %v8339, %v8407
    %v8472 = vadd.f32 %v8340, %v8408
    %v8473 = vadd.f32 %v8341, %v8409
    %v8474 = vadd.f32 %v8342, %v8410
    %v8475 = vadd.f32 %v8343, %v8411
    %v8476 = vadd.f32 %v8344, %v8412
    %v8477 = vadd.f32 %v8345, %v8413
    %v8478 = vadd.f32 %v8346, %v8414
    %v8479 = vadd.f32 %v8347, %v8415
    %v8480 = vadd.f32 %v8348, %v8416
    %v8481 = vadd.f32 %v8349, %v8417
    %v8482 = vadd.f32 %v8350, %v8418
    %v8483 = vadd.f32 %v8351, %v8419
    %v8484 = vadd.f32 %v8352, %v8420
    %v8485 = vlaneseq
    %v8486 = vshrl.u32 %v8485, 7
    %v8487 = vsub.s32 2, %v8486
    %v8488 = vrot.slane %v7368, %v8487
    %v8489 = vmul.f32 %v7648, %v8488
    %v8490 = vmul.f32 %v7806, %v8488
    %v8491 = vmul.f32 %v7651, %v8488
    %v8492 = vmul.f32 %v7807, %v8488
    %v8493 = vmul.f32 %v7654, %v8488
    %v8494 = vmul.f32 %v7808, %v8488
    %v8495 = vmul.f32 %v7657, %v8488
    %v8496 = vmul.f32 %v7809, %v8488
    %v8497 = vmul.f32 %v7660, %v8488
    %v8498 = vmul.f32 %v7810, %v8488
    %v8499 = vmul.f32 %v7663, %v8488
    %v8500 = vmul.f32 %v7811, %v8488
    %v8501 = vmul.f32 %v7666, %v8488
    %v8502 = vmul.f32 %v7812, %v8488
    %v8503 = vmul.f32 %v7669, %v8488
    %v8504 = vmul.f32 %v7813, %v8488
    %v8505 = vmul.f32 %v7672, %v8488
    %v8506 = vmul.f32 %v7814, %v8488
    %v8507 = vmul.f32 %v7675, %v8488
    %v8508 = vmul.f32 %v7815, %v8488
    %v8509 = vmul.f32 %v7678, %v8488
    %v8510 = vmul.f32 %v7816, %v8488
    %v8511 = vmul.f32 %v7681, %v8488
    %v8512 = vmul.f32 %v7817, %v8488
    %v8513 = vmul.f32 %v7684, %v8488
    %v8514 = vmul.f32 %v7818, %v8488
    %v8515 = vmul.f32 %v7687, %v8488
    %v8516 = vmul.f32 %v7819, %v8488
    %v8517 = vmul.f32 %v7690, %v8488
    %v8518 = vmul.f32 %v7820, %v8488
    %v8519 = vmul.f32 %v7693, %v8488
    %v8520 = vmul.f32 %v7821, %v8488
    %v8521 = vmul.f32 %v7696, %v8488
    %v8522 = vmul.f32 %v7822, %v8488
    %v8523 = vmul.f32 %v7699, %v8488
    %v8524 = vmul.f32 %v7823, %v8488
    %v8525 = vmul.f32 %v7702, %v8488
    %v8526 = vmul.f32 %v7824, %v8488
    %v8527 = vmul.f32 %v7705, %v8488
    %v8528 = vmul.f32 %v7825, %v8488
    %v8529 = vmul.f32 %v7708, %v8488
    %v8530 = vmul.f32 %v7826, %v8488
    %v8531 = vmul.f32 %v7711, %v8488
    %v8532 = vmul.f32 %v7827, %v8488
    %v8533 = vmul.f32 %v7714, %v8488
    %v8534 = vmul.f32 %v7828, %v8488
    %v8535 = vmul.f32 %v7717, %v8488
    %v8536 = vmul.f32 %v7829, %v8488
    %v8537 = vmul.f32 %v7720, %v8488
    %v8538 = vmul.f32 %v7830, %v8488
    %v8539 = vmul.f32 %v7723, %v8488
    %v8540 = vmul.f32 %v7831, %v8488
    %v8541 = vmul.f32 %v7726, %v8488
    %v8542 = vmul.f32 %v7832, %v8488
    %v8543 = vmul.f32 %v7729, %v8488
    %v8544 = vmul.f32 %v7833, %v8488
    %v8545 = vmul.f32 %v7732, %v8488
    %v8546 = vmul.f32 %v7834, %v8488
    %v8547 = vmul.f32 %v7735, %v8488
    %v8548 = vmul.f32 %v7835, %v8488
    %v8549 = vmul.f32 %v7738, %v8488
    %v8550 = vmul.f32 %v7836, %v8488
    %v8551 = vmul.f32 %v7741, %v8488
    %v8552 = vmul.f32 %v7837, %v8488
    %v8553 = vadd.f32 %v8421, %v8489
    %v8554 = vadd.f32 %v8422, %v8490
    %v8555 = vadd.f32 %v8423, %v8491
    %v8556 = vadd.f32 %v8424, %v8492
    %v8557 = vadd.f32 %v8425, %v8493
    %v8558 = vadd.f32 %v8426, %v8494
    %v8559 = vadd.f32 %v8427, %v8495
    %v8560 = vadd.f32 %v8428, %v8496
    %v8561 = vadd.f32 %v8429, %v8497
    %v8562 = vadd.f32 %v8430, %v8498
    %v8563 = vadd.f32 %v8431, %v8499
    %v8564 = vadd.f32 %v8432, %v8500
    %v8565 = vadd.f32 %v8433, %v8501
    %v8566 = vadd.f32 %v8434, %v8502
    %v8567 = vadd.f32 %v8435, %v8503
    %v8568 = vadd.f32 %v8436, %v8504
    %v8569 = vadd.f32 %v8437, %v8505
    %v8570 = vadd.f32 %v8438, %v8506
    %v8571 = vadd.f32 %v8439, %v8507
    %v8572 = vadd.f32 %v8440, %v8508
    %v8573 = vadd.f32 %v8441, %v8509
    %v8574 = vadd.f32 %v8442, %v8510
    %v8575 = vadd.f32 %v8443, %v8511
    %v8576 = vadd.f32 %v8444, %v8512
    %v8577 = vadd.f32 %v8445, %v8513
    %v8578 = vadd.f32 %v8446, %v8514
    %v8579 = vadd.f32 %v8447, %v8515
    %v8580 = vadd.f32 %v8448, %v8516
    %v8581 = vadd.f32 %v8449, %v8517
    %v8582 = vadd.f32 %v8450, %v8518
    %v8583 = vadd.f32 %v8451, %v8519
    %v8584 = vadd.f32 %v8452, %v8520
    %v8585 = vadd.f32 %v8453, %v8521
    %v8586 = vadd.f32 %v8454, %v8522
    %v8587 = vadd.f32 %v8455, %v8523
    %v8588 = vadd.f32 %v8456, %v8524
    %v8589 = vadd.f32 %v8457, %v8525
    %v8590 = vadd.f32 %v8458, %v8526
    %v8591 = vadd.f32 %v8459, %v8527
    %v8592 = vadd.f32 %v8460, %v8528
    %v8593 = vadd.f32 %v8461, %v8529
    %v8594 = vadd.f32 %v8462, %v8530
    %v8595 = vadd.f32 %v8463, %v8531
    %v8596 = vadd.f32 %v8464, %v8532
    %v8597 = vadd.f32 %v8465, %v8533
    %v8598 = vadd.f32 %v8466, %v8534
    %v8599 = vadd.f32 %v8467, %v8535
    %v8600 = vadd.f32 %v8468, %v8536
    %v8601 = vadd.f32 %v8469, %v8537
    %v8602 = vadd.f32 %v8470, %v8538
    %v8603 = vadd.f32 %v8471, %v8539
    %v8604 = vadd.f32 %v8472, %v8540
    %v8605 = vadd.f32 %v8473, %v8541
    %v8606 = vadd.f32 %v8474, %v8542
    %v8607 = vadd.f32 %v8475, %v8543
    %v8608 = vadd.f32 %v8476, %v8544
    %v8609 = vadd.f32 %v8477, %v8545
    %v8610 = vadd.f32 %v8478, %v8546
    %v8611 = vadd.f32 %v8479, %v8547
    %v8612 = vadd.f32 %v8480, %v8548
    %v8613 = vadd.f32 %v8481, %v8549
    %v8614 = vadd.f32 %v8482, %v8550
    %v8615 = vadd.f32 %v8483, %v8551
    %v8616 = vadd.f32 %v8484, %v8552
    %v8617 = vlaneseq
    %v8618 = vshrl.u32 %v8617, 7
    %v8619 = vsub.s32 0, %v8618
    %v8620 = vrot.slane %v7369, %v8619
    %v8621 = vmul.f32 %v7615, %v8620
    %v8622 = vmul.f32 %v7459, %v8620
    %v8623 = vmul.f32 %v7616, %v8620
    %v8624 = vmul.f32 %v7462, %v8620
    %v8625 = vmul.f32 %v7617, %v8620
    %v8626 = vmul.f32 %v7465, %v8620
    %v8627 = vmul.f32 %v7618, %v8620
    %v8628 = vmul.f32 %v7468, %v8620
    %v8629 = vmul.f32 %v7619, %v8620
    %v8630 = vmul.f32 %v7471, %v8620
    %v8631 = vmul.f32 %v7620, %v8620
    %v8632 = vmul.f32 %v7474, %v8620
    %v8633 = vmul.f32 %v7621, %v8620
    %v8634 = vmul.f32 %v7477, %v8620
    %v8635 = vmul.f32 %v7622, %v8620
    %v8636 = vmul.f32 %v7480, %v8620
    %v8637 = vmul.f32 %v7623, %v8620
    %v8638 = vmul.f32 %v7483, %v8620
    %v8639 = vmul.f32 %v7624, %v8620
    %v8640 = vmul.f32 %v7486, %v8620
    %v8641 = vmul.f32 %v7625, %v8620
    %v8642 = vmul.f32 %v7489, %v8620
    %v8643 = vmul.f32 %v7626, %v8620
    %v8644 = vmul.f32 %v7492, %v8620
    %v8645 = vmul.f32 %v7627, %v8620
    %v8646 = vmul.f32 %v7495, %v8620
    %v8647 = vmul.f32 %v7628, %v8620
    %v8648 = vmul.f32 %v7498, %v8620
    %v8649 = vmul.f32 %v7629, %v8620
    %v8650 = vmul.f32 %v7501, %v8620
    %v8651 = vmul.f32 %v966, %v8620
    %v8652 = vmul.f32 %v803, %v8620
    %v8653 = vmul.f32 %v7631, %v8620
    %v8654 = vmul.f32 %v7507, %v8620
    %v8655 = vmul.f32 %v7632, %v8620
    %v8656 = vmul.f32 %v7510, %v8620
    %v8657 = vmul.f32 %v7633, %v8620
    %v8658 = vmul.f32 %v7513, %v8620
    %v8659 = vmul.f32 %v7634, %v8620
    %v8660 = vmul.f32 %v7516, %v8620
    %v8661 = vmul.f32 %v7635, %v8620
    %v8662 = vmul.f32 %v7519, %v8620
    %v8663 = vmul.f32 %v7636, %v8620
    %v8664 = vmul.f32 %v7522, %v8620
    %v8665 = vmul.f32 %v7637, %v8620
    %v8666 = vmul.f32 %v7525, %v8620
    %v8667 = vmul.f32 %v7638, %v8620
    %v8668 = vmul.f32 %v7528, %v8620
    %v8669 = vmul.f32 %v7639, %v8620
    %v8670 = vmul.f32 %v7531, %v8620
    %v8671 = vmul.f32 %v7640, %v8620
    %v8672 = vmul.f32 %v7534, %v8620
    %v8673 = vmul.f32 %v7641, %v8620
    %v8674 = vmul.f32 %v7537, %v8620
    %v8675 = vmul.f32 %v7642, %v8620
    %v8676 = vmul.f32 %v7540, %v8620
    %v8677 = vmul.f32 %v7643, %v8620
    %v8678 = vmul.f32 %v7543, %v8620
    %v8679 = vmul.f32 %v7644, %v8620
    %v8680 = vmul.f32 %v7546, %v8620
    %v8681 = vmul.f32 %v7645, %v8620
    %v8682 = vmul.f32 %v7549, %v8620
    %v8683 = vadd.f32 %v8553, %v8621
    %v8684 = vadd.f32 %v8554, %v8622
    %v8685 = vadd.f32 %v8555, %v8623
    %v8686 = vadd.f32 %v8556, %v8624
    %v8687 = vadd.f32 %v8557, %v8625
    %v8688 = vadd.f32 %v8558, %v8626
    %v8689 = vadd.f32 %v8559, %v8627
    %v8690 = vadd.f32 %v8560, %v8628
    %v8691 = vadd.f32 %v8561, %v8629
    %v8692 = vadd.f32 %v8562, %v8630
    %v8693 = vadd.f32 %v8563, %v8631
    %v8694 = vadd.f32 %v8564, %v8632
    %v8695 = vadd.f32 %v8565, %v8633
    %v8696 = vadd.f32 %v8566, %v8634
    %v8697 = vadd.f32 %v8567, %v8635
    %v8698 = vadd.f32 %v8568, %v8636
    %v8699 = vadd.f32 %v8569, %v8637
    %v8700 = vadd.f32 %v8570, %v8638
    %v8701 = vadd.f32 %v8571, %v8639
    %v8702 = vadd.f32 %v8572, %v8640
    %v8703 = vadd.f32 %v8573, %v8641
    %v8704 = vadd.f32 %v8574, %v8642
    %v8705 = vadd.f32 %v8575, %v8643
    %v8706 = vadd.f32 %v8576, %v8644
    %v8707 = vadd.f32 %v8577, %v8645
    %v8708 = vadd.f32 %v8578, %v8646
    %v8709 = vadd.f32 %v8579, %v8647
    %v8710 = vadd.f32 %v8580, %v8648
    %v8711 = vadd.f32 %v8581, %v8649
    %v8712 = vadd.f32 %v8582, %v8650
    %v8713 = vadd.f32 %v8583, %v8651
    %v8714 = vadd.f32 %v8584, %v8652
    %v8715 = vadd.f32 %v8585, %v8653
    %v8716 = vadd.f32 %v8586, %v8654
    %v8717 = vadd.f32 %v8587, %v8655
    %v8718 = vadd.f32 %v8588, %v8656
    %v8719 = vadd.f32 %v8589, %v8657
    %v8720 = vadd.f32 %v8590, %v8658
    %v8721 = vadd.f32 %v8591, %v8659
    %v8722 = vadd.f32 %v8592, %v8660
    %v8723 = vadd.f32 %v8593, %v8661
    %v8724 = vadd.f32 %v8594, %v8662
    %v8725 = vadd.f32 %v8595, %v8663
    %v8726 = vadd.f32 %v8596, %v8664
    %v8727 = vadd.f32 %v8597, %v8665
    %v8728 = vadd.f32 %v8598, %v8666
    %v8729 = vadd.f32 %v8599, %v8667
    %v8730 = vadd.f32 %v8600, %v8668
    %v8731 = vadd.f32 %v8601, %v8669
    %v8732 = vadd.f32 %v8602, %v8670
    %v8733 = vadd.f32 %v8603, %v8671
    %v8734 = vadd.f32 %v8604, %v8672
    %v8735 = vadd.f32 %v8605, %v8673
    %v8736 = vadd.f32 %v8606, %v8674
    %v8737 = vadd.f32 %v8607, %v8675
    %v8738 = vadd.f32 %v8608, %v8676
    %v8739 = vadd.f32 %v8609, %v8677
    %v8740 = vadd.f32 %v8610, %v8678
    %v8741 = vadd.f32 %v8611, %v8679
    %v8742 = vadd.f32 %v8612, %v8680
    %v8743 = vadd.f32 %v8613, %v8681
    %v8744 = vadd.f32 %v8614, %v8682
    %v8745 = vadd.f32 %v8615, %v8651
    %v8746 = vadd.f32 %v8616, %v8652
    %v8747 = vlaneseq
    %v8748 = vshrl.u32 %v8747, 7
    %v8749 = vsub.s32 1, %v8748
    %v8750 = vrot.slane %v7369, %v8749
    %v8751 = vmul.f32 %v7305, %v8750
    %v8752 = vmul.f32 %v7306, %v8750
    %v8753 = vmul.f32 %v7307, %v8750
    %v8754 = vmul.f32 %v7308, %v8750
    %v8755 = vmul.f32 %v7309, %v8750
    %v8756 = vmul.f32 %v7310, %v8750
    %v8757 = vmul.f32 %v7311, %v8750
    %v8758 = vmul.f32 %v7312, %v8750
    %v8759 = vmul.f32 %v7313, %v8750
    %v8760 = vmul.f32 %v7314, %v8750
    %v8761 = vmul.f32 %v7315, %v8750
    %v8762 = vmul.f32 %v7316, %v8750
    %v8763 = vmul.f32 %v7317, %v8750
    %v8764 = vmul.f32 %v7318, %v8750
    %v8765 = vmul.f32 %v7319, %v8750
    %v8766 = vmul.f32 %v7320, %v8750
    %v8767 = vmul.f32 %v7321, %v8750
    %v8768 = vmul.f32 %v7322, %v8750
    %v8769 = vmul.f32 %v7323, %v8750
    %v8770 = vmul.f32 %v7324, %v8750
    %v8771 = vmul.f32 %v7325, %v8750
    %v8772 = vmul.f32 %v7326, %v8750
    %v8773 = vmul.f32 %v7327, %v8750
    %v8774 = vmul.f32 %v7328, %v8750
    %v8775 = vmul.f32 %v7329, %v8750
    %v8776 = vmul.f32 %v7330, %v8750
    %v8777 = vmul.f32 %v7331, %v8750
    %v8778 = vmul.f32 %v7332, %v8750
    %v8779 = vmul.f32 %v7333, %v8750
    %v8780 = vmul.f32 %v7334, %v8750
    %v8781 = vmul.f32 %v8750, 0.0
    %v8782 = vmul.f32 %v7337, %v8750
    %v8783 = vmul.f32 %v7338, %v8750
    %v8784 = vmul.f32 %v7339, %v8750
    %v8785 = vmul.f32 %v7340, %v8750
    %v8786 = vmul.f32 %v7341, %v8750
    %v8787 = vmul.f32 %v7342, %v8750
    %v8788 = vmul.f32 %v7343, %v8750
    %v8789 = vmul.f32 %v7344, %v8750
    %v8790 = vmul.f32 %v7345, %v8750
    %v8791 = vmul.f32 %v7346, %v8750
    %v8792 = vmul.f32 %v7347, %v8750
    %v8793 = vmul.f32 %v7348, %v8750
    %v8794 = vmul.f32 %v7349, %v8750
    %v8795 = vmul.f32 %v7350, %v8750
    %v8796 = vmul.f32 %v7351, %v8750
    %v8797 = vmul.f32 %v7352, %v8750
    %v8798 = vmul.f32 %v7353, %v8750
    %v8799 = vmul.f32 %v7354, %v8750
    %v8800 = vmul.f32 %v7355, %v8750
    %v8801 = vmul.f32 %v7356, %v8750
    %v8802 = vmul.f32 %v7357, %v8750
    %v8803 = vmul.f32 %v7358, %v8750
    %v8804 = vmul.f32 %v7359, %v8750
    %v8805 = vmul.f32 %v7360, %v8750
    %v8806 = vmul.f32 %v7361, %v8750
    %v8807 = vmul.f32 %v7362, %v8750
    %v8808 = vmul.f32 %v7363, %v8750
    %v8809 = vmul.f32 %v7364, %v8750
    %v8810 = vmul.f32 %v7365, %v8750
    %v8811 = vmul.f32 %v7366, %v8750
    %v8812 = vadd.f32 %v8683, %v8751
    %v8813 = vadd.f32 %v8684, %v8752
    %v8814 = vadd.f32 %v8685, %v8753
    %v8815 = vadd.f32 %v8686, %v8754
    %v8816 = vadd.f32 %v8687, %v8755
    %v8817 = vadd.f32 %v8688, %v8756
    %v8818 = vadd.f32 %v8689, %v8757
    %v8819 = vadd.f32 %v8690, %v8758
    %v8820 = vadd.f32 %v8691, %v8759
    %v8821 = vadd.f32 %v8692, %v8760
    %v8822 = vadd.f32 %v8693, %v8761
    %v8823 = vadd.f32 %v8694, %v8762
    %v8824 = vadd.f32 %v8695, %v8763
    %v8825 = vadd.f32 %v8696, %v8764
    %v8826 = vadd.f32 %v8697, %v8765
    %v8827 = vadd.f32 %v8698, %v8766
    %v8828 = vadd.f32 %v8699, %v8767
    %v8829 = vadd.f32 %v8700, %v8768
    %v8830 = vadd.f32 %v8701, %v8769
    %v8831 = vadd.f32 %v8702, %v8770
    %v8832 = vadd.f32 %v8703, %v8771
    %v8833 = vadd.f32 %v8704, %v8772
    %v8834 = vadd.f32 %v8705, %v8773
    %v8835 = vadd.f32 %v8706, %v8774
    %v8836 = vadd.f32 %v8707, %v8775
    %v8837 = vadd.f32 %v8708, %v8776
    %v8838 = vadd.f32 %v8709, %v8777
    %v8839 = vadd.f32 %v8710, %v8778
    %v8840 = vadd.f32 %v8711, %v8779
    %v8841 = vadd.f32 %v8712, %v8780
    %v8842 = vadd.f32 %v8713, %v8781
    %v8843 = vadd.f32 %v8714, %v8781
    %v8844 = vadd.f32 %v8715, %v8782
    %v8845 = vadd.f32 %v8716, %v8783
    %v8846 = vadd.f32 %v8717, %v8784
    %v8847 = vadd.f32 %v8718, %v8785
    %v8848 = vadd.f32 %v8719, %v8786
    %v8849 = vadd.f32 %v8720, %v8787
    %v8850 = vadd.f32 %v8721, %v8788
    %v8851 = vadd.f32 %v8722, %v8789
    %v8852 = vadd.f32 %v8723, %v8790
    %v8853 = vadd.f32 %v8724, %v8791
    %v8854 = vadd.f32 %v8725, %v8792
    %v8855 = vadd.f32 %v8726, %v8793
    %v8856 = vadd.f32 %v8727, %v8794
    %v8857 = vadd.f32 %v8728, %v8795
    %v8858 = vadd.f32 %v8729, %v8796
    %v8859 = vadd.f32 %v8730, %v8797
    %v8860 = vadd.f32 %v8731, %v8798
    %v8861 = vadd.f32 %v8732, %v8799
    %v8862 = vadd.f32 %v8733, %v8800
    %v8863 = vadd.f32 %v8734, %v8801
    %v8864 = vadd.f32 %v8735, %v8802
    %v8865 = vadd.f32 %v8736, %v8803
    %v8866 = vadd.f32 %v8737, %v8804
    %v8867 = vadd.f32 %v8738, %v8805
    %v8868 = vadd.f32 %v8739, %v8806
    %v8869 = vadd.f32 %v8740, %v8807
    %v8870 = vadd.f32 %v8741, %v8808
    %v8871 = vadd.f32 %v8742, %v8809
    %v8872 = vadd.f32 %v8743, %v8810
    %v8873 = vadd.f32 %v8744, %v8811
    %v8874 = vadd.f32 %v8745, %v8781
    %v8875 = vadd.f32 %v8746, %v8781
    %v8876 = vlaneseq
    %v8877 = vshrl.u32 %v8876, 7
    %v8878 = vsub.s32 2, %v8877
    %v8879 = vrot.slane %v7369, %v8878
    %v8880 = vmul.f32 %v7651, %v8879
    %v8881 = vmul.f32 %v7807, %v8879
    %v8882 = vmul.f32 %v7654, %v8879
    %v8883 = vmul.f32 %v7808, %v8879
    %v8884 = vmul.f32 %v7657, %v8879
    %v8885 = vmul.f32 %v7809, %v8879
    %v8886 = vmul.f32 %v7660, %v8879
    %v8887 = vmul.f32 %v7810, %v8879
    %v8888 = vmul.f32 %v7663, %v8879
    %v8889 = vmul.f32 %v7811, %v8879
    %v8890 = vmul.f32 %v7666, %v8879
    %v8891 = vmul.f32 %v7812, %v8879
    %v8892 = vmul.f32 %v7669, %v8879
    %v8893 = vmul.f32 %v7813, %v8879
    %v8894 = vmul.f32 %v7672, %v8879
    %v8895 = vmul.f32 %v7814, %v8879
    %v8896 = vmul.f32 %v7675, %v8879
    %v8897 = vmul.f32 %v7815, %v8879
    %v8898 = vmul.f32 %v7678, %v8879
    %v8899 = vmul.f32 %v7816, %v8879
    %v8900 = vmul.f32 %v7681, %v8879
    %v8901 = vmul.f32 %v7817, %v8879
    %v8902 = vmul.f32 %v7684, %v8879
    %v8903 = vmul.f32 %v7818, %v8879
    %v8904 = vmul.f32 %v7687, %v8879
    %v8905 = vmul.f32 %v7819, %v8879
    %v8906 = vmul.f32 %v7690, %v8879
    %v8907 = vmul.f32 %v7820, %v8879
    %v8908 = vmul.f32 %v7693, %v8879
    %v8909 = vmul.f32 %v7821, %v8879
    %v8910 = vmul.f32 %v1001, %v8879
    %v8911 = vmul.f32 %v1164, %v8879
    %v8912 = vmul.f32 %v7699, %v8879
    %v8913 = vmul.f32 %v7823, %v8879
    %v8914 = vmul.f32 %v7702, %v8879
    %v8915 = vmul.f32 %v7824, %v8879
    %v8916 = vmul.f32 %v7705, %v8879
    %v8917 = vmul.f32 %v7825, %v8879
    %v8918 = vmul.f32 %v7708, %v8879
    %v8919 = vmul.f32 %v7826, %v8879
    %v8920 = vmul.f32 %v7711, %v8879
    %v8921 = vmul.f32 %v7827, %v8879
    %v8922 = vmul.f32 %v7714, %v8879
    %v8923 = vmul.f32 %v7828, %v8879
    %v8924 = vmul.f32 %v7717, %v8879
    %v8925 = vmul.f32 %v7829, %v8879
    %v8926 = vmul.f32 %v7720, %v8879
    %v8927 = vmul.f32 %v7830, %v8879
    %v8928 = vmul.f32 %v7723, %v8879
    %v8929 = vmul.f32 %v7831, %v8879
    %v8930 = vmul.f32 %v7726, %v8879
    %v8931 = vmul.f32 %v7832, %v8879
    %v8932 = vmul.f32 %v7729, %v8879
    %v8933 = vmul.f32 %v7833, %v8879
    %v8934 = vmul.f32 %v7732, %v8879
    %v8935 = vmul.f32 %v7834, %v8879
    %v8936 = vmul.f32 %v7735, %v8879
    %v8937 = vmul.f32 %v7835, %v8879
    %v8938 = vmul.f32 %v7738, %v8879
    %v8939 = vmul.f32 %v7836, %v8879
    %v8940 = vmul.f32 %v7741, %v8879
    %v8941 = vmul.f32 %v7837, %v8879
    %v8942 = vadd.f32 %v8812, %v8880
    %v8943 = vadd.f32 %v8813, %v8881
    %v8944 = vadd.f32 %v8814, %v8882
    %v8945 = vadd.f32 %v8815, %v8883
    %v8946 = vadd.f32 %v8816, %v8884
    %v8947 = vadd.f32 %v8817, %v8885
    %v8948 = vadd.f32 %v8818, %v8886
    %v8949 = vadd.f32 %v8819, %v8887
    %v8950 = vadd.f32 %v8820, %v8888
    %v8951 = vadd.f32 %v8821, %v8889
    %v8952 = vadd.f32 %v8822, %v8890
    %v8953 = vadd.f32 %v8823, %v8891
    %v8954 = vadd.f32 %v8824, %v8892
    %v8955 = vadd.f32 %v8825, %v8893
    %v8956 = vadd.f32 %v8826, %v8894
    %v8957 = vadd.f32 %v8827, %v8895
    %v8958 = vadd.f32 %v8828, %v8896
    %v8959 = vadd.f32 %v8829, %v8897
    %v8960 = vadd.f32 %v8830, %v8898
    %v8961 = vadd.f32 %v8831, %v8899
    %v8962 = vadd.f32 %v8832, %v8900
    %v8963 = vadd.f32 %v8833, %v8901
    %v8964 = vadd.f32 %v8834, %v8902
    %v8965 = vadd.f32 %v8835, %v8903
    %v8966 = vadd.f32 %v8836, %v8904
    %v8967 = vadd.f32 %v8837, %v8905
    %v8968 = vadd.f32 %v8838, %v8906
    %v8969 = vadd.f32 %v8839, %v8907
    %v8970 = vadd.f32 %v8840, %v8908
    %v8971 = vadd.f32 %v8841, %v8909
    %v8972 = vadd.f32 %v8842, %v8910
    %v8973 = vadd.f32 %v8843, %v8911
    %v8974 = vadd.f32 %v8844, %v8912
    %v8975 = vadd.f32 %v8845, %v8913
    %v8976 = vadd.f32 %v8846, %v8914
    %v8977 = vadd.f32 %v8847, %v8915
    %v8978 = vadd.f32 %v8848, %v8916
    %v8979 = vadd.f32 %v8849, %v8917
    %v8980 = vadd.f32 %v8850, %v8918
    %v8981 = vadd.f32 %v8851, %v8919
    %v8982 = vadd.f32 %v8852, %v8920
    %v8983 = vadd.f32 %v8853, %v8921
    %v8984 = vadd.f32 %v8854, %v8922
    %v8985 = vadd.f32 %v8855, %v8923
    %v8986 = vadd.f32 %v8856, %v8924
    %v8987 = vadd.f32 %v8857, %v8925
    %v8988 = vadd.f32 %v8858, %v8926
    %v8989 = vadd.f32 %v8859, %v8927
    %v8990 = vadd.f32 %v8860, %v8928
    %v8991 = vadd.f32 %v8861, %v8929
    %v8992 = vadd.f32 %v8862, %v8930
    %v8993 = vadd.f32 %v8863, %v8931
    %v8994 = vadd.f32 %v8864, %v8932
    %v8995 = vadd.f32 %v8865, %v8933
    %v8996 = vadd.f32 %v8866, %v8934
    %v8997 = vadd.f32 %v8867, %v8935
    %v8998 = vadd.f32 %v8868, %v8936
    %v8999 = vadd.f32 %v8869, %v8937
    %v9000 = vadd.f32 %v8870, %v8938
    %v9001 = vadd.f32 %v8871, %v8939
    %v9002 = vadd.f32 %v8872, %v8940
    %v9003 = vadd.f32 %v8873, %v8941
    %v9004 = vadd.f32 %v8874, %v8910
    %v9005 = vadd.f32 %v8875, %v8911
    %v9006 = vadd.f32 %v8942, %v8943
    %v9007 = vadd.f32 %v9006, %v8944
    %v9008 = vadd.f32 %v9007, %v8945
    %v9009 = vadd.f32 %v9008, %v8946
    %v9010 = vadd.f32 %v9009, %v8947
    %v9011 = vadd.f32 %v9010, %v8948
    %v9012 = vadd.f32 %v9011, %v8949
    %v9013 = vadd.f32 %v9012, %v8950
    %v9014 = vadd.f32 %v9013, %v8951
    %v9015 = vadd.f32 %v9014, %v8952
    %v9016 = vadd.f32 %v9015, %v8953
    %v9017 = vadd.f32 %v9016, %v8954
    %v9018 = vadd.f32 %v9017, %v8955
    %v9019 = vadd.f32 %v9018, %v8956
    %v9020 = vadd.f32 %v9019, %v8957
    %v9021 = vadd.f32 %v9020, %v8958
    %v9022 = vadd.f32 %v9021, %v8959
    %v9023 = vadd.f32 %v9022, %v8960
    %v9024 = vadd.f32 %v9023, %v8961
    %v9025 = vadd.f32 %v9024, %v8962
    %v9026 = vadd.f32 %v9025, %v8963
    %v9027 = vadd.f32 %v9026, %v8964
    %v9028 = vadd.f32 %v9027, %v8965
    %v9029 = vadd.f32 %v9028, %v8966
    %v9030 = vadd.f32 %v9029, %v8967
    %v9031 = vadd.f32 %v9030, %v8968
    %v9032 = vadd.f32 %v9031, %v8969
    %v9033 = vadd.f32 %v9032, %v8970
    %v9034 = vadd.f32 %v9033, %v8971
    %v9035 = vadd.f32 %v9034, %v8972
    %v9036 = vadd.f32 %v9035, %v8973
    %v9037 = vadd.f32 %v9036, %v8974
    %v9038 = vadd.f32 %v9037, %v8975
    %v9039 = vadd.f32 %v9038, %v8976
    %v9040 = vadd.f32 %v9039, %v8977
    %v9041 = vadd.f32 %v9040, %v8978
    %v9042 = vadd.f32 %v9041, %v8979
    %v9043 = vadd.f32 %v9042, %v8980
    %v9044 = vadd.f32 %v9043, %v8981
    %v9045 = vadd.f32 %v9044, %v8982
    %v9046 = vadd.f32 %v9045, %v8983
    %v9047 = vadd.f32 %v9046, %v8984
    %v9048 = vadd.f32 %v9047, %v8985
    %v9049 = vadd.f32 %v9048, %v8986
    %v9050 = vadd.f32 %v9049, %v8987
    %v9051 = vadd.f32 %v9050, %v8988
    %v9052 = vadd.f32 %v9051, %v8989
    %v9053 = vadd.f32 %v9052, %v8990
    %v9054 = vadd.f32 %v9053, %v8991
    %v9055 = vadd.f32 %v9054, %v8992
    %v9056 = vadd.f32 %v9055, %v8993
    %v9057 = vadd.f32 %v9056, %v8994
    %v9058 = vadd.f32 %v9057, %v8995
    %v9059 = vadd.f32 %v9058, %v8996
    %v9060 = vadd.f32 %v9059, %v8997
    %v9061 = vadd.f32 %v9060, %v8998
    %v9062 = vadd.f32 %v9061, %v8999
    %v9063 = vadd.f32 %v9062, %v9000
    %v9064 = vadd.f32 %v9063, %v9001
    %v9065 = vadd.f32 %v9064, %v9002
    %v9066 = vadd.f32 %v9065, %v9003
    %v9067 = vadd.f32 %v9066, %v9004
    %v9068 = vadd.f32 %v9067, %v9005
    %v9069 = vrot.slane %v9068, 4
    %v9070 = vadd.f32 %v9068, %v9069
    %v9071 = vrot.slane %v9070, 2
    %v9072 = vadd.f32 %v9070, %v9071
    %v9073 = vrot.slane %v9072, 1
    %v9074 = vadd.f32 %v9072, %v9073
    %v9075 = vmul.f32 %v9074, 0.001953125
    %v9076 = vmul.f32 %v8942, %v8942
    %v9077 = vmul.f32 %v8943, %v8943
    %v9078 = vmul.f32 %v8944, %v8944
    %v9079 = vmul.f32 %v8945, %v8945
    %v9080 = vmul.f32 %v8946, %v8946
    %v9081 = vmul.f32 %v8947, %v8947
    %v9082 = vmul.f32 %v8948, %v8948
    %v9083 = vmul.f32 %v8949, %v8949
    %v9084 = vmul.f32 %v8950, %v8950
    %v9085 = vmul.f32 %v8951, %v8951
    %v9086 = vmul.f32 %v8952, %v8952
    %v9087 = vmul.f32 %v8953, %v8953
    %v9088 = vmul.f32 %v8954, %v8954
    %v9089 = vmul.f32 %v8955, %v8955
    %v9090 = vmul.f32 %v8956, %v8956
    %v9091 = vmul.f32 %v8957, %v8957
    %v9092 = vmul.f32 %v8958, %v8958
    %v9093 = vmul.f32 %v8959, %v8959
    %v9094 = vmul.f32 %v8960, %v8960
    %v9095 = vmul.f32 %v8961, %v8961
    %v9096 = vmul.f32 %v8962, %v8962
    %v9097 = vmul.f32 %v8963, %v8963
    %v9098 = vmul.f32 %v8964, %v8964
    %v9099 = vmul.f32 %v8965, %v8965
    %v9100 = vmul.f32 %v8966, %v8966
    %v9101 = vmul.f32 %v8967, %v8967
    %v9102 = vmul.f32 %v8968, %v8968
    %v9103 = vmul.f32 %v8969, %v8969
    %v9104 = vmul.f32 %v8970, %v8970
    %v9105 = vmul.f32 %v8971, %v8971
    %v9106 = vmul.f32 %v8972, %v8972
    %v9107 = vmul.f32 %v8973, %v8973
    %v9108 = vmul.f32 %v8974, %v8974
    %v9109 = vmul.f32 %v8975, %v8975
    %v9110 = vmul.f32 %v8976, %v8976
    %v9111 = vmul.f32 %v8977, %v8977
    %v9112 = vmul.f32 %v8978, %v8978
    %v9113 = vmul.f32 %v8979, %v8979
    %v9114 = vmul.f32 %v8980, %v8980
    %v9115 = vmul.f32 %v8981, %v8981
    %v9116 = vmul.f32 %v8982, %v8982
    %v9117 = vmul.f32 %v8983, %v8983
    %v9118 = vmul.f32 %v8984, %v8984
    %v9119 = vmul.f32 %v8985, %v8985
    %v9120 = vmul.f32 %v8986, %v8986
    %v9121 = vmul.f32 %v8987, %v8987
    %v9122 = vmul.f32 %v8988, %v8988
    %v9123 = vmul.f32 %v8989, %v8989
    %v9124 = vmul.f32 %v8990, %v8990
    %v9125 = vmul.f32 %v8991, %v8991
    %v9126 = vmul.f32 %v8992, %v8992
    %v9127 = vmul.f32 %v8993, %v8993
    %v9128 = vmul.f32 %v8994, %v8994
    %v9129 = vmul.f32 %v8995, %v8995
    %v9130 = vmul.f32 %v8996, %v8996
    %v9131 = vmul.f32 %v8997, %v8997
    %v9132 = vmul.f32 %v8998, %v8998
    %v9133 = vmul.f32 %v8999, %v8999
    %v9134 = vmul.f32 %v9000, %v9000
    %v9135 = vmul.f32 %v9001, %v9001
    %v9136 = vmul.f32 %v9002, %v9002
    %v9137 = vmul.f32 %v9003, %v9003
    %v9138 = vmul.f32 %v9004, %v9004
    %v9139 = vmul.f32 %v9005, %v9005
    %v9140 = vadd.f32 %v9076, %v9077
    %v9141 = vadd.f32 %v9140, %v9078
    %v9142 = vadd.f32 %v9141, %v9079
    %v9143 = vadd.f32 %v9142, %v9080
    %v9144 = vadd.f32 %v9143, %v9081
    %v9145 = vadd.f32 %v9144, %v9082
    %v9146 = vadd.f32 %v9145, %v9083
    %v9147 = vadd.f32 %v9146, %v9084
    %v9148 = vadd.f32 %v9147, %v9085
    %v9149 = vadd.f32 %v9148, %v9086
    %v9150 = vadd.f32 %v9149, %v9087
    %v9151 = vadd.f32 %v9150, %v9088
    %v9152 = vadd.f32 %v9151, %v9089
    %v9153 = vadd.f32 %v9152, %v9090
    %v9154 = vadd.f32 %v9153, %v9091
    %v9155 = vadd.f32 %v9154, %v9092
    %v9156 = vadd.f32 %v9155, %v9093
    %v9157 = vadd.f32 %v9156, %v9094
    %v9158 = vadd.f32 %v9157, %v9095
    %v9159 = vadd.f32 %v9158, %v9096
    %v9160 = vadd.f32 %v9159, %v9097
    %v9161 = vadd.f32 %v9160, %v9098
    %v9162 = vadd.f32 %v9161, %v9099
    %v9163 = vadd.f32 %v9162, %v9100
    %v9164 = vadd.f32 %v9163, %v9101
    %v9165 = vadd.f32 %v9164, %v9102
    %v9166 = vadd.f32 %v9165, %v9103
    %v9167 = vadd.f32 %v9166, %v9104
    %v9168 = vadd.f32 %v9167, %v9105
    %v9169 = vadd.f32 %v9168, %v9106
    %v9170 = vadd.f32 %v9169, %v9107
    %v9171 = vadd.f32 %v9170, %v9108
    %v9172 = vadd.f32 %v9171, %v9109
    %v9173 = vadd.f32 %v9172, %v9110
    %v9174 = vadd.f32 %v9173, %v9111
    %v9175 = vadd.f32 %v9174, %v9112
    %v9176 = vadd.f32 %v9175, %v9113
    %v9177 = vadd.f32 %v9176, %v9114
    %v9178 = vadd.f32 %v9177, %v9115
    %v9179 = vadd.f32 %v9178, %v9116
    %v9180 = vadd.f32 %v9179, %v9117
    %v9181 = vadd.f32 %v9180, %v9118
    %v9182 = vadd.f32 %v9181, %v9119
    %v9183 = vadd.f32 %v9182, %v9120
    %v9184 = vadd.f32 %v9183, %v9121
    %v9185 = vadd.f32 %v9184, %v9122
    %v9186 = vadd.f32 %v9185, %v9123
    %v9187 = vadd.f32 %v9186, %v9124
    %v9188 = vadd.f32 %v9187, %v9125
    %v9189 = vadd.f32 %v9188, %v9126
    %v9190 = vadd.f32 %v9189, %v9127
    %v9191 = vadd.f32 %v9190, %v9128
    %v9192 = vadd.f32 %v9191, %v9129
    %v9193 = vadd.f32 %v9192, %v9130
    %v9194 = vadd.f32 %v9193, %v9131
    %v9195 = vadd.f32 %v9194, %v9132
    %v9196 = vadd.f32 %v9195, %v9133
    %v9197 = vadd.f32 %v9196, %v9134
    %v9198 = vadd.f32 %v9197, %v9135
    %v9199 = vadd.f32 %v9198, %v9136
    %v9200 = vadd.f32 %v9199, %v9137
    %v9201 = vadd.f32 %v9200, %v9138
    %v9202 = vadd.f32 %v9201, %v9139
    %v9203 = vrot.slane %v9202, 4
    %v9204 = vadd.f32 %v9202, %v9203
    %v9205 = vrot.slane %v9204, 2
    %v9206 = vadd.f32 %v9204, %v9205
    %v9207 = vrot.slane %v9206, 1
    %v9208 = vadd.f32 %v9206, %v9207
    %v9209 = vmul.f32 %v9208, 0.001953125
    %v9210 = vmul.f32 %v9075, %v9075
    %v9211 = vsub.f32 %v9209, %v9210
    %v9212 = vmax.f32 %v9211, 0.0
    %v9213 = vadd.f32 %v9212, 1e-05
    %v9214 = vrsqrt.pop %v9213
    %v9215 = vmul.f32 %v9214, %v7370
    %v9216 = vmul.f32 %v9075, %v9215
    %v9217 = vsub.f32 %v7371, %v9216
    %v9218 = vlaneseq
    %v9219 = vshrl.u32 %v9218, 7
    %v9220 = vsub.s32 0, %v9219
    %v9221 = vrot.slane %v9215, %v9220
    %v9222 = vmul.f32 %v8942, %v9221
    %v9223 = vmul.f32 %v8943, %v9221
    %v9224 = vmul.f32 %v8944, %v9221
    %v9225 = vmul.f32 %v8945, %v9221
    %v9226 = vmul.f32 %v8946, %v9221
    %v9227 = vmul.f32 %v8947, %v9221
    %v9228 = vmul.f32 %v8948, %v9221
    %v9229 = vmul.f32 %v8949, %v9221
    %v9230 = vmul.f32 %v8950, %v9221
    %v9231 = vmul.f32 %v8951, %v9221
    %v9232 = vmul.f32 %v8952, %v9221
    %v9233 = vmul.f32 %v8953, %v9221
    %v9234 = vmul.f32 %v8954, %v9221
    %v9235 = vmul.f32 %v8955, %v9221
    %v9236 = vmul.f32 %v8956, %v9221
    %v9237 = vmul.f32 %v8957, %v9221
    %v9238 = vmul.f32 %v8958, %v9221
    %v9239 = vmul.f32 %v8959, %v9221
    %v9240 = vmul.f32 %v8960, %v9221
    %v9241 = vmul.f32 %v8961, %v9221
    %v9242 = vmul.f32 %v8962, %v9221
    %v9243 = vmul.f32 %v8963, %v9221
    %v9244 = vmul.f32 %v8964, %v9221
    %v9245 = vmul.f32 %v8965, %v9221
    %v9246 = vmul.f32 %v8966, %v9221
    %v9247 = vmul.f32 %v8967, %v9221
    %v9248 = vmul.f32 %v8968, %v9221
    %v9249 = vmul.f32 %v8969, %v9221
    %v9250 = vmul.f32 %v8970, %v9221
    %v9251 = vmul.f32 %v8971, %v9221
    %v9252 = vmul.f32 %v8972, %v9221
    %v9253 = vmul.f32 %v8973, %v9221
    %v9254 = vmul.f32 %v8974, %v9221
    %v9255 = vmul.f32 %v8975, %v9221
    %v9256 = vmul.f32 %v8976, %v9221
    %v9257 = vmul.f32 %v8977, %v9221
    %v9258 = vmul.f32 %v8978, %v9221
    %v9259 = vmul.f32 %v8979, %v9221
    %v9260 = vmul.f32 %v8980, %v9221
    %v9261 = vmul.f32 %v8981, %v9221
    %v9262 = vmul.f32 %v8982, %v9221
    %v9263 = vmul.f32 %v8983, %v9221
    %v9264 = vmul.f32 %v8984, %v9221
    %v9265 = vmul.f32 %v8985, %v9221
    %v9266 = vmul.f32 %v8986, %v9221
    %v9267 = vmul.f32 %v8987, %v9221
    %v9268 = vmul.f32 %v8988, %v9221
    %v9269 = vmul.f32 %v8989, %v9221
    %v9270 = vmul.f32 %v8990, %v9221
    %v9271 = vmul.f32 %v8991, %v9221
    %v9272 = vmul.f32 %v8992, %v9221
    %v9273 = vmul.f32 %v8993, %v9221
    %v9274 = vmul.f32 %v8994, %v9221
    %v9275 = vmul.f32 %v8995, %v9221
    %v9276 = vmul.f32 %v8996, %v9221
    %v9277 = vmul.f32 %v8997, %v9221
    %v9278 = vmul.f32 %v8998, %v9221
    %v9279 = vmul.f32 %v8999, %v9221
    %v9280 = vmul.f32 %v9000, %v9221
    %v9281 = vmul.f32 %v9001, %v9221
    %v9282 = vmul.f32 %v9002, %v9221
    %v9283 = vmul.f32 %v9003, %v9221
    %v9284 = vmul.f32 %v9004, %v9221
    %v9285 = vmul.f32 %v9005, %v9221
    %v9287 = vlaneseq
    %v9288 = vshrl.u32 %v9287, 7
    %v9289 = vsub.s32 0, %v9288
    %v9290 = vrot.slane %v9217, %v9289
    %v9292 = vadd.f32 %v9222, %v9290
    %v9293 = vadd.f32 %v9223, %v9290
    %v9294 = vadd.f32 %v9224, %v9290
    %v9295 = vadd.f32 %v9225, %v9290
    %v9296 = vadd.f32 %v9226, %v9290
    %v9297 = vadd.f32 %v9227, %v9290
    %v9298 = vadd.f32 %v9228, %v9290
    %v9299 = vadd.f32 %v9229, %v9290
    %v9300 = vadd.f32 %v9230, %v9290
    %v9301 = vadd.f32 %v9231, %v9290
    %v9302 = vadd.f32 %v9232, %v9290
    %v9303 = vadd.f32 %v9233, %v9290
    %v9304 = vadd.f32 %v9234, %v9290
    %v9305 = vadd.f32 %v9235, %v9290
    %v9306 = vadd.f32 %v9236, %v9290
    %v9307 = vadd.f32 %v9237, %v9290
    %v9308 = vadd.f32 %v9238, %v9290
    %v9309 = vadd.f32 %v9239, %v9290
    %v9310 = vadd.f32 %v9240, %v9290
    %v9311 = vadd.f32 %v9241, %v9290
    %v9312 = vadd.f32 %v9242, %v9290
    %v9313 = vadd.f32 %v9243, %v9290
    %v9314 = vadd.f32 %v9244, %v9290
    %v9315 = vadd.f32 %v9245, %v9290
    %v9316 = vadd.f32 %v9246, %v9290
    %v9317 = vadd.f32 %v9247, %v9290
    %v9318 = vadd.f32 %v9248, %v9290
    %v9319 = vadd.f32 %v9249, %v9290
    %v9320 = vadd.f32 %v9250, %v9290
    %v9321 = vadd.f32 %v9251, %v9290
    %v9322 = vadd.f32 %v9252, %v9290
    %v9323 = vadd.f32 %v9253, %v9290
    %v9324 = vadd.f32 %v9254, %v9290
    %v9325 = vadd.f32 %v9255, %v9290
    %v9326 = vadd.f32 %v9256, %v9290
    %v9327 = vadd.f32 %v9257, %v9290
    %v9328 = vadd.f32 %v9258, %v9290
    %v9329 = vadd.f32 %v9259, %v9290
    %v9330 = vadd.f32 %v9260, %v9290
    %v9331 = vadd.f32 %v9261, %v9290
    %v9332 = vadd.f32 %v9262, %v9290
    %v9333 = vadd.f32 %v9263, %v9290
    %v9334 = vadd.f32 %v9264, %v9290
    %v9335 = vadd.f32 %v9265, %v9290
    %v9336 = vadd.f32 %v9266, %v9290
    %v9337 = vadd.f32 %v9267, %v9290
    %v9338 = vadd.f32 %v9268, %v9290
    %v9339 = vadd.f32 %v9269, %v9290
    %v9340 = vadd.f32 %v9270, %v9290
    %v9341 = vadd.f32 %v9271, %v9290
    %v9342 = vadd.f32 %v9272, %v9290
    %v9343 = vadd.f32 %v9273, %v9290
    %v9344 = vadd.f32 %v9274, %v9290
    %v9345 = vadd.f32 %v9275, %v9290
    %v9346 = vadd.f32 %v9276, %v9290
    %v9347 = vadd.f32 %v9277, %v9290
    %v9348 = vadd.f32 %v9278, %v9290
    %v9349 = vadd.f32 %v9279, %v9290
    %v9350 = vadd.f32 %v9280, %v9290
    %v9351 = vadd.f32 %v9281, %v9290
    %v9352 = vadd.f32 %v9282, %v9290
    %v9353 = vadd.f32 %v9283, %v9290
    %v9354 = vadd.f32 %v9284, %v9290
    %v9355 = vadd.f32 %v9285, %v9290
    %v9356 = vmax.f32 %v9292, 0.0
    %v9357 = vmax.f32 %v9293, 0.0
    %v9358 = vmax.f32 %v9294, 0.0
    %v9359 = vmax.f32 %v9295, 0.0
    %v9360 = vmax.f32 %v9296, 0.0
    %v9361 = vmax.f32 %v9297, 0.0
    %v9362 = vmax.f32 %v9298, 0.0
    %v9363 = vmax.f32 %v9299, 0.0
    %v9364 = vmax.f32 %v9300, 0.0
    %v9365 = vmax.f32 %v9301, 0.0
    %v9366 = vmax.f32 %v9302, 0.0
    %v9367 = vmax.f32 %v9303, 0.0
    %v9368 = vmax.f32 %v9304, 0.0
    %v9369 = vmax.f32 %v9305, 0.0
    %v9370 = vmax.f32 %v9306, 0.0
    %v9371 = vmax.f32 %v9307, 0.0
    %v9372 = vmax.f32 %v9308, 0.0
    %v9373 = vmax.f32 %v9309, 0.0
    %v9374 = vmax.f32 %v9310, 0.0
    %v9375 = vmax.f32 %v9311, 0.0
    %v9376 = vmax.f32 %v9312, 0.0
    %v9377 = vmax.f32 %v9313, 0.0
    %v9378 = vmax.f32 %v9314, 0.0
    %v9379 = vmax.f32 %v9315, 0.0
    %v9380 = vmax.f32 %v9316, 0.0
    %v9381 = vmax.f32 %v9317, 0.0
    %v9382 = vmax.f32 %v9318, 0.0
    %v9383 = vmax.f32 %v9319, 0.0
    %v9384 = vmax.f32 %v9320, 0.0
    %v9385 = vmax.f32 %v9321, 0.0
    %v9386 = vmax.f32 %v9322, 0.0
    %v9387 = vmax.f32 %v9323, 0.0
    %v9388 = vmax.f32 %v9324, 0.0
    %v9389 = vmax.f32 %v9325, 0.0
    %v9390 = vmax.f32 %v9326, 0.0
    %v9391 = vmax.f32 %v9327, 0.0
    %v9392 = vmax.f32 %v9328, 0.0
    %v9393 = vmax.f32 %v9329, 0.0
    %v9394 = vmax.f32 %v9330, 0.0
    %v9395 = vmax.f32 %v9331, 0.0
    %v9396 = vmax.f32 %v9332, 0.0
    %v9397 = vmax.f32 %v9333, 0.0
    %v9398 = vmax.f32 %v9334, 0.0
    %v9399 = vmax.f32 %v9335, 0.0
    %v9400 = vmax.f32 %v9336, 0.0
    %v9401 = vmax.f32 %v9337, 0.0
    %v9402 = vmax.f32 %v9338, 0.0
    %v9403 = vmax.f32 %v9339, 0.0
    %v9404 = vmax.f32 %v9340, 0.0
    %v9405 = vmax.f32 %v9341, 0.0
    %v9406 = vmax.f32 %v9342, 0.0
    %v9407 = vmax.f32 %v9343, 0.0
    %v9408 = vmax.f32 %v9344, 0.0
    %v9409 = vmax.f32 %v9345, 0.0
    %v9410 = vmax.f32 %v9346, 0.0
    %v9411 = vmax.f32 %v9347, 0.0
    %v9412 = vmax.f32 %v9348, 0.0
    %v9413 = vmax.f32 %v9349, 0.0
    %v9414 = vmax.f32 %v9350, 0.0
    %v9415 = vmax.f32 %v9351, 0.0
    %v9416 = vmax.f32 %v9352, 0.0
    %v9417 = vmax.f32 %v9353, 0.0
    %v9418 = vmax.f32 %v9354, 0.0
    %v9419 = vmax.f32 %v9355, 0.0
    %v9420 = vpack.c.bf16 %v9357, %v9356
    %v9421 = vpack.c.bf16 %v9359, %v9358
    %v9422 = vpack.c.bf16 %v9361, %v9360
    %v9423 = vpack.c.bf16 %v9363, %v9362
    %v9424 = vpack.c.bf16 %v9365, %v9364
    %v9425 = vpack.c.bf16 %v9367, %v9366
    %v9426 = vpack.c.bf16 %v9369, %v9368
    %v9427 = vpack.c.bf16 %v9371, %v9370
    %v9428 = vpack.c.bf16 %v9373, %v9372
    %v9429 = vpack.c.bf16 %v9375, %v9374
    %v9430 = vpack.c.bf16 %v9377, %v9376
    %v9431 = vpack.c.bf16 %v9379, %v9378
    %v9432 = vpack.c.bf16 %v9381, %v9380
    %v9433 = vpack.c.bf16 %v9383, %v9382
    %v9434 = vpack.c.bf16 %v9385, %v9384
    %v9435 = vpack.c.bf16 %v9387, %v9386
    %v9436 = vpack.c.bf16 %v9389, %v9388
    %v9437 = vpack.c.bf16 %v9391, %v9390
    %v9438 = vpack.c.bf16 %v9393, %v9392
    %v9439 = vpack.c.bf16 %v9395, %v9394
    %v9440 = vpack.c.bf16 %v9397, %v9396
    %v9441 = vpack.c.bf16 %v9399, %v9398
    %v9442 = vpack.c.bf16 %v9401, %v9400
    %v9443 = vpack.c.bf16 %v9403, %v9402
    %v9444 = vpack.c.bf16 %v9405, %v9404
    %v9445 = vpack.c.bf16 %v9407, %v9406
    %v9446 = vpack.c.bf16 %v9409, %v9408
    %v9447 = vpack.c.bf16 %v9411, %v9410
    %v9448 = vpack.c.bf16 %v9413, %v9412
    %v9449 = vpack.c.bf16 %v9415, %v9414
    %v9450 = vpack.c.bf16 %v9417, %v9416
    %v9451 = vpack.c.bf16 %v9419, %v9418
    %v9468 = vunpack.c.l.b16 %v7372
    %v9469 = vunpack.c.l.b16 %v7373
    %v9470 = vunpack.c.l.b16 %v7374
    %v9471 = vunpack.c.l.b16 %v7375
    %v9472 = vunpack.c.l.b16 %v7376
    %v9473 = vunpack.c.l.b16 %v7377
    %v9474 = vunpack.c.l.b16 %v7378
    %v9475 = vunpack.c.l.b16 %v7379
    %v9476 = vunpack.c.l.b16 %v7380
    %v9477 = vunpack.c.l.b16 %v7381
    %v9478 = vunpack.c.l.b16 %v7382
    %v9479 = vunpack.c.l.b16 %v7383
    %v9480 = vunpack.c.l.b16 %v7384
    %v9481 = vunpack.c.l.b16 %v7385
    %v9482 = vunpack.c.l.b16 %v7386
    %v9483 = vunpack.c.l.b16 %v7387
    %v9484 = vpack.c.b16 %v9469, %v9468
    %v9485 = vpack.c.b16 %v9471, %v9470
    %v9486 = vpack.c.b16 %v9473, %v9472
    %v9487 = vpack.c.b16 %v9475, %v9474
    %v9488 = vpack.c.b16 %v9477, %v9476
    %v9489 = vpack.c.b16 %v9479, %v9478
    %v9490 = vpack.c.b16 %v9481, %v9480
    %v9491 = vpack.c.b16 %v9483, %v9482
    %9500 = vmatprep.subr.bf16.mxu0 0
    %9501 = vmatpush1.bf16.msra.mxu0 %v9484
    %9502 = vmatprep.subr.bf16.mxu0 0
    %9503 = vmatpush1.bf16.msra.mxu0 %v9485
    %9504 = vmatprep.subr.bf16.mxu0 0
    %9505 = vmatpush1.bf16.msra.mxu0 %v9486
    %9506 = vmatprep.subr.bf16.mxu0 0
    %9507 = vmatpush1.bf16.msra.mxu0 %v9487
    %9508 = vmatprep.subr.bf16.mxu0 0
    %9509 = vmatpush1.bf16.msra.mxu0 %v9488
    %9510 = vmatprep.subr.bf16.mxu0 0
    %9511 = vmatpush1.bf16.msra.mxu0 %v9489
    %9512 = vmatprep.subr.bf16.mxu0 0
    %9513 = vmatpush1.bf16.msra.mxu0 %v9490
    %9514 = vmatprep.subr.bf16.mxu0 0
    %9515 = vmatpush1.bf16.msra.mxu0 %v9491
    %9516 = vmatprep.subr.bf16.mxu0 0
    %9517 = vmatpush1.bf16.msra.mxu0 0
    %9518 = vmatprep.subr.bf16.mxu0 0
    %9519 = vmatpush1.bf16.msra.mxu0 0
    %9520 = vmatprep.subr.bf16.mxu0 0
    %9521 = vmatpush1.bf16.msra.mxu0 0
    %9522 = vmatprep.subr.bf16.mxu0 0
    %9523 = vmatpush1.bf16.msra.mxu0 0
    %9524 = vmatprep.subr.bf16.mxu0 0
    %9525 = vmatpush1.bf16.msra.mxu0 0
    %9526 = vmatprep.subr.bf16.mxu0 0
    %9527 = vmatpush1.bf16.msra.mxu0 0
    %9528 = vmatprep.subr.bf16.mxu0 0
    %9529 = vmatpush1.bf16.msra.mxu0 0
    %9530 = vmatprep.subr.bf16.mxu0 0
    %9531 = vmatpush1.bf16.msra.mxu0 0
    %9532 = vmatprep.mubr.bf16.mxu0 0
    %9533 = vmatmul.mubr.bf16.gmra.mrb[0].mxu0 %v9420
    %v9534 = vpop.f32.mrb[0].mxu0
    %v9535 = vadd.f32 0.0, %v9534
    %v9536 = vpop.f32.mrb[0].mxu0
    %v9537 = vpop.f32.mrb[0].mxu0
    %v9538 = vadd.f32 0.0, %v9537
    %v9539 = vpop.f32.mrb[0].mxu0
    %9540 = vmatprep.mubr.bf16.mxu0 0
    %9541 = vmatmul.mubr.bf16.gmra.mrb[0].mxu0 %v9421
    %v9542 = vpop.f32.mrb[0].mxu0
    %v9543 = vadd.f32 0.0, %v9542
    %v9544 = vpop.f32.mrb[0].mxu0
    %v9545 = vpop.f32.mrb[0].mxu0
    %v9546 = vadd.f32 0.0, %v9545
    %v9547 = vpop.f32.mrb[0].mxu0
    %9548 = vmatprep.mubr.bf16.mxu0 0
    %9549 = vmatmul.mubr.bf16.gmra.mrb[0].mxu0 %v9422
    %v9550 = vpop.f32.mrb[0].mxu0
    %v9551 = vadd.f32 0.0, %v9550
    %v9552 = vpop.f32.mrb[0].mxu0
    %v9553 = vpop.f32.mrb[0].mxu0
    %v9554 = vadd.f32 0.0, %v9553
    %v9555 = vpop.f32.mrb[0].mxu0
    %9556 = vmatprep.mubr.bf16.mxu0 0
    %9557 = vmatmul.mubr.bf16.gmra.mrb[0].mxu0 %v9423
    %v9558 = vpop.f32.mrb[0].mxu0
    %v9559 = vadd.f32 0.0, %v9558
    %v9560 = vpop.f32.mrb[0].mxu0
    %v9561 = vpop.f32.mrb[0].mxu0
    %v9562 = vadd.f32 0.0, %v9561
    %v9563 = vpop.f32.mrb[0].mxu0
    %9564 = vmatprep.mubr.bf16.mxu0 0
    %9565 = vmatmul.mubr.bf16.gmra.mrb[0].mxu0 %v9424
    %v9566 = vpop.f32.mrb[0].mxu0
    %v9567 = vadd.f32 0.0, %v9566
    %v9568 = vpop.f32.mrb[0].mxu0
    %v9569 = vpop.f32.mrb[0].mxu0
    %v9570 = vadd.f32 0.0, %v9569
    %v9571 = vpop.f32.mrb[0].mxu0
    %9572 = vmatprep.mubr.bf16.mxu0 0
    %9573 = vmatmul.mubr.bf16.gmra.mrb[0].mxu0 %v9425
    %v9574 = vpop.f32.mrb[0].mxu0
    %v9575 = vadd.f32 0.0, %v9574
    %v9576 = vpop.f32.mrb[0].mxu0
    %v9577 = vpop.f32.mrb[0].mxu0
    %v9578 = vadd.f32 0.0, %v9577
    %v9579 = vpop.f32.mrb[0].mxu0
    %9580 = vmatprep.mubr.bf16.mxu0 0
    %9581 = vmatmul.mubr.bf16.gmra.mrb[0].mxu0 %v9426
    %v9582 = vpop.f32.mrb[0].mxu0
    %v9583 = vadd.f32 0.0, %v9582
    %v9584 = vpop.f32.mrb[0].mxu0
    %v9585 = vpop.f32.mrb[0].mxu0
    %v9586 = vadd.f32 0.0, %v9585
    %v9587 = vpop.f32.mrb[0].mxu0
    %9588 = vmatprep.mubr.bf16.mxu0 0
    %9589 = vmatmul.mubr.bf16.gmra.mrb[0].mxu0 %v9427
    %v9590 = vpop.f32.mrb[0].mxu0
    %v9591 = vadd.f32 0.0, %v9590
    %v9592 = vpop.f32.mrb[0].mxu0
    %v9593 = vpop.f32.mrb[0].mxu0
    %v9594 = vadd.f32 0.0, %v9593
    %v9595 = vpop.f32.mrb[0].mxu0
    %9596 = vmatprep.mubr.bf16.mxu0 0
    %9597 = vmatmul.mubr.bf16.gmra.mrb[0].mxu0 %v9428
    %v9598 = vpop.f32.mrb[0].mxu0
    %v9599 = vadd.f32 0.0, %v9598
    %v9600 = vpop.f32.mrb[0].mxu0
    %v9601 = vpop.f32.mrb[0].mxu0
    %v9602 = vadd.f32 0.0, %v9601
    %v9603 = vpop.f32.mrb[0].mxu0
    %9604 = vmatprep.mubr.bf16.mxu0 0
    %9605 = vmatmul.mubr.bf16.gmra.mrb[0].mxu0 %v9429
    %v9606 = vpop.f32.mrb[0].mxu0
    %v9607 = vadd.f32 0.0, %v9606
    %v9608 = vpop.f32.mrb[0].mxu0
    %v9609 = vpop.f32.mrb[0].mxu0
    %v9610 = vadd.f32 0.0, %v9609
    %v9611 = vpop.f32.mrb[0].mxu0
    %9612 = vmatprep.mubr.bf16.mxu0 0
    %9613 = vmatmul.mubr.bf16.gmra.mrb[0].mxu0 %v9430
    %v9614 = vpop.f32.mrb[0].mxu0
    %v9615 = vadd.f32 0.0, %v9614
    %v9616 = vpop.f32.mrb[0].mxu0
    %v9617 = vpop.f32.mrb[0].mxu0
    %v9618 = vadd.f32 0.0, %v9617
    %v9619 = vpop.f32.mrb[0].mxu0
    %9620 = vmatprep.mubr.bf16.mxu0 0
    %9621 = vmatmul.mubr.bf16.gmra.mrb[0].mxu0 %v9431
    %v9622 = vpop.f32.mrb[0].mxu0
    %v9623 = vadd.f32 0.0, %v9622
    %v9624 = vpop.f32.mrb[0].mxu0
    %v9625 = vpop.f32.mrb[0].mxu0
    %v9626 = vadd.f32 0.0, %v9625
    %v9627 = vpop.f32.mrb[0].mxu0
    %9628 = vmatprep.mubr.bf16.mxu0 0
    %9629 = vmatmul.mubr.bf16.gmra.mrb[0].mxu0 %v9432
    %v9630 = vpop.f32.mrb[0].mxu0
    %v9631 = vadd.f32 0.0, %v9630
    %v9632 = vpop.f32.mrb[0].mxu0
    %v9633 = vpop.f32.mrb[0].mxu0
    %v9634 = vadd.f32 0.0, %v9633
    %v9635 = vpop.f32.mrb[0].mxu0
    %9636 = vmatprep.mubr.bf16.mxu0 0
    %9637 = vmatmul.mubr.bf16.gmra.mrb[0].mxu0 %v9433
    %v9638 = vpop.f32.mrb[0].mxu0
    %v9639 = vadd.f32 0.0, %v9638
    %v9640 = vpop.f32.mrb[0].mxu0
    %v9641 = vpop.f32.mrb[0].mxu0
    %v9642 = vadd.f32 0.0, %v9641
    %v9643 = vpop.f32.mrb[0].mxu0
    %9644 = vmatprep.mubr.bf16.mxu0 0
    %9645 = vmatmul.mubr.bf16.gmra.mrb[0].mxu0 %v9434
    %v9646 = vpop.f32.mrb[0].mxu0
    %v9647 = vadd.f32 0.0, %v9646
    %v9648 = vpop.f32.mrb[0].mxu0
    %v9649 = vpop.f32.mrb[0].mxu0
    %v9650 = vadd.f32 0.0, %v9649
    %v9651 = vpop.f32.mrb[0].mxu0
    %9652 = vmatprep.mubr.bf16.mxu0 0
    %9653 = vmatmul.mubr.bf16.gmra.mrb[0].mxu0 %v9435
    %v9654 = vpop.f32.mrb[0].mxu0
    %v9655 = vadd.f32 0.0, %v9654
    %v9656 = vpop.f32.mrb[0].mxu0
    %v9657 = vpop.f32.mrb[0].mxu0
    %v9658 = vadd.f32 0.0, %v9657
    %v9659 = vpop.f32.mrb[0].mxu0
    %9660 = vmatprep.mubr.bf16.mxu0 0
    %9661 = vmatmul.mubr.bf16.gmra.mrb[0].mxu0 %v9436
    %v9662 = vpop.f32.mrb[0].mxu0
    %v9663 = vadd.f32 0.0, %v9662
    %v9664 = vpop.f32.mrb[0].mxu0
    %v9665 = vpop.f32.mrb[0].mxu0
    %v9666 = vadd.f32 0.0, %v9665
    %v9667 = vpop.f32.mrb[0].mxu0
    %9668 = vmatprep.mubr.bf16.mxu0 0
    %9669 = vmatmul.mubr.bf16.gmra.mrb[0].mxu0 %v9437
    %v9670 = vpop.f32.mrb[0].mxu0
    %v9671 = vadd.f32 0.0, %v9670
    %v9672 = vpop.f32.mrb[0].mxu0
    %v9673 = vpop.f32.mrb[0].mxu0
    %v9674 = vadd.f32 0.0, %v9673
    %v9675 = vpop.f32.mrb[0].mxu0
    %9676 = vmatprep.mubr.bf16.mxu0 0
    %9677 = vmatmul.mubr.bf16.gmra.mrb[0].mxu0 %v9438
    %v9678 = vpop.f32.mrb[0].mxu0
    %v9679 = vadd.f32 0.0, %v9678
    %v9680 = vpop.f32.mrb[0].mxu0
    %v9681 = vpop.f32.mrb[0].mxu0
    %v9682 = vadd.f32 0.0, %v9681
    %v9683 = vpop.f32.mrb[0].mxu0
    %9684 = vmatprep.mubr.bf16.mxu0 0
    %9685 = vmatmul.mubr.bf16.gmra.mrb[0].mxu0 %v9439
    %v9686 = vpop.f32.mrb[0].mxu0
    %v9687 = vadd.f32 0.0, %v9686
    %v9688 = vpop.f32.mrb[0].mxu0
    %v9689 = vpop.f32.mrb[0].mxu0
    %v9690 = vadd.f32 0.0, %v9689
    %v9691 = vpop.f32.mrb[0].mxu0
    %9692 = vmatprep.mubr.bf16.mxu0 0
    %9693 = vmatmul.mubr.bf16.gmra.mrb[0].mxu0 %v9440
    %v9694 = vpop.f32.mrb[0].mxu0
    %v9695 = vadd.f32 0.0, %v9694
    %v9696 = vpop.f32.mrb[0].mxu0
    %v9697 = vpop.f32.mrb[0].mxu0
    %v9698 = vadd.f32 0.0, %v9697
    %v9699 = vpop.f32.mrb[0].mxu0
    %9700 = vmatprep.mubr.bf16.mxu0 0
    %9701 = vmatmul.mubr.bf16.gmra.mrb[0].mxu0 %v9441
    %v9702 = vpop.f32.mrb[0].mxu0
    %v9703 = vadd.f32 0.0, %v9702
    %v9704 = vpop.f32.mrb[0].mxu0
    %v9705 = vpop.f32.mrb[0].mxu0
    %v9706 = vadd.f32 0.0, %v9705
    %v9707 = vpop.f32.mrb[0].mxu0
    %9708 = vmatprep.mubr.bf16.mxu0 0
    %9709 = vmatmul.mubr.bf16.gmra.mrb[0].mxu0 %v9442
    %v9710 = vpop.f32.mrb[0].mxu0
    %v9711 = vadd.f32 0.0, %v9710
    %v9712 = vpop.f32.mrb[0].mxu0
    %v9713 = vpop.f32.mrb[0].mxu0
    %v9714 = vadd.f32 0.0, %v9713
    %v9715 = vpop.f32.mrb[0].mxu0
    %9716 = vmatprep.mubr.bf16.mxu0 0
    %9717 = vmatmul.mubr.bf16.gmra.mrb[0].mxu0 %v9443
    %v9718 = vpop.f32.mrb[0].mxu0
    %v9719 = vadd.f32 0.0, %v9718
    %v9720 = vpop.f32.mrb[0].mxu0
    %v9721 = vpop.f32.mrb[0].mxu0
    %v9722 = vadd.f32 0.0, %v9721
    %v9723 = vpop.f32.mrb[0].mxu0
    %9724 = vmatprep.mubr.bf16.mxu0 0
    %9725 = vmatmul.mubr.bf16.gmra.mrb[0].mxu0 %v9444
    %v9726 = vpop.f32.mrb[0].mxu0
    %v9727 = vadd.f32 0.0, %v9726
    %v9728 = vpop.f32.mrb[0].mxu0
    %v9729 = vpop.f32.mrb[0].mxu0
    %v9730 = vadd.f32 0.0, %v9729
    %v9731 = vpop.f32.mrb[0].mxu0
    %9732 = vmatprep.mubr.bf16.mxu0 0
    %9733 = vmatmul.mubr.bf16.gmra.mrb[0].mxu0 %v9445
    %v9734 = vpop.f32.mrb[0].mxu0
    %v9735 = vadd.f32 0.0, %v9734
    %v9736 = vpop.f32.mrb[0].mxu0
    %v9737 = vpop.f32.mrb[0].mxu0
    %v9738 = vadd.f32 0.0, %v9737
    %v9739 = vpop.f32.mrb[0].mxu0
    %9740 = vmatprep.mubr.bf16.mxu0 0
    %9741 = vmatmul.mubr.bf16.gmra.mrb[0].mxu0 %v9446
    %v9742 = vpop.f32.mrb[0].mxu0
    %v9743 = vadd.f32 0.0, %v9742
    %v9744 = vpop.f32.mrb[0].mxu0
    %v9745 = vpop.f32.mrb[0].mxu0
    %v9746 = vadd.f32 0.0, %v9745
    %v9747 = vpop.f32.mrb[0].mxu0
    %9748 = vmatprep.mubr.bf16.mxu0 0
    %9749 = vmatmul.mubr.bf16.gmra.mrb[0].mxu0 %v9447
    %v9750 = vpop.f32.mrb[0].mxu0
    %v9751 = vadd.f32 0.0, %v9750
    %v9752 = vpop.f32.mrb[0].mxu0
    %v9753 = vpop.f32.mrb[0].mxu0
    %v9754 = vadd.f32 0.0, %v9753
    %v9755 = vpop.f32.mrb[0].mxu0
    %9756 = vmatprep.mubr.bf16.mxu0 0
    %9757 = vmatmul.mubr.bf16.gmra.mrb[0].mxu0 %v9448
    %v9758 = vpop.f32.mrb[0].mxu0
    %v9759 = vadd.f32 0.0, %v9758
    %v9760 = vpop.f32.mrb[0].mxu0
    %v9761 = vpop.f32.mrb[0].mxu0
    %v9762 = vadd.f32 0.0, %v9761
    %v9763 = vpop.f32.mrb[0].mxu0
    %9764 = vmatprep.mubr.bf16.mxu0 0
    %9765 = vmatmul.mubr.bf16.gmra.mrb[0].mxu0 %v9449
    %v9766 = vpop.f32.mrb[0].mxu0
    %v9767 = vadd.f32 0.0, %v9766
    %v9768 = vpop.f32.mrb[0].mxu0
    %v9769 = vpop.f32.mrb[0].mxu0
    %v9770 = vadd.f32 0.0, %v9769
    %v9771 = vpop.f32.mrb[0].mxu0
    %9772 = vmatprep.mubr.bf16.mxu0 0
    %9773 = vmatmul.mubr.bf16.gmra.mrb[0].mxu0 %v9450
    %v9774 = vpop.f32.mrb[0].mxu0
    %v9775 = vadd.f32 0.0, %v9774
    %v9776 = vpop.f32.mrb[0].mxu0
    %v9777 = vpop.f32.mrb[0].mxu0
    %v9778 = vadd.f32 0.0, %v9777
    %v9779 = vpop.f32.mrb[0].mxu0
    %9780 = vmatprep.mubr.bf16.mxu0 0
    %9781 = vmatmul.mubr.bf16.gmra.mrb[0].mxu0 %v9451
    %v9782 = vpop.f32.mrb[0].mxu0
    %v9783 = vadd.f32 0.0, %v9782
    %v9784 = vpop.f32.mrb[0].mxu0
    %v9785 = vpop.f32.mrb[0].mxu0
    %v9786 = vadd.f32 0.0, %v9785
    %v9787 = vpop.f32.mrb[0].mxu0
    %9788 = vdwg.mxu0
    %v9789 = vadd.f32 %v9535, %v9538
    %v9790 = vadd.f32 %v9789, %v9543
    %v9791 = vadd.f32 %v9790, %v9546
    %v9792 = vadd.f32 %v9791, %v9551
    %v9793 = vadd.f32 %v9792, %v9554
    %v9794 = vadd.f32 %v9793, %v9559
    %v9795 = vadd.f32 %v9794, %v9562
    %v9796 = vadd.f32 %v9795, %v9567
    %v9797 = vadd.f32 %v9796, %v9570
    %v9798 = vadd.f32 %v9797, %v9575
    %v9799 = vadd.f32 %v9798, %v9578
    %v9800 = vadd.f32 %v9799, %v9583
    %v9801 = vadd.f32 %v9800, %v9586
    %v9802 = vadd.f32 %v9801, %v9591
    %v9803 = vadd.f32 %v9802, %v9594
    %v9804 = vadd.f32 %v9803, %v9599
    %v9805 = vadd.f32 %v9804, %v9602
    %v9806 = vadd.f32 %v9805, %v9607
    %v9807 = vadd.f32 %v9806, %v9610
    %v9808 = vadd.f32 %v9807, %v9615
    %v9809 = vadd.f32 %v9808, %v9618
    %v9810 = vadd.f32 %v9809, %v9623
    %v9811 = vadd.f32 %v9810, %v9626
    %v9812 = vadd.f32 %v9811, %v9631
    %v9813 = vadd.f32 %v9812, %v9634
    %v9814 = vadd.f32 %v9813, %v9639
    %v9815 = vadd.f32 %v9814, %v9642
    %v9816 = vadd.f32 %v9815, %v9647
    %v9817 = vadd.f32 %v9816, %v9650
    %v9818 = vadd.f32 %v9817, %v9655
    %v9819 = vadd.f32 %v9818, %v9658
    %v9820 = vadd.f32 %v9819, %v9663
    %v9821 = vadd.f32 %v9820, %v9666
    %v9822 = vadd.f32 %v9821, %v9671
    %v9823 = vadd.f32 %v9822, %v9674
    %v9824 = vadd.f32 %v9823, %v9679
    %v9825 = vadd.f32 %v9824, %v9682
    %v9826 = vadd.f32 %v9825, %v9687
    %v9827 = vadd.f32 %v9826, %v9690
    %v9828 = vadd.f32 %v9827, %v9695
    %v9829 = vadd.f32 %v9828, %v9698
    %v9830 = vadd.f32 %v9829, %v9703
    %v9831 = vadd.f32 %v9830, %v9706
    %v9832 = vadd.f32 %v9831, %v9711
    %v9833 = vadd.f32 %v9832, %v9714
    %v9834 = vadd.f32 %v9833, %v9719
    %v9835 = vadd.f32 %v9834, %v9722
    %v9836 = vadd.f32 %v9835, %v9727
    %v9837 = vadd.f32 %v9836, %v9730
    %v9838 = vadd.f32 %v9837, %v9735
    %v9839 = vadd.f32 %v9838, %v9738
    %v9840 = vadd.f32 %v9839, %v9743
    %v9841 = vadd.f32 %v9840, %v9746
    %v9842 = vadd.f32 %v9841, %v9751
    %v9843 = vadd.f32 %v9842, %v9754
    %v9844 = vadd.f32 %v9843, %v9759
    %v9845 = vadd.f32 %v9844, %v9762
    %v9846 = vadd.f32 %v9845, %v9767
    %v9847 = vadd.f32 %v9846, %v9770
    %v9848 = vadd.f32 %v9847, %v9775
    %v9849 = vadd.f32 %v9848, %v9778
    %v9850 = vadd.f32 %v9849, %v9783
    %v9851 = vadd.f32 %v9850, %v9786
    %v9852 = vrot.slane %v9851, 4
    %v9853 = vadd.f32 %v9851, %v9852
    %v9854 = vrot.slane %v9853, 2
    %v9855 = vadd.f32 %v9853, %v9854
    %v9856 = vrot.slane %v9855, 1
    %v9857 = vadd.f32 %v9855, %v9856
    %v9858 = vmul.f32 %v9857, 0.001953125
    %v9859 = vmul.f32 %v9535, %v9535
    %v9860 = vmul.f32 %v9538, %v9538
    %v9861 = vmul.f32 %v9543, %v9543
    %v9862 = vmul.f32 %v9546, %v9546
    %v9863 = vmul.f32 %v9551, %v9551
    %v9864 = vmul.f32 %v9554, %v9554
    %v9865 = vmul.f32 %v9559, %v9559
    %v9866 = vmul.f32 %v9562, %v9562
    %v9867 = vmul.f32 %v9567, %v9567
    %v9868 = vmul.f32 %v9570, %v9570
    %v9869 = vmul.f32 %v9575, %v9575
    %v9870 = vmul.f32 %v9578, %v9578
    %v9871 = vmul.f32 %v9583, %v9583
    %v9872 = vmul.f32 %v9586, %v9586
    %v9873 = vmul.f32 %v9591, %v9591
    %v9874 = vmul.f32 %v9594, %v9594
    %v9875 = vmul.f32 %v9599, %v9599
    %v9876 = vmul.f32 %v9602, %v9602
    %v9877 = vmul.f32 %v9607, %v9607
    %v9878 = vmul.f32 %v9610, %v9610
    %v9879 = vmul.f32 %v9615, %v9615
    %v9880 = vmul.f32 %v9618, %v9618
    %v9881 = vmul.f32 %v9623, %v9623
    %v9882 = vmul.f32 %v9626, %v9626
    %v9883 = vmul.f32 %v9631, %v9631
    %v9884 = vmul.f32 %v9634, %v9634
    %v9885 = vmul.f32 %v9639, %v9639
    %v9886 = vmul.f32 %v9642, %v9642
    %v9887 = vmul.f32 %v9647, %v9647
    %v9888 = vmul.f32 %v9650, %v9650
    %v9889 = vmul.f32 %v9655, %v9655
    %v9890 = vmul.f32 %v9658, %v9658
    %v9891 = vmul.f32 %v9663, %v9663
    %v9892 = vmul.f32 %v9666, %v9666
    %v9893 = vmul.f32 %v9671, %v9671
    %v9894 = vmul.f32 %v9674, %v9674
    %v9895 = vmul.f32 %v9679, %v9679
    %v9896 = vmul.f32 %v9682, %v9682
    %v9897 = vmul.f32 %v9687, %v9687
    %v9898 = vmul.f32 %v9690, %v9690
    %v9899 = vmul.f32 %v9695, %v9695
    %v9900 = vmul.f32 %v9698, %v9698
    %v9901 = vmul.f32 %v9703, %v9703
    %v9902 = vmul.f32 %v9706, %v9706
    %v9903 = vmul.f32 %v9711, %v9711
    %v9904 = vmul.f32 %v9714, %v9714
    %v9905 = vmul.f32 %v9719, %v9719
    %v9906 = vmul.f32 %v9722, %v9722
    %v9907 = vmul.f32 %v9727, %v9727
    %v9908 = vmul.f32 %v9730, %v9730
    %v9909 = vmul.f32 %v9735, %v9735
    %v9910 = vmul.f32 %v9738, %v9738
    %v9911 = vmul.f32 %v9743, %v9743
    %v9912 = vmul.f32 %v9746, %v9746
    %v9913 = vmul.f32 %v9751, %v9751
    %v9914 = vmul.f32 %v9754, %v9754
    %v9915 = vmul.f32 %v9759, %v9759
    %v9916 = vmul.f32 %v9762, %v9762
    %v9917 = vmul.f32 %v9767, %v9767
    %v9918 = vmul.f32 %v9770, %v9770
    %v9919 = vmul.f32 %v9775, %v9775
    %v9920 = vmul.f32 %v9778, %v9778
    %v9921 = vmul.f32 %v9783, %v9783
    %v9922 = vmul.f32 %v9786, %v9786
    %v9923 = vadd.f32 %v9859, %v9860
    %v9924 = vadd.f32 %v9923, %v9861
    %v9925 = vadd.f32 %v9924, %v9862
    %v9926 = vadd.f32 %v9925, %v9863
    %v9927 = vadd.f32 %v9926, %v9864
    %v9928 = vadd.f32 %v9927, %v9865
    %v9929 = vadd.f32 %v9928, %v9866
    %v9930 = vadd.f32 %v9929, %v9867
    %v9931 = vadd.f32 %v9930, %v9868
    %v9932 = vadd.f32 %v9931, %v9869
    %v9933 = vadd.f32 %v9932, %v9870
    %v9934 = vadd.f32 %v9933, %v9871
    %v9935 = vadd.f32 %v9934, %v9872
    %v9936 = vadd.f32 %v9935, %v9873
    %v9937 = vadd.f32 %v9936, %v9874
    %v9938 = vadd.f32 %v9937, %v9875
    %v9939 = vadd.f32 %v9938, %v9876
    %v9940 = vadd.f32 %v9939, %v9877
    %v9941 = vadd.f32 %v9940, %v9878
    %v9942 = vadd.f32 %v9941, %v9879
    %v9943 = vadd.f32 %v9942, %v9880
    %v9944 = vadd.f32 %v9943, %v9881
    %v9945 = vadd.f32 %v9944, %v9882
    %v9946 = vadd.f32 %v9945, %v9883
    %v9947 = vadd.f32 %v9946, %v9884
    %v9948 = vadd.f32 %v9947, %v9885
    %v9949 = vadd.f32 %v9948, %v9886
    %v9950 = vadd.f32 %v9949, %v9887
    %v9951 = vadd.f32 %v9950, %v9888
    %v9952 = vadd.f32 %v9951, %v9889
    %v9953 = vadd.f32 %v9952, %v9890
    %v9954 = vadd.f32 %v9953, %v9891
    %v9955 = vadd.f32 %v9954, %v9892
    %v9956 = vadd.f32 %v9955, %v9893
    %v9957 = vadd.f32 %v9956, %v9894
    %v9958 = vadd.f32 %v9957, %v9895
    %v9959 = vadd.f32 %v9958, %v9896
    %v9960 = vadd.f32 %v9959, %v9897
    %v9961 = vadd.f32 %v9960, %v9898
    %v9962 = vadd.f32 %v9961, %v9899
    %v9963 = vadd.f32 %v9962, %v9900
    %v9964 = vadd.f32 %v9963, %v9901
    %v9965 = vadd.f32 %v9964, %v9902
    %v9966 = vadd.f32 %v9965, %v9903
    %v9967 = vadd.f32 %v9966, %v9904
    %v9968 = vadd.f32 %v9967, %v9905
    %v9969 = vadd.f32 %v9968, %v9906
    %v9970 = vadd.f32 %v9969, %v9907
    %v9971 = vadd.f32 %v9970, %v9908
    %v9972 = vadd.f32 %v9971, %v9909
    %v9973 = vadd.f32 %v9972, %v9910
    %v9974 = vadd.f32 %v9973, %v9911
    %v9975 = vadd.f32 %v9974, %v9912
    %v9976 = vadd.f32 %v9975, %v9913
    %v9977 = vadd.f32 %v9976, %v9914
    %v9978 = vadd.f32 %v9977, %v9915
    %v9979 = vadd.f32 %v9978, %v9916
    %v9980 = vadd.f32 %v9979, %v9917
    %v9981 = vadd.f32 %v9980, %v9918
    %v9982 = vadd.f32 %v9981, %v9919
    %v9983 = vadd.f32 %v9982, %v9920
    %v9984 = vadd.f32 %v9983, %v9921
    %v9985 = vadd.f32 %v9984, %v9922
    %v9986 = vrot.slane %v9985, 4
    %v9987 = vadd.f32 %v9985, %v9986
    %v9988 = vrot.slane %v9987, 2
    %v9989 = vadd.f32 %v9987, %v9988
    %v9990 = vrot.slane %v9989, 1
    %v9991 = vadd.f32 %v9989, %v9990
    %v9992 = vmul.f32 %v9991, 0.001953125
    %v9993 = vmul.f32 %v9858, %v9858
    %v9994 = vsub.f32 %v9992, %v9993
    %v9995 = vmax.f32 %v9994, 0.0
    %v9996 = vadd.f32 %v9995, 1e-05
    %v9997 = vrsqrt.pop %v9996
    %v9998 = vmul.f32 %v9997, %v7388
    %v9999 = vmul.f32 %v9858, %v9998
    %v10000 = vsub.f32 %v7389, %v9999
    %v10001 = vlaneseq
    %v10002 = vshrl.u32 %v10001, 7
    %v10003 = vsub.s32 0, %v10002
    %v10004 = vrot.slane %v9998, %v10003
    %v10005 = vmul.f32 %v9535, %v10004
    %v10006 = vmul.f32 %v9538, %v10004
    %v10007 = vmul.f32 %v9543, %v10004
    %v10008 = vmul.f32 %v9546, %v10004
    %v10009 = vmul.f32 %v9551, %v10004
    %v10010 = vmul.f32 %v9554, %v10004
    %v10011 = vmul.f32 %v9559, %v10004
    %v10012 = vmul.f32 %v9562, %v10004
    %v10013 = vmul.f32 %v9567, %v10004
    %v10014 = vmul.f32 %v9570, %v10004
    %v10015 = vmul.f32 %v9575, %v10004
    %v10016 = vmul.f32 %v9578, %v10004
    %v10017 = vmul.f32 %v9583, %v10004
    %v10018 = vmul.f32 %v9586, %v10004
    %v10019 = vmul.f32 %v9591, %v10004
    %v10020 = vmul.f32 %v9594, %v10004
    %v10021 = vmul.f32 %v9599, %v10004
    %v10022 = vmul.f32 %v9602, %v10004
    %v10023 = vmul.f32 %v9607, %v10004
    %v10024 = vmul.f32 %v9610, %v10004
    %v10025 = vmul.f32 %v9615, %v10004
    %v10026 = vmul.f32 %v9618, %v10004
    %v10027 = vmul.f32 %v9623, %v10004
    %v10028 = vmul.f32 %v9626, %v10004
    %v10029 = vmul.f32 %v9631, %v10004
    %v10030 = vmul.f32 %v9634, %v10004
    %v10031 = vmul.f32 %v9639, %v10004
    %v10032 = vmul.f32 %v9642, %v10004
    %v10033 = vmul.f32 %v9647, %v10004
    %v10034 = vmul.f32 %v9650, %v10004
    %v10035 = vmul.f32 %v9655, %v10004
    %v10036 = vmul.f32 %v9658, %v10004
    %v10037 = vmul.f32 %v9663, %v10004
    %v10038 = vmul.f32 %v9666, %v10004
    %v10039 = vmul.f32 %v9671, %v10004
    %v10040 = vmul.f32 %v9674, %v10004
    %v10041 = vmul.f32 %v9679, %v10004
    %v10042 = vmul.f32 %v9682, %v10004
    %v10043 = vmul.f32 %v9687, %v10004
    %v10044 = vmul.f32 %v9690, %v10004
    %v10045 = vmul.f32 %v9695, %v10004
    %v10046 = vmul.f32 %v9698, %v10004
    %v10047 = vmul.f32 %v9703, %v10004
    %v10048 = vmul.f32 %v9706, %v10004
    %v10049 = vmul.f32 %v9711, %v10004
    %v10050 = vmul.f32 %v9714, %v10004
    %v10051 = vmul.f32 %v9719, %v10004
    %v10052 = vmul.f32 %v9722, %v10004
    %v10053 = vmul.f32 %v9727, %v10004
    %v10054 = vmul.f32 %v9730, %v10004
    %v10055 = vmul.f32 %v9735, %v10004
    %v10056 = vmul.f32 %v9738, %v10004
    %v10057 = vmul.f32 %v9743, %v10004
    %v10058 = vmul.f32 %v9746, %v10004
    %v10059 = vmul.f32 %v9751, %v10004
    %v10060 = vmul.f32 %v9754, %v10004
    %v10061 = vmul.f32 %v9759, %v10004
    %v10062 = vmul.f32 %v9762, %v10004
    %v10063 = vmul.f32 %v9767, %v10004
    %v10064 = vmul.f32 %v9770, %v10004
    %v10065 = vmul.f32 %v9775, %v10004
    %v10066 = vmul.f32 %v9778, %v10004
    %v10067 = vmul.f32 %v9783, %v10004
    %v10068 = vmul.f32 %v9786, %v10004
    %v10070 = vlaneseq
    %v10071 = vshrl.u32 %v10070, 7
    %v10072 = vsub.s32 0, %v10071
    %v10073 = vrot.slane %v10000, %v10072
    %v10075 = vadd.f32 %v10005, %v10073
    %v10076 = vadd.f32 %v10006, %v10073
    %v10077 = vadd.f32 %v10007, %v10073
    %v10078 = vadd.f32 %v10008, %v10073
    %v10079 = vadd.f32 %v10009, %v10073
    %v10080 = vadd.f32 %v10010, %v10073
    %v10081 = vadd.f32 %v10011, %v10073
    %v10082 = vadd.f32 %v10012, %v10073
    %v10083 = vadd.f32 %v10013, %v10073
    %v10084 = vadd.f32 %v10014, %v10073
    %v10085 = vadd.f32 %v10015, %v10073
    %v10086 = vadd.f32 %v10016, %v10073
    %v10087 = vadd.f32 %v10017, %v10073
    %v10088 = vadd.f32 %v10018, %v10073
    %v10089 = vadd.f32 %v10019, %v10073
    %v10090 = vadd.f32 %v10020, %v10073
    %v10091 = vadd.f32 %v10021, %v10073
    %v10092 = vadd.f32 %v10022, %v10073
    %v10093 = vadd.f32 %v10023, %v10073
    %v10094 = vadd.f32 %v10024, %v10073
    %v10095 = vadd.f32 %v10025, %v10073
    %v10096 = vadd.f32 %v10026, %v10073
    %v10097 = vadd.f32 %v10027, %v10073
    %v10098 = vadd.f32 %v10028, %v10073
    %v10099 = vadd.f32 %v10029, %v10073
    %v10100 = vadd.f32 %v10030, %v10073
    %v10101 = vadd.f32 %v10031, %v10073
    %v10102 = vadd.f32 %v10032, %v10073
    %v10103 = vadd.f32 %v10033, %v10073
    %v10104 = vadd.f32 %v10034, %v10073
    %v10105 = vadd.f32 %v10035, %v10073
    %v10106 = vadd.f32 %v10036, %v10073
    %v10107 = vadd.f32 %v10037, %v10073
    %v10108 = vadd.f32 %v10038, %v10073
    %v10109 = vadd.f32 %v10039, %v10073
    %v10110 = vadd.f32 %v10040, %v10073
    %v10111 = vadd.f32 %v10041, %v10073
    %v10112 = vadd.f32 %v10042, %v10073
    %v10113 = vadd.f32 %v10043, %v10073
    %v10114 = vadd.f32 %v10044, %v10073
    %v10115 = vadd.f32 %v10045, %v10073
    %v10116 = vadd.f32 %v10046, %v10073
    %v10117 = vadd.f32 %v10047, %v10073
    %v10118 = vadd.f32 %v10048, %v10073
    %v10119 = vadd.f32 %v10049, %v10073
    %v10120 = vadd.f32 %v10050, %v10073
    %v10121 = vadd.f32 %v10051, %v10073
    %v10122 = vadd.f32 %v10052, %v10073
    %v10123 = vadd.f32 %v10053, %v10073
    %v10124 = vadd.f32 %v10054, %v10073
    %v10125 = vadd.f32 %v10055, %v10073
    %v10126 = vadd.f32 %v10056, %v10073
    %v10127 = vadd.f32 %v10057, %v10073
    %v10128 = vadd.f32 %v10058, %v10073
    %v10129 = vadd.f32 %v10059, %v10073
    %v10130 = vadd.f32 %v10060, %v10073
    %v10131 = vadd.f32 %v10061, %v10073
    %v10132 = vadd.f32 %v10062, %v10073
    %v10133 = vadd.f32 %v10063, %v10073
    %v10134 = vadd.f32 %v10064, %v10073
    %v10135 = vadd.f32 %v10065, %v10073
    %v10136 = vadd.f32 %v10066, %v10073
    %v10137 = vadd.f32 %v10067, %v10073
    %v10138 = vadd.f32 %v10068, %v10073
    %v10139 = vmax.f32 %v10075, 0.0
    %v10140 = vmax.f32 %v10076, 0.0
    %v10141 = vmax.f32 %v10077, 0.0
    %v10142 = vmax.f32 %v10078, 0.0
    %v10143 = vmax.f32 %v10079, 0.0
    %v10144 = vmax.f32 %v10080, 0.0
    %v10145 = vmax.f32 %v10081, 0.0
    %v10146 = vmax.f32 %v10082, 0.0
    %v10147 = vmax.f32 %v10083, 0.0
    %v10148 = vmax.f32 %v10084, 0.0
    %v10149 = vmax.f32 %v10085, 0.0
    %v10150 = vmax.f32 %v10086, 0.0
    %v10151 = vmax.f32 %v10087, 0.0
    %v10152 = vmax.f32 %v10088, 0.0
    %v10153 = vmax.f32 %v10089, 0.0
    %v10154 = vmax.f32 %v10090, 0.0
    %v10155 = vmax.f32 %v10091, 0.0
    %v10156 = vmax.f32 %v10092, 0.0
    %v10157 = vmax.f32 %v10093, 0.0
    %v10158 = vmax.f32 %v10094, 0.0
    %v10159 = vmax.f32 %v10095, 0.0
    %v10160 = vmax.f32 %v10096, 0.0
    %v10161 = vmax.f32 %v10097, 0.0
    %v10162 = vmax.f32 %v10098, 0.0
    %v10163 = vmax.f32 %v10099, 0.0
    %v10164 = vmax.f32 %v10100, 0.0
    %v10165 = vmax.f32 %v10101, 0.0
    %v10166 = vmax.f32 %v10102, 0.0
    %v10167 = vmax.f32 %v10103, 0.0
    %v10168 = vmax.f32 %v10104, 0.0
    %v10169 = vmax.f32 %v10105, 0.0
    %v10170 = vmax.f32 %v10106, 0.0
    %v10171 = vmax.f32 %v10107, 0.0
    %v10172 = vmax.f32 %v10108, 0.0
    %v10173 = vmax.f32 %v10109, 0.0
    %v10174 = vmax.f32 %v10110, 0.0
    %v10175 = vmax.f32 %v10111, 0.0
    %v10176 = vmax.f32 %v10112, 0.0
    %v10177 = vmax.f32 %v10113, 0.0
    %v10178 = vmax.f32 %v10114, 0.0
    %v10179 = vmax.f32 %v10115, 0.0
    %v10180 = vmax.f32 %v10116, 0.0
    %v10181 = vmax.f32 %v10117, 0.0
    %v10182 = vmax.f32 %v10118, 0.0
    %v10183 = vmax.f32 %v10119, 0.0
    %v10184 = vmax.f32 %v10120, 0.0
    %v10185 = vmax.f32 %v10121, 0.0
    %v10186 = vmax.f32 %v10122, 0.0
    %v10187 = vmax.f32 %v10123, 0.0
    %v10188 = vmax.f32 %v10124, 0.0
    %v10189 = vmax.f32 %v10125, 0.0
    %v10190 = vmax.f32 %v10126, 0.0
    %v10191 = vmax.f32 %v10127, 0.0
    %v10192 = vmax.f32 %v10128, 0.0
    %v10193 = vmax.f32 %v10129, 0.0
    %v10194 = vmax.f32 %v10130, 0.0
    %v10195 = vmax.f32 %v10131, 0.0
    %v10196 = vmax.f32 %v10132, 0.0
    %v10197 = vmax.f32 %v10133, 0.0
    %v10198 = vmax.f32 %v10134, 0.0
    %v10199 = vmax.f32 %v10135, 0.0
    %v10200 = vmax.f32 %v10136, 0.0
    %v10201 = vmax.f32 %v10137, 0.0
    %v10202 = vmax.f32 %v10138, 0.0
    %10203 = vst [vmem:[#allocation2] sm:$0xff] %v10139
    %10204 = vst [vmem:[#allocation2 + $0x8] sm:$0xff] %v10140
    %10205 = vst [vmem:[#allocation2 + $0x10] sm:$0xff] %v10141
    %10206 = vst [vmem:[#allocation2 + $0x18] sm:$0xff] %v10142
    %10207 = vst [vmem:[#allocation2 + $0x20] sm:$0xff] %v10143
    %10208 = vst [vmem:[#allocation2 + $0x28] sm:$0xff] %v10144
    %10209 = vst [vmem:[#allocation2 + $0x30] sm:$0xff] %v10145
    %10210 = vst [vmem:[#allocation2 + $0x38] sm:$0xff] %v10146
    %10211 = vst [vmem:[#allocation2 + $0x40] sm:$0xff] %v10147
    %10212 = vst [vmem:[#allocation2 + $0x48] sm:$0xff] %v10148
    %10213 = vst [vmem:[#allocation2 + $0x50] sm:$0xff] %v10149
    %10214 = vst [vmem:[#allocation2 + $0x58] sm:$0xff] %v10150
    %10215 = vst [vmem:[#allocation2 + $0x60] sm:$0xff] %v10151
    %10216 = vst [vmem:[#allocation2 + $0x68] sm:$0xff] %v10152
    %10217 = vst [vmem:[#allocation2 + $0x70] sm:$0xff] %v10153
    %10218 = vst [vmem:[#allocation2 + $0x78] sm:$0xff] %v10154
    %10219 = vst [vmem:[#allocation2 + $0x80] sm:$0xff] %v10155
    %10220 = vst [vmem:[#allocation2 + $0x88] sm:$0xff] %v10156
    %10221 = vst [vmem:[#allocation2 + $0x90] sm:$0xff] %v10157
    %10222 = vst [vmem:[#allocation2 + $0x98] sm:$0xff] %v10158
    %10223 = vst [vmem:[#allocation2 + $0xa0] sm:$0xff] %v10159
    %10224 = vst [vmem:[#allocation2 + $0xa8] sm:$0xff] %v10160
    %10225 = vst [vmem:[#allocation2 + $0xb0] sm:$0xff] %v10161
    %10226 = vst [vmem:[#allocation2 + $0xb8] sm:$0xff] %v10162
    %10227 = vst [vmem:[#allocation2 + $0xc0] sm:$0xff] %v10163
    %10228 = vst [vmem:[#allocation2 + $0xc8] sm:$0xff] %v10164
    %10229 = vst [vmem:[#allocation2 + $0xd0] sm:$0xff] %v10165
    %10230 = vst [vmem:[#allocation2 + $0xd8] sm:$0xff] %v10166
    %10231 = vst [vmem:[#allocation2 + $0xe0] sm:$0xff] %v10167
    %10232 = vst [vmem:[#allocation2 + $0xe8] sm:$0xff] %v10168
    %10233 = vst [vmem:[#allocation2 + $0xf0] sm:$0xff] %v10169
    %10234 = vst [vmem:[#allocation2 + $0xf8] sm:$0xff] %v10170
    %10235 = vst [vmem:[#allocation2 + $0x100] sm:$0xff] %v10171
    %10236 = vst [vmem:[#allocation2 + $0x108] sm:$0xff] %v10172
    %10237 = vst [vmem:[#allocation2 + $0x110] sm:$0xff] %v10173
    %10238 = vst [vmem:[#allocation2 + $0x118] sm:$0xff] %v10174
    %10239 = vst [vmem:[#allocation2 + $0x120] sm:$0xff] %v10175
    %10240 = vst [vmem:[#allocation2 + $0x128] sm:$0xff] %v10176
    %10241 = vst [vmem:[#allocation2 + $0x130] sm:$0xff] %v10177
    %10242 = vst [vmem:[#allocation2 + $0x138] sm:$0xff] %v10178
    %10243 = vst [vmem:[#allocation2 + $0x140] sm:$0xff] %v10179
    %10244 = vst [vmem:[#allocation2 + $0x148] sm:$0xff] %v10180
    %10245 = vst [vmem:[#allocation2 + $0x150] sm:$0xff] %v10181
    %10246 = vst [vmem:[#allocation2 + $0x158] sm:$0xff] %v10182
    %10247 = vst [vmem:[#allocation2 + $0x160] sm:$0xff] %v10183
    %10248 = vst [vmem:[#allocation2 + $0x168] sm:$0xff] %v10184
    %10249 = vst [vmem:[#allocation2 + $0x170] sm:$0xff] %v10185
    %10250 = vst [vmem:[#allocation2 + $0x178] sm:$0xff] %v10186
    %10251 = vst [vmem:[#allocation2 + $0x180] sm:$0xff] %v10187
    %10252 = vst [vmem:[#allocation2 + $0x188] sm:$0xff] %v10188
    %10253 = vst [vmem:[#allocation2 + $0x190] sm:$0xff] %v10189
    %10254 = vst [vmem:[#allocation2 + $0x198] sm:$0xff] %v10190
    %10255 = vst [vmem:[#allocation2 + $0x1a0] sm:$0xff] %v10191
    %10256 = vst [vmem:[#allocation2 + $0x1a8] sm:$0xff] %v10192
    %10257 = vst [vmem:[#allocation2 + $0x1b0] sm:$0xff] %v10193
    %10258 = vst [vmem:[#allocation2 + $0x1b8] sm:$0xff] %v10194
    %10259 = vst [vmem:[#allocation2 + $0x1c0] sm:$0xff] %v10195
    %10260 = vst [vmem:[#allocation2 + $0x1c8] sm:$0xff] %v10196
    %10261 = vst [vmem:[#allocation2 + $0x1d0] sm:$0xff] %v10197
    %10262 = vst [vmem:[#allocation2 + $0x1d8] sm:$0xff] %v10198
    %10263 = vst [vmem:[#allocation2 + $0x1e0] sm:$0xff] %v10199
    %10264 = vst [vmem:[#allocation2 + $0x1e8] sm:$0xff] %v10200
    %10265 = vst [vmem:[#allocation2 + $0x1f0] sm:$0xff] %v10201
    %10266 = vst [vmem:[#allocation2 + $0x1f8] sm:$0xff] %v10202
    // Predicated region
    $region78: #{group_single_unit_xblock.1} parent=1 // pred_check
      _
    $region79: #{group_single_unit_xblock.1} parent=1 // pred_check_branch
      %10268 = sbr.rel (0) target = $region81
    $region80: #{group_single_unit_xblock.1} parent=1 // pred_region
      %s10270 = ssub.s32 8192, 8192
      %10271 = vsyncadd [#allocation3], %s10270
      %s10272 = sshll.u32 [#allocation2], 4
      %s10273 = int_to_ptr.vmem [resolvable:$true] %s10272
      %10278 = dma.vmem_to_hbm [thread:$0]  %s10273, 8192, %s19, [#allocation3], 128, 128, 8
    $region81: #{group_single_unit_xblock.1} parent=1 // pred_fallthru
      _
    // Predicated region
    $region82: #{group_single_unit_xblock.1} parent=1 // pred_check
      _
    $region83: #{group_single_unit_xblock.1} parent=1 // pred_check_branch
      %10280 = sbr.rel (0) target = $region85
    $region84: #{group_single_unit_xblock.1} parent=1 // pred_region
      %10281 = dma.done [#allocation3], 8192
    $region85: #{group_single_unit_xblock.1} parent=1 // pred_fallthru
      _
    %10282 = vsyncpa [#allocation3], 1

</llo_original>
